<compile_context>
chip_gen: v7x
topology: tpu7x:2x2x1
jax: 0.10.0
libtpu: 0.0.40
codegen_flags: <defaults>
</compile_context>

<pallas_src>
import math

import jax
import jax.numpy as jnp
from jax.experimental import pallas as pl
from jax.experimental.pallas import tpu as pltpu

C_IN = 256                      # decoder_ol input channels (fixed by CGModule)
OUT_DIMS = (512, 512, 256, 2)   # PointNet(out_dims=[512, 512, 256, 2], cls=True)
MAX_TN = 512                    # point-tile upper bound (multiple of 128)


def _cg_kernel(x_ref,
               w0_ref, b0_ref, w1_ref, b1_ref, w2_ref, b2_ref, w3_ref, b3_ref,
               logits_ref, masked_ref):
    """One (batch, point-tile): 4 pointwise convs (+ReLU on all but last),
    channel-argmax, and masked input features.  Everything is transposed
    (channels x points) so no layout change is needed outside the kernel."""
    x = x_ref[...]                               # (C_IN, TN) float32
    xb = x.astype(jnp.bfloat16)

    h = jnp.dot(w0_ref[...], xb,
                preferred_element_type=jnp.float32) + b0_ref[...]        # (512, TN)
    h = jnp.maximum(h, 0.0)
    h = jnp.dot(w1_ref[...], h.astype(jnp.bfloat16),
                preferred_element_type=jnp.float32) + b1_ref[...]        # (512, TN)
    h = jnp.maximum(h, 0.0)
    h = jnp.dot(w2_ref[...], h.astype(jnp.bfloat16),
                preferred_element_type=jnp.float32) + b2_ref[...]        # (256, TN)
    h = jnp.maximum(h, 0.0)
    logits = jnp.dot(w3_ref[...], h.astype(jnp.bfloat16),
                     preferred_element_type=jnp.float32) + b3_ref[...]   # (2, TN)

    logits_ref[...] = logits.astype(logits_ref.dtype)

    # argmax over the 2 channels -> {0, 1}; ties -> index 0 (matches torch.argmax).
    mask = (logits[1:2, :] > logits[0:1, :]).astype(x.dtype)             # (1, TN)
    masked_ref[...] = x * mask


def _choose_tile(n):
    assert n % 128 == 0, "number of points must be a multiple of 128"
    return math.gcd(n, MAX_TN)


def pointnet_decode_and_mask(x_ncl, params):
    """x_ncl: (B, 256, N) float32 (PyTorch NCL layout).
    Returns (logits (B, 2, N), masked_feature (B, 256, N)) — same layout, no transposes."""
    B, C, N = x_ncl.shape
    assert C == C_IN
    tn = _choose_tile(N)
    grid = (B, N // tn)

    weights = [w.astype(jnp.bfloat16) for (w, _) in params]   # MXU operands in bf16
    biases = [b for (_, b) in params]                          # bias stays f32
    w0, w1, w2, w3 = weights
    b0, b1, b2, b3 = biases

    def const_spec(shape):
        zeros = (0,) * len(shape)
        return pl.BlockSpec(shape, lambda b, n: zeros)         # weights resident across grid

    flops = 2 * B * N * sum(ci * co for ci, co in
                            zip((C_IN,) + OUT_DIMS[:-1], OUT_DIMS))
    bytes_accessed = (B * N * C_IN * 4                 # input features
                      + B * N * (C_IN + 2) * 4         # masked features + logits
                      + sum(w.size * 2 + b.size * 4 for w, b in zip(weights, biases)))

    logits, masked = pl.pallas_call(
        _cg_kernel,
        out_shape=(
            jax.ShapeDtypeStruct((B, 2, N), jnp.float32),
            jax.ShapeDtypeStruct((B, C_IN, N), jnp.float32),
        ),
        grid_spec=pltpu.PrefetchScalarGridSpec(
            num_scalar_prefetch=0,
            grid=grid,
            in_specs=[
                pl.BlockSpec((None, C_IN, tn), lambda b, n: (b, 0, n)),
                const_spec(w0.shape), const_spec(b0.shape),
                const_spec(w1.shape), const_spec(b1.shape),
                const_spec(w2.shape), const_spec(b2.shape),
                const_spec(w3.shape), const_spec(b3.shape),
            ],
            out_specs=[
                pl.BlockSpec((None, 2, tn), lambda b, n: (b, 0, n)),
                pl.BlockSpec((None, C_IN, tn), lambda b, n: (b, 0, n)),
            ],
        ),
        compiler_params=pltpu.CompilerParams(
            dimension_semantics=("parallel", "parallel"),
            vmem_limit_bytes=32 * 1024 * 1024),
        cost_estimate=pl.CostEstimate(
            flops=flops, transcendentals=0, bytes_accessed=bytes_accessed),
    )(x_ncl, w0, b0, w1, b1, w2, b2, w3, b3)

    return logits, masked


def cg_module_forward(src_feature, tgt_feature, params):
    """CGModule.forward: returns (x_ol, y_ol, src_mask_feature, tgt_mask_feature)."""
    if src_feature.shape == tgt_feature.shape:
        # Fuse src & tgt into one pallas_call: weights DMA'd once, 2x grid work
        # (keeps both v7x TensorCores busy), one launch.
        B = src_feature.shape[0]
        stacked = jnp.concatenate([src_feature, tgt_feature], axis=0)
        logits, masked = pointnet_decode_and_mask(stacked, params)
        return logits[:B], logits[B:], masked[:B], masked[B:]
    # Different point counts: fall back to two calls.
    x_ol, src_masked = pointnet_decode_and_mask(src_feature, params)
    y_ol, tgt_masked = pointnet_decode_and_mask(tgt_feature, params)
    return x_ol, y_ol, src_masked, tgt_masked


def init_params(key):
    """Deterministic params. Weights in torch Conv1d layout (C_out, C_in); bias (C_out, 1)."""
    params = []
    c_in = C_IN
    for c_out in OUT_DIMS:
        key, kw, kb = jax.random.split(key, 3)
        bound = 1.0 / math.sqrt(c_in)
        w = jax.random.uniform(kw, (c_out, c_in), jnp.float32, -bound, bound)
        b = jax.random.uniform(kb, (c_out, 1), jnp.float32, -bound, bound)
        params.append((w, b))
        c_in = c_out
    return params


def _ref_decode_and_mask(x_ncl, params):
    """Pure-JAX reference with the same bf16-matmul / f32-accumulate numerics."""
    h = x_ncl
    last = len(params) - 1
    for i, (w, b) in enumerate(params):
        h = jnp.einsum('oc,bcn->bon', w.astype(jnp.bfloat16),
                       h.astype(jnp.bfloat16),
                       preferred_element_type=jnp.float32) + b
        if i != last:
            h = jnp.maximum(h, 0.0)
    mask = jnp.argmax(h, axis=1)[:, None, :].astype(x_ncl.dtype)
    return h, x_ncl * mask


if __name__ == "__main__":
    key = jax.random.PRNGKey(0)
    kp, ks, kt = jax.random.split(key, 3)

    params = init_params(kp)

    B, N = 2, 512
    src_feature = jax.random.normal(ks, (B, C_IN, N), jnp.float32)
    tgt_feature = jax.random.normal(kt, (B, C_IN, N), jnp.float32)

    fwd = jax.jit(lambda s, t: cg_module_forward(s, t, params))
    x_ol, y_ol, src_mask_feature, tgt_mask_feature = jax.block_until_ready(
        fwd(src_feature, tgt_feature))

    assert x_ol.shape == (B, 2, N)
    assert y_ol.shape == (B, 2, N)
    assert src_mask_feature.shape == (B, C_IN, N)
    assert tgt_mask_feature.shape == (B, C_IN, N)

    # Correctness check against a pure-JAX reference with matching numerics.
    ref_x_ol, ref_src_masked = _ref_decode_and_mask(src_feature, params)
    ref_y_ol, ref_tgt_masked = _ref_decode_and_mask(tgt_feature, params)
    assert jnp.allclose(x_ol, ref_x_ol, rtol=1e-3, atol=1e-3)
    assert jnp.allclose(y_ol, ref_y_ol, rtol=1e-3, atol=1e-3)
    assert jnp.allclose(src_mask_feature, ref_src_masked, rtol=1e-3, atol=1e-3)
    assert jnp.allclose(tgt_mask_feature, ref_tgt_masked, rtol=1e-3, atol=1e-3)

    print("KERNEL_OK")
</pallas_src>

<mosaic_0001>
module attributes {stable_mosaic.version = 11 : i64} {
  func.func @_cg_kernel(%arg0: i32, %arg1: i32, %arg2: memref<1x256x512xf32, #tpu.memory_space<vmem>>, %arg3: memref<512x256xbf16, #tpu.memory_space<vmem>>, %arg4: memref<512x1xf32, #tpu.memory_space<vmem>>, %arg5: memref<512x512xbf16, #tpu.memory_space<vmem>>, %arg6: memref<512x1xf32, #tpu.memory_space<vmem>>, %arg7: memref<256x512xbf16, #tpu.memory_space<vmem>>, %arg8: memref<256x1xf32, #tpu.memory_space<vmem>>, %arg9: memref<2x256xbf16, #tpu.memory_space<vmem>>, %arg10: memref<2x1xf32, #tpu.memory_space<vmem>>, %arg11: memref<1x2x512xf32, #tpu.memory_space<vmem>>, %arg12: memref<1x256x512xf32, #tpu.memory_space<vmem>>) attributes {dimension_semantics = [#tpu.dimension_semantics<parallel>, #tpu.dimension_semantics<parallel>], iteration_bounds = array<i64: 4, 1>, scalar_prefetch = 0 : i64, scratch_operands = 0 : i64, tpu.core_type = #tpu.core_type<tc>, window_params = [{transform_indices = @transform_0, window_bounds = array<i64: 1, 256, 512>}, {pipeline_mode = #tpu.pipeline_mode<synchronous>, transform_indices = @transform_1, window_bounds = array<i64: 512, 256>}, {pipeline_mode = #tpu.pipeline_mode<synchronous>, transform_indices = @transform_2, window_bounds = array<i64: 512, 1>}, {pipeline_mode = #tpu.pipeline_mode<synchronous>, transform_indices = @transform_3, window_bounds = array<i64: 512, 512>}, {pipeline_mode = #tpu.pipeline_mode<synchronous>, transform_indices = @transform_4, window_bounds = array<i64: 512, 1>}, {pipeline_mode = #tpu.pipeline_mode<synchronous>, transform_indices = @transform_5, window_bounds = array<i64: 256, 512>}, {pipeline_mode = #tpu.pipeline_mode<synchronous>, transform_indices = @transform_6, window_bounds = array<i64: 256, 1>}, {pipeline_mode = #tpu.pipeline_mode<synchronous>, transform_indices = @transform_7, window_bounds = array<i64: 2, 256>}, {pipeline_mode = #tpu.pipeline_mode<synchronous>, transform_indices = @transform_8, window_bounds = array<i64: 2, 1>}, {transform_indices = @transform_9, window_bounds = array<i64: 1, 2, 512>}, {transform_indices = @transform_10, window_bounds = array<i64: 1, 256, 512>}]} {
    %c0 = arith.constant 0 : index
    %c0_0 = arith.constant 0 : index
    %c0_1 = arith.constant 0 : index
    %0 = vector.load %arg2[%c0, %c0_0, %c0_1] : memref<1x256x512xf32, #tpu.memory_space<vmem>>, vector<1x256x512xf32>
    %1 = vector.shape_cast %0 : vector<1x256x512xf32> to vector<256x512xf32>
    %2 = arith.truncf %1 : vector<256x512xf32> to vector<256x512xbf16>
    %c0_2 = arith.constant 0 : index
    %c0_3 = arith.constant 0 : index
    %3 = vector.load %arg3[%c0_2, %c0_3] : memref<512x256xbf16, #tpu.memory_space<vmem>>, vector<512x256xbf16>
    %cst = arith.constant dense<0.000000e+00> : vector<512x512xf32>
    %4 = tpu.matmul %3, %2, %cst {dimension_numbers = #tpu.dot_dimension_numbers<[1], [0], [0], [1], [0, 0, 1, 1], [], []>} : vector<512x256xbf16>, vector<256x512xbf16>, vector<512x512xf32> -> vector<512x512xf32>
    %c0_4 = arith.constant 0 : index
    %c0_5 = arith.constant 0 : index
    %5 = vector.load %arg4[%c0_4, %c0_5] : memref<512x1xf32, #tpu.memory_space<vmem>>, vector<512x1xf32>
    %6 = vector.broadcast %5 : vector<512x1xf32> to vector<512x512xf32>
    %7 = arith.addf %4, %6 : vector<512x512xf32>
    %cst_6 = arith.constant 0.000000e+00 : f32
    %8 = vector.broadcast %cst_6 : f32 to vector<512x512xf32>
    %9 = arith.maximumf %7, %8 : vector<512x512xf32>
    %c0_7 = arith.constant 0 : index
    %c0_8 = arith.constant 0 : index
    %10 = vector.load %arg5[%c0_7, %c0_8] : memref<512x512xbf16, #tpu.memory_space<vmem>>, vector<512x512xbf16>
    %11 = arith.truncf %9 : vector<512x512xf32> to vector<512x512xbf16>
    %cst_9 = arith.constant dense<0.000000e+00> : vector<512x512xf32>
    %12 = tpu.matmul %10, %11, %cst_9 {dimension_numbers = #tpu.dot_dimension_numbers<[1], [0], [0], [1], [0, 0, 1, 1], [], []>} : vector<512x512xbf16>, vector<512x512xbf16>, vector<512x512xf32> -> vector<512x512xf32>
    %c0_10 = arith.constant 0 : index
    %c0_11 = arith.constant 0 : index
    %13 = vector.load %arg6[%c0_10, %c0_11] : memref<512x1xf32, #tpu.memory_space<vmem>>, vector<512x1xf32>
    %14 = vector.broadcast %13 : vector<512x1xf32> to vector<512x512xf32>
    %15 = arith.addf %12, %14 : vector<512x512xf32>
    %cst_12 = arith.constant 0.000000e+00 : f32
    %16 = vector.broadcast %cst_12 : f32 to vector<512x512xf32>
    %17 = arith.maximumf %15, %16 : vector<512x512xf32>
    %c0_13 = arith.constant 0 : index
    %c0_14 = arith.constant 0 : index
    %18 = vector.load %arg7[%c0_13, %c0_14] : memref<256x512xbf16, #tpu.memory_space<vmem>>, vector<256x512xbf16>
    %19 = arith.truncf %17 : vector<512x512xf32> to vector<512x512xbf16>
    %cst_15 = arith.constant dense<0.000000e+00> : vector<256x512xf32>
    %20 = tpu.matmul %18, %19, %cst_15 {dimension_numbers = #tpu.dot_dimension_numbers<[1], [0], [0], [1], [0, 0, 1, 1], [], []>} : vector<256x512xbf16>, vector<512x512xbf16>, vector<256x512xf32> -> vector<256x512xf32>
    %c0_16 = arith.constant 0 : index
    %c0_17 = arith.constant 0 : index
    %21 = vector.load %arg8[%c0_16, %c0_17] : memref<256x1xf32, #tpu.memory_space<vmem>>, vector<256x1xf32>
    %22 = vector.broadcast %21 : vector<256x1xf32> to vector<256x512xf32>
    %23 = arith.addf %20, %22 : vector<256x512xf32>
    %cst_18 = arith.constant 0.000000e+00 : f32
    %24 = vector.broadcast %cst_18 : f32 to vector<256x512xf32>
    %25 = arith.maximumf %23, %24 : vector<256x512xf32>
    %c0_19 = arith.constant 0 : index
    %c0_20 = arith.constant 0 : index
    %26 = vector.load %arg9[%c0_19, %c0_20] : memref<2x256xbf16, #tpu.memory_space<vmem>>, vector<2x256xbf16>
    %27 = arith.truncf %25 : vector<256x512xf32> to vector<256x512xbf16>
    %cst_21 = arith.constant dense<0.000000e+00> : vector<2x512xf32>
    %28 = tpu.matmul %26, %27, %cst_21 {dimension_numbers = #tpu.dot_dimension_numbers<[1], [0], [0], [1], [0, 0, 1, 1], [], []>} : vector<2x256xbf16>, vector<256x512xbf16>, vector<2x512xf32> -> vector<2x512xf32>
    %c0_22 = arith.constant 0 : index
    %c0_23 = arith.constant 0 : index
    %29 = vector.load %arg10[%c0_22, %c0_23] : memref<2x1xf32, #tpu.memory_space<vmem>>, vector<2x1xf32>
    %30 = vector.broadcast %29 : vector<2x1xf32> to vector<2x512xf32>
    %31 = arith.addf %28, %30 : vector<2x512xf32>
    %c0_24 = arith.constant 0 : index
    %c0_25 = arith.constant 0 : index
    %c0_26 = arith.constant 0 : index
    %32 = vector.load %arg11[%c0_24, %c0_25, %c0_26] : memref<1x2x512xf32, #tpu.memory_space<vmem>>, vector<1x2x512xf32>
    %33 = vector.shape_cast %32 : vector<1x2x512xf32> to vector<2x512xf32>
    %34 = vector.shape_cast %31 : vector<2x512xf32> to vector<1x2x512xf32>
    tpu.vector_store %arg11[%c0_24, %c0_25, %c0_26], %34 {strides = array<i32>} : memref<1x2x512xf32, #tpu.memory_space<vmem>>, vector<1x2x512xf32>,
    %35 = vector.extract_strided_slice %31 {offsets = [1, 0], sizes = [1, 512], strides = [1, 1]} : vector<2x512xf32> to vector<1x512xf32>
    %36 = vector.extract_strided_slice %31 {offsets = [0, 0], sizes = [1, 512], strides = [1, 1]} : vector<2x512xf32> to vector<1x512xf32>
    %37 = arith.cmpf ogt, %35, %36 : vector<1x512xf32>
    %38 = arith.extui %37 : vector<1x512xi1> to vector<1x512xi32>
    %39 = arith.sitofp %38 : vector<1x512xi32> to vector<1x512xf32>
    %40 = vector.broadcast %39 : vector<1x512xf32> to vector<256x512xf32>
    %41 = arith.mulf %1, %40 : vector<256x512xf32>
    %c0_27 = arith.constant 0 : index
    %c0_28 = arith.constant 0 : index
    %c0_29 = arith.constant 0 : index
    %42 = vector.load %arg12[%c0_27, %c0_28, %c0_29] : memref<1x256x512xf32, #tpu.memory_space<vmem>>, vector<1x256x512xf32>
    %43 = vector.shape_cast %42 : vector<1x256x512xf32> to vector<256x512xf32>
    %44 = vector.shape_cast %41 : vector<256x512xf32> to vector<1x256x512xf32>
    tpu.vector_store %arg12[%c0_27, %c0_28, %c0_29], %44 {strides = array<i32>} : memref<1x256x512xf32, #tpu.memory_space<vmem>>, vector<1x256x512xf32>,
    return
  }
  func.func @transform_0(%arg0: i32, %arg1: i32) -> (i32, i32, i32) {
    %c0_i32 = arith.constant 0 : i32
    %c0_i32_0 = arith.constant 0 : i32
    return %arg0, %c0_i32, %arg1 : i32, i32, i32
  }
  func.func @transform_1(%arg0: i32, %arg1: i32) -> (i32, i32) {
    %c0_i32 = arith.constant 0 : i32
    %c0_i32_0 = arith.constant 0 : i32
    %c0_i32_1 = arith.constant 0 : i32
    return %c0_i32, %c0_i32_0 : i32, i32
  }
  func.func @transform_2(%arg0: i32, %arg1: i32) -> (i32, i32) {
    %c0_i32 = arith.constant 0 : i32
    %c0_i32_0 = arith.constant 0 : i32
    %c0_i32_1 = arith.constant 0 : i32
    return %c0_i32, %c0_i32_0 : i32, i32
  }
  func.func @transform_3(%arg0: i32, %arg1: i32) -> (i32, i32) {
    %c0_i32 = arith.constant 0 : i32
    %c0_i32_0 = arith.constant 0 : i32
    %c0_i32_1 = arith.constant 0 : i32
    return %c0_i32, %c0_i32_0 : i32, i32
  }
  func.func @transform_4(%arg0: i32, %arg1: i32) -> (i32, i32) {
    %c0_i32 = arith.constant 0 : i32
    %c0_i32_0 = arith.constant 0 : i32
    %c0_i32_1 = arith.constant 0 : i32
    return %c0_i32, %c0_i32_0 : i32, i32
  }
  func.func @transform_5(%arg0: i32, %arg1: i32) -> (i32, i32) {
    %c0_i32 = arith.constant 0 : i32
    %c0_i32_0 = arith.constant 0 : i32
    %c0_i32_1 = arith.constant 0 : i32
    return %c0_i32, %c0_i32_0 : i32, i32
  }
  func.func @transform_6(%arg0: i32, %arg1: i32) -> (i32, i32) {
    %c0_i32 = arith.constant 0 : i32
    %c0_i32_0 = arith.constant 0 : i32
    %c0_i32_1 = arith.constant 0 : i32
    return %c0_i32, %c0_i32_0 : i32, i32
  }
  func.func @transform_7(%arg0: i32, %arg1: i32) -> (i32, i32) {
    %c0_i32 = arith.constant 0 : i32
    %c0_i32_0 = arith.constant 0 : i32
    %c0_i32_1 = arith.constant 0 : i32
    return %c0_i32, %c0_i32_0 : i32, i32
  }
  func.func @transform_8(%arg0: i32, %arg1: i32) -> (i32, i32) {
    %c0_i32 = arith.constant 0 : i32
    %c0_i32_0 = arith.constant 0 : i32
    %c0_i32_1 = arith.constant 0 : i32
    return %c0_i32, %c0_i32_0 : i32, i32
  }
  func.func @transform_9(%arg0: i32, %arg1: i32) -> (i32, i32, i32) {
    %c0_i32 = arith.constant 0 : i32
    %c0_i32_0 = arith.constant 0 : i32
    return %arg0, %c0_i32, %arg1 : i32, i32, i32
  }
  func.func @transform_10(%arg0: i32, %arg1: i32) -> (i32, i32, i32) {
    %c0_i32 = arith.constant 0 : i32
    %c0_i32_0 = arith.constant 0 : i32
    return %arg0, %c0_i32, %arg1 : i32, i32, i32
  }
}

</mosaic_0001>

<llo_original>
// kernel: _lambda_.1
$region0: #{_lambda_.1}
  #allocation0 [shape = 'u32[]', space=smem, size = 0x4, offset = 0x4, fixed_abs, tag = 'smem constant byte address 0x4 - core index']
  #allocation1 [shape = 'u32[144,128]{1,0:T(1,128)}', space=vmem, size = 0x12000, scoped, tag = 'internal scratch']
  %s0 = inlined_call_operand.vmem [shape: f32[4,256,512], index: 0, kind: input, shape index: {}]
  %s1 = inlined_call_operand.vmem [shape: bf16[512,256], index: 1, kind: input, shape index: {}]
  %s2 = inlined_call_operand.vmem [shape: f32[512,1], index: 2, kind: input, shape index: {}]
  %s3 = inlined_call_operand.vmem [shape: bf16[512,512], index: 3, kind: input, shape index: {}]
  %s4 = inlined_call_operand.vmem [shape: f32[512,1], index: 4, kind: input, shape index: {}]
  %s5 = inlined_call_operand.vmem [shape: bf16[256,512], index: 5, kind: input, shape index: {}]
  %s6 = inlined_call_operand.vmem [shape: f32[256,1], index: 6, kind: input, shape index: {}]
  %s7 = inlined_call_operand.vmem [shape: bf16[2,256], index: 7, kind: input, shape index: {}]
  %s8 = inlined_call_operand.vmem [shape: f32[2,1], index: 8, kind: input, shape index: {}]
  %s9 = inlined_call_operand.vmem [shape: f32[4,2,512], index: 9, kind: output, shape index: {0}]
  %s10 = inlined_call_operand.vmem [shape: f32[4,256,512], index: 10, kind: output, shape index: {1}]
  %11 = xla_tuple %s9, %s10
  %s12 = sld [smem:[#allocation0]]
  $region77: #{_lambda_.1} parent=0
    _
  %s14 = ssub.s32 1, %s12
  %s15 = scalar_select 0, %s14, %s12
  loop: start=0, step=1, limit=6
  $region2: #{_lambda_.1} parent=0 // loop_pre_header
    _
  $region3: #{_lambda_.1} parent=0 // loop_header
    %s17 = sphi 0, %s21
    %p18 = scmp.ge.s32.totalorder %s17, 6
    %s24 = sphi 0, %s36
    %s25 = sphi 0, %s32
    %s26 = sphi 0, %s24
    %s27 = sphi 0, %s25
    %s28 = sphi 0, %s26
    %s29 = sphi 0, %s27
    %s41 = sphi 0, %s43
    %s44 = sphi 0, %s41
    %s45 = sphi 0, %s44
    %s61 = sphi 0, %s45
    %s65 = sphi 0, %s65
    %s67 = sphi 0, %s65
    %s68 = sphi 0, %s67
    %s82 = sphi 0, %s68
    %s86 = sphi 0, %s86
    %s88 = sphi 0, %s86
    %s89 = sphi 0, %s88
    %s103 = sphi 0, %s89
    %s107 = sphi 0, %s107
    %s109 = sphi 0, %s107
    %s110 = sphi 0, %s109
    %s124 = sphi 0, %s110
    %s128 = sphi 0, %s128
    %s130 = sphi 0, %s128
    %s131 = sphi 0, %s130
    %s145 = sphi 0, %s131
    %s149 = sphi 0, %s149
    %s151 = sphi 0, %s149
    %s152 = sphi 0, %s151
    %s166 = sphi 0, %s152
    %s170 = sphi 0, %s170
    %s172 = sphi 0, %s170
    %s173 = sphi 0, %s172
    %s187 = sphi 0, %s173
    %s191 = sphi 0, %s191
    %s193 = sphi 0, %s191
    %s194 = sphi 0, %s193
    %s208 = sphi 0, %s194
    %s212 = sphi 0, %s212
    %s214 = sphi 0, %s212
    %s215 = sphi 0, %s214
    %s229 = sphi 0, %s215
    %s237 = sphi 0, %s239
    %s240 = sphi 0, %s237
    %s241 = sphi 0, %s240
    %s257 = sphi 0, %s241
    %s265 = sphi 0, %s267
    %s268 = sphi 0, %s265
    %s269 = sphi 0, %s268
    %s285 = sphi 0, %s269
  $region4: #{_lambda_.1} parent=0 // loop_header_branch
    %20 = sbr.rel (%p18) target = $region8
  $region5: #{_lambda_.1} parent=0 // loop_body
    %s22 = ssub.s32 %s17, 1
    %s23 = ssub.s32 %s17, 2
    %s30 = sadd.s32 1, %s25
    %p31 = scmp.ge.s32.totalorder %s30, 1
    %s32 = scalar_select %p31, 0, %s30
    %s33 = sadd.s32 1, %s24
    %s34 = scalar_select %p31, %s33, %s24
    %p35 = scmp.ge.s32.totalorder %s34, 4
    %s36 = scalar_select %p35, 0, %s34
    %s37 = ssub.s32 %s24, %s36
    %s38 = ssub.s32 %s25, %s32
    %s39 = sor.u32 %s37, %s38
    %p40 = scmp.eq.s32.totalorder %s39, 0
    %s42 = sadd.s32 %s41, 1
    %s43 = scalar_select %p40, %s41, %s42
    %p46 = pneg %p40
    %p47 = scmp.eq.s32.totalorder %s17, 3
    %p48 = por %p46, %p47
    %p49 = scmp.ne.s32.totalorder %s41, %s44
    %p50 = scmp.eq.s32.totalorder %s17, 0
    %p51 = por %p49, %p50
    %p52 = scmp.ne.s32.totalorder %s41, %s44
    %p53 = scmp.eq.s32.totalorder %s22, 3
    %p54 = por %p52, %p53
    %p55 = scmp.ne.s32.totalorder %s44, %s45
    %p56 = scmp.eq.s32.totalorder %s22, 0
    %p57 = por %p55, %p56
    %p58 = scmp.ne.s32.totalorder %s44, %s45
    %p59 = scmp.eq.s32.totalorder %s23, 3
    %p60 = por %p58, %p59
    %p62 = scmp.ne.s32.totalorder %s45, %s61
    %p63 = scmp.eq.s32.totalorder %s23, 0
    %p64 = por %p62, %p63
    %s66 = sadd.s32 %s65, 1
    %p69 = scmp.eq.s32.totalorder %s17, 3
    %p70 = scmp.ne.s32.totalorder %s65, %s67
    %p71 = scmp.eq.s32.totalorder %s17, 0
    %p72 = por %p70, %p71
    %p73 = scmp.ne.s32.totalorder %s65, %s67
    %p74 = scmp.eq.s32.totalorder %s22, 3
    %p75 = por %p73, %p74
    %p76 = scmp.ne.s32.totalorder %s67, %s68
    %p77 = scmp.eq.s32.totalorder %s22, 0
    %p78 = por %p76, %p77
    %p79 = scmp.ne.s32.totalorder %s67, %s68
    %p80 = scmp.eq.s32.totalorder %s23, 3
    %p81 = por %p79, %p80
    %p83 = scmp.ne.s32.totalorder %s68, %s82
    %p84 = scmp.eq.s32.totalorder %s23, 0
    %p85 = por %p83, %p84
    %s87 = sadd.s32 %s86, 1
    %p90 = scmp.eq.s32.totalorder %s17, 3
    %p91 = scmp.ne.s32.totalorder %s86, %s88
    %p92 = scmp.eq.s32.totalorder %s17, 0
    %p93 = por %p91, %p92
    %p94 = scmp.ne.s32.totalorder %s86, %s88
    %p95 = scmp.eq.s32.totalorder %s22, 3
    %p96 = por %p94, %p95
    %p97 = scmp.ne.s32.totalorder %s88, %s89
    %p98 = scmp.eq.s32.totalorder %s22, 0
    %p99 = por %p97, %p98
    %p100 = scmp.ne.s32.totalorder %s88, %s89
    %p101 = scmp.eq.s32.totalorder %s23, 3
    %p102 = por %p100, %p101
    %p104 = scmp.ne.s32.totalorder %s89, %s103
    %p105 = scmp.eq.s32.totalorder %s23, 0
    %p106 = por %p104, %p105
    %s108 = sadd.s32 %s107, 1
    %p111 = scmp.eq.s32.totalorder %s17, 3
    %p112 = scmp.ne.s32.totalorder %s107, %s109
    %p113 = scmp.eq.s32.totalorder %s17, 0
    %p114 = por %p112, %p113
    %p115 = scmp.ne.s32.totalorder %s107, %s109
    %p116 = scmp.eq.s32.totalorder %s22, 3
    %p117 = por %p115, %p116
    %p118 = scmp.ne.s32.totalorder %s109, %s110
    %p119 = scmp.eq.s32.totalorder %s22, 0
    %p120 = por %p118, %p119
    %p121 = scmp.ne.s32.totalorder %s109, %s110
    %p122 = scmp.eq.s32.totalorder %s23, 3
    %p123 = por %p121, %p122
    %p125 = scmp.ne.s32.totalorder %s110, %s124
    %p126 = scmp.eq.s32.totalorder %s23, 0
    %p127 = por %p125, %p126
    %s129 = sadd.s32 %s128, 1
    %p132 = scmp.eq.s32.totalorder %s17, 3
    %p133 = scmp.ne.s32.totalorder %s128, %s130
    %p134 = scmp.eq.s32.totalorder %s17, 0
    %p135 = por %p133, %p134
    %p136 = scmp.ne.s32.totalorder %s128, %s130
    %p137 = scmp.eq.s32.totalorder %s22, 3
    %p138 = por %p136, %p137
    %p139 = scmp.ne.s32.totalorder %s130, %s131
    %p140 = scmp.eq.s32.totalorder %s22, 0
    %p141 = por %p139, %p140
    %p142 = scmp.ne.s32.totalorder %s130, %s131
    %p143 = scmp.eq.s32.totalorder %s23, 3
    %p144 = por %p142, %p143
    %p146 = scmp.ne.s32.totalorder %s131, %s145
    %p147 = scmp.eq.s32.totalorder %s23, 0
    %p148 = por %p146, %p147
    %s150 = sadd.s32 %s149, 1
    %p153 = scmp.eq.s32.totalorder %s17, 3
    %p154 = scmp.ne.s32.totalorder %s149, %s151
    %p155 = scmp.eq.s32.totalorder %s17, 0
    %p156 = por %p154, %p155
    %p157 = scmp.ne.s32.totalorder %s149, %s151
    %p158 = scmp.eq.s32.totalorder %s22, 3
    %p159 = por %p157, %p158
    %p160 = scmp.ne.s32.totalorder %s151, %s152
    %p161 = scmp.eq.s32.totalorder %s22, 0
    %p162 = por %p160, %p161
    %p163 = scmp.ne.s32.totalorder %s151, %s152
    %p164 = scmp.eq.s32.totalorder %s23, 3
    %p165 = por %p163, %p164
    %p167 = scmp.ne.s32.totalorder %s152, %s166
    %p168 = scmp.eq.s32.totalorder %s23, 0
    %p169 = por %p167, %p168
    %s171 = sadd.s32 %s170, 1
    %p174 = scmp.eq.s32.totalorder %s17, 3
    %p175 = scmp.ne.s32.totalorder %s170, %s172
    %p176 = scmp.eq.s32.totalorder %s17, 0
    %p177 = por %p175, %p176
    %p178 = scmp.ne.s32.totalorder %s170, %s172
    %p179 = scmp.eq.s32.totalorder %s22, 3
    %p180 = por %p178, %p179
    %p181 = scmp.ne.s32.totalorder %s172, %s173
    %p182 = scmp.eq.s32.totalorder %s22, 0
    %p183 = por %p181, %p182
    %p184 = scmp.ne.s32.totalorder %s172, %s173
    %p185 = scmp.eq.s32.totalorder %s23, 3
    %p186 = por %p184, %p185
    %p188 = scmp.ne.s32.totalorder %s173, %s187
    %p189 = scmp.eq.s32.totalorder %s23, 0
    %p190 = por %p188, %p189
    %s192 = sadd.s32 %s191, 1
    %p195 = scmp.eq.s32.totalorder %s17, 3
    %p196 = scmp.ne.s32.totalorder %s191, %s193
    %p197 = scmp.eq.s32.totalorder %s17, 0
    %p198 = por %p196, %p197
    %p199 = scmp.ne.s32.totalorder %s191, %s193
    %p200 = scmp.eq.s32.totalorder %s22, 3
    %p201 = por %p199, %p200
    %p202 = scmp.ne.s32.totalorder %s193, %s194
    %p203 = scmp.eq.s32.totalorder %s22, 0
    %p204 = por %p202, %p203
    %p205 = scmp.ne.s32.totalorder %s193, %s194
    %p206 = scmp.eq.s32.totalorder %s23, 3
    %p207 = por %p205, %p206
    %p209 = scmp.ne.s32.totalorder %s194, %s208
    %p210 = scmp.eq.s32.totalorder %s23, 0
    %p211 = por %p209, %p210
    %s213 = sadd.s32 %s212, 1
    %p216 = scmp.eq.s32.totalorder %s17, 3
    %p217 = scmp.ne.s32.totalorder %s212, %s214
    %p218 = scmp.eq.s32.totalorder %s17, 0
    %p219 = por %p217, %p218
    %p220 = scmp.ne.s32.totalorder %s212, %s214
    %p221 = scmp.eq.s32.totalorder %s22, 3
    %p222 = por %p220, %p221
    %p223 = scmp.ne.s32.totalorder %s214, %s215
    %p224 = scmp.eq.s32.totalorder %s22, 0
    %p225 = por %p223, %p224
    %p226 = scmp.ne.s32.totalorder %s214, %s215
    %p227 = scmp.eq.s32.totalorder %s23, 3
    %p228 = por %p226, %p227
    %p230 = scmp.ne.s32.totalorder %s215, %s229
    %p231 = scmp.eq.s32.totalorder %s23, 0
    %p232 = por %p230, %p231
    %s233 = ssub.s32 %s24, %s36
    %s234 = ssub.s32 %s25, %s32
    %s235 = sor.u32 %s233, %s234
    %p236 = scmp.eq.s32.totalorder %s235, 0
    %s238 = sadd.s32 %s237, 1
    %s239 = scalar_select %p236, %s237, %s238
    %p242 = pneg %p236
    %p243 = scmp.eq.s32.totalorder %s17, 3
    %p244 = por %p242, %p243
    %p245 = scmp.ne.s32.totalorder %s237, %s240
    %p246 = scmp.eq.s32.totalorder %s17, 0
    %p247 = por %p245, %p246
    %p248 = scmp.ne.s32.totalorder %s237, %s240
    %p249 = scmp.eq.s32.totalorder %s22, 3
    %p250 = por %p248, %p249
    %p251 = scmp.ne.s32.totalorder %s240, %s241
    %p252 = scmp.eq.s32.totalorder %s22, 0
    %p253 = por %p251, %p252
    %p254 = scmp.ne.s32.totalorder %s240, %s241
    %p255 = scmp.eq.s32.totalorder %s23, 3
    %p256 = por %p254, %p255
    %p258 = scmp.ne.s32.totalorder %s241, %s257
    %p259 = scmp.eq.s32.totalorder %s23, 0
    %p260 = por %p258, %p259
    %s261 = ssub.s32 %s24, %s36
    %s262 = ssub.s32 %s25, %s32
    %s263 = sor.u32 %s261, %s262
    %p264 = scmp.eq.s32.totalorder %s263, 0
    %s266 = sadd.s32 %s265, 1
    %s267 = scalar_select %p264, %s265, %s266
    %p270 = pneg %p264
    %p271 = scmp.eq.s32.totalorder %s17, 3
    %p272 = por %p270, %p271
    %p273 = scmp.ne.s32.totalorder %s265, %s268
    %p274 = scmp.eq.s32.totalorder %s17, 0
    %p275 = por %p273, %p274
    %p276 = scmp.ne.s32.totalorder %s265, %s268
    %p277 = scmp.eq.s32.totalorder %s22, 3
    %p278 = por %p276, %p277
    %p279 = scmp.ne.s32.totalorder %s268, %s269
    %p280 = scmp.eq.s32.totalorder %s22, 0
    %p281 = por %p279, %p280
    %p282 = scmp.ne.s32.totalorder %s268, %s269
    %p283 = scmp.eq.s32.totalorder %s23, 3
    %p284 = por %p282, %p283
    %p286 = scmp.ne.s32.totalorder %s269, %s285
    %p287 = scmp.eq.s32.totalorder %s23, 0
    %p288 = por %p286, %p287
    %p289 = scmp.le.s32.totalorder 1, %s17
    %p290 = scmp.lt.s32.totalorder %s17, 5
    %p291 = pnand %p289, %p290
    %p292 = pneg %p291
    // Predicated region
    $region9: #{_lambda_.1} parent=5 // pred_check
      _
    $region10: #{_lambda_.1} parent=5 // pred_check_branch
      %294 = sbr.rel (%p291) target = $region12
    $region11: #{_lambda_.1} parent=5 // pred_region
      %s295 = ssub.s32 %s17, 1
      // Predicated region
      $region13: #{_lambda_.1} parent=11 // pred_check
        %p296 = pneg %p78
      $region14: #{_lambda_.1} parent=11 // pred_check_branch
        %298 = sbr.rel (%p296) target = $region16
      $region15: #{_lambda_.1} parent=11 // pred_region
        _
      $region16: #{_lambda_.1} parent=11 // pred_fallthru
        _
      // Predicated region
      $region17: #{_lambda_.1} parent=11 // pred_check
        %p299 = pneg %p99
      $region18: #{_lambda_.1} parent=11 // pred_check_branch
        %301 = sbr.rel (%p299) target = $region20
      $region19: #{_lambda_.1} parent=11 // pred_region
        _
      $region20: #{_lambda_.1} parent=11 // pred_fallthru
        _
      // Predicated region
      $region21: #{_lambda_.1} parent=11 // pred_check
        %p302 = pneg %p120
      $region22: #{_lambda_.1} parent=11 // pred_check_branch
        %304 = sbr.rel (%p302) target = $region24
      $region23: #{_lambda_.1} parent=11 // pred_region
        _
      $region24: #{_lambda_.1} parent=11 // pred_fallthru
        _
      // Predicated region
      $region25: #{_lambda_.1} parent=11 // pred_check
        %p305 = pneg %p141
      $region26: #{_lambda_.1} parent=11 // pred_check_branch
        %307 = sbr.rel (%p305) target = $region28
      $region27: #{_lambda_.1} parent=11 // pred_region
        _
      $region28: #{_lambda_.1} parent=11 // pred_fallthru
        _
      // Predicated region
      $region29: #{_lambda_.1} parent=11 // pred_check
        %p308 = pneg %p162
      $region30: #{_lambda_.1} parent=11 // pred_check_branch
        %310 = sbr.rel (%p308) target = $region32
      $region31: #{_lambda_.1} parent=11 // pred_region
        _
      $region32: #{_lambda_.1} parent=11 // pred_fallthru
        _
      // Predicated region
      $region33: #{_lambda_.1} parent=11 // pred_check
        %p311 = pneg %p183
      $region34: #{_lambda_.1} parent=11 // pred_check_branch
        %313 = sbr.rel (%p311) target = $region36
      $region35: #{_lambda_.1} parent=11 // pred_region
        _
      $region36: #{_lambda_.1} parent=11 // pred_fallthru
        _
      // Predicated region
      $region37: #{_lambda_.1} parent=11 // pred_check
        %p314 = pneg %p204
      $region38: #{_lambda_.1} parent=11 // pred_check_branch
        %316 = sbr.rel (%p314) target = $region40
      $region39: #{_lambda_.1} parent=11 // pred_region
        _
      $region40: #{_lambda_.1} parent=11 // pred_fallthru
        _
      // Predicated region
      $region41: #{_lambda_.1} parent=11 // pred_check
        %p317 = pneg %p225
      $region42: #{_lambda_.1} parent=11 // pred_check_branch
        %319 = sbr.rel (%p317) target = $region44
      $region43: #{_lambda_.1} parent=11 // pred_region
        _
      $region44: #{_lambda_.1} parent=11 // pred_fallthru
        _
    $region12: #{_lambda_.1} parent=5 // pred_fallthru
      _
    %p320 = scmp.lt.s32.totalorder %s17, 4
    // Predicated region
    $region45: #{_lambda_.1} parent=5 // pred_check
      %p321 = pneg %p320
    $region46: #{_lambda_.1} parent=5 // pred_check_branch
      %323 = sbr.rel (%p321) target = $region48
    $region47: #{_lambda_.1} parent=5 // pred_region
      // Predicated region
      $region49: #{_lambda_.1} parent=47 // pred_check
        %p324 = pneg %p51
      $region50: #{_lambda_.1} parent=47 // pred_check_branch
        %326 = sbr.rel (%p324) target = $region52
      $region51: #{_lambda_.1} parent=47 // pred_region
        %s327 = smul.u32 4, %s25
        %p328 = scmp.lt.s32.totalorder %s24, 3
        %s329 = scalar_select %p328, %s24, 3
        %p330 = scmp.lt.s32.totalorder %s327, 3
        %s331 = scalar_select %p330, %s327, 3
        %s332 = smul.addr %s329, 128
        %s333 = sadd.s32 %s331, %s332
        %s334 = smul.addr %s333, 8
        %s335 = scalar_lea.vmem %s0, %s334
        %s336 = smul.u32 4, %s25
      $region52: #{_lambda_.1} parent=47 // pred_fallthru
        _
    $region48: #{_lambda_.1} parent=5 // pred_fallthru
      _
    %p337 = scmp.le.s32.totalorder 1, %s17
    %p338 = scmp.lt.s32.totalorder %s17, 5
    %p339 = pnand %p337, %p338
    %p340 = pneg %p339
    // Predicated region
    $region53: #{_lambda_.1} parent=5 // pred_check
      _
    $region54: #{_lambda_.1} parent=5 // pred_check_branch
      %342 = sbr.rel (%p339) target = $region56
    $region55: #{_lambda_.1} parent=5 // pred_region
      %s343 = ssub.s32 %s17, 1
      %s344 = smul.u32 4, %s27
      %p345 = scmp.lt.s32.totalorder %s26, 3
      %s346 = scalar_select %p345, %s26, 3
      %p347 = scmp.lt.s32.totalorder %s344, 3
      %s348 = scalar_select %p347, %s344, 3
      %s349 = smul.addr %s346, 128
      %s350 = sadd.s32 %s348, %s349
      %s351 = smul.addr %s350, 8
      %s352 = scalar_lea.vmem %s0, %s351
      %p353 = pneg %p57
      %p354 = pneg %p54
      %p355 = pneg %p78
      %p356 = pneg %p75
      %p357 = pneg %p99
      %p358 = pneg %p96
      %p359 = pneg %p120
      %p360 = pneg %p117
      %p361 = pneg %p141
      %p362 = pneg %p138
      %p363 = pneg %p162
      %p364 = pneg %p159
      %p365 = pneg %p183
      %p366 = pneg %p180
      %p367 = pneg %p204
      %p368 = pneg %p201
      %p369 = pneg %p225
      %p370 = pneg %p222
      %p371 = pneg %p253
      %p372 = pneg %p250
      %s373 = smul.u32 4, %s27
      %p374 = scmp.lt.s32.totalorder %s26, 3
      %s375 = scalar_select %p374, %s26, 3
      %p376 = scmp.lt.s32.totalorder %s373, 3
      %s377 = scalar_select %p376, %s373, 3
      %s378 = smul.addr %s375, 4
      %s379 = sadd.s32 %s377, %s378
      %s380 = smul.addr %s379, 2
      %s381 = scalar_lea.vmem %s9, %s380
      %p382 = pneg %p281
      %p383 = pneg %p278
      %s384 = smul.u32 4, %s27
      %p385 = scmp.lt.s32.totalorder %s26, 3
      %s386 = scalar_select %p385, %s26, 3
      %p387 = scmp.lt.s32.totalorder %s384, 3
      %s388 = scalar_select %p387, %s384, 3
      %s389 = smul.addr %s386, 128
      %s390 = sadd.s32 %s388, %s389
      %s391 = smul.addr %s390, 8
      %s392 = scalar_lea.vmem %s10, %s391
      %s393 = smul.u32 4, %s27
      %p394 = scmp.lt.s32.totalorder %s26, 3
      %s395 = scalar_select %p394, %s26, 3
      %p396 = scmp.lt.s32.totalorder %s393, 3
      %s397 = scalar_select %p396, %s393, 3
      %s398 = smul.addr %s395, 128
      %s399 = sadd.s32 %s397, %s398
      %s400 = smul.addr %s399, 8
      %s401 = scalar_lea.vmem %s0, %s400
      %s402 = smul.u32 4, %s27
      %s403 = smul.u32 4, %s27
      %p404 = scmp.lt.s32.totalorder %s26, 3
      %s405 = scalar_select %p404, %s26, 3
      %p406 = scmp.lt.s32.totalorder %s403, 3
      %s407 = scalar_select %p406, %s403, 3
      %s408 = smul.addr %s405, 4
      %s409 = sadd.s32 %s407, %s408
      %s410 = smul.addr %s409, 2
      %s411 = scalar_lea.vmem %s9, %s410
      %s412 = smul.u32 4, %s27
      %s413 = smul.u32 4, %s27
      %p414 = scmp.lt.s32.totalorder %s26, 3
      %s415 = scalar_select %p414, %s26, 3
      %p416 = scmp.lt.s32.totalorder %s413, 3
      %s417 = scalar_select %p416, %s413, 3
      %s418 = smul.addr %s415, 128
      %s419 = sadd.s32 %s417, %s418
      %s420 = smul.addr %s419, 8
      %s421 = scalar_lea.vmem %s10, %s420
      %s422 = smul.u32 4, %s27
      %v423 = vld [vmem:[%s401] sm:$0xff]
      %v424 = vld [vmem:[%s401 + $0x8] sm:$0xff]
      %v425 = vld [vmem:[%s401 + $0x10] sm:$0xff]
      %v426 = vld [vmem:[%s401 + $0x18] sm:$0xff]
      %v427 = vld [vmem:[%s401 + $0x20] sm:$0xff]
      %v428 = vld [vmem:[%s401 + $0x28] sm:$0xff]
      %v429 = vld [vmem:[%s401 + $0x30] sm:$0xff]
      %v430 = vld [vmem:[%s401 + $0x38] sm:$0xff]
      %v431 = vld [vmem:[%s401 + $0x40] sm:$0xff]
      %v432 = vld [vmem:[%s401 + $0x48] sm:$0xff]
      %v433 = vld [vmem:[%s401 + $0x50] sm:$0xff]
      %v434 = vld [vmem:[%s401 + $0x58] sm:$0xff]
      %v435 = vld [vmem:[%s401 + $0x60] sm:$0xff]
      %v436 = vld [vmem:[%s401 + $0x68] sm:$0xff]
      %v437 = vld [vmem:[%s401 + $0x70] sm:$0xff]
      %v438 = vld [vmem:[%s401 + $0x78] sm:$0xff]
      %v439 = vld [vmem:[%s401 + $0x80] sm:$0xff]
      %v440 = vld [vmem:[%s401 + $0x88] sm:$0xff]
      %v441 = vld [vmem:[%s401 + $0x90] sm:$0xff]
      %v442 = vld [vmem:[%s401 + $0x98] sm:$0xff]
      %v443 = vld [vmem:[%s401 + $0xa0] sm:$0xff]
      %v444 = vld [vmem:[%s401 + $0xa8] sm:$0xff]
      %v445 = vld [vmem:[%s401 + $0xb0] sm:$0xff]
      %v446 = vld [vmem:[%s401 + $0xb8] sm:$0xff]
      %v447 = vld [vmem:[%s401 + $0xc0] sm:$0xff]
      %v448 = vld [vmem:[%s401 + $0xc8] sm:$0xff]
      %v449 = vld [vmem:[%s401 + $0xd0] sm:$0xff]
      %v450 = vld [vmem:[%s401 + $0xd8] sm:$0xff]
      %v451 = vld [vmem:[%s401 + $0xe0] sm:$0xff]
      %v452 = vld [vmem:[%s401 + $0xe8] sm:$0xff]
      %v453 = vld [vmem:[%s401 + $0xf0] sm:$0xff]
      %v454 = vld [vmem:[%s401 + $0xf8] sm:$0xff]
      %v455 = vld [vmem:[%s401 + $0x100] sm:$0xff]
      %v456 = vld [vmem:[%s401 + $0x108] sm:$0xff]
      %v457 = vld [vmem:[%s401 + $0x110] sm:$0xff]
      %v458 = vld [vmem:[%s401 + $0x118] sm:$0xff]
      %v459 = vld [vmem:[%s401 + $0x120] sm:$0xff]
      %v460 = vld [vmem:[%s401 + $0x128] sm:$0xff]
      %v461 = vld [vmem:[%s401 + $0x130] sm:$0xff]
      %v462 = vld [vmem:[%s401 + $0x138] sm:$0xff]
      %v463 = vld [vmem:[%s401 + $0x140] sm:$0xff]
      %v464 = vld [vmem:[%s401 + $0x148] sm:$0xff]
      %v465 = vld [vmem:[%s401 + $0x150] sm:$0xff]
      %v466 = vld [vmem:[%s401 + $0x158] sm:$0xff]
      %v467 = vld [vmem:[%s401 + $0x160] sm:$0xff]
      %v468 = vld [vmem:[%s401 + $0x168] sm:$0xff]
      %v469 = vld [vmem:[%s401 + $0x170] sm:$0xff]
      %v470 = vld [vmem:[%s401 + $0x178] sm:$0xff]
      %v471 = vld [vmem:[%s401 + $0x180] sm:$0xff]
      %v472 = vld [vmem:[%s401 + $0x188] sm:$0xff]
      %v473 = vld [vmem:[%s401 + $0x190] sm:$0xff]
      %v474 = vld [vmem:[%s401 + $0x198] sm:$0xff]
      %v475 = vld [vmem:[%s401 + $0x1a0] sm:$0xff]
      %v476 = vld [vmem:[%s401 + $0x1a8] sm:$0xff]
      %v477 = vld [vmem:[%s401 + $0x1b0] sm:$0xff]
      %v478 = vld [vmem:[%s401 + $0x1b8] sm:$0xff]
      %v479 = vld [vmem:[%s401 + $0x1c0] sm:$0xff]
      %v480 = vld [vmem:[%s401 + $0x1c8] sm:$0xff]
      %v481 = vld [vmem:[%s401 + $0x1d0] sm:$0xff]
      %v482 = vld [vmem:[%s401 + $0x1d8] sm:$0xff]
      %v483 = vld [vmem:[%s401 + $0x1e0] sm:$0xff]
      %v484 = vld [vmem:[%s401 + $0x1e8] sm:$0xff]
      %v485 = vld [vmem:[%s401 + $0x1f0] sm:$0xff]
      %v486 = vld [vmem:[%s401 + $0x1f8] sm:$0xff]
      %v487 = vld [vmem:[%s401 + $0x200] sm:$0xff]
      %v488 = vld [vmem:[%s401 + $0x208] sm:$0xff]
      %v489 = vld [vmem:[%s401 + $0x210] sm:$0xff]
      %v490 = vld [vmem:[%s401 + $0x218] sm:$0xff]
      %v491 = vld [vmem:[%s401 + $0x220] sm:$0xff]
      %v492 = vld [vmem:[%s401 + $0x228] sm:$0xff]
      %v493 = vld [vmem:[%s401 + $0x230] sm:$0xff]
      %v494 = vld [vmem:[%s401 + $0x238] sm:$0xff]
      %v495 = vld [vmem:[%s401 + $0x240] sm:$0xff]
      %v496 = vld [vmem:[%s401 + $0x248] sm:$0xff]
      %v497 = vld [vmem:[%s401 + $0x250] sm:$0xff]
      %v498 = vld [vmem:[%s401 + $0x258] sm:$0xff]
      %v499 = vld [vmem:[%s401 + $0x260] sm:$0xff]
      %v500 = vld [vmem:[%s401 + $0x268] sm:$0xff]
      %v501 = vld [vmem:[%s401 + $0x270] sm:$0xff]
      %v502 = vld [vmem:[%s401 + $0x278] sm:$0xff]
      %v503 = vld [vmem:[%s401 + $0x280] sm:$0xff]
      %v504 = vld [vmem:[%s401 + $0x288] sm:$0xff]
      %v505 = vld [vmem:[%s401 + $0x290] sm:$0xff]
      %v506 = vld [vmem:[%s401 + $0x298] sm:$0xff]
      %v507 = vld [vmem:[%s401 + $0x2a0] sm:$0xff]
      %v508 = vld [vmem:[%s401 + $0x2a8] sm:$0xff]
      %v509 = vld [vmem:[%s401 + $0x2b0] sm:$0xff]
      %v510 = vld [vmem:[%s401 + $0x2b8] sm:$0xff]
      %v511 = vld [vmem:[%s401 + $0x2c0] sm:$0xff]
      %v512 = vld [vmem:[%s401 + $0x2c8] sm:$0xff]
      %v513 = vld [vmem:[%s401 + $0x2d0] sm:$0xff]
      %v514 = vld [vmem:[%s401 + $0x2d8] sm:$0xff]
      %v515 = vld [vmem:[%s401 + $0x2e0] sm:$0xff]
      %v516 = vld [vmem:[%s401 + $0x2e8] sm:$0xff]
      %v517 = vld [vmem:[%s401 + $0x2f0] sm:$0xff]
      %v518 = vld [vmem:[%s401 + $0x2f8] sm:$0xff]
      %v519 = vld [vmem:[%s401 + $0x300] sm:$0xff]
      %v520 = vld [vmem:[%s401 + $0x308] sm:$0xff]
      %v521 = vld [vmem:[%s401 + $0x310] sm:$0xff]
      %v522 = vld [vmem:[%s401 + $0x318] sm:$0xff]
      %v523 = vld [vmem:[%s401 + $0x320] sm:$0xff]
      %v524 = vld [vmem:[%s401 + $0x328] sm:$0xff]
      %v525 = vld [vmem:[%s401 + $0x330] sm:$0xff]
      %v526 = vld [vmem:[%s401 + $0x338] sm:$0xff]
      %v527 = vld [vmem:[%s401 + $0x340] sm:$0xff]
      %v528 = vld [vmem:[%s401 + $0x348] sm:$0xff]
      %v529 = vld [vmem:[%s401 + $0x350] sm:$0xff]
      %v530 = vld [vmem:[%s401 + $0x358] sm:$0xff]
      %v531 = vld [vmem:[%s401 + $0x360] sm:$0xff]
      %v532 = vld [vmem:[%s401 + $0x368] sm:$0xff]
      %v533 = vld [vmem:[%s401 + $0x370] sm:$0xff]
      %v534 = vld [vmem:[%s401 + $0x378] sm:$0xff]
      %v535 = vld [vmem:[%s401 + $0x380] sm:$0xff]
      %v536 = vld [vmem:[%s401 + $0x388] sm:$0xff]
      %v537 = vld [vmem:[%s401 + $0x390] sm:$0xff]
      %v538 = vld [vmem:[%s401 + $0x398] sm:$0xff]
      %v539 = vld [vmem:[%s401 + $0x3a0] sm:$0xff]
      %v540 = vld [vmem:[%s401 + $0x3a8] sm:$0xff]
      %v541 = vld [vmem:[%s401 + $0x3b0] sm:$0xff]
      %v542 = vld [vmem:[%s401 + $0x3b8] sm:$0xff]
      %v543 = vld [vmem:[%s401 + $0x3c0] sm:$0xff]
      %v544 = vld [vmem:[%s401 + $0x3c8] sm:$0xff]
      %v545 = vld [vmem:[%s401 + $0x3d0] sm:$0xff]
      %v546 = vld [vmem:[%s401 + $0x3d8] sm:$0xff]
      %v547 = vld [vmem:[%s401 + $0x3e0] sm:$0xff]
      %v548 = vld [vmem:[%s401 + $0x3e8] sm:$0xff]
      %v549 = vld [vmem:[%s401 + $0x3f0] sm:$0xff]
      %v550 = vld [vmem:[%s401 + $0x3f8] sm:$0xff]
      %v551 = vpack.c.bf16 %v427, %v423
      %v552 = vpack.c.bf16 %v428, %v424
      %v553 = vpack.c.bf16 %v429, %v425
      %v554 = vpack.c.bf16 %v430, %v426
      %v555 = vpack.c.bf16 %v435, %v431
      %v556 = vpack.c.bf16 %v436, %v432
      %v557 = vpack.c.bf16 %v437, %v433
      %v558 = vpack.c.bf16 %v438, %v434
      %v559 = vpack.c.bf16 %v443, %v439
      %v560 = vpack.c.bf16 %v444, %v440
      %v561 = vpack.c.bf16 %v445, %v441
      %v562 = vpack.c.bf16 %v446, %v442
      %v563 = vpack.c.bf16 %v451, %v447
      %v564 = vpack.c.bf16 %v452, %v448
      %v565 = vpack.c.bf16 %v453, %v449
      %v566 = vpack.c.bf16 %v454, %v450
      %v567 = vpack.c.bf16 %v459, %v455
      %v568 = vpack.c.bf16 %v460, %v456
      %v569 = vpack.c.bf16 %v461, %v457
      %v570 = vpack.c.bf16 %v462, %v458
      %v571 = vpack.c.bf16 %v467, %v463
      %v572 = vpack.c.bf16 %v468, %v464
      %v573 = vpack.c.bf16 %v469, %v465
      %v574 = vpack.c.bf16 %v470, %v466
      %v575 = vpack.c.bf16 %v475, %v471
      %v576 = vpack.c.bf16 %v476, %v472
      %v577 = vpack.c.bf16 %v477, %v473
      %v578 = vpack.c.bf16 %v478, %v474
      %v579 = vpack.c.bf16 %v483, %v479
      %v580 = vpack.c.bf16 %v484, %v480
      %v581 = vpack.c.bf16 %v485, %v481
      %v582 = vpack.c.bf16 %v486, %v482
      %v583 = vpack.c.bf16 %v491, %v487
      %v584 = vpack.c.bf16 %v492, %v488
      %v585 = vpack.c.bf16 %v493, %v489
      %v586 = vpack.c.bf16 %v494, %v490
      %v587 = vpack.c.bf16 %v499, %v495
      %v588 = vpack.c.bf16 %v500, %v496
      %v589 = vpack.c.bf16 %v501, %v497
      %v590 = vpack.c.bf16 %v502, %v498
      %v591 = vpack.c.bf16 %v507, %v503
      %v592 = vpack.c.bf16 %v508, %v504
      %v593 = vpack.c.bf16 %v509, %v505
      %v594 = vpack.c.bf16 %v510, %v506
      %v595 = vpack.c.bf16 %v515, %v511
      %v596 = vpack.c.bf16 %v516, %v512
      %v597 = vpack.c.bf16 %v517, %v513
      %v598 = vpack.c.bf16 %v518, %v514
      %v599 = vpack.c.bf16 %v523, %v519
      %v600 = vpack.c.bf16 %v524, %v520
      %v601 = vpack.c.bf16 %v525, %v521
      %v602 = vpack.c.bf16 %v526, %v522
      %v603 = vpack.c.bf16 %v531, %v527
      %v604 = vpack.c.bf16 %v532, %v528
      %v605 = vpack.c.bf16 %v533, %v529
      %v606 = vpack.c.bf16 %v534, %v530
      %v607 = vpack.c.bf16 %v539, %v535
      %v608 = vpack.c.bf16 %v540, %v536
      %v609 = vpack.c.bf16 %v541, %v537
      %v610 = vpack.c.bf16 %v542, %v538
      %v611 = vpack.c.bf16 %v547, %v543
      %v612 = vpack.c.bf16 %v548, %v544
      %v613 = vpack.c.bf16 %v549, %v545
      %v614 = vpack.c.bf16 %v550, %v546
      %v615 = vld [vmem:[%s1] sm:$0xff]
      %v616 = vld [vmem:[%s1 + $0x8] sm:$0xff]
      %v617 = vld [vmem:[%s1 + $0x10] sm:$0xff]
      %v618 = vld [vmem:[%s1 + $0x18] sm:$0xff]
      %v619 = vld [vmem:[%s1 + $0x20] sm:$0xff]
      %v620 = vld [vmem:[%s1 + $0x28] sm:$0xff]
      %v621 = vld [vmem:[%s1 + $0x30] sm:$0xff]
      %v622 = vld [vmem:[%s1 + $0x38] sm:$0xff]
      %v623 = vld [vmem:[%s1 + $0x40] sm:$0xff]
      %v624 = vld [vmem:[%s1 + $0x48] sm:$0xff]
      %v625 = vld [vmem:[%s1 + $0x50] sm:$0xff]
      %v626 = vld [vmem:[%s1 + $0x58] sm:$0xff]
      %v627 = vld [vmem:[%s1 + $0x60] sm:$0xff]
      %v628 = vld [vmem:[%s1 + $0x68] sm:$0xff]
      %v629 = vld [vmem:[%s1 + $0x70] sm:$0xff]
      %v630 = vld [vmem:[%s1 + $0x78] sm:$0xff]
      %v631 = vld [vmem:[%s1 + $0x80] sm:$0xff]
      %v632 = vld [vmem:[%s1 + $0x88] sm:$0xff]
      %v633 = vld [vmem:[%s1 + $0x90] sm:$0xff]
      %v634 = vld [vmem:[%s1 + $0x98] sm:$0xff]
      %v635 = vld [vmem:[%s1 + $0xa0] sm:$0xff]
      %v636 = vld [vmem:[%s1 + $0xa8] sm:$0xff]
      %v637 = vld [vmem:[%s1 + $0xb0] sm:$0xff]
      %v638 = vld [vmem:[%s1 + $0xb8] sm:$0xff]
      %v639 = vld [vmem:[%s1 + $0xc0] sm:$0xff]
      %v640 = vld [vmem:[%s1 + $0xc8] sm:$0xff]
      %v641 = vld [vmem:[%s1 + $0xd0] sm:$0xff]
      %v642 = vld [vmem:[%s1 + $0xd8] sm:$0xff]
      %v643 = vld [vmem:[%s1 + $0xe0] sm:$0xff]
      %v644 = vld [vmem:[%s1 + $0xe8] sm:$0xff]
      %v645 = vld [vmem:[%s1 + $0xf0] sm:$0xff]
      %v646 = vld [vmem:[%s1 + $0xf8] sm:$0xff]
      %v647 = vld [vmem:[%s1 + $0x100] sm:$0xff]
      %v648 = vld [vmem:[%s1 + $0x108] sm:$0xff]
      %v649 = vld [vmem:[%s1 + $0x110] sm:$0xff]
      %v650 = vld [vmem:[%s1 + $0x118] sm:$0xff]
      %v651 = vld [vmem:[%s1 + $0x120] sm:$0xff]
      %v652 = vld [vmem:[%s1 + $0x128] sm:$0xff]
      %v653 = vld [vmem:[%s1 + $0x130] sm:$0xff]
      %v654 = vld [vmem:[%s1 + $0x138] sm:$0xff]
      %v655 = vld [vmem:[%s1 + $0x140] sm:$0xff]
      %v656 = vld [vmem:[%s1 + $0x148] sm:$0xff]
      %v657 = vld [vmem:[%s1 + $0x150] sm:$0xff]
      %v658 = vld [vmem:[%s1 + $0x158] sm:$0xff]
      %v659 = vld [vmem:[%s1 + $0x160] sm:$0xff]
      %v660 = vld [vmem:[%s1 + $0x168] sm:$0xff]
      %v661 = vld [vmem:[%s1 + $0x170] sm:$0xff]
      %v662 = vld [vmem:[%s1 + $0x178] sm:$0xff]
      %v663 = vld [vmem:[%s1 + $0x180] sm:$0xff]
      %v664 = vld [vmem:[%s1 + $0x188] sm:$0xff]
      %v665 = vld [vmem:[%s1 + $0x190] sm:$0xff]
      %v666 = vld [vmem:[%s1 + $0x198] sm:$0xff]
      %v667 = vld [vmem:[%s1 + $0x1a0] sm:$0xff]
      %v668 = vld [vmem:[%s1 + $0x1a8] sm:$0xff]
      %v669 = vld [vmem:[%s1 + $0x1b0] sm:$0xff]
      %v670 = vld [vmem:[%s1 + $0x1b8] sm:$0xff]
      %v671 = vld [vmem:[%s1 + $0x1c0] sm:$0xff]
      %v672 = vld [vmem:[%s1 + $0x1c8] sm:$0xff]
      %v673 = vld [vmem:[%s1 + $0x1d0] sm:$0xff]
      %v674 = vld [vmem:[%s1 + $0x1d8] sm:$0xff]
      %v675 = vld [vmem:[%s1 + $0x1e0] sm:$0xff]
      %v676 = vld [vmem:[%s1 + $0x1e8] sm:$0xff]
      %v677 = vld [vmem:[%s1 + $0x1f0] sm:$0xff]
      %v678 = vld [vmem:[%s1 + $0x1f8] sm:$0xff]
      %v679 = vld [vmem:[%s2] sm:$0xff]
      %v680 = vld [vmem:[%s2 + $0x8] sm:$0xff]
      %v681 = vld [vmem:[%s2 + $0x10] sm:$0xff]
      %v682 = vld [vmem:[%s2 + $0x18] sm:$0xff]
      %v683 = vld [vmem:[%s2 + $0x20] sm:$0xff]
      %v684 = vld [vmem:[%s2 + $0x28] sm:$0xff]
      %v685 = vld [vmem:[%s2 + $0x30] sm:$0xff]
      %v686 = vld [vmem:[%s2 + $0x38] sm:$0xff]
      %v687 = vld [vmem:[%s2 + $0x40] sm:$0xff]
      %v688 = vld [vmem:[%s2 + $0x48] sm:$0xff]
      %v689 = vld [vmem:[%s2 + $0x50] sm:$0xff]
      %v690 = vld [vmem:[%s2 + $0x58] sm:$0xff]
      %v691 = vld [vmem:[%s2 + $0x60] sm:$0xff]
      %v692 = vld [vmem:[%s2 + $0x68] sm:$0xff]
      %v693 = vld [vmem:[%s2 + $0x70] sm:$0xff]
      %v694 = vld [vmem:[%s2 + $0x78] sm:$0xff]
      %v695 = vld [vmem:[%s2 + $0x80] sm:$0xff]
      %v696 = vld [vmem:[%s2 + $0x88] sm:$0xff]
      %v697 = vld [vmem:[%s2 + $0x90] sm:$0xff]
      %v698 = vld [vmem:[%s2 + $0x98] sm:$0xff]
      %v699 = vld [vmem:[%s2 + $0xa0] sm:$0xff]
      %v700 = vld [vmem:[%s2 + $0xa8] sm:$0xff]
      %v701 = vld [vmem:[%s2 + $0xb0] sm:$0xff]
      %v702 = vld [vmem:[%s2 + $0xb8] sm:$0xff]
      %v703 = vld [vmem:[%s2 + $0xc0] sm:$0xff]
      %v704 = vld [vmem:[%s2 + $0xc8] sm:$0xff]
      %v705 = vld [vmem:[%s2 + $0xd0] sm:$0xff]
      %v706 = vld [vmem:[%s2 + $0xd8] sm:$0xff]
      %v707 = vld [vmem:[%s2 + $0xe0] sm:$0xff]
      %v708 = vld [vmem:[%s2 + $0xe8] sm:$0xff]
      %v709 = vld [vmem:[%s2 + $0xf0] sm:$0xff]
      %v710 = vld [vmem:[%s2 + $0xf8] sm:$0xff]
      %v711 = vld [vmem:[%s2 + $0x100] sm:$0xff]
      %v712 = vld [vmem:[%s2 + $0x108] sm:$0xff]
      %v713 = vld [vmem:[%s2 + $0x110] sm:$0xff]
      %v714 = vld [vmem:[%s2 + $0x118] sm:$0xff]
      %v715 = vld [vmem:[%s2 + $0x120] sm:$0xff]
      %v716 = vld [vmem:[%s2 + $0x128] sm:$0xff]
      %v717 = vld [vmem:[%s2 + $0x130] sm:$0xff]
      %v718 = vld [vmem:[%s2 + $0x138] sm:$0xff]
      %v719 = vld [vmem:[%s2 + $0x140] sm:$0xff]
      %v720 = vld [vmem:[%s2 + $0x148] sm:$0xff]
      %v721 = vld [vmem:[%s2 + $0x150] sm:$0xff]
      %v722 = vld [vmem:[%s2 + $0x158] sm:$0xff]
      %v723 = vld [vmem:[%s2 + $0x160] sm:$0xff]
      %v724 = vld [vmem:[%s2 + $0x168] sm:$0xff]
      %v725 = vld [vmem:[%s2 + $0x170] sm:$0xff]
      %v726 = vld [vmem:[%s2 + $0x178] sm:$0xff]
      %v727 = vld [vmem:[%s2 + $0x180] sm:$0xff]
      %v728 = vld [vmem:[%s2 + $0x188] sm:$0xff]
      %v729 = vld [vmem:[%s2 + $0x190] sm:$0xff]
      %v730 = vld [vmem:[%s2 + $0x198] sm:$0xff]
      %v731 = vld [vmem:[%s2 + $0x1a0] sm:$0xff]
      %v732 = vld [vmem:[%s2 + $0x1a8] sm:$0xff]
      %v733 = vld [vmem:[%s2 + $0x1b0] sm:$0xff]
      %v734 = vld [vmem:[%s2 + $0x1b8] sm:$0xff]
      %v735 = vld [vmem:[%s2 + $0x1c0] sm:$0xff]
      %v736 = vld [vmem:[%s2 + $0x1c8] sm:$0xff]
      %v737 = vld [vmem:[%s2 + $0x1d0] sm:$0xff]
      %v738 = vld [vmem:[%s2 + $0x1d8] sm:$0xff]
      %v739 = vld [vmem:[%s2 + $0x1e0] sm:$0xff]
      %v740 = vld [vmem:[%s2 + $0x1e8] sm:$0xff]
      %v741 = vld [vmem:[%s2 + $0x1f0] sm:$0xff]
      %v742 = vld [vmem:[%s2 + $0x1f8] sm:$0xff]
      %744 = vset.pattern.permute.xlu0 0
      %745 = vperm.xlu0 %744, %v679
      %v746 = vpop.permute.xlu0 %745
      %749 = vset.pattern.permute.xlu0 0
      %750 = vperm.xlu0 %749, %v680
      %v751 = vpop.permute.xlu0 %750
      %754 = vset.pattern.permute.xlu0 0
      %755 = vperm.xlu0 %754, %v681
      %v756 = vpop.permute.xlu0 %755
      %759 = vset.pattern.permute.xlu0 0
      %760 = vperm.xlu0 %759, %v682
      %v761 = vpop.permute.xlu0 %760
      %764 = vset.pattern.permute.xlu0 0
      %765 = vperm.xlu0 %764, %v683
      %v766 = vpop.permute.xlu0 %765
      %769 = vset.pattern.permute.xlu0 0
      %770 = vperm.xlu0 %769, %v684
      %v771 = vpop.permute.xlu0 %770
      %774 = vset.pattern.permute.xlu0 0
      %775 = vperm.xlu0 %774, %v685
      %v776 = vpop.permute.xlu0 %775
      %779 = vset.pattern.permute.xlu0 0
      %780 = vperm.xlu0 %779, %v686
      %v781 = vpop.permute.xlu0 %780
      %784 = vset.pattern.permute.xlu0 0
      %785 = vperm.xlu0 %784, %v687
      %v786 = vpop.permute.xlu0 %785
      %789 = vset.pattern.permute.xlu0 0
      %790 = vperm.xlu0 %789, %v688
      %v791 = vpop.permute.xlu0 %790
      %794 = vset.pattern.permute.xlu0 0
      %795 = vperm.xlu0 %794, %v689
      %v796 = vpop.permute.xlu0 %795
      %799 = vset.pattern.permute.xlu0 0
      %800 = vperm.xlu0 %799, %v690
      %v801 = vpop.permute.xlu0 %800
      %804 = vset.pattern.permute.xlu0 0
      %805 = vperm.xlu0 %804, %v691
      %v806 = vpop.permute.xlu0 %805
      %809 = vset.pattern.permute.xlu0 0
      %810 = vperm.xlu0 %809, %v692
      %v811 = vpop.permute.xlu0 %810
      %814 = vset.pattern.permute.xlu0 0
      %815 = vperm.xlu0 %814, %v693
      %v816 = vpop.permute.xlu0 %815
      %819 = vset.pattern.permute.xlu0 0
      %820 = vperm.xlu0 %819, %v694
      %v821 = vpop.permute.xlu0 %820
      %824 = vset.pattern.permute.xlu0 0
      %825 = vperm.xlu0 %824, %v695
      %v826 = vpop.permute.xlu0 %825
      %829 = vset.pattern.permute.xlu0 0
      %830 = vperm.xlu0 %829, %v696
      %v831 = vpop.permute.xlu0 %830
      %834 = vset.pattern.permute.xlu0 0
      %835 = vperm.xlu0 %834, %v697
      %v836 = vpop.permute.xlu0 %835
      %839 = vset.pattern.permute.xlu0 0
      %840 = vperm.xlu0 %839, %v698
      %v841 = vpop.permute.xlu0 %840
      %844 = vset.pattern.permute.xlu0 0
      %845 = vperm.xlu0 %844, %v699
      %v846 = vpop.permute.xlu0 %845
      %849 = vset.pattern.permute.xlu0 0
      %850 = vperm.xlu0 %849, %v700
      %v851 = vpop.permute.xlu0 %850
      %854 = vset.pattern.permute.xlu0 0
      %855 = vperm.xlu0 %854, %v701
      %v856 = vpop.permute.xlu0 %855
      %859 = vset.pattern.permute.xlu0 0
      %860 = vperm.xlu0 %859, %v702
      %v861 = vpop.permute.xlu0 %860
      %864 = vset.pattern.permute.xlu0 0
      %865 = vperm.xlu0 %864, %v703
      %v866 = vpop.permute.xlu0 %865
      %869 = vset.pattern.permute.xlu0 0
      %870 = vperm.xlu0 %869, %v704
      %v871 = vpop.permute.xlu0 %870
      %874 = vset.pattern.permute.xlu0 0
      %875 = vperm.xlu0 %874, %v705
      %v876 = vpop.permute.xlu0 %875
      %879 = vset.pattern.permute.xlu0 0
      %880 = vperm.xlu0 %879, %v706
      %v881 = vpop.permute.xlu0 %880
      %884 = vset.pattern.permute.xlu0 0
      %885 = vperm.xlu0 %884, %v707
      %v886 = vpop.permute.xlu0 %885
      %889 = vset.pattern.permute.xlu0 0
      %890 = vperm.xlu0 %889, %v708
      %v891 = vpop.permute.xlu0 %890
      %894 = vset.pattern.permute.xlu0 0
      %895 = vperm.xlu0 %894, %v709
      %v896 = vpop.permute.xlu0 %895
      %899 = vset.pattern.permute.xlu0 0
      %900 = vperm.xlu0 %899, %v710
      %v901 = vpop.permute.xlu0 %900
      %904 = vset.pattern.permute.xlu0 0
      %905 = vperm.xlu0 %904, %v711
      %v906 = vpop.permute.xlu0 %905
      %909 = vset.pattern.permute.xlu0 0
      %910 = vperm.xlu0 %909, %v712
      %v911 = vpop.permute.xlu0 %910
      %914 = vset.pattern.permute.xlu0 0
      %915 = vperm.xlu0 %914, %v713
      %v916 = vpop.permute.xlu0 %915
      %919 = vset.pattern.permute.xlu0 0
      %920 = vperm.xlu0 %919, %v714
      %v921 = vpop.permute.xlu0 %920
      %924 = vset.pattern.permute.xlu0 0
      %925 = vperm.xlu0 %924, %v715
      %v926 = vpop.permute.xlu0 %925
      %929 = vset.pattern.permute.xlu0 0
      %930 = vperm.xlu0 %929, %v716
      %v931 = vpop.permute.xlu0 %930
      %934 = vset.pattern.permute.xlu0 0
      %935 = vperm.xlu0 %934, %v717
      %v936 = vpop.permute.xlu0 %935
      %939 = vset.pattern.permute.xlu0 0
      %940 = vperm.xlu0 %939, %v718
      %v941 = vpop.permute.xlu0 %940
      %944 = vset.pattern.permute.xlu0 0
      %945 = vperm.xlu0 %944, %v719
      %v946 = vpop.permute.xlu0 %945
      %949 = vset.pattern.permute.xlu0 0
      %950 = vperm.xlu0 %949, %v720
      %v951 = vpop.permute.xlu0 %950
      %954 = vset.pattern.permute.xlu0 0
      %955 = vperm.xlu0 %954, %v721
      %v956 = vpop.permute.xlu0 %955
      %959 = vset.pattern.permute.xlu0 0
      %960 = vperm.xlu0 %959, %v722
      %v961 = vpop.permute.xlu0 %960
      %964 = vset.pattern.permute.xlu0 0
      %965 = vperm.xlu0 %964, %v723
      %v966 = vpop.permute.xlu0 %965
      %969 = vset.pattern.permute.xlu0 0
      %970 = vperm.xlu0 %969, %v724
      %v971 = vpop.permute.xlu0 %970
      %974 = vset.pattern.permute.xlu0 0
      %975 = vperm.xlu0 %974, %v725
      %v976 = vpop.permute.xlu0 %975
      %979 = vset.pattern.permute.xlu0 0
      %980 = vperm.xlu0 %979, %v726
      %v981 = vpop.permute.xlu0 %980
      %984 = vset.pattern.permute.xlu0 0
      %985 = vperm.xlu0 %984, %v727
      %v986 = vpop.permute.xlu0 %985
      %989 = vset.pattern.permute.xlu0 0
      %990 = vperm.xlu0 %989, %v728
      %v991 = vpop.permute.xlu0 %990
      %994 = vset.pattern.permute.xlu0 0
      %995 = vperm.xlu0 %994, %v729
      %v996 = vpop.permute.xlu0 %995
      %999 = vset.pattern.permute.xlu0 0
      %1000 = vperm.xlu0 %999, %v730
      %v1001 = vpop.permute.xlu0 %1000
      %1004 = vset.pattern.permute.xlu0 0
      %1005 = vperm.xlu0 %1004, %v731
      %v1006 = vpop.permute.xlu0 %1005
      %1009 = vset.pattern.permute.xlu0 0
      %1010 = vperm.xlu0 %1009, %v732
      %v1011 = vpop.permute.xlu0 %1010
      %1014 = vset.pattern.permute.xlu0 0
      %1015 = vperm.xlu0 %1014, %v733
      %v1016 = vpop.permute.xlu0 %1015
      %1019 = vset.pattern.permute.xlu0 0
      %1020 = vperm.xlu0 %1019, %v734
      %v1021 = vpop.permute.xlu0 %1020
      %1024 = vset.pattern.permute.xlu0 0
      %1025 = vperm.xlu0 %1024, %v735
      %v1026 = vpop.permute.xlu0 %1025
      %1029 = vset.pattern.permute.xlu0 0
      %1030 = vperm.xlu0 %1029, %v736
      %v1031 = vpop.permute.xlu0 %1030
      %1034 = vset.pattern.permute.xlu0 0
      %1035 = vperm.xlu0 %1034, %v737
      %v1036 = vpop.permute.xlu0 %1035
      %1039 = vset.pattern.permute.xlu0 0
      %1040 = vperm.xlu0 %1039, %v738
      %v1041 = vpop.permute.xlu0 %1040
      %1044 = vset.pattern.permute.xlu0 0
      %1045 = vperm.xlu0 %1044, %v739
      %v1046 = vpop.permute.xlu0 %1045
      %1049 = vset.pattern.permute.xlu0 0
      %1050 = vperm.xlu0 %1049, %v740
      %v1051 = vpop.permute.xlu0 %1050
      %1054 = vset.pattern.permute.xlu0 0
      %1055 = vperm.xlu0 %1054, %v741
      %v1056 = vpop.permute.xlu0 %1055
      %1059 = vset.pattern.permute.xlu0 0
      %1060 = vperm.xlu0 %1059, %v742
      %v1061 = vpop.permute.xlu0 %1060
      %v1127 = vunpack.c.l.b16 %v615
      %v1128 = vunpack.c.h.b16 %v615
      %v1129 = vunpack.c.l.b16 %v616
      %v1130 = vunpack.c.h.b16 %v616
      %v1131 = vunpack.c.l.b16 %v617
      %v1132 = vunpack.c.h.b16 %v617
      %v1133 = vunpack.c.l.b16 %v618
      %v1134 = vunpack.c.h.b16 %v618
      %v1135 = vunpack.c.l.b16 %v619
      %v1136 = vunpack.c.h.b16 %v619
      %v1137 = vunpack.c.l.b16 %v620
      %v1138 = vunpack.c.h.b16 %v620
      %v1139 = vunpack.c.l.b16 %v621
      %v1140 = vunpack.c.h.b16 %v621
      %v1141 = vunpack.c.l.b16 %v622
      %v1142 = vunpack.c.h.b16 %v622
      %v1143 = vunpack.c.l.b16 %v623
      %v1144 = vunpack.c.h.b16 %v623
      %v1145 = vunpack.c.l.b16 %v624
      %v1146 = vunpack.c.h.b16 %v624
      %v1147 = vunpack.c.l.b16 %v625
      %v1148 = vunpack.c.h.b16 %v625
      %v1149 = vunpack.c.l.b16 %v626
      %v1150 = vunpack.c.h.b16 %v626
      %v1151 = vunpack.c.l.b16 %v627
      %v1152 = vunpack.c.h.b16 %v627
      %v1153 = vunpack.c.l.b16 %v628
      %v1154 = vunpack.c.h.b16 %v628
      %v1155 = vunpack.c.l.b16 %v629
      %v1156 = vunpack.c.h.b16 %v629
      %v1157 = vunpack.c.l.b16 %v630
      %v1158 = vunpack.c.h.b16 %v630
      %v1159 = vunpack.c.l.b16 %v631
      %v1160 = vunpack.c.h.b16 %v631
      %v1161 = vunpack.c.l.b16 %v632
      %v1162 = vunpack.c.h.b16 %v632
      %v1163 = vunpack.c.l.b16 %v633
      %v1164 = vunpack.c.h.b16 %v633
      %v1165 = vunpack.c.l.b16 %v634
      %v1166 = vunpack.c.h.b16 %v634
      %v1167 = vunpack.c.l.b16 %v635
      %v1168 = vunpack.c.h.b16 %v635
      %v1169 = vunpack.c.l.b16 %v636
      %v1170 = vunpack.c.h.b16 %v636
      %v1171 = vunpack.c.l.b16 %v637
      %v1172 = vunpack.c.h.b16 %v637
      %v1173 = vunpack.c.l.b16 %v638
      %v1174 = vunpack.c.h.b16 %v638
      %v1175 = vunpack.c.l.b16 %v639
      %v1176 = vunpack.c.h.b16 %v639
      %v1177 = vunpack.c.l.b16 %v640
      %v1178 = vunpack.c.h.b16 %v640
      %v1179 = vunpack.c.l.b16 %v641
      %v1180 = vunpack.c.h.b16 %v641
      %v1181 = vunpack.c.l.b16 %v642
      %v1182 = vunpack.c.h.b16 %v642
      %v1183 = vunpack.c.l.b16 %v643
      %v1184 = vunpack.c.h.b16 %v643
      %v1185 = vunpack.c.l.b16 %v644
      %v1186 = vunpack.c.h.b16 %v644
      %v1187 = vunpack.c.l.b16 %v645
      %v1188 = vunpack.c.h.b16 %v645
      %v1189 = vunpack.c.l.b16 %v646
      %v1190 = vunpack.c.h.b16 %v646
      %v1191 = vunpack.c.l.b16 %v647
      %v1192 = vunpack.c.h.b16 %v647
      %v1193 = vunpack.c.l.b16 %v648
      %v1194 = vunpack.c.h.b16 %v648
      %v1195 = vunpack.c.l.b16 %v649
      %v1196 = vunpack.c.h.b16 %v649
      %v1197 = vunpack.c.l.b16 %v650
      %v1198 = vunpack.c.h.b16 %v650
      %v1199 = vunpack.c.l.b16 %v651
      %v1200 = vunpack.c.h.b16 %v651
      %v1201 = vunpack.c.l.b16 %v652
      %v1202 = vunpack.c.h.b16 %v652
      %v1203 = vunpack.c.l.b16 %v653
      %v1204 = vunpack.c.h.b16 %v653
      %v1205 = vunpack.c.l.b16 %v654
      %v1206 = vunpack.c.h.b16 %v654
      %v1207 = vunpack.c.l.b16 %v655
      %v1208 = vunpack.c.h.b16 %v655
      %v1209 = vunpack.c.l.b16 %v656
      %v1210 = vunpack.c.h.b16 %v656
      %v1211 = vunpack.c.l.b16 %v657
      %v1212 = vunpack.c.h.b16 %v657
      %v1213 = vunpack.c.l.b16 %v658
      %v1214 = vunpack.c.h.b16 %v658
      %v1215 = vunpack.c.l.b16 %v659
      %v1216 = vunpack.c.h.b16 %v659
      %v1217 = vunpack.c.l.b16 %v660
      %v1218 = vunpack.c.h.b16 %v660
      %v1219 = vunpack.c.l.b16 %v661
      %v1220 = vunpack.c.h.b16 %v661
      %v1221 = vunpack.c.l.b16 %v662
      %v1222 = vunpack.c.h.b16 %v662
      %v1223 = vunpack.c.l.b16 %v663
      %v1224 = vunpack.c.h.b16 %v663
      %v1225 = vunpack.c.l.b16 %v664
      %v1226 = vunpack.c.h.b16 %v664
      %v1227 = vunpack.c.l.b16 %v665
      %v1228 = vunpack.c.h.b16 %v665
      %v1229 = vunpack.c.l.b16 %v666
      %v1230 = vunpack.c.h.b16 %v666
      %v1231 = vunpack.c.l.b16 %v667
      %v1232 = vunpack.c.h.b16 %v667
      %v1233 = vunpack.c.l.b16 %v668
      %v1234 = vunpack.c.h.b16 %v668
      %v1235 = vunpack.c.l.b16 %v669
      %v1236 = vunpack.c.h.b16 %v669
      %v1237 = vunpack.c.l.b16 %v670
      %v1238 = vunpack.c.h.b16 %v670
      %v1239 = vunpack.c.l.b16 %v671
      %v1240 = vunpack.c.h.b16 %v671
      %v1241 = vunpack.c.l.b16 %v672
      %v1242 = vunpack.c.h.b16 %v672
      %v1243 = vunpack.c.l.b16 %v673
      %v1244 = vunpack.c.h.b16 %v673
      %v1245 = vunpack.c.l.b16 %v674
      %v1246 = vunpack.c.h.b16 %v674
      %v1247 = vunpack.c.l.b16 %v675
      %v1248 = vunpack.c.h.b16 %v675
      %v1249 = vunpack.c.l.b16 %v676
      %v1250 = vunpack.c.h.b16 %v676
      %v1251 = vunpack.c.l.b16 %v677
      %v1252 = vunpack.c.h.b16 %v677
      %v1253 = vunpack.c.l.b16 %v678
      %v1254 = vunpack.c.h.b16 %v678
      %v1255 = vpack.c.b16 %v1129, %v1127
      %v1256 = vpack.c.b16 %v1130, %v1128
      %v1257 = vpack.c.b16 %v1133, %v1131
      %v1258 = vpack.c.b16 %v1134, %v1132
      %v1259 = vpack.c.b16 %v1137, %v1135
      %v1260 = vpack.c.b16 %v1138, %v1136
      %v1261 = vpack.c.b16 %v1141, %v1139
      %v1262 = vpack.c.b16 %v1142, %v1140
      %v1263 = vpack.c.b16 %v1145, %v1143
      %v1264 = vpack.c.b16 %v1146, %v1144
      %v1265 = vpack.c.b16 %v1149, %v1147
      %v1266 = vpack.c.b16 %v1150, %v1148
      %v1267 = vpack.c.b16 %v1153, %v1151
      %v1268 = vpack.c.b16 %v1154, %v1152
      %v1269 = vpack.c.b16 %v1157, %v1155
      %v1270 = vpack.c.b16 %v1158, %v1156
      %v1271 = vpack.c.b16 %v1161, %v1159
      %v1272 = vpack.c.b16 %v1162, %v1160
      %v1273 = vpack.c.b16 %v1165, %v1163
      %v1274 = vpack.c.b16 %v1166, %v1164
      %v1275 = vpack.c.b16 %v1169, %v1167
      %v1276 = vpack.c.b16 %v1170, %v1168
      %v1277 = vpack.c.b16 %v1173, %v1171
      %v1278 = vpack.c.b16 %v1174, %v1172
      %v1279 = vpack.c.b16 %v1177, %v1175
      %v1280 = vpack.c.b16 %v1178, %v1176
      %v1281 = vpack.c.b16 %v1181, %v1179
      %v1282 = vpack.c.b16 %v1182, %v1180
      %v1283 = vpack.c.b16 %v1185, %v1183
      %v1284 = vpack.c.b16 %v1186, %v1184
      %v1285 = vpack.c.b16 %v1189, %v1187
      %v1286 = vpack.c.b16 %v1190, %v1188
      %v1287 = vpack.c.b16 %v1193, %v1191
      %v1288 = vpack.c.b16 %v1194, %v1192
      %v1289 = vpack.c.b16 %v1197, %v1195
      %v1290 = vpack.c.b16 %v1198, %v1196
      %v1291 = vpack.c.b16 %v1201, %v1199
      %v1292 = vpack.c.b16 %v1202, %v1200
      %v1293 = vpack.c.b16 %v1205, %v1203
      %v1294 = vpack.c.b16 %v1206, %v1204
      %v1295 = vpack.c.b16 %v1209, %v1207
      %v1296 = vpack.c.b16 %v1210, %v1208
      %v1297 = vpack.c.b16 %v1213, %v1211
      %v1298 = vpack.c.b16 %v1214, %v1212
      %v1299 = vpack.c.b16 %v1217, %v1215
      %v1300 = vpack.c.b16 %v1218, %v1216
      %v1301 = vpack.c.b16 %v1221, %v1219
      %v1302 = vpack.c.b16 %v1222, %v1220
      %v1303 = vpack.c.b16 %v1225, %v1223
      %v1304 = vpack.c.b16 %v1226, %v1224
      %v1305 = vpack.c.b16 %v1229, %v1227
      %v1306 = vpack.c.b16 %v1230, %v1228
      %v1307 = vpack.c.b16 %v1233, %v1231
      %v1308 = vpack.c.b16 %v1234, %v1232
      %v1309 = vpack.c.b16 %v1237, %v1235
      %v1310 = vpack.c.b16 %v1238, %v1236
      %v1311 = vpack.c.b16 %v1241, %v1239
      %v1312 = vpack.c.b16 %v1242, %v1240
      %v1313 = vpack.c.b16 %v1245, %v1243
      %v1314 = vpack.c.b16 %v1246, %v1244
      %v1315 = vpack.c.b16 %v1249, %v1247
      %v1316 = vpack.c.b16 %v1250, %v1248
      %v1317 = vpack.c.b16 %v1253, %v1251
      %v1318 = vpack.c.b16 %v1254, %v1252
      %1383 = vmatprep.subr.bf16.mxu0 %v552
      %1384 = vmatpush1.bf16.msra.mxu0 %v551
      %1385 = vmatprep.subr.bf16.mxu0 %v556
      %1386 = vmatpush1.bf16.msra.mxu0 %v555
      %1387 = vmatprep.subr.bf16.mxu0 %v560
      %1388 = vmatpush1.bf16.msra.mxu0 %v559
      %1389 = vmatprep.subr.bf16.mxu0 %v564
      %1390 = vmatpush1.bf16.msra.mxu0 %v563
      %1391 = vmatprep.subr.bf16.mxu0 %v568
      %1392 = vmatpush1.bf16.msra.mxu0 %v567
      %1393 = vmatprep.subr.bf16.mxu0 %v572
      %1394 = vmatpush1.bf16.msra.mxu0 %v571
      %1395 = vmatprep.subr.bf16.mxu0 %v576
      %1396 = vmatpush1.bf16.msra.mxu0 %v575
      %1397 = vmatprep.subr.bf16.mxu0 %v580
      %1398 = vmatpush1.bf16.msra.mxu0 %v579
      %1399 = vmatprep.subr.bf16.mxu0 %v584
      %1400 = vmatpush1.bf16.msra.mxu0 %v583
      %1401 = vmatprep.subr.bf16.mxu0 %v588
      %1402 = vmatpush1.bf16.msra.mxu0 %v587
      %1403 = vmatprep.subr.bf16.mxu0 %v592
      %1404 = vmatpush1.bf16.msra.mxu0 %v591
      %1405 = vmatprep.subr.bf16.mxu0 %v596
      %1406 = vmatpush1.bf16.msra.mxu0 %v595
      %1407 = vmatprep.subr.bf16.mxu0 %v600
      %1408 = vmatpush1.bf16.msra.mxu0 %v599
      %1409 = vmatprep.subr.bf16.mxu0 %v604
      %1410 = vmatpush1.bf16.msra.mxu0 %v603
      %1411 = vmatprep.subr.bf16.mxu0 %v608
      %1412 = vmatpush1.bf16.msra.mxu0 %v607
      %1413 = vmatprep.subr.bf16.mxu0 %v612
      %1414 = vmatpush1.bf16.msra.mxu0 %v611
      %1415 = vmatprep.mubr.bf16.mxu0 %v1256
      %1416 = vmatmul.mubr.bf16.gmra.mrb[0].mxu0 %v1255
      %v1417 = vpop.f32.mrb[0].mxu0
      %v1418 = vadd.f32 %v746, %v1417
      %v1419 = vpop.f32.mrb[0].mxu0
      %v1420 = vadd.f32 %v746, %v1419
      %v1421 = vpop.f32.mrb[0].mxu0
      %v1422 = vadd.f32 %v751, %v1421
      %v1423 = vpop.f32.mrb[0].mxu0
      %v1424 = vadd.f32 %v751, %v1423
      %1425 = vmatprep.mubr.bf16.mxu0 %v1258
      %1426 = vmatmul.mubr.bf16.gmra.mrb[0].mxu0 %v1257
      %v1427 = vpop.f32.mrb[0].mxu0
      %v1428 = vadd.f32 %v756, %v1427
      %v1429 = vpop.f32.mrb[0].mxu0
      %v1430 = vadd.f32 %v756, %v1429
      %v1431 = vpop.f32.mrb[0].mxu0
      %v1432 = vadd.f32 %v761, %v1431
      %v1433 = vpop.f32.mrb[0].mxu0
      %v1434 = vadd.f32 %v761, %v1433
      %1435 = vmatprep.mubr.bf16.mxu0 %v1260
      %1436 = vmatmul.mubr.bf16.gmra.mrb[0].mxu0 %v1259
      %v1437 = vpop.f32.mrb[0].mxu0
      %v1438 = vadd.f32 %v766, %v1437
      %v1439 = vpop.f32.mrb[0].mxu0
      %v1440 = vadd.f32 %v766, %v1439
      %v1441 = vpop.f32.mrb[0].mxu0
      %v1442 = vadd.f32 %v771, %v1441
      %v1443 = vpop.f32.mrb[0].mxu0
      %v1444 = vadd.f32 %v771, %v1443
      %1445 = vmatprep.mubr.bf16.mxu0 %v1262
      %1446 = vmatmul.mubr.bf16.gmra.mrb[0].mxu0 %v1261
      %v1447 = vpop.f32.mrb[0].mxu0
      %v1448 = vadd.f32 %v776, %v1447
      %v1449 = vpop.f32.mrb[0].mxu0
      %v1450 = vadd.f32 %v776, %v1449
      %v1451 = vpop.f32.mrb[0].mxu0
      %v1452 = vadd.f32 %v781, %v1451
      %v1453 = vpop.f32.mrb[0].mxu0
      %v1454 = vadd.f32 %v781, %v1453
      %1455 = vmatprep.mubr.bf16.mxu0 %v1264
      %1456 = vmatmul.mubr.bf16.gmra.mrb[0].mxu0 %v1263
      %v1457 = vpop.f32.mrb[0].mxu0
      %v1458 = vadd.f32 %v786, %v1457
      %v1459 = vpop.f32.mrb[0].mxu0
      %v1460 = vadd.f32 %v786, %v1459
      %v1461 = vpop.f32.mrb[0].mxu0
      %v1462 = vadd.f32 %v791, %v1461
      %v1463 = vpop.f32.mrb[0].mxu0
      %v1464 = vadd.f32 %v791, %v1463
      %1465 = vmatprep.mubr.bf16.mxu0 %v1266
      %1466 = vmatmul.mubr.bf16.gmra.mrb[0].mxu0 %v1265
      %v1467 = vpop.f32.mrb[0].mxu0
      %v1468 = vadd.f32 %v796, %v1467
      %v1469 = vpop.f32.mrb[0].mxu0
      %v1470 = vadd.f32 %v796, %v1469
      %v1471 = vpop.f32.mrb[0].mxu0
      %v1472 = vadd.f32 %v801, %v1471
      %v1473 = vpop.f32.mrb[0].mxu0
      %v1474 = vadd.f32 %v801, %v1473
      %1475 = vmatprep.mubr.bf16.mxu0 %v1268
      %1476 = vmatmul.mubr.bf16.gmra.mrb[0].mxu0 %v1267
      %v1477 = vpop.f32.mrb[0].mxu0
      %v1478 = vadd.f32 %v806, %v1477
      %v1479 = vpop.f32.mrb[0].mxu0
      %v1480 = vadd.f32 %v806, %v1479
      %v1481 = vpop.f32.mrb[0].mxu0
      %v1482 = vadd.f32 %v811, %v1481
      %v1483 = vpop.f32.mrb[0].mxu0
      %v1484 = vadd.f32 %v811, %v1483
      %1485 = vmatprep.mubr.bf16.mxu0 %v1270
      %1486 = vmatmul.mubr.bf16.gmra.mrb[0].mxu0 %v1269
      %v1487 = vpop.f32.mrb[0].mxu0
      %v1488 = vadd.f32 %v816, %v1487
      %v1489 = vpop.f32.mrb[0].mxu0
      %v1490 = vadd.f32 %v816, %v1489
      %v1491 = vpop.f32.mrb[0].mxu0
      %v1492 = vadd.f32 %v821, %v1491
      %v1493 = vpop.f32.mrb[0].mxu0
      %v1494 = vadd.f32 %v821, %v1493
      %1495 = vmatprep.mubr.bf16.mxu0 %v1272
      %1496 = vmatmul.mubr.bf16.gmra.mrb[0].mxu0 %v1271
      %v1497 = vpop.f32.mrb[0].mxu0
      %v1498 = vadd.f32 %v826, %v1497
      %v1499 = vpop.f32.mrb[0].mxu0
      %v1500 = vadd.f32 %v826, %v1499
      %v1501 = vpop.f32.mrb[0].mxu0
      %v1502 = vadd.f32 %v831, %v1501
      %v1503 = vpop.f32.mrb[0].mxu0
      %v1504 = vadd.f32 %v831, %v1503
      %1505 = vmatprep.mubr.bf16.mxu0 %v1274
      %1506 = vmatmul.mubr.bf16.gmra.mrb[0].mxu0 %v1273
      %v1507 = vpop.f32.mrb[0].mxu0
      %v1508 = vadd.f32 %v836, %v1507
      %v1509 = vpop.f32.mrb[0].mxu0
      %v1510 = vadd.f32 %v836, %v1509
      %v1511 = vpop.f32.mrb[0].mxu0
      %v1512 = vadd.f32 %v841, %v1511
      %v1513 = vpop.f32.mrb[0].mxu0
      %v1514 = vadd.f32 %v841, %v1513
      %1515 = vmatprep.mubr.bf16.mxu0 %v1276
      %1516 = vmatmul.mubr.bf16.gmra.mrb[0].mxu0 %v1275
      %v1517 = vpop.f32.mrb[0].mxu0
      %v1518 = vadd.f32 %v846, %v1517
      %v1519 = vpop.f32.mrb[0].mxu0
      %v1520 = vadd.f32 %v846, %v1519
      %v1521 = vpop.f32.mrb[0].mxu0
      %v1522 = vadd.f32 %v851, %v1521
      %v1523 = vpop.f32.mrb[0].mxu0
      %v1524 = vadd.f32 %v851, %v1523
      %1525 = vmatprep.mubr.bf16.mxu0 %v1278
      %1526 = vmatmul.mubr.bf16.gmra.mrb[0].mxu0 %v1277
      %v1527 = vpop.f32.mrb[0].mxu0
      %v1528 = vadd.f32 %v856, %v1527
      %v1529 = vpop.f32.mrb[0].mxu0
      %v1530 = vadd.f32 %v856, %v1529
      %v1531 = vpop.f32.mrb[0].mxu0
      %v1532 = vadd.f32 %v861, %v1531
      %v1533 = vpop.f32.mrb[0].mxu0
      %v1534 = vadd.f32 %v861, %v1533
      %1535 = vmatprep.mubr.bf16.mxu0 %v1280
      %1536 = vmatmul.mubr.bf16.gmra.mrb[0].mxu0 %v1279
      %v1537 = vpop.f32.mrb[0].mxu0
      %v1538 = vadd.f32 %v866, %v1537
      %v1539 = vpop.f32.mrb[0].mxu0
      %v1540 = vadd.f32 %v866, %v1539
      %v1541 = vpop.f32.mrb[0].mxu0
      %v1542 = vadd.f32 %v871, %v1541
      %v1543 = vpop.f32.mrb[0].mxu0
      %v1544 = vadd.f32 %v871, %v1543
      %1545 = vmatprep.mubr.bf16.mxu0 %v1282
      %1546 = vmatmul.mubr.bf16.gmra.mrb[0].mxu0 %v1281
      %v1547 = vpop.f32.mrb[0].mxu0
      %v1548 = vadd.f32 %v876, %v1547
      %v1549 = vpop.f32.mrb[0].mxu0
      %v1550 = vadd.f32 %v876, %v1549
      %v1551 = vpop.f32.mrb[0].mxu0
      %v1552 = vadd.f32 %v881, %v1551
      %v1553 = vpop.f32.mrb[0].mxu0
      %v1554 = vadd.f32 %v881, %v1553
      %1555 = vmatprep.mubr.bf16.mxu0 %v1284
      %1556 = vmatmul.mubr.bf16.gmra.mrb[0].mxu0 %v1283
      %v1557 = vpop.f32.mrb[0].mxu0
      %v1558 = vadd.f32 %v886, %v1557
      %v1559 = vpop.f32.mrb[0].mxu0
      %v1560 = vadd.f32 %v886, %v1559
      %v1561 = vpop.f32.mrb[0].mxu0
      %v1562 = vadd.f32 %v891, %v1561
      %v1563 = vpop.f32.mrb[0].mxu0
      %v1564 = vadd.f32 %v891, %v1563
      %1565 = vmatprep.mubr.bf16.mxu0 %v1286
      %1566 = vmatmul.mubr.bf16.gmra.mrb[0].mxu0 %v1285
      %v1567 = vpop.f32.mrb[0].mxu0
      %v1568 = vadd.f32 %v896, %v1567
      %v1569 = vpop.f32.mrb[0].mxu0
      %v1570 = vadd.f32 %v896, %v1569
      %v1571 = vpop.f32.mrb[0].mxu0
      %v1572 = vadd.f32 %v901, %v1571
      %v1573 = vpop.f32.mrb[0].mxu0
      %v1574 = vadd.f32 %v901, %v1573
      %1575 = vmatprep.mubr.bf16.mxu0 %v1288
      %1576 = vmatmul.mubr.bf16.gmra.mrb[0].mxu0 %v1287
      %v1577 = vpop.f32.mrb[0].mxu0
      %v1578 = vadd.f32 %v906, %v1577
      %v1579 = vpop.f32.mrb[0].mxu0
      %v1580 = vadd.f32 %v906, %v1579
      %v1581 = vpop.f32.mrb[0].mxu0
      %v1582 = vadd.f32 %v911, %v1581
      %v1583 = vpop.f32.mrb[0].mxu0
      %v1584 = vadd.f32 %v911, %v1583
      %1585 = vmatprep.mubr.bf16.mxu0 %v1290
      %1586 = vmatmul.mubr.bf16.gmra.mrb[0].mxu0 %v1289
      %v1587 = vpop.f32.mrb[0].mxu0
      %v1588 = vadd.f32 %v916, %v1587
      %v1589 = vpop.f32.mrb[0].mxu0
      %v1590 = vadd.f32 %v916, %v1589
      %v1591 = vpop.f32.mrb[0].mxu0
      %v1592 = vadd.f32 %v921, %v1591
      %v1593 = vpop.f32.mrb[0].mxu0
      %v1594 = vadd.f32 %v921, %v1593
      %1595 = vmatprep.mubr.bf16.mxu0 %v1292
      %1596 = vmatmul.mubr.bf16.gmra.mrb[0].mxu0 %v1291
      %v1597 = vpop.f32.mrb[0].mxu0
      %v1598 = vadd.f32 %v926, %v1597
      %v1599 = vpop.f32.mrb[0].mxu0
      %v1600 = vadd.f32 %v926, %v1599
      %v1601 = vpop.f32.mrb[0].mxu0
      %v1602 = vadd.f32 %v931, %v1601
      %v1603 = vpop.f32.mrb[0].mxu0
      %v1604 = vadd.f32 %v931, %v1603
      %1605 = vmatprep.mubr.bf16.mxu0 %v1294
      %1606 = vmatmul.mubr.bf16.gmra.mrb[0].mxu0 %v1293
      %v1607 = vpop.f32.mrb[0].mxu0
      %v1608 = vadd.f32 %v936, %v1607
      %v1609 = vpop.f32.mrb[0].mxu0
      %v1610 = vadd.f32 %v936, %v1609
      %v1611 = vpop.f32.mrb[0].mxu0
      %v1612 = vadd.f32 %v941, %v1611
      %v1613 = vpop.f32.mrb[0].mxu0
      %v1614 = vadd.f32 %v941, %v1613
      %1615 = vmatprep.mubr.bf16.mxu0 %v1296
      %1616 = vmatmul.mubr.bf16.gmra.mrb[0].mxu0 %v1295
      %v1617 = vpop.f32.mrb[0].mxu0
      %v1618 = vadd.f32 %v946, %v1617
      %v1619 = vpop.f32.mrb[0].mxu0
      %v1620 = vadd.f32 %v946, %v1619
      %v1621 = vpop.f32.mrb[0].mxu0
      %v1622 = vadd.f32 %v951, %v1621
      %v1623 = vpop.f32.mrb[0].mxu0
      %v1624 = vadd.f32 %v951, %v1623
      %1625 = vmatprep.mubr.bf16.mxu0 %v1298
      %1626 = vmatmul.mubr.bf16.gmra.mrb[0].mxu0 %v1297
      %v1627 = vpop.f32.mrb[0].mxu0
      %v1628 = vadd.f32 %v956, %v1627
      %v1629 = vpop.f32.mrb[0].mxu0
      %v1630 = vadd.f32 %v956, %v1629
      %v1631 = vpop.f32.mrb[0].mxu0
      %v1632 = vadd.f32 %v961, %v1631
      %v1633 = vpop.f32.mrb[0].mxu0
      %v1634 = vadd.f32 %v961, %v1633
      %1635 = vmatprep.mubr.bf16.mxu0 %v1300
      %1636 = vmatmul.mubr.bf16.gmra.mrb[0].mxu0 %v1299
      %v1637 = vpop.f32.mrb[0].mxu0
      %v1638 = vadd.f32 %v966, %v1637
      %v1639 = vpop.f32.mrb[0].mxu0
      %v1640 = vadd.f32 %v966, %v1639
      %v1641 = vpop.f32.mrb[0].mxu0
      %v1642 = vadd.f32 %v971, %v1641
      %v1643 = vpop.f32.mrb[0].mxu0
      %v1644 = vadd.f32 %v971, %v1643
      %1645 = vmatprep.mubr.bf16.mxu0 %v1302
      %1646 = vmatmul.mubr.bf16.gmra.mrb[0].mxu0 %v1301
      %v1647 = vpop.f32.mrb[0].mxu0
      %v1648 = vadd.f32 %v976, %v1647
      %v1649 = vpop.f32.mrb[0].mxu0
      %v1650 = vadd.f32 %v976, %v1649
      %v1651 = vpop.f32.mrb[0].mxu0
      %v1652 = vadd.f32 %v981, %v1651
      %v1653 = vpop.f32.mrb[0].mxu0
      %v1654 = vadd.f32 %v981, %v1653
      %1655 = vmatprep.mubr.bf16.mxu0 %v1304
      %1656 = vmatmul.mubr.bf16.gmra.mrb[0].mxu0 %v1303
      %v1657 = vpop.f32.mrb[0].mxu0
      %v1658 = vadd.f32 %v986, %v1657
      %v1659 = vpop.f32.mrb[0].mxu0
      %v1660 = vadd.f32 %v986, %v1659
      %v1661 = vpop.f32.mrb[0].mxu0
      %v1662 = vadd.f32 %v991, %v1661
      %v1663 = vpop.f32.mrb[0].mxu0
      %v1664 = vadd.f32 %v991, %v1663
      %1665 = vmatprep.mubr.bf16.mxu0 %v1306
      %1666 = vmatmul.mubr.bf16.gmra.mrb[0].mxu0 %v1305
      %v1667 = vpop.f32.mrb[0].mxu0
      %v1668 = vadd.f32 %v996, %v1667
      %v1669 = vpop.f32.mrb[0].mxu0
      %v1670 = vadd.f32 %v996, %v1669
      %v1671 = vpop.f32.mrb[0].mxu0
      %v1672 = vadd.f32 %v1001, %v1671
      %v1673 = vpop.f32.mrb[0].mxu0
      %v1674 = vadd.f32 %v1001, %v1673
      %1675 = vmatprep.mubr.bf16.mxu0 %v1308
      %1676 = vmatmul.mubr.bf16.gmra.mrb[0].mxu0 %v1307
      %v1677 = vpop.f32.mrb[0].mxu0
      %v1678 = vadd.f32 %v1006, %v1677
      %v1679 = vpop.f32.mrb[0].mxu0
      %v1680 = vadd.f32 %v1006, %v1679
      %v1681 = vpop.f32.mrb[0].mxu0
      %v1682 = vadd.f32 %v1011, %v1681
      %v1683 = vpop.f32.mrb[0].mxu0
      %v1684 = vadd.f32 %v1011, %v1683
      %1685 = vmatprep.mubr.bf16.mxu0 %v1310
      %1686 = vmatmul.mubr.bf16.gmra.mrb[0].mxu0 %v1309
      %v1687 = vpop.f32.mrb[0].mxu0
      %v1688 = vadd.f32 %v1016, %v1687
      %v1689 = vpop.f32.mrb[0].mxu0
      %v1690 = vadd.f32 %v1016, %v1689
      %v1691 = vpop.f32.mrb[0].mxu0
      %v1692 = vadd.f32 %v1021, %v1691
      %v1693 = vpop.f32.mrb[0].mxu0
      %v1694 = vadd.f32 %v1021, %v1693
      %1695 = vmatprep.mubr.bf16.mxu0 %v1312
      %1696 = vmatmul.mubr.bf16.gmra.mrb[0].mxu0 %v1311
      %v1697 = vpop.f32.mrb[0].mxu0
      %v1698 = vadd.f32 %v1026, %v1697
      %v1699 = vpop.f32.mrb[0].mxu0
      %v1700 = vadd.f32 %v1026, %v1699
      %v1701 = vpop.f32.mrb[0].mxu0
      %v1702 = vadd.f32 %v1031, %v1701
      %v1703 = vpop.f32.mrb[0].mxu0
      %v1704 = vadd.f32 %v1031, %v1703
      %1705 = vmatprep.mubr.bf16.mxu0 %v1314
      %1706 = vmatmul.mubr.bf16.gmra.mrb[0].mxu0 %v1313
      %v1707 = vpop.f32.mrb[0].mxu0
      %v1708 = vadd.f32 %v1036, %v1707
      %v1709 = vpop.f32.mrb[0].mxu0
      %v1710 = vadd.f32 %v1036, %v1709
      %v1711 = vpop.f32.mrb[0].mxu0
      %v1712 = vadd.f32 %v1041, %v1711
      %v1713 = vpop.f32.mrb[0].mxu0
      %v1714 = vadd.f32 %v1041, %v1713
      %1715 = vmatprep.mubr.bf16.mxu0 %v1316
      %1716 = vmatmul.mubr.bf16.gmra.mrb[0].mxu0 %v1315
      %v1717 = vpop.f32.mrb[0].mxu0
      %v1718 = vadd.f32 %v1046, %v1717
      %v1719 = vpop.f32.mrb[0].mxu0
      %v1720 = vadd.f32 %v1046, %v1719
      %v1721 = vpop.f32.mrb[0].mxu0
      %v1722 = vadd.f32 %v1051, %v1721
      %v1723 = vpop.f32.mrb[0].mxu0
      %v1724 = vadd.f32 %v1051, %v1723
      %1725 = vmatprep.mubr.bf16.mxu0 %v1318
      %1726 = vmatmul.mubr.bf16.gmra.mrb[0].mxu0 %v1317
      %v1727 = vpop.f32.mrb[0].mxu0
      %v1728 = vadd.f32 %v1056, %v1727
      %v1729 = vpop.f32.mrb[0].mxu0
      %v1730 = vadd.f32 %v1056, %v1729
      %v1731 = vpop.f32.mrb[0].mxu0
      %v1732 = vadd.f32 %v1061, %v1731
      %v1733 = vpop.f32.mrb[0].mxu0
      %v1734 = vadd.f32 %v1061, %v1733
      %1735 = vdwg.mxu0
      %1736 = vmatprep.subr.bf16.mxu0 %v554
      %1737 = vmatpush1.bf16.msra.mxu0 %v553
      %1738 = vmatprep.subr.bf16.mxu0 %v558
      %1739 = vmatpush1.bf16.msra.mxu0 %v557
      %1740 = vmatprep.subr.bf16.mxu0 %v562
      %1741 = vmatpush1.bf16.msra.mxu0 %v561
      %1742 = vmatprep.subr.bf16.mxu0 %v566
      %1743 = vmatpush1.bf16.msra.mxu0 %v565
      %1744 = vmatprep.subr.bf16.mxu0 %v570
      %1745 = vmatpush1.bf16.msra.mxu0 %v569
      %1746 = vmatprep.subr.bf16.mxu0 %v574
      %1747 = vmatpush1.bf16.msra.mxu0 %v573
      %1748 = vmatprep.subr.bf16.mxu0 %v578
      %1749 = vmatpush1.bf16.msra.mxu0 %v577
      %1750 = vmatprep.subr.bf16.mxu0 %v582
      %1751 = vmatpush1.bf16.msra.mxu0 %v581
      %1752 = vmatprep.subr.bf16.mxu0 %v586
      %1753 = vmatpush1.bf16.msra.mxu0 %v585
      %1754 = vmatprep.subr.bf16.mxu0 %v590
      %1755 = vmatpush1.bf16.msra.mxu0 %v589
      %1756 = vmatprep.subr.bf16.mxu0 %v594
      %1757 = vmatpush1.bf16.msra.mxu0 %v593
      %1758 = vmatprep.subr.bf16.mxu0 %v598
      %1759 = vmatpush1.bf16.msra.mxu0 %v597
      %1760 = vmatprep.subr.bf16.mxu0 %v602
      %1761 = vmatpush1.bf16.msra.mxu0 %v601
      %1762 = vmatprep.subr.bf16.mxu0 %v606
      %1763 = vmatpush1.bf16.msra.mxu0 %v605
      %1764 = vmatprep.subr.bf16.mxu0 %v610
      %1765 = vmatpush1.bf16.msra.mxu0 %v609
      %1766 = vmatprep.subr.bf16.mxu0 %v614
      %1767 = vmatpush1.bf16.msra.mxu0 %v613
      %1768 = vmatprep.mubr.bf16.mxu0 %v1256
      %1769 = vmatmul.mubr.bf16.gmra.mrb[0].mxu0 %v1255
      %v1770 = vpop.f32.mrb[0].mxu0
      %v1771 = vadd.f32 %v746, %v1770
      %v1772 = vpop.f32.mrb[0].mxu0
      %v1773 = vadd.f32 %v746, %v1772
      %v1774 = vpop.f32.mrb[0].mxu0
      %v1775 = vadd.f32 %v751, %v1774
      %v1776 = vpop.f32.mrb[0].mxu0
      %v1777 = vadd.f32 %v751, %v1776
      %1778 = vmatprep.mubr.bf16.mxu0 %v1258
      %1779 = vmatmul.mubr.bf16.gmra.mrb[0].mxu0 %v1257
      %v1780 = vpop.f32.mrb[0].mxu0
      %v1781 = vadd.f32 %v756, %v1780
      %v1782 = vpop.f32.mrb[0].mxu0
      %v1783 = vadd.f32 %v756, %v1782
      %v1784 = vpop.f32.mrb[0].mxu0
      %v1785 = vadd.f32 %v761, %v1784
      %v1786 = vpop.f32.mrb[0].mxu0
      %v1787 = vadd.f32 %v761, %v1786
      %1788 = vmatprep.mubr.bf16.mxu0 %v1260
      %1789 = vmatmul.mubr.bf16.gmra.mrb[0].mxu0 %v1259
      %v1790 = vpop.f32.mrb[0].mxu0
      %v1791 = vadd.f32 %v766, %v1790
      %v1792 = vpop.f32.mrb[0].mxu0
      %v1793 = vadd.f32 %v766, %v1792
      %v1794 = vpop.f32.mrb[0].mxu0
      %v1795 = vadd.f32 %v771, %v1794
      %v1796 = vpop.f32.mrb[0].mxu0
      %v1797 = vadd.f32 %v771, %v1796
      %1798 = vmatprep.mubr.bf16.mxu0 %v1262
      %1799 = vmatmul.mubr.bf16.gmra.mrb[0].mxu0 %v1261
      %v1800 = vpop.f32.mrb[0].mxu0
      %v1801 = vadd.f32 %v776, %v1800
      %v1802 = vpop.f32.mrb[0].mxu0
      %v1803 = vadd.f32 %v776, %v1802
      %v1804 = vpop.f32.mrb[0].mxu0
      %v1805 = vadd.f32 %v781, %v1804
      %v1806 = vpop.f32.mrb[0].mxu0
      %v1807 = vadd.f32 %v781, %v1806
      %1808 = vmatprep.mubr.bf16.mxu0 %v1264
      %1809 = vmatmul.mubr.bf16.gmra.mrb[0].mxu0 %v1263
      %v1810 = vpop.f32.mrb[0].mxu0
      %v1811 = vadd.f32 %v786, %v1810
      %v1812 = vpop.f32.mrb[0].mxu0
      %v1813 = vadd.f32 %v786, %v1812
      %v1814 = vpop.f32.mrb[0].mxu0
      %v1815 = vadd.f32 %v791, %v1814
      %v1816 = vpop.f32.mrb[0].mxu0
      %v1817 = vadd.f32 %v791, %v1816
      %1818 = vmatprep.mubr.bf16.mxu0 %v1266
      %1819 = vmatmul.mubr.bf16.gmra.mrb[0].mxu0 %v1265
      %v1820 = vpop.f32.mrb[0].mxu0
      %v1821 = vadd.f32 %v796, %v1820
      %v1822 = vpop.f32.mrb[0].mxu0
      %v1823 = vadd.f32 %v796, %v1822
      %v1824 = vpop.f32.mrb[0].mxu0
      %v1825 = vadd.f32 %v801, %v1824
      %v1826 = vpop.f32.mrb[0].mxu0
      %v1827 = vadd.f32 %v801, %v1826
      %1828 = vmatprep.mubr.bf16.mxu0 %v1268
      %1829 = vmatmul.mubr.bf16.gmra.mrb[0].mxu0 %v1267
      %v1830 = vpop.f32.mrb[0].mxu0
      %v1831 = vadd.f32 %v806, %v1830
      %v1832 = vpop.f32.mrb[0].mxu0
      %v1833 = vadd.f32 %v806, %v1832
      %v1834 = vpop.f32.mrb[0].mxu0
      %v1835 = vadd.f32 %v811, %v1834
      %v1836 = vpop.f32.mrb[0].mxu0
      %v1837 = vadd.f32 %v811, %v1836
      %1838 = vmatprep.mubr.bf16.mxu0 %v1270
      %1839 = vmatmul.mubr.bf16.gmra.mrb[0].mxu0 %v1269
      %v1840 = vpop.f32.mrb[0].mxu0
      %v1841 = vadd.f32 %v816, %v1840
      %v1842 = vpop.f32.mrb[0].mxu0
      %v1843 = vadd.f32 %v816, %v1842
      %v1844 = vpop.f32.mrb[0].mxu0
      %v1845 = vadd.f32 %v821, %v1844
      %v1846 = vpop.f32.mrb[0].mxu0
      %v1847 = vadd.f32 %v821, %v1846
      %1848 = vmatprep.mubr.bf16.mxu0 %v1272
      %1849 = vmatmul.mubr.bf16.gmra.mrb[0].mxu0 %v1271
      %v1850 = vpop.f32.mrb[0].mxu0
      %v1851 = vadd.f32 %v826, %v1850
      %v1852 = vpop.f32.mrb[0].mxu0
      %v1853 = vadd.f32 %v826, %v1852
      %v1854 = vpop.f32.mrb[0].mxu0
      %v1855 = vadd.f32 %v831, %v1854
      %v1856 = vpop.f32.mrb[0].mxu0
      %v1857 = vadd.f32 %v831, %v1856
      %1858 = vmatprep.mubr.bf16.mxu0 %v1274
      %1859 = vmatmul.mubr.bf16.gmra.mrb[0].mxu0 %v1273
      %v1860 = vpop.f32.mrb[0].mxu0
      %v1861 = vadd.f32 %v836, %v1860
      %v1862 = vpop.f32.mrb[0].mxu0
      %v1863 = vadd.f32 %v836, %v1862
      %v1864 = vpop.f32.mrb[0].mxu0
      %v1865 = vadd.f32 %v841, %v1864
      %v1866 = vpop.f32.mrb[0].mxu0
      %v1867 = vadd.f32 %v841, %v1866
      %1868 = vmatprep.mubr.bf16.mxu0 %v1276
      %1869 = vmatmul.mubr.bf16.gmra.mrb[0].mxu0 %v1275
      %v1870 = vpop.f32.mrb[0].mxu0
      %v1871 = vadd.f32 %v846, %v1870
      %v1872 = vpop.f32.mrb[0].mxu0
      %v1873 = vadd.f32 %v846, %v1872
      %v1874 = vpop.f32.mrb[0].mxu0
      %v1875 = vadd.f32 %v851, %v1874
      %v1876 = vpop.f32.mrb[0].mxu0
      %v1877 = vadd.f32 %v851, %v1876
      %1878 = vmatprep.mubr.bf16.mxu0 %v1278
      %1879 = vmatmul.mubr.bf16.gmra.mrb[0].mxu0 %v1277
      %v1880 = vpop.f32.mrb[0].mxu0
      %v1881 = vadd.f32 %v856, %v1880
      %v1882 = vpop.f32.mrb[0].mxu0
      %v1883 = vadd.f32 %v856, %v1882
      %v1884 = vpop.f32.mrb[0].mxu0
      %v1885 = vadd.f32 %v861, %v1884
      %v1886 = vpop.f32.mrb[0].mxu0
      %v1887 = vadd.f32 %v861, %v1886
      %1888 = vmatprep.mubr.bf16.mxu0 %v1280
      %1889 = vmatmul.mubr.bf16.gmra.mrb[0].mxu0 %v1279
      %v1890 = vpop.f32.mrb[0].mxu0
      %v1891 = vadd.f32 %v866, %v1890
      %v1892 = vpop.f32.mrb[0].mxu0
      %v1893 = vadd.f32 %v866, %v1892
      %v1894 = vpop.f32.mrb[0].mxu0
      %v1895 = vadd.f32 %v871, %v1894
      %v1896 = vpop.f32.mrb[0].mxu0
      %v1897 = vadd.f32 %v871, %v1896
      %1898 = vmatprep.mubr.bf16.mxu0 %v1282
      %1899 = vmatmul.mubr.bf16.gmra.mrb[0].mxu0 %v1281
      %v1900 = vpop.f32.mrb[0].mxu0
      %v1901 = vadd.f32 %v876, %v1900
      %v1902 = vpop.f32.mrb[0].mxu0
      %v1903 = vadd.f32 %v876, %v1902
      %v1904 = vpop.f32.mrb[0].mxu0
      %v1905 = vadd.f32 %v881, %v1904
      %v1906 = vpop.f32.mrb[0].mxu0
      %v1907 = vadd.f32 %v881, %v1906
      %1908 = vmatprep.mubr.bf16.mxu0 %v1284
      %1909 = vmatmul.mubr.bf16.gmra.mrb[0].mxu0 %v1283
      %v1910 = vpop.f32.mrb[0].mxu0
      %v1911 = vadd.f32 %v886, %v1910
      %v1912 = vpop.f32.mrb[0].mxu0
      %v1913 = vadd.f32 %v886, %v1912
      %v1914 = vpop.f32.mrb[0].mxu0
      %v1915 = vadd.f32 %v891, %v1914
      %v1916 = vpop.f32.mrb[0].mxu0
      %v1917 = vadd.f32 %v891, %v1916
      %1918 = vmatprep.mubr.bf16.mxu0 %v1286
      %1919 = vmatmul.mubr.bf16.gmra.mrb[0].mxu0 %v1285
      %v1920 = vpop.f32.mrb[0].mxu0
      %v1921 = vadd.f32 %v896, %v1920
      %v1922 = vpop.f32.mrb[0].mxu0
      %v1923 = vadd.f32 %v896, %v1922
      %v1924 = vpop.f32.mrb[0].mxu0
      %v1925 = vadd.f32 %v901, %v1924
      %v1926 = vpop.f32.mrb[0].mxu0
      %v1927 = vadd.f32 %v901, %v1926
      %1928 = vmatprep.mubr.bf16.mxu0 %v1288
      %1929 = vmatmul.mubr.bf16.gmra.mrb[0].mxu0 %v1287
      %v1930 = vpop.f32.mrb[0].mxu0
      %v1931 = vadd.f32 %v906, %v1930
      %v1932 = vpop.f32.mrb[0].mxu0
      %v1933 = vadd.f32 %v906, %v1932
      %v1934 = vpop.f32.mrb[0].mxu0
      %v1935 = vadd.f32 %v911, %v1934
      %v1936 = vpop.f32.mrb[0].mxu0
      %v1937 = vadd.f32 %v911, %v1936
      %1938 = vmatprep.mubr.bf16.mxu0 %v1290
      %1939 = vmatmul.mubr.bf16.gmra.mrb[0].mxu0 %v1289
      %v1940 = vpop.f32.mrb[0].mxu0
      %v1941 = vadd.f32 %v916, %v1940
      %v1942 = vpop.f32.mrb[0].mxu0
      %v1943 = vadd.f32 %v916, %v1942
      %v1944 = vpop.f32.mrb[0].mxu0
      %v1945 = vadd.f32 %v921, %v1944
      %v1946 = vpop.f32.mrb[0].mxu0
      %v1947 = vadd.f32 %v921, %v1946
      %1948 = vmatprep.mubr.bf16.mxu0 %v1292
      %1949 = vmatmul.mubr.bf16.gmra.mrb[0].mxu0 %v1291
      %v1950 = vpop.f32.mrb[0].mxu0
      %v1951 = vadd.f32 %v926, %v1950
      %v1952 = vpop.f32.mrb[0].mxu0
      %v1953 = vadd.f32 %v926, %v1952
      %v1954 = vpop.f32.mrb[0].mxu0
      %v1955 = vadd.f32 %v931, %v1954
      %v1956 = vpop.f32.mrb[0].mxu0
      %v1957 = vadd.f32 %v931, %v1956
      %1958 = vmatprep.mubr.bf16.mxu0 %v1294
      %1959 = vmatmul.mubr.bf16.gmra.mrb[0].mxu0 %v1293
      %v1960 = vpop.f32.mrb[0].mxu0
      %v1961 = vadd.f32 %v936, %v1960
      %v1962 = vpop.f32.mrb[0].mxu0
      %v1963 = vadd.f32 %v936, %v1962
      %v1964 = vpop.f32.mrb[0].mxu0
      %v1965 = vadd.f32 %v941, %v1964
      %v1966 = vpop.f32.mrb[0].mxu0
      %v1967 = vadd.f32 %v941, %v1966
      %1968 = vmatprep.mubr.bf16.mxu0 %v1296
      %1969 = vmatmul.mubr.bf16.gmra.mrb[0].mxu0 %v1295
      %v1970 = vpop.f32.mrb[0].mxu0
      %v1971 = vadd.f32 %v946, %v1970
      %v1972 = vpop.f32.mrb[0].mxu0
      %v1973 = vadd.f32 %v946, %v1972
      %v1974 = vpop.f32.mrb[0].mxu0
      %v1975 = vadd.f32 %v951, %v1974
      %v1976 = vpop.f32.mrb[0].mxu0
      %v1977 = vadd.f32 %v951, %v1976
      %1978 = vmatprep.mubr.bf16.mxu0 %v1298
      %1979 = vmatmul.mubr.bf16.gmra.mrb[0].mxu0 %v1297
      %v1980 = vpop.f32.mrb[0].mxu0
      %v1981 = vadd.f32 %v956, %v1980
      %v1982 = vpop.f32.mrb[0].mxu0
      %v1983 = vadd.f32 %v956, %v1982
      %v1984 = vpop.f32.mrb[0].mxu0
      %v1985 = vadd.f32 %v961, %v1984
      %v1986 = vpop.f32.mrb[0].mxu0
      %v1987 = vadd.f32 %v961, %v1986
      %1988 = vmatprep.mubr.bf16.mxu0 %v1300
      %1989 = vmatmul.mubr.bf16.gmra.mrb[0].mxu0 %v1299
      %v1990 = vpop.f32.mrb[0].mxu0
      %v1991 = vadd.f32 %v966, %v1990
      %v1992 = vpop.f32.mrb[0].mxu0
      %v1993 = vadd.f32 %v966, %v1992
      %v1994 = vpop.f32.mrb[0].mxu0
      %v1995 = vadd.f32 %v971, %v1994
      %v1996 = vpop.f32.mrb[0].mxu0
      %v1997 = vadd.f32 %v971, %v1996
      %1998 = vmatprep.mubr.bf16.mxu0 %v1302
      %1999 = vmatmul.mubr.bf16.gmra.mrb[0].mxu0 %v1301
      %v2000 = vpop.f32.mrb[0].mxu0
      %v2001 = vadd.f32 %v976, %v2000
      %v2002 = vpop.f32.mrb[0].mxu0
      %v2003 = vadd.f32 %v976, %v2002
      %v2004 = vpop.f32.mrb[0].mxu0
      %v2005 = vadd.f32 %v981, %v2004
      %v2006 = vpop.f32.mrb[0].mxu0
      %v2007 = vadd.f32 %v981, %v2006
      %2008 = vmatprep.mubr.bf16.mxu0 %v1304
      %2009 = vmatmul.mubr.bf16.gmra.mrb[0].mxu0 %v1303
      %v2010 = vpop.f32.mrb[0].mxu0
      %v2011 = vadd.f32 %v986, %v2010
      %v2012 = vpop.f32.mrb[0].mxu0
      %v2013 = vadd.f32 %v986, %v2012
      %v2014 = vpop.f32.mrb[0].mxu0
      %v2015 = vadd.f32 %v991, %v2014
      %v2016 = vpop.f32.mrb[0].mxu0
      %v2017 = vadd.f32 %v991, %v2016
      %2018 = vmatprep.mubr.bf16.mxu0 %v1306
      %2019 = vmatmul.mubr.bf16.gmra.mrb[0].mxu0 %v1305
      %v2020 = vpop.f32.mrb[0].mxu0
      %v2021 = vadd.f32 %v996, %v2020
      %v2022 = vpop.f32.mrb[0].mxu0
      %v2023 = vadd.f32 %v996, %v2022
      %v2024 = vpop.f32.mrb[0].mxu0
      %v2025 = vadd.f32 %v1001, %v2024
      %v2026 = vpop.f32.mrb[0].mxu0
      %v2027 = vadd.f32 %v1001, %v2026
      %2028 = vmatprep.mubr.bf16.mxu0 %v1308
      %2029 = vmatmul.mubr.bf16.gmra.mrb[0].mxu0 %v1307
      %v2030 = vpop.f32.mrb[0].mxu0
      %v2031 = vadd.f32 %v1006, %v2030
      %v2032 = vpop.f32.mrb[0].mxu0
      %v2033 = vadd.f32 %v1006, %v2032
      %v2034 = vpop.f32.mrb[0].mxu0
      %v2035 = vadd.f32 %v1011, %v2034
      %v2036 = vpop.f32.mrb[0].mxu0
      %v2037 = vadd.f32 %v1011, %v2036
      %2038 = vmatprep.mubr.bf16.mxu0 %v1310
      %2039 = vmatmul.mubr.bf16.gmra.mrb[0].mxu0 %v1309
      %v2040 = vpop.f32.mrb[0].mxu0
      %v2041 = vadd.f32 %v1016, %v2040
      %v2042 = vpop.f32.mrb[0].mxu0
      %v2043 = vadd.f32 %v1016, %v2042
      %v2044 = vpop.f32.mrb[0].mxu0
      %v2045 = vadd.f32 %v1021, %v2044
      %v2046 = vpop.f32.mrb[0].mxu0
      %v2047 = vadd.f32 %v1021, %v2046
      %2048 = vmatprep.mubr.bf16.mxu0 %v1312
      %2049 = vmatmul.mubr.bf16.gmra.mrb[0].mxu0 %v1311
      %v2050 = vpop.f32.mrb[0].mxu0
      %v2051 = vadd.f32 %v1026, %v2050
      %v2052 = vpop.f32.mrb[0].mxu0
      %v2053 = vadd.f32 %v1026, %v2052
      %v2054 = vpop.f32.mrb[0].mxu0
      %v2055 = vadd.f32 %v1031, %v2054
      %v2056 = vpop.f32.mrb[0].mxu0
      %v2057 = vadd.f32 %v1031, %v2056
      %2058 = vmatprep.mubr.bf16.mxu0 %v1314
      %2059 = vmatmul.mubr.bf16.gmra.mrb[0].mxu0 %v1313
      %v2060 = vpop.f32.mrb[0].mxu0
      %v2061 = vadd.f32 %v1036, %v2060
      %v2062 = vpop.f32.mrb[0].mxu0
      %v2063 = vadd.f32 %v1036, %v2062
      %v2064 = vpop.f32.mrb[0].mxu0
      %v2065 = vadd.f32 %v1041, %v2064
      %v2066 = vpop.f32.mrb[0].mxu0
      %v2067 = vadd.f32 %v1041, %v2066
      %2068 = vmatprep.mubr.bf16.mxu0 %v1316
      %2069 = vmatmul.mubr.bf16.gmra.mrb[0].mxu0 %v1315
      %v2070 = vpop.f32.mrb[0].mxu0
      %v2071 = vadd.f32 %v1046, %v2070
      %v2072 = vpop.f32.mrb[0].mxu0
      %v2073 = vadd.f32 %v1046, %v2072
      %v2074 = vpop.f32.mrb[0].mxu0
      %v2075 = vadd.f32 %v1051, %v2074
      %v2076 = vpop.f32.mrb[0].mxu0
      %v2077 = vadd.f32 %v1051, %v2076
      %2078 = vmatprep.mubr.bf16.mxu0 %v1318
      %2079 = vmatmul.mubr.bf16.gmra.mrb[0].mxu0 %v1317
      %v2080 = vpop.f32.mrb[0].mxu0
      %v2081 = vadd.f32 %v1056, %v2080
      %v2082 = vpop.f32.mrb[0].mxu0
      %v2083 = vadd.f32 %v1056, %v2082
      %v2084 = vpop.f32.mrb[0].mxu0
      %v2085 = vadd.f32 %v1061, %v2084
      %v2086 = vpop.f32.mrb[0].mxu0
      %v2087 = vadd.f32 %v1061, %v2086
      %2088 = vdwg.mxu0
      %v2089 = vmax.f32 %v1418, 0.0
      %v2090 = vmax.f32 %v1420, 0.0
      %v2091 = vmax.f32 %v1771, 0.0
      %v2092 = vmax.f32 %v1773, 0.0
      %v2093 = vmax.f32 %v1422, 0.0
      %v2094 = vmax.f32 %v1424, 0.0
      %v2095 = vmax.f32 %v1775, 0.0
      %v2096 = vmax.f32 %v1777, 0.0
      %v2097 = vmax.f32 %v1428, 0.0
      %v2098 = vmax.f32 %v1430, 0.0
      %v2099 = vmax.f32 %v1781, 0.0
      %v2100 = vmax.f32 %v1783, 0.0
      %v2101 = vmax.f32 %v1432, 0.0
      %v2102 = vmax.f32 %v1434, 0.0
      %v2103 = vmax.f32 %v1785, 0.0
      %v2104 = vmax.f32 %v1787, 0.0
      %v2105 = vmax.f32 %v1438, 0.0
      %v2106 = vmax.f32 %v1440, 0.0
      %v2107 = vmax.f32 %v1791, 0.0
      %v2108 = vmax.f32 %v1793, 0.0
      %v2109 = vmax.f32 %v1442, 0.0
      %v2110 = vmax.f32 %v1444, 0.0
      %v2111 = vmax.f32 %v1795, 0.0
      %v2112 = vmax.f32 %v1797, 0.0
      %v2113 = vmax.f32 %v1448, 0.0
      %v2114 = vmax.f32 %v1450, 0.0
      %v2115 = vmax.f32 %v1801, 0.0
      %v2116 = vmax.f32 %v1803, 0.0
      %v2117 = vmax.f32 %v1452, 0.0
      %v2118 = vmax.f32 %v1454, 0.0
      %v2119 = vmax.f32 %v1805, 0.0
      %v2120 = vmax.f32 %v1807, 0.0
      %v2121 = vmax.f32 %v1458, 0.0
      %v2122 = vmax.f32 %v1460, 0.0
      %v2123 = vmax.f32 %v1811, 0.0
      %v2124 = vmax.f32 %v1813, 0.0
      %v2125 = vmax.f32 %v1462, 0.0
      %v2126 = vmax.f32 %v1464, 0.0
      %v2127 = vmax.f32 %v1815, 0.0
      %v2128 = vmax.f32 %v1817, 0.0
      %v2129 = vmax.f32 %v1468, 0.0
      %v2130 = vmax.f32 %v1470, 0.0
      %v2131 = vmax.f32 %v1821, 0.0
      %v2132 = vmax.f32 %v1823, 0.0
      %v2133 = vmax.f32 %v1472, 0.0
      %v2134 = vmax.f32 %v1474, 0.0
      %v2135 = vmax.f32 %v1825, 0.0
      %v2136 = vmax.f32 %v1827, 0.0
      %v2137 = vmax.f32 %v1478, 0.0
      %v2138 = vmax.f32 %v1480, 0.0
      %v2139 = vmax.f32 %v1831, 0.0
      %v2140 = vmax.f32 %v1833, 0.0
      %v2141 = vmax.f32 %v1482, 0.0
      %v2142 = vmax.f32 %v1484, 0.0
      %v2143 = vmax.f32 %v1835, 0.0
      %v2144 = vmax.f32 %v1837, 0.0
      %v2145 = vmax.f32 %v1488, 0.0
      %v2146 = vmax.f32 %v1490, 0.0
      %v2147 = vmax.f32 %v1841, 0.0
      %v2148 = vmax.f32 %v1843, 0.0
      %v2149 = vmax.f32 %v1492, 0.0
      %v2150 = vmax.f32 %v1494, 0.0
      %v2151 = vmax.f32 %v1845, 0.0
      %v2152 = vmax.f32 %v1847, 0.0
      %v2153 = vmax.f32 %v1498, 0.0
      %v2154 = vmax.f32 %v1500, 0.0
      %v2155 = vmax.f32 %v1851, 0.0
      %v2156 = vmax.f32 %v1853, 0.0
      %v2157 = vmax.f32 %v1502, 0.0
      %v2158 = vmax.f32 %v1504, 0.0
      %v2159 = vmax.f32 %v1855, 0.0
      %v2160 = vmax.f32 %v1857, 0.0
      %v2161 = vmax.f32 %v1508, 0.0
      %v2162 = vmax.f32 %v1510, 0.0
      %v2163 = vmax.f32 %v1861, 0.0
      %v2164 = vmax.f32 %v1863, 0.0
      %v2165 = vmax.f32 %v1512, 0.0
      %v2166 = vmax.f32 %v1514, 0.0
      %v2167 = vmax.f32 %v1865, 0.0
      %v2168 = vmax.f32 %v1867, 0.0
      %v2169 = vmax.f32 %v1518, 0.0
      %v2170 = vmax.f32 %v1520, 0.0
      %v2171 = vmax.f32 %v1871, 0.0
      %v2172 = vmax.f32 %v1873, 0.0
      %v2173 = vmax.f32 %v1522, 0.0
      %v2174 = vmax.f32 %v1524, 0.0
      %v2175 = vmax.f32 %v1875, 0.0
      %v2176 = vmax.f32 %v1877, 0.0
      %v2177 = vmax.f32 %v1528, 0.0
      %v2178 = vmax.f32 %v1530, 0.0
      %v2179 = vmax.f32 %v1881, 0.0
      %v2180 = vmax.f32 %v1883, 0.0
      %v2181 = vmax.f32 %v1532, 0.0
      %v2182 = vmax.f32 %v1534, 0.0
      %v2183 = vmax.f32 %v1885, 0.0
      %v2184 = vmax.f32 %v1887, 0.0
      %v2185 = vmax.f32 %v1538, 0.0
      %v2186 = vmax.f32 %v1540, 0.0
      %v2187 = vmax.f32 %v1891, 0.0
      %v2188 = vmax.f32 %v1893, 0.0
      %v2189 = vmax.f32 %v1542, 0.0
      %v2190 = vmax.f32 %v1544, 0.0
      %v2191 = vmax.f32 %v1895, 0.0
      %v2192 = vmax.f32 %v1897, 0.0
      %v2193 = vmax.f32 %v1548, 0.0
      %v2194 = vmax.f32 %v1550, 0.0
      %v2195 = vmax.f32 %v1901, 0.0
      %v2196 = vmax.f32 %v1903, 0.0
      %v2197 = vmax.f32 %v1552, 0.0
      %v2198 = vmax.f32 %v1554, 0.0
      %v2199 = vmax.f32 %v1905, 0.0
      %v2200 = vmax.f32 %v1907, 0.0
      %v2201 = vmax.f32 %v1558, 0.0
      %v2202 = vmax.f32 %v1560, 0.0
      %v2203 = vmax.f32 %v1911, 0.0
      %v2204 = vmax.f32 %v1913, 0.0
      %v2205 = vmax.f32 %v1562, 0.0
      %v2206 = vmax.f32 %v1564, 0.0
      %v2207 = vmax.f32 %v1915, 0.0
      %v2208 = vmax.f32 %v1917, 0.0
      %v2209 = vmax.f32 %v1568, 0.0
      %v2210 = vmax.f32 %v1570, 0.0
      %v2211 = vmax.f32 %v1921, 0.0
      %v2212 = vmax.f32 %v1923, 0.0
      %v2213 = vmax.f32 %v1572, 0.0
      %v2214 = vmax.f32 %v1574, 0.0
      %v2215 = vmax.f32 %v1925, 0.0
      %v2216 = vmax.f32 %v1927, 0.0
      %v2217 = vmax.f32 %v1578, 0.0
      %v2218 = vmax.f32 %v1580, 0.0
      %v2219 = vmax.f32 %v1931, 0.0
      %v2220 = vmax.f32 %v1933, 0.0
      %v2221 = vmax.f32 %v1582, 0.0
      %v2222 = vmax.f32 %v1584, 0.0
      %v2223 = vmax.f32 %v1935, 0.0
      %v2224 = vmax.f32 %v1937, 0.0
      %v2225 = vmax.f32 %v1588, 0.0
      %v2226 = vmax.f32 %v1590, 0.0
      %v2227 = vmax.f32 %v1941, 0.0
      %v2228 = vmax.f32 %v1943, 0.0
      %v2229 = vmax.f32 %v1592, 0.0
      %v2230 = vmax.f32 %v1594, 0.0
      %v2231 = vmax.f32 %v1945, 0.0
      %v2232 = vmax.f32 %v1947, 0.0
      %v2233 = vmax.f32 %v1598, 0.0
      %v2234 = vmax.f32 %v1600, 0.0
      %v2235 = vmax.f32 %v1951, 0.0
      %v2236 = vmax.f32 %v1953, 0.0
      %v2237 = vmax.f32 %v1602, 0.0
      %v2238 = vmax.f32 %v1604, 0.0
      %v2239 = vmax.f32 %v1955, 0.0
      %v2240 = vmax.f32 %v1957, 0.0
      %v2241 = vmax.f32 %v1608, 0.0
      %v2242 = vmax.f32 %v1610, 0.0
      %v2243 = vmax.f32 %v1961, 0.0
      %v2244 = vmax.f32 %v1963, 0.0
      %v2245 = vmax.f32 %v1612, 0.0
      %v2246 = vmax.f32 %v1614, 0.0
      %v2247 = vmax.f32 %v1965, 0.0
      %v2248 = vmax.f32 %v1967, 0.0
      %v2249 = vmax.f32 %v1618, 0.0
      %v2250 = vmax.f32 %v1620, 0.0
      %v2251 = vmax.f32 %v1971, 0.0
      %v2252 = vmax.f32 %v1973, 0.0
      %v2253 = vmax.f32 %v1622, 0.0
      %v2254 = vmax.f32 %v1624, 0.0
      %v2255 = vmax.f32 %v1975, 0.0
      %v2256 = vmax.f32 %v1977, 0.0
      %v2257 = vmax.f32 %v1628, 0.0
      %v2258 = vmax.f32 %v1630, 0.0
      %v2259 = vmax.f32 %v1981, 0.0
      %v2260 = vmax.f32 %v1983, 0.0
      %v2261 = vmax.f32 %v1632, 0.0
      %v2262 = vmax.f32 %v1634, 0.0
      %v2263 = vmax.f32 %v1985, 0.0
      %v2264 = vmax.f32 %v1987, 0.0
      %v2265 = vmax.f32 %v1638, 0.0
      %v2266 = vmax.f32 %v1640, 0.0
      %v2267 = vmax.f32 %v1991, 0.0
      %v2268 = vmax.f32 %v1993, 0.0
      %v2269 = vmax.f32 %v1642, 0.0
      %v2270 = vmax.f32 %v1644, 0.0
      %v2271 = vmax.f32 %v1995, 0.0
      %v2272 = vmax.f32 %v1997, 0.0
      %v2273 = vmax.f32 %v1648, 0.0
      %v2274 = vmax.f32 %v1650, 0.0
      %v2275 = vmax.f32 %v2001, 0.0
      %v2276 = vmax.f32 %v2003, 0.0
      %v2277 = vmax.f32 %v1652, 0.0
      %v2278 = vmax.f32 %v1654, 0.0
      %v2279 = vmax.f32 %v2005, 0.0
      %v2280 = vmax.f32 %v2007, 0.0
      %v2281 = vmax.f32 %v1658, 0.0
      %v2282 = vmax.f32 %v1660, 0.0
      %v2283 = vmax.f32 %v2011, 0.0
      %v2284 = vmax.f32 %v2013, 0.0
      %v2285 = vmax.f32 %v1662, 0.0
      %v2286 = vmax.f32 %v1664, 0.0
      %v2287 = vmax.f32 %v2015, 0.0
      %v2288 = vmax.f32 %v2017, 0.0
      %v2289 = vmax.f32 %v1668, 0.0
      %v2290 = vmax.f32 %v1670, 0.0
      %v2291 = vmax.f32 %v2021, 0.0
      %v2292 = vmax.f32 %v2023, 0.0
      %v2293 = vmax.f32 %v1672, 0.0
      %v2294 = vmax.f32 %v1674, 0.0
      %v2295 = vmax.f32 %v2025, 0.0
      %v2296 = vmax.f32 %v2027, 0.0
      %v2297 = vmax.f32 %v1678, 0.0
      %v2298 = vmax.f32 %v1680, 0.0
      %v2299 = vmax.f32 %v2031, 0.0
      %v2300 = vmax.f32 %v2033, 0.0
      %v2301 = vmax.f32 %v1682, 0.0
      %v2302 = vmax.f32 %v1684, 0.0
      %v2303 = vmax.f32 %v2035, 0.0
      %v2304 = vmax.f32 %v2037, 0.0
      %v2305 = vmax.f32 %v1688, 0.0
      %v2306 = vmax.f32 %v1690, 0.0
      %v2307 = vmax.f32 %v2041, 0.0
      %v2308 = vmax.f32 %v2043, 0.0
      %v2309 = vmax.f32 %v1692, 0.0
      %v2310 = vmax.f32 %v1694, 0.0
      %v2311 = vmax.f32 %v2045, 0.0
      %v2312 = vmax.f32 %v2047, 0.0
      %v2313 = vmax.f32 %v1698, 0.0
      %v2314 = vmax.f32 %v1700, 0.0
      %v2315 = vmax.f32 %v2051, 0.0
      %v2316 = vmax.f32 %v2053, 0.0
      %v2317 = vmax.f32 %v1702, 0.0
      %v2318 = vmax.f32 %v1704, 0.0
      %v2319 = vmax.f32 %v2055, 0.0
      %v2320 = vmax.f32 %v2057, 0.0
      %v2321 = vmax.f32 %v1708, 0.0
      %v2322 = vmax.f32 %v1710, 0.0
      %v2323 = vmax.f32 %v2061, 0.0
      %v2324 = vmax.f32 %v2063, 0.0
      %v2325 = vmax.f32 %v1712, 0.0
      %v2326 = vmax.f32 %v1714, 0.0
      %v2327 = vmax.f32 %v2065, 0.0
      %v2328 = vmax.f32 %v2067, 0.0
      %v2329 = vmax.f32 %v1718, 0.0
      %v2330 = vmax.f32 %v1720, 0.0
      %v2331 = vmax.f32 %v2071, 0.0
      %v2332 = vmax.f32 %v2073, 0.0
      %v2333 = vmax.f32 %v1722, 0.0
      %v2334 = vmax.f32 %v1724, 0.0
      %v2335 = vmax.f32 %v2075, 0.0
      %v2336 = vmax.f32 %v2077, 0.0
      %v2337 = vmax.f32 %v1728, 0.0
      %v2338 = vmax.f32 %v1730, 0.0
      %v2339 = vmax.f32 %v2081, 0.0
      %v2340 = vmax.f32 %v2083, 0.0
      %v2341 = vmax.f32 %v1732, 0.0
      %v2342 = vmax.f32 %v1734, 0.0
      %v2343 = vmax.f32 %v2085, 0.0
      %v2344 = vmax.f32 %v2087, 0.0
      %v2345 = vld [vmem:[%s3] sm:$0xff]
      %v2346 = vld [vmem:[%s3 + $0x8] sm:$0xff]
      %v2347 = vld [vmem:[%s3 + $0x10] sm:$0xff]
      %v2348 = vld [vmem:[%s3 + $0x18] sm:$0xff]
      %v2349 = vld [vmem:[%s3 + $0x20] sm:$0xff]
      %v2350 = vld [vmem:[%s3 + $0x28] sm:$0xff]
      %v2351 = vld [vmem:[%s3 + $0x30] sm:$0xff]
      %v2352 = vld [vmem:[%s3 + $0x38] sm:$0xff]
      %v2353 = vld [vmem:[%s3 + $0x40] sm:$0xff]
      %v2354 = vld [vmem:[%s3 + $0x48] sm:$0xff]
      %v2355 = vld [vmem:[%s3 + $0x50] sm:$0xff]
      %v2356 = vld [vmem:[%s3 + $0x58] sm:$0xff]
      %v2357 = vld [vmem:[%s3 + $0x60] sm:$0xff]
      %v2358 = vld [vmem:[%s3 + $0x68] sm:$0xff]
      %v2359 = vld [vmem:[%s3 + $0x70] sm:$0xff]
      %v2360 = vld [vmem:[%s3 + $0x78] sm:$0xff]
      %v2361 = vld [vmem:[%s3 + $0x80] sm:$0xff]
      %v2362 = vld [vmem:[%s3 + $0x88] sm:$0xff]
      %v2363 = vld [vmem:[%s3 + $0x90] sm:$0xff]
      %v2364 = vld [vmem:[%s3 + $0x98] sm:$0xff]
      %v2365 = vld [vmem:[%s3 + $0xa0] sm:$0xff]
      %v2366 = vld [vmem:[%s3 + $0xa8] sm:$0xff]
      %v2367 = vld [vmem:[%s3 + $0xb0] sm:$0xff]
      %v2368 = vld [vmem:[%s3 + $0xb8] sm:$0xff]
      %v2369 = vld [vmem:[%s3 + $0xc0] sm:$0xff]
      %v2370 = vld [vmem:[%s3 + $0xc8] sm:$0xff]
      %v2371 = vld [vmem:[%s3 + $0xd0] sm:$0xff]
      %v2372 = vld [vmem:[%s3 + $0xd8] sm:$0xff]
      %v2373 = vld [vmem:[%s3 + $0xe0] sm:$0xff]
      %v2374 = vld [vmem:[%s3 + $0xe8] sm:$0xff]
      %v2375 = vld [vmem:[%s3 + $0xf0] sm:$0xff]
      %v2376 = vld [vmem:[%s3 + $0xf8] sm:$0xff]
      %v2377 = vld [vmem:[%s3 + $0x100] sm:$0xff]
      %v2378 = vld [vmem:[%s3 + $0x108] sm:$0xff]
      %v2379 = vld [vmem:[%s3 + $0x110] sm:$0xff]
      %v2380 = vld [vmem:[%s3 + $0x118] sm:$0xff]
      %v2381 = vld [vmem:[%s3 + $0x120] sm:$0xff]
      %v2382 = vld [vmem:[%s3 + $0x128] sm:$0xff]
      %v2383 = vld [vmem:[%s3 + $0x130] sm:$0xff]
      %v2384 = vld [vmem:[%s3 + $0x138] sm:$0xff]
      %v2385 = vld [vmem:[%s3 + $0x140] sm:$0xff]
      %v2386 = vld [vmem:[%s3 + $0x148] sm:$0xff]
      %v2387 = vld [vmem:[%s3 + $0x150] sm:$0xff]
      %v2388 = vld [vmem:[%s3 + $0x158] sm:$0xff]
      %v2389 = vld [vmem:[%s3 + $0x160] sm:$0xff]
      %v2390 = vld [vmem:[%s3 + $0x168] sm:$0xff]
      %v2391 = vld [vmem:[%s3 + $0x170] sm:$0xff]
      %v2392 = vld [vmem:[%s3 + $0x178] sm:$0xff]
      %v2393 = vld [vmem:[%s3 + $0x180] sm:$0xff]
      %v2394 = vld [vmem:[%s3 + $0x188] sm:$0xff]
      %v2395 = vld [vmem:[%s3 + $0x190] sm:$0xff]
      %v2396 = vld [vmem:[%s3 + $0x198] sm:$0xff]
      %v2397 = vld [vmem:[%s3 + $0x1a0] sm:$0xff]
      %v2398 = vld [vmem:[%s3 + $0x1a8] sm:$0xff]
      %v2399 = vld [vmem:[%s3 + $0x1b0] sm:$0xff]
      %v2400 = vld [vmem:[%s3 + $0x1b8] sm:$0xff]
      %v2401 = vld [vmem:[%s3 + $0x1c0] sm:$0xff]
      %v2402 = vld [vmem:[%s3 + $0x1c8] sm:$0xff]
      %v2403 = vld [vmem:[%s3 + $0x1d0] sm:$0xff]
      %v2404 = vld [vmem:[%s3 + $0x1d8] sm:$0xff]
      %v2405 = vld [vmem:[%s3 + $0x1e0] sm:$0xff]
      %v2406 = vld [vmem:[%s3 + $0x1e8] sm:$0xff]
      %v2407 = vld [vmem:[%s3 + $0x1f0] sm:$0xff]
      %v2408 = vld [vmem:[%s3 + $0x1f8] sm:$0xff]
      %v2409 = vld [vmem:[%s3 + $0x200] sm:$0xff]
      %v2410 = vld [vmem:[%s3 + $0x208] sm:$0xff]
      %v2411 = vld [vmem:[%s3 + $0x210] sm:$0xff]
      %v2412 = vld [vmem:[%s3 + $0x218] sm:$0xff]
      %v2413 = vld [vmem:[%s3 + $0x220] sm:$0xff]
      %v2414 = vld [vmem:[%s3 + $0x228] sm:$0xff]
      %v2415 = vld [vmem:[%s3 + $0x230] sm:$0xff]
      %v2416 = vld [vmem:[%s3 + $0x238] sm:$0xff]
      %v2417 = vld [vmem:[%s3 + $0x240] sm:$0xff]
      %v2418 = vld [vmem:[%s3 + $0x248] sm:$0xff]
      %v2419 = vld [vmem:[%s3 + $0x250] sm:$0xff]
      %v2420 = vld [vmem:[%s3 + $0x258] sm:$0xff]
      %v2421 = vld [vmem:[%s3 + $0x260] sm:$0xff]
      %v2422 = vld [vmem:[%s3 + $0x268] sm:$0xff]
      %v2423 = vld [vmem:[%s3 + $0x270] sm:$0xff]
      %v2424 = vld [vmem:[%s3 + $0x278] sm:$0xff]
      %v2425 = vld [vmem:[%s3 + $0x280] sm:$0xff]
      %v2426 = vld [vmem:[%s3 + $0x288] sm:$0xff]
      %v2427 = vld [vmem:[%s3 + $0x290] sm:$0xff]
      %v2428 = vld [vmem:[%s3 + $0x298] sm:$0xff]
      %v2429 = vld [vmem:[%s3 + $0x2a0] sm:$0xff]
      %v2430 = vld [vmem:[%s3 + $0x2a8] sm:$0xff]
      %v2431 = vld [vmem:[%s3 + $0x2b0] sm:$0xff]
      %v2432 = vld [vmem:[%s3 + $0x2b8] sm:$0xff]
      %v2433 = vld [vmem:[%s3 + $0x2c0] sm:$0xff]
      %v2434 = vld [vmem:[%s3 + $0x2c8] sm:$0xff]
      %v2435 = vld [vmem:[%s3 + $0x2d0] sm:$0xff]
      %v2436 = vld [vmem:[%s3 + $0x2d8] sm:$0xff]
      %v2437 = vld [vmem:[%s3 + $0x2e0] sm:$0xff]
      %v2438 = vld [vmem:[%s3 + $0x2e8] sm:$0xff]
      %v2439 = vld [vmem:[%s3 + $0x2f0] sm:$0xff]
      %v2440 = vld [vmem:[%s3 + $0x2f8] sm:$0xff]
      %v2441 = vld [vmem:[%s3 + $0x300] sm:$0xff]
      %v2442 = vld [vmem:[%s3 + $0x308] sm:$0xff]
      %v2443 = vld [vmem:[%s3 + $0x310] sm:$0xff]
      %v2444 = vld [vmem:[%s3 + $0x318] sm:$0xff]
      %v2445 = vld [vmem:[%s3 + $0x320] sm:$0xff]
      %v2446 = vld [vmem:[%s3 + $0x328] sm:$0xff]
      %v2447 = vld [vmem:[%s3 + $0x330] sm:$0xff]
      %v2448 = vld [vmem:[%s3 + $0x338] sm:$0xff]
      %v2449 = vld [vmem:[%s3 + $0x340] sm:$0xff]
      %v2450 = vld [vmem:[%s3 + $0x348] sm:$0xff]
      %v2451 = vld [vmem:[%s3 + $0x350] sm:$0xff]
      %v2452 = vld [vmem:[%s3 + $0x358] sm:$0xff]
      %v2453 = vld [vmem:[%s3 + $0x360] sm:$0xff]
      %v2454 = vld [vmem:[%s3 + $0x368] sm:$0xff]
      %v2455 = vld [vmem:[%s3 + $0x370] sm:$0xff]
      %v2456 = vld [vmem:[%s3 + $0x378] sm:$0xff]
      %v2457 = vld [vmem:[%s3 + $0x380] sm:$0xff]
      %v2458 = vld [vmem:[%s3 + $0x388] sm:$0xff]
      %v2459 = vld [vmem:[%s3 + $0x390] sm:$0xff]
      %v2460 = vld [vmem:[%s3 + $0x398] sm:$0xff]
      %v2461 = vld [vmem:[%s3 + $0x3a0] sm:$0xff]
      %v2462 = vld [vmem:[%s3 + $0x3a8] sm:$0xff]
      %v2463 = vld [vmem:[%s3 + $0x3b0] sm:$0xff]
      %v2464 = vld [vmem:[%s3 + $0x3b8] sm:$0xff]
      %v2465 = vld [vmem:[%s3 + $0x3c0] sm:$0xff]
      %v2466 = vld [vmem:[%s3 + $0x3c8] sm:$0xff]
      %v2467 = vld [vmem:[%s3 + $0x3d0] sm:$0xff]
      %v2468 = vld [vmem:[%s3 + $0x3d8] sm:$0xff]
      %v2469 = vld [vmem:[%s3 + $0x3e0] sm:$0xff]
      %v2470 = vld [vmem:[%s3 + $0x3e8] sm:$0xff]
      %v2471 = vld [vmem:[%s3 + $0x3f0] sm:$0xff]
      %v2472 = vld [vmem:[%s3 + $0x3f8] sm:$0xff]
      %v2473 = vpack.c.bf16 %v2093, %v2089
      %v2474 = vpack.c.bf16 %v2094, %v2090
      %v2475 = vpack.c.bf16 %v2095, %v2091
      %v2476 = vpack.c.bf16 %v2096, %v2092
      %v2477 = vpack.c.bf16 %v2101, %v2097
      %v2478 = vpack.c.bf16 %v2102, %v2098
      %v2479 = vpack.c.bf16 %v2103, %v2099
      %v2480 = vpack.c.bf16 %v2104, %v2100
      %v2481 = vpack.c.bf16 %v2109, %v2105
      %v2482 = vpack.c.bf16 %v2110, %v2106
      %v2483 = vpack.c.bf16 %v2111, %v2107
      %v2484 = vpack.c.bf16 %v2112, %v2108
      %v2485 = vpack.c.bf16 %v2117, %v2113
      %v2486 = vpack.c.bf16 %v2118, %v2114
      %v2487 = vpack.c.bf16 %v2119, %v2115
      %v2488 = vpack.c.bf16 %v2120, %v2116
      %v2489 = vpack.c.bf16 %v2125, %v2121
      %v2490 = vpack.c.bf16 %v2126, %v2122
      %v2491 = vpack.c.bf16 %v2127, %v2123
      %v2492 = vpack.c.bf16 %v2128, %v2124
      %v2493 = vpack.c.bf16 %v2133, %v2129
      %v2494 = vpack.c.bf16 %v2134, %v2130
      %v2495 = vpack.c.bf16 %v2135, %v2131
      %v2496 = vpack.c.bf16 %v2136, %v2132
      %v2497 = vpack.c.bf16 %v2141, %v2137
      %v2498 = vpack.c.bf16 %v2142, %v2138
      %v2499 = vpack.c.bf16 %v2143, %v2139
      %v2500 = vpack.c.bf16 %v2144, %v2140
      %v2501 = vpack.c.bf16 %v2149, %v2145
      %v2502 = vpack.c.bf16 %v2150, %v2146
      %v2503 = vpack.c.bf16 %v2151, %v2147
      %v2504 = vpack.c.bf16 %v2152, %v2148
      %v2505 = vpack.c.bf16 %v2157, %v2153
      %v2506 = vpack.c.bf16 %v2158, %v2154
      %v2507 = vpack.c.bf16 %v2159, %v2155
      %v2508 = vpack.c.bf16 %v2160, %v2156
      %v2509 = vpack.c.bf16 %v2165, %v2161
      %v2510 = vpack.c.bf16 %v2166, %v2162
      %v2511 = vpack.c.bf16 %v2167, %v2163
      %v2512 = vpack.c.bf16 %v2168, %v2164
      %v2513 = vpack.c.bf16 %v2173, %v2169
      %v2514 = vpack.c.bf16 %v2174, %v2170
      %v2515 = vpack.c.bf16 %v2175, %v2171
      %v2516 = vpack.c.bf16 %v2176, %v2172
      %v2517 = vpack.c.bf16 %v2181, %v2177
      %v2518 = vpack.c.bf16 %v2182, %v2178
      %v2519 = vpack.c.bf16 %v2183, %v2179
      %v2520 = vpack.c.bf16 %v2184, %v2180
      %v2521 = vpack.c.bf16 %v2189, %v2185
      %v2522 = vpack.c.bf16 %v2190, %v2186
      %v2523 = vpack.c.bf16 %v2191, %v2187
      %v2524 = vpack.c.bf16 %v2192, %v2188
      %v2525 = vpack.c.bf16 %v2197, %v2193
      %v2526 = vpack.c.bf16 %v2198, %v2194
      %v2527 = vpack.c.bf16 %v2199, %v2195
      %v2528 = vpack.c.bf16 %v2200, %v2196
      %v2529 = vpack.c.bf16 %v2205, %v2201
      %v2530 = vpack.c.bf16 %v2206, %v2202
      %v2531 = vpack.c.bf16 %v2207, %v2203
      %v2532 = vpack.c.bf16 %v2208, %v2204
      %v2533 = vpack.c.bf16 %v2213, %v2209
      %v2534 = vpack.c.bf16 %v2214, %v2210
      %v2535 = vpack.c.bf16 %v2215, %v2211
      %v2536 = vpack.c.bf16 %v2216, %v2212
      %v2537 = vpack.c.bf16 %v2221, %v2217
      %v2538 = vpack.c.bf16 %v2222, %v2218
      %v2539 = vpack.c.bf16 %v2223, %v2219
      %v2540 = vpack.c.bf16 %v2224, %v2220
      %v2541 = vpack.c.bf16 %v2229, %v2225
      %v2542 = vpack.c.bf16 %v2230, %v2226
      %v2543 = vpack.c.bf16 %v2231, %v2227
      %v2544 = vpack.c.bf16 %v2232, %v2228
      %v2545 = vpack.c.bf16 %v2237, %v2233
      %v2546 = vpack.c.bf16 %v2238, %v2234
      %v2547 = vpack.c.bf16 %v2239, %v2235
      %v2548 = vpack.c.bf16 %v2240, %v2236
      %v2549 = vpack.c.bf16 %v2245, %v2241
      %v2550 = vpack.c.bf16 %v2246, %v2242
      %v2551 = vpack.c.bf16 %v2247, %v2243
      %v2552 = vpack.c.bf16 %v2248, %v2244
      %v2553 = vpack.c.bf16 %v2253, %v2249
      %v2554 = vpack.c.bf16 %v2254, %v2250
      %v2555 = vpack.c.bf16 %v2255, %v2251
      %v2556 = vpack.c.bf16 %v2256, %v2252
      %v2557 = vpack.c.bf16 %v2261, %v2257
      %v2558 = vpack.c.bf16 %v2262, %v2258
      %v2559 = vpack.c.bf16 %v2263, %v2259
      %v2560 = vpack.c.bf16 %v2264, %v2260
      %v2561 = vpack.c.bf16 %v2269, %v2265
      %v2562 = vpack.c.bf16 %v2270, %v2266
      %v2563 = vpack.c.bf16 %v2271, %v2267
      %v2564 = vpack.c.bf16 %v2272, %v2268
      %v2565 = vpack.c.bf16 %v2277, %v2273
      %v2566 = vpack.c.bf16 %v2278, %v2274
      %v2567 = vpack.c.bf16 %v2279, %v2275
      %v2568 = vpack.c.bf16 %v2280, %v2276
      %v2569 = vpack.c.bf16 %v2285, %v2281
      %v2570 = vpack.c.bf16 %v2286, %v2282
      %v2571 = vpack.c.bf16 %v2287, %v2283
      %v2572 = vpack.c.bf16 %v2288, %v2284
      %v2573 = vpack.c.bf16 %v2293, %v2289
      %v2574 = vpack.c.bf16 %v2294, %v2290
      %v2575 = vpack.c.bf16 %v2295, %v2291
      %v2576 = vpack.c.bf16 %v2296, %v2292
      %v2577 = vpack.c.bf16 %v2301, %v2297
      %v2578 = vpack.c.bf16 %v2302, %v2298
      %v2579 = vpack.c.bf16 %v2303, %v2299
      %v2580 = vpack.c.bf16 %v2304, %v2300
      %v2581 = vpack.c.bf16 %v2309, %v2305
      %v2582 = vpack.c.bf16 %v2310, %v2306
      %v2583 = vpack.c.bf16 %v2311, %v2307
      %v2584 = vpack.c.bf16 %v2312, %v2308
      %v2585 = vpack.c.bf16 %v2317, %v2313
      %v2586 = vpack.c.bf16 %v2318, %v2314
      %v2587 = vpack.c.bf16 %v2319, %v2315
      %v2588 = vpack.c.bf16 %v2320, %v2316
      %v2589 = vpack.c.bf16 %v2325, %v2321
      %v2590 = vpack.c.bf16 %v2326, %v2322
      %v2591 = vpack.c.bf16 %v2327, %v2323
      %v2592 = vpack.c.bf16 %v2328, %v2324
      %v2593 = vpack.c.bf16 %v2333, %v2329
      %v2594 = vpack.c.bf16 %v2334, %v2330
      %v2595 = vpack.c.bf16 %v2335, %v2331
      %v2596 = vpack.c.bf16 %v2336, %v2332
      %v2597 = vpack.c.bf16 %v2341, %v2337
      %v2598 = vpack.c.bf16 %v2342, %v2338
      %v2599 = vpack.c.bf16 %v2343, %v2339
      %v2600 = vpack.c.bf16 %v2344, %v2340
      %v2601 = vld [vmem:[%s4] sm:$0xff]
      %v2602 = vld [vmem:[%s4 + $0x8] sm:$0xff]
      %v2603 = vld [vmem:[%s4 + $0x10] sm:$0xff]
      %v2604 = vld [vmem:[%s4 + $0x18] sm:$0xff]
      %v2605 = vld [vmem:[%s4 + $0x20] sm:$0xff]
      %v2606 = vld [vmem:[%s4 + $0x28] sm:$0xff]
      %v2607 = vld [vmem:[%s4 + $0x30] sm:$0xff]
      %v2608 = vld [vmem:[%s4 + $0x38] sm:$0xff]
      %v2609 = vld [vmem:[%s4 + $0x40] sm:$0xff]
      %v2610 = vld [vmem:[%s4 + $0x48] sm:$0xff]
      %v2611 = vld [vmem:[%s4 + $0x50] sm:$0xff]
      %v2612 = vld [vmem:[%s4 + $0x58] sm:$0xff]
      %v2613 = vld [vmem:[%s4 + $0x60] sm:$0xff]
      %v2614 = vld [vmem:[%s4 + $0x68] sm:$0xff]
      %v2615 = vld [vmem:[%s4 + $0x70] sm:$0xff]
      %v2616 = vld [vmem:[%s4 + $0x78] sm:$0xff]
      %v2617 = vld [vmem:[%s4 + $0x80] sm:$0xff]
      %v2618 = vld [vmem:[%s4 + $0x88] sm:$0xff]
      %v2619 = vld [vmem:[%s4 + $0x90] sm:$0xff]
      %v2620 = vld [vmem:[%s4 + $0x98] sm:$0xff]
      %v2621 = vld [vmem:[%s4 + $0xa0] sm:$0xff]
      %v2622 = vld [vmem:[%s4 + $0xa8] sm:$0xff]
      %v2623 = vld [vmem:[%s4 + $0xb0] sm:$0xff]
      %v2624 = vld [vmem:[%s4 + $0xb8] sm:$0xff]
      %v2625 = vld [vmem:[%s4 + $0xc0] sm:$0xff]
      %v2626 = vld [vmem:[%s4 + $0xc8] sm:$0xff]
      %v2627 = vld [vmem:[%s4 + $0xd0] sm:$0xff]
      %v2628 = vld [vmem:[%s4 + $0xd8] sm:$0xff]
      %v2629 = vld [vmem:[%s4 + $0xe0] sm:$0xff]
      %v2630 = vld [vmem:[%s4 + $0xe8] sm:$0xff]
      %v2631 = vld [vmem:[%s4 + $0xf0] sm:$0xff]
      %v2632 = vld [vmem:[%s4 + $0xf8] sm:$0xff]
      %v2633 = vld [vmem:[%s4 + $0x100] sm:$0xff]
      %v2634 = vld [vmem:[%s4 + $0x108] sm:$0xff]
      %v2635 = vld [vmem:[%s4 + $0x110] sm:$0xff]
      %v2636 = vld [vmem:[%s4 + $0x118] sm:$0xff]
      %v2637 = vld [vmem:[%s4 + $0x120] sm:$0xff]
      %v2638 = vld [vmem:[%s4 + $0x128] sm:$0xff]
      %v2639 = vld [vmem:[%s4 + $0x130] sm:$0xff]
      %v2640 = vld [vmem:[%s4 + $0x138] sm:$0xff]
      %v2641 = vld [vmem:[%s4 + $0x140] sm:$0xff]
      %v2642 = vld [vmem:[%s4 + $0x148] sm:$0xff]
      %v2643 = vld [vmem:[%s4 + $0x150] sm:$0xff]
      %v2644 = vld [vmem:[%s4 + $0x158] sm:$0xff]
      %v2645 = vld [vmem:[%s4 + $0x160] sm:$0xff]
      %v2646 = vld [vmem:[%s4 + $0x168] sm:$0xff]
      %v2647 = vld [vmem:[%s4 + $0x170] sm:$0xff]
      %v2648 = vld [vmem:[%s4 + $0x178] sm:$0xff]
      %v2649 = vld [vmem:[%s4 + $0x180] sm:$0xff]
      %v2650 = vld [vmem:[%s4 + $0x188] sm:$0xff]
      %v2651 = vld [vmem:[%s4 + $0x190] sm:$0xff]
      %v2652 = vld [vmem:[%s4 + $0x198] sm:$0xff]
      %v2653 = vld [vmem:[%s4 + $0x1a0] sm:$0xff]
      %v2654 = vld [vmem:[%s4 + $0x1a8] sm:$0xff]
      %v2655 = vld [vmem:[%s4 + $0x1b0] sm:$0xff]
      %v2656 = vld [vmem:[%s4 + $0x1b8] sm:$0xff]
      %v2657 = vld [vmem:[%s4 + $0x1c0] sm:$0xff]
      %v2658 = vld [vmem:[%s4 + $0x1c8] sm:$0xff]
      %v2659 = vld [vmem:[%s4 + $0x1d0] sm:$0xff]
      %v2660 = vld [vmem:[%s4 + $0x1d8] sm:$0xff]
      %v2661 = vld [vmem:[%s4 + $0x1e0] sm:$0xff]
      %v2662 = vld [vmem:[%s4 + $0x1e8] sm:$0xff]
      %v2663 = vld [vmem:[%s4 + $0x1f0] sm:$0xff]
      %v2664 = vld [vmem:[%s4 + $0x1f8] sm:$0xff]
      %2666 = vset.pattern.permute.xlu0 0
      %2667 = vperm.xlu0 %2666, %v2601
      %v2668 = vpop.permute.xlu0 %2667
      %2671 = vset.pattern.permute.xlu0 0
      %2672 = vperm.xlu0 %2671, %v2602
      %v2673 = vpop.permute.xlu0 %2672
      %2676 = vset.pattern.permute.xlu0 0
      %2677 = vperm.xlu0 %2676, %v2603
      %v2678 = vpop.permute.xlu0 %2677
      %2681 = vset.pattern.permute.xlu0 0
      %2682 = vperm.xlu0 %2681, %v2604
      %v2683 = vpop.permute.xlu0 %2682
      %2686 = vset.pattern.permute.xlu0 0
      %2687 = vperm.xlu0 %2686, %v2605
      %v2688 = vpop.permute.xlu0 %2687
      %2691 = vset.pattern.permute.xlu0 0
      %2692 = vperm.xlu0 %2691, %v2606
      %v2693 = vpop.permute.xlu0 %2692
      %2696 = vset.pattern.permute.xlu0 0
      %2697 = vperm.xlu0 %2696, %v2607
      %v2698 = vpop.permute.xlu0 %2697
      %2701 = vset.pattern.permute.xlu0 0
      %2702 = vperm.xlu0 %2701, %v2608
      %v2703 = vpop.permute.xlu0 %2702
      %2706 = vset.pattern.permute.xlu0 0
      %2707 = vperm.xlu0 %2706, %v2609
      %v2708 = vpop.permute.xlu0 %2707
      %2711 = vset.pattern.permute.xlu0 0
      %2712 = vperm.xlu0 %2711, %v2610
      %v2713 = vpop.permute.xlu0 %2712
      %2716 = vset.pattern.permute.xlu0 0
      %2717 = vperm.xlu0 %2716, %v2611
      %v2718 = vpop.permute.xlu0 %2717
      %2721 = vset.pattern.permute.xlu0 0
      %2722 = vperm.xlu0 %2721, %v2612
      %v2723 = vpop.permute.xlu0 %2722
      %2726 = vset.pattern.permute.xlu0 0
      %2727 = vperm.xlu0 %2726, %v2613
      %v2728 = vpop.permute.xlu0 %2727
      %2731 = vset.pattern.permute.xlu0 0
      %2732 = vperm.xlu0 %2731, %v2614
      %v2733 = vpop.permute.xlu0 %2732
      %2736 = vset.pattern.permute.xlu0 0
      %2737 = vperm.xlu0 %2736, %v2615
      %v2738 = vpop.permute.xlu0 %2737
      %2741 = vset.pattern.permute.xlu0 0
      %2742 = vperm.xlu0 %2741, %v2616
      %v2743 = vpop.permute.xlu0 %2742
      %2746 = vset.pattern.permute.xlu0 0
      %2747 = vperm.xlu0 %2746, %v2617
      %v2748 = vpop.permute.xlu0 %2747
      %2751 = vset.pattern.permute.xlu0 0
      %2752 = vperm.xlu0 %2751, %v2618
      %v2753 = vpop.permute.xlu0 %2752
      %2756 = vset.pattern.permute.xlu0 0
      %2757 = vperm.xlu0 %2756, %v2619
      %v2758 = vpop.permute.xlu0 %2757
      %2761 = vset.pattern.permute.xlu0 0
      %2762 = vperm.xlu0 %2761, %v2620
      %v2763 = vpop.permute.xlu0 %2762
      %2766 = vset.pattern.permute.xlu0 0
      %2767 = vperm.xlu0 %2766, %v2621
      %v2768 = vpop.permute.xlu0 %2767
      %2771 = vset.pattern.permute.xlu0 0
      %2772 = vperm.xlu0 %2771, %v2622
      %v2773 = vpop.permute.xlu0 %2772
      %2776 = vset.pattern.permute.xlu0 0
      %2777 = vperm.xlu0 %2776, %v2623
      %v2778 = vpop.permute.xlu0 %2777
      %2781 = vset.pattern.permute.xlu0 0
      %2782 = vperm.xlu0 %2781, %v2624
      %v2783 = vpop.permute.xlu0 %2782
      %2786 = vset.pattern.permute.xlu0 0
      %2787 = vperm.xlu0 %2786, %v2625
      %v2788 = vpop.permute.xlu0 %2787
      %2791 = vset.pattern.permute.xlu0 0
      %2792 = vperm.xlu0 %2791, %v2626
      %v2793 = vpop.permute.xlu0 %2792
      %2796 = vset.pattern.permute.xlu0 0
      %2797 = vperm.xlu0 %2796, %v2627
      %v2798 = vpop.permute.xlu0 %2797
      %2801 = vset.pattern.permute.xlu0 0
      %2802 = vperm.xlu0 %2801, %v2628
      %v2803 = vpop.permute.xlu0 %2802
      %2806 = vset.pattern.permute.xlu0 0
      %2807 = vperm.xlu0 %2806, %v2629
      %v2808 = vpop.permute.xlu0 %2807
      %2811 = vset.pattern.permute.xlu0 0
      %2812 = vperm.xlu0 %2811, %v2630
      %v2813 = vpop.permute.xlu0 %2812
      %2816 = vset.pattern.permute.xlu0 0
      %2817 = vperm.xlu0 %2816, %v2631
      %v2818 = vpop.permute.xlu0 %2817
      %2821 = vset.pattern.permute.xlu0 0
      %2822 = vperm.xlu0 %2821, %v2632
      %v2823 = vpop.permute.xlu0 %2822
      %2826 = vset.pattern.permute.xlu0 0
      %2827 = vperm.xlu0 %2826, %v2633
      %v2828 = vpop.permute.xlu0 %2827
      %2831 = vset.pattern.permute.xlu0 0
      %2832 = vperm.xlu0 %2831, %v2634
      %v2833 = vpop.permute.xlu0 %2832
      %2836 = vset.pattern.permute.xlu0 0
      %2837 = vperm.xlu0 %2836, %v2635
      %v2838 = vpop.permute.xlu0 %2837
      %2841 = vset.pattern.permute.xlu0 0
      %2842 = vperm.xlu0 %2841, %v2636
      %v2843 = vpop.permute.xlu0 %2842
      %2846 = vset.pattern.permute.xlu0 0
      %2847 = vperm.xlu0 %2846, %v2637
      %v2848 = vpop.permute.xlu0 %2847
      %2851 = vset.pattern.permute.xlu0 0
      %2852 = vperm.xlu0 %2851, %v2638
      %v2853 = vpop.permute.xlu0 %2852
      %2856 = vset.pattern.permute.xlu0 0
      %2857 = vperm.xlu0 %2856, %v2639
      %v2858 = vpop.permute.xlu0 %2857
      %2861 = vset.pattern.permute.xlu0 0
      %2862 = vperm.xlu0 %2861, %v2640
      %v2863 = vpop.permute.xlu0 %2862
      %2866 = vset.pattern.permute.xlu0 0
      %2867 = vperm.xlu0 %2866, %v2641
      %v2868 = vpop.permute.xlu0 %2867
      %2871 = vset.pattern.permute.xlu0 0
      %2872 = vperm.xlu0 %2871, %v2642
      %v2873 = vpop.permute.xlu0 %2872
      %2876 = vset.pattern.permute.xlu0 0
      %2877 = vperm.xlu0 %2876, %v2643
      %v2878 = vpop.permute.xlu0 %2877
      %2881 = vset.pattern.permute.xlu0 0
      %2882 = vperm.xlu0 %2881, %v2644
      %v2883 = vpop.permute.xlu0 %2882
      %2886 = vset.pattern.permute.xlu0 0
      %2887 = vperm.xlu0 %2886, %v2645
      %v2888 = vpop.permute.xlu0 %2887
      %2891 = vset.pattern.permute.xlu0 0
      %2892 = vperm.xlu0 %2891, %v2646
      %v2893 = vpop.permute.xlu0 %2892
      %2896 = vset.pattern.permute.xlu0 0
      %2897 = vperm.xlu0 %2896, %v2647
      %v2898 = vpop.permute.xlu0 %2897
      %2901 = vset.pattern.permute.xlu0 0
      %2902 = vperm.xlu0 %2901, %v2648
      %v2903 = vpop.permute.xlu0 %2902
      %2906 = vset.pattern.permute.xlu0 0
      %2907 = vperm.xlu0 %2906, %v2649
      %v2908 = vpop.permute.xlu0 %2907
      %2911 = vset.pattern.permute.xlu0 0
      %2912 = vperm.xlu0 %2911, %v2650
      %v2913 = vpop.permute.xlu0 %2912
      %2916 = vset.pattern.permute.xlu0 0
      %2917 = vperm.xlu0 %2916, %v2651
      %v2918 = vpop.permute.xlu0 %2917
      %2921 = vset.pattern.permute.xlu0 0
      %2922 = vperm.xlu0 %2921, %v2652
      %v2923 = vpop.permute.xlu0 %2922
      %2926 = vset.pattern.permute.xlu0 0
      %2927 = vperm.xlu0 %2926, %v2653
      %v2928 = vpop.permute.xlu0 %2927
      %2931 = vset.pattern.permute.xlu0 0
      %2932 = vperm.xlu0 %2931, %v2654
      %v2933 = vpop.permute.xlu0 %2932
      %2936 = vset.pattern.permute.xlu0 0
      %2937 = vperm.xlu0 %2936, %v2655
      %v2938 = vpop.permute.xlu0 %2937
      %2941 = vset.pattern.permute.xlu0 0
      %2942 = vperm.xlu0 %2941, %v2656
      %v2943 = vpop.permute.xlu0 %2942
      %2946 = vset.pattern.permute.xlu0 0
      %2947 = vperm.xlu0 %2946, %v2657
      %v2948 = vpop.permute.xlu0 %2947
      %2951 = vset.pattern.permute.xlu0 0
      %2952 = vperm.xlu0 %2951, %v2658
      %v2953 = vpop.permute.xlu0 %2952
      %2956 = vset.pattern.permute.xlu0 0
      %2957 = vperm.xlu0 %2956, %v2659
      %v2958 = vpop.permute.xlu0 %2957
      %2961 = vset.pattern.permute.xlu0 0
      %2962 = vperm.xlu0 %2961, %v2660
      %v2963 = vpop.permute.xlu0 %2962
      %2966 = vset.pattern.permute.xlu0 0
      %2967 = vperm.xlu0 %2966, %v2661
      %v2968 = vpop.permute.xlu0 %2967
      %2971 = vset.pattern.permute.xlu0 0
      %2972 = vperm.xlu0 %2971, %v2662
      %v2973 = vpop.permute.xlu0 %2972
      %2976 = vset.pattern.permute.xlu0 0
      %2977 = vperm.xlu0 %2976, %v2663
      %v2978 = vpop.permute.xlu0 %2977
      %2981 = vset.pattern.permute.xlu0 0
      %2982 = vperm.xlu0 %2981, %v2664
      %v2983 = vpop.permute.xlu0 %2982
      %v3113 = vunpack.c.l.b16 %v2345
      %v3114 = vunpack.c.h.b16 %v2345
      %v3115 = vunpack.c.l.b16 %v2346
      %v3116 = vunpack.c.h.b16 %v2346
      %v3117 = vunpack.c.l.b16 %v2347
      %v3118 = vunpack.c.h.b16 %v2347
      %v3119 = vunpack.c.l.b16 %v2348
      %v3120 = vunpack.c.h.b16 %v2348
      %v3121 = vunpack.c.l.b16 %v2349
      %v3122 = vunpack.c.h.b16 %v2349
      %v3123 = vunpack.c.l.b16 %v2350
      %v3124 = vunpack.c.h.b16 %v2350
      %v3125 = vunpack.c.l.b16 %v2351
      %v3126 = vunpack.c.h.b16 %v2351
      %v3127 = vunpack.c.l.b16 %v2352
      %v3128 = vunpack.c.h.b16 %v2352
      %v3129 = vunpack.c.l.b16 %v2353
      %v3130 = vunpack.c.h.b16 %v2353
      %v3131 = vunpack.c.l.b16 %v2354
      %v3132 = vunpack.c.h.b16 %v2354
      %v3133 = vunpack.c.l.b16 %v2355
      %v3134 = vunpack.c.h.b16 %v2355
      %v3135 = vunpack.c.l.b16 %v2356
      %v3136 = vunpack.c.h.b16 %v2356
      %v3137 = vunpack.c.l.b16 %v2357
      %v3138 = vunpack.c.h.b16 %v2357
      %v3139 = vunpack.c.l.b16 %v2358
      %v3140 = vunpack.c.h.b16 %v2358
      %v3141 = vunpack.c.l.b16 %v2359
      %v3142 = vunpack.c.h.b16 %v2359
      %v3143 = vunpack.c.l.b16 %v2360
      %v3144 = vunpack.c.h.b16 %v2360
      %v3145 = vunpack.c.l.b16 %v2361
      %v3146 = vunpack.c.h.b16 %v2361
      %v3147 = vunpack.c.l.b16 %v2362
      %v3148 = vunpack.c.h.b16 %v2362
      %v3149 = vunpack.c.l.b16 %v2363
      %v3150 = vunpack.c.h.b16 %v2363
      %v3151 = vunpack.c.l.b16 %v2364
      %v3152 = vunpack.c.h.b16 %v2364
      %v3153 = vunpack.c.l.b16 %v2365
      %v3154 = vunpack.c.h.b16 %v2365
      %v3155 = vunpack.c.l.b16 %v2366
      %v3156 = vunpack.c.h.b16 %v2366
      %v3157 = vunpack.c.l.b16 %v2367
      %v3158 = vunpack.c.h.b16 %v2367
      %v3159 = vunpack.c.l.b16 %v2368
      %v3160 = vunpack.c.h.b16 %v2368
      %v3161 = vunpack.c.l.b16 %v2369
      %v3162 = vunpack.c.h.b16 %v2369
      %v3163 = vunpack.c.l.b16 %v2370
      %v3164 = vunpack.c.h.b16 %v2370
      %v3165 = vunpack.c.l.b16 %v2371
      %v3166 = vunpack.c.h.b16 %v2371
      %v3167 = vunpack.c.l.b16 %v2372
      %v3168 = vunpack.c.h.b16 %v2372
      %v3169 = vunpack.c.l.b16 %v2373
      %v3170 = vunpack.c.h.b16 %v2373
      %v3171 = vunpack.c.l.b16 %v2374
      %v3172 = vunpack.c.h.b16 %v2374
      %v3173 = vunpack.c.l.b16 %v2375
      %v3174 = vunpack.c.h.b16 %v2375
      %v3175 = vunpack.c.l.b16 %v2376
      %v3176 = vunpack.c.h.b16 %v2376
      %v3177 = vunpack.c.l.b16 %v2377
      %v3178 = vunpack.c.h.b16 %v2377
      %v3179 = vunpack.c.l.b16 %v2378
      %v3180 = vunpack.c.h.b16 %v2378
      %v3181 = vunpack.c.l.b16 %v2379
      %v3182 = vunpack.c.h.b16 %v2379
      %v3183 = vunpack.c.l.b16 %v2380
      %v3184 = vunpack.c.h.b16 %v2380
      %v3185 = vunpack.c.l.b16 %v2381
      %v3186 = vunpack.c.h.b16 %v2381
      %v3187 = vunpack.c.l.b16 %v2382
      %v3188 = vunpack.c.h.b16 %v2382
      %v3189 = vunpack.c.l.b16 %v2383
      %v3190 = vunpack.c.h.b16 %v2383
      %v3191 = vunpack.c.l.b16 %v2384
      %v3192 = vunpack.c.h.b16 %v2384
      %v3193 = vunpack.c.l.b16 %v2385
      %v3194 = vunpack.c.h.b16 %v2385
      %v3195 = vunpack.c.l.b16 %v2386
      %v3196 = vunpack.c.h.b16 %v2386
      %v3197 = vunpack.c.l.b16 %v2387
      %v3198 = vunpack.c.h.b16 %v2387
      %v3199 = vunpack.c.l.b16 %v2388
      %v3200 = vunpack.c.h.b16 %v2388
      %v3201 = vunpack.c.l.b16 %v2389
      %v3202 = vunpack.c.h.b16 %v2389
      %v3203 = vunpack.c.l.b16 %v2390
      %v3204 = vunpack.c.h.b16 %v2390
      %v3205 = vunpack.c.l.b16 %v2391
      %v3206 = vunpack.c.h.b16 %v2391
      %v3207 = vunpack.c.l.b16 %v2392
      %v3208 = vunpack.c.h.b16 %v2392
      %v3209 = vunpack.c.l.b16 %v2393
      %v3210 = vunpack.c.h.b16 %v2393
      %v3211 = vunpack.c.l.b16 %v2394
      %v3212 = vunpack.c.h.b16 %v2394
      %v3213 = vunpack.c.l.b16 %v2395
      %v3214 = vunpack.c.h.b16 %v2395
      %v3215 = vunpack.c.l.b16 %v2396
      %v3216 = vunpack.c.h.b16 %v2396
      %v3217 = vunpack.c.l.b16 %v2397
      %v3218 = vunpack.c.h.b16 %v2397
      %v3219 = vunpack.c.l.b16 %v2398
      %v3220 = vunpack.c.h.b16 %v2398
      %v3221 = vunpack.c.l.b16 %v2399
      %v3222 = vunpack.c.h.b16 %v2399
      %v3223 = vunpack.c.l.b16 %v2400
      %v3224 = vunpack.c.h.b16 %v2400
      %v3225 = vunpack.c.l.b16 %v2401
      %v3226 = vunpack.c.h.b16 %v2401
      %v3227 = vunpack.c.l.b16 %v2402
      %v3228 = vunpack.c.h.b16 %v2402
      %v3229 = vunpack.c.l.b16 %v2403
      %v3230 = vunpack.c.h.b16 %v2403
      %v3231 = vunpack.c.l.b16 %v2404
      %v3232 = vunpack.c.h.b16 %v2404
      %v3233 = vunpack.c.l.b16 %v2405
      %v3234 = vunpack.c.h.b16 %v2405
      %v3235 = vunpack.c.l.b16 %v2406
      %v3236 = vunpack.c.h.b16 %v2406
      %v3237 = vunpack.c.l.b16 %v2407
      %v3238 = vunpack.c.h.b16 %v2407
      %v3239 = vunpack.c.l.b16 %v2408
      %v3240 = vunpack.c.h.b16 %v2408
      %v3241 = vunpack.c.l.b16 %v2409
      %v3242 = vunpack.c.h.b16 %v2409
      %v3243 = vunpack.c.l.b16 %v2410
      %v3244 = vunpack.c.h.b16 %v2410
      %v3245 = vunpack.c.l.b16 %v2411
      %v3246 = vunpack.c.h.b16 %v2411
      %v3247 = vunpack.c.l.b16 %v2412
      %v3248 = vunpack.c.h.b16 %v2412
      %v3249 = vunpack.c.l.b16 %v2413
      %v3250 = vunpack.c.h.b16 %v2413
      %v3251 = vunpack.c.l.b16 %v2414
      %v3252 = vunpack.c.h.b16 %v2414
      %v3253 = vunpack.c.l.b16 %v2415
      %v3254 = vunpack.c.h.b16 %v2415
      %v3255 = vunpack.c.l.b16 %v2416
      %v3256 = vunpack.c.h.b16 %v2416
      %v3257 = vunpack.c.l.b16 %v2417
      %v3258 = vunpack.c.h.b16 %v2417
      %v3259 = vunpack.c.l.b16 %v2418
      %v3260 = vunpack.c.h.b16 %v2418
      %v3261 = vunpack.c.l.b16 %v2419
      %v3262 = vunpack.c.h.b16 %v2419
      %v3263 = vunpack.c.l.b16 %v2420
      %v3264 = vunpack.c.h.b16 %v2420
      %v3265 = vunpack.c.l.b16 %v2421
      %v3266 = vunpack.c.h.b16 %v2421
      %v3267 = vunpack.c.l.b16 %v2422
      %v3268 = vunpack.c.h.b16 %v2422
      %v3269 = vunpack.c.l.b16 %v2423
      %v3270 = vunpack.c.h.b16 %v2423
      %v3271 = vunpack.c.l.b16 %v2424
      %v3272 = vunpack.c.h.b16 %v2424
      %v3273 = vunpack.c.l.b16 %v2425
      %v3274 = vunpack.c.h.b16 %v2425
      %v3275 = vunpack.c.l.b16 %v2426
      %v3276 = vunpack.c.h.b16 %v2426
      %v3277 = vunpack.c.l.b16 %v2427
      %v3278 = vunpack.c.h.b16 %v2427
      %v3279 = vunpack.c.l.b16 %v2428
      %v3280 = vunpack.c.h.b16 %v2428
      %v3281 = vunpack.c.l.b16 %v2429
      %v3282 = vunpack.c.h.b16 %v2429
      %v3283 = vunpack.c.l.b16 %v2430
      %v3284 = vunpack.c.h.b16 %v2430
      %v3285 = vunpack.c.l.b16 %v2431
      %v3286 = vunpack.c.h.b16 %v2431
      %v3287 = vunpack.c.l.b16 %v2432
      %v3288 = vunpack.c.h.b16 %v2432
      %v3289 = vunpack.c.l.b16 %v2433
      %v3290 = vunpack.c.h.b16 %v2433
      %v3291 = vunpack.c.l.b16 %v2434
      %v3292 = vunpack.c.h.b16 %v2434
      %v3293 = vunpack.c.l.b16 %v2435
      %v3294 = vunpack.c.h.b16 %v2435
      %v3295 = vunpack.c.l.b16 %v2436
      %v3296 = vunpack.c.h.b16 %v2436
      %v3297 = vunpack.c.l.b16 %v2437
      %v3298 = vunpack.c.h.b16 %v2437
      %v3299 = vunpack.c.l.b16 %v2438
      %v3300 = vunpack.c.h.b16 %v2438
      %v3301 = vunpack.c.l.b16 %v2439
      %v3302 = vunpack.c.h.b16 %v2439
      %v3303 = vunpack.c.l.b16 %v2440
      %v3304 = vunpack.c.h.b16 %v2440
      %v3305 = vunpack.c.l.b16 %v2441
      %v3306 = vunpack.c.h.b16 %v2441
      %v3307 = vunpack.c.l.b16 %v2442
      %v3308 = vunpack.c.h.b16 %v2442
      %v3309 = vunpack.c.l.b16 %v2443
      %v3310 = vunpack.c.h.b16 %v2443
      %v3311 = vunpack.c.l.b16 %v2444
      %v3312 = vunpack.c.h.b16 %v2444
      %v3313 = vunpack.c.l.b16 %v2445
      %v3314 = vunpack.c.h.b16 %v2445
      %v3315 = vunpack.c.l.b16 %v2446
      %v3316 = vunpack.c.h.b16 %v2446
      %v3317 = vunpack.c.l.b16 %v2447
      %v3318 = vunpack.c.h.b16 %v2447
      %v3319 = vunpack.c.l.b16 %v2448
      %v3320 = vunpack.c.h.b16 %v2448
      %v3321 = vunpack.c.l.b16 %v2449
      %v3322 = vunpack.c.h.b16 %v2449
      %v3323 = vunpack.c.l.b16 %v2450
      %v3324 = vunpack.c.h.b16 %v2450
      %v3325 = vunpack.c.l.b16 %v2451
      %v3326 = vunpack.c.h.b16 %v2451
      %v3327 = vunpack.c.l.b16 %v2452
      %v3328 = vunpack.c.h.b16 %v2452
      %v3329 = vunpack.c.l.b16 %v2453
      %v3330 = vunpack.c.h.b16 %v2453
      %v3331 = vunpack.c.l.b16 %v2454
      %v3332 = vunpack.c.h.b16 %v2454
      %v3333 = vunpack.c.l.b16 %v2455
      %v3334 = vunpack.c.h.b16 %v2455
      %v3335 = vunpack.c.l.b16 %v2456
      %v3336 = vunpack.c.h.b16 %v2456
      %v3337 = vunpack.c.l.b16 %v2457
      %v3338 = vunpack.c.h.b16 %v2457
      %v3339 = vunpack.c.l.b16 %v2458
      %v3340 = vunpack.c.h.b16 %v2458
      %v3341 = vunpack.c.l.b16 %v2459
      %v3342 = vunpack.c.h.b16 %v2459
      %v3343 = vunpack.c.l.b16 %v2460
      %v3344 = vunpack.c.h.b16 %v2460
      %v3345 = vunpack.c.l.b16 %v2461
      %v3346 = vunpack.c.h.b16 %v2461
      %v3347 = vunpack.c.l.b16 %v2462
      %v3348 = vunpack.c.h.b16 %v2462
      %v3349 = vunpack.c.l.b16 %v2463
      %v3350 = vunpack.c.h.b16 %v2463
      %v3351 = vunpack.c.l.b16 %v2464
      %v3352 = vunpack.c.h.b16 %v2464
      %v3353 = vunpack.c.l.b16 %v2465
      %v3354 = vunpack.c.h.b16 %v2465
      %v3355 = vunpack.c.l.b16 %v2466
      %v3356 = vunpack.c.h.b16 %v2466
      %v3357 = vunpack.c.l.b16 %v2467
      %v3358 = vunpack.c.h.b16 %v2467
      %v3359 = vunpack.c.l.b16 %v2468
      %v3360 = vunpack.c.h.b16 %v2468
      %v3361 = vunpack.c.l.b16 %v2469
      %v3362 = vunpack.c.h.b16 %v2469
      %v3363 = vunpack.c.l.b16 %v2470
      %v3364 = vunpack.c.h.b16 %v2470
      %v3365 = vunpack.c.l.b16 %v2471
      %v3366 = vunpack.c.h.b16 %v2471
      %v3367 = vunpack.c.l.b16 %v2472
      %v3368 = vunpack.c.h.b16 %v2472
      %v3369 = vpack.c.b16 %v3117, %v3113
      %v3370 = vpack.c.b16 %v3118, %v3114
      %v3371 = vpack.c.b16 %v3119, %v3115
      %v3372 = vpack.c.b16 %v3120, %v3116
      %v3373 = vpack.c.b16 %v3125, %v3121
      %v3374 = vpack.c.b16 %v3126, %v3122
      %v3375 = vpack.c.b16 %v3127, %v3123
      %v3376 = vpack.c.b16 %v3128, %v3124
      %v3377 = vpack.c.b16 %v3133, %v3129
      %v3378 = vpack.c.b16 %v3134, %v3130
      %v3379 = vpack.c.b16 %v3135, %v3131
      %v3380 = vpack.c.b16 %v3136, %v3132
      %v3381 = vpack.c.b16 %v3141, %v3137
      %v3382 = vpack.c.b16 %v3142, %v3138
      %v3383 = vpack.c.b16 %v3143, %v3139
      %v3384 = vpack.c.b16 %v3144, %v3140
      %v3385 = vpack.c.b16 %v3149, %v3145
      %v3386 = vpack.c.b16 %v3150, %v3146
      %v3387 = vpack.c.b16 %v3151, %v3147
      %v3388 = vpack.c.b16 %v3152, %v3148
      %v3389 = vpack.c.b16 %v3157, %v3153
      %v3390 = vpack.c.b16 %v3158, %v3154
      %v3391 = vpack.c.b16 %v3159, %v3155
      %v3392 = vpack.c.b16 %v3160, %v3156
      %v3393 = vpack.c.b16 %v3165, %v3161
      %v3394 = vpack.c.b16 %v3166, %v3162
      %v3395 = vpack.c.b16 %v3167, %v3163
      %v3396 = vpack.c.b16 %v3168, %v3164
      %v3397 = vpack.c.b16 %v3173, %v3169
      %v3398 = vpack.c.b16 %v3174, %v3170
      %v3399 = vpack.c.b16 %v3175, %v3171
      %v3400 = vpack.c.b16 %v3176, %v3172
      %v3401 = vpack.c.b16 %v3181, %v3177
      %v3402 = vpack.c.b16 %v3182, %v3178
      %v3403 = vpack.c.b16 %v3183, %v3179
      %v3404 = vpack.c.b16 %v3184, %v3180
      %v3405 = vpack.c.b16 %v3189, %v3185
      %v3406 = vpack.c.b16 %v3190, %v3186
      %v3407 = vpack.c.b16 %v3191, %v3187
      %v3408 = vpack.c.b16 %v3192, %v3188
      %v3409 = vpack.c.b16 %v3197, %v3193
      %v3410 = vpack.c.b16 %v3198, %v3194
      %v3411 = vpack.c.b16 %v3199, %v3195
      %v3412 = vpack.c.b16 %v3200, %v3196
      %v3413 = vpack.c.b16 %v3205, %v3201
      %v3414 = vpack.c.b16 %v3206, %v3202
      %v3415 = vpack.c.b16 %v3207, %v3203
      %v3416 = vpack.c.b16 %v3208, %v3204
      %v3417 = vpack.c.b16 %v3213, %v3209
      %v3418 = vpack.c.b16 %v3214, %v3210
      %v3419 = vpack.c.b16 %v3215, %v3211
      %v3420 = vpack.c.b16 %v3216, %v3212
      %v3421 = vpack.c.b16 %v3221, %v3217
      %v3422 = vpack.c.b16 %v3222, %v3218
      %v3423 = vpack.c.b16 %v3223, %v3219
      %v3424 = vpack.c.b16 %v3224, %v3220
      %v3425 = vpack.c.b16 %v3229, %v3225
      %v3426 = vpack.c.b16 %v3230, %v3226
      %v3427 = vpack.c.b16 %v3231, %v3227
      %v3428 = vpack.c.b16 %v3232, %v3228
      %v3429 = vpack.c.b16 %v3237, %v3233
      %v3430 = vpack.c.b16 %v3238, %v3234
      %v3431 = vpack.c.b16 %v3239, %v3235
      %v3432 = vpack.c.b16 %v3240, %v3236
      %v3433 = vpack.c.b16 %v3245, %v3241
      %v3434 = vpack.c.b16 %v3246, %v3242
      %v3435 = vpack.c.b16 %v3247, %v3243
      %v3436 = vpack.c.b16 %v3248, %v3244
      %v3437 = vpack.c.b16 %v3253, %v3249
      %v3438 = vpack.c.b16 %v3254, %v3250
      %v3439 = vpack.c.b16 %v3255, %v3251
      %v3440 = vpack.c.b16 %v3256, %v3252
      %v3441 = vpack.c.b16 %v3261, %v3257
      %v3442 = vpack.c.b16 %v3262, %v3258
      %v3443 = vpack.c.b16 %v3263, %v3259
      %v3444 = vpack.c.b16 %v3264, %v3260
      %v3445 = vpack.c.b16 %v3269, %v3265
      %v3446 = vpack.c.b16 %v3270, %v3266
      %v3447 = vpack.c.b16 %v3271, %v3267
      %v3448 = vpack.c.b16 %v3272, %v3268
      %v3449 = vpack.c.b16 %v3277, %v3273
      %v3450 = vpack.c.b16 %v3278, %v3274
      %v3451 = vpack.c.b16 %v3279, %v3275
      %v3452 = vpack.c.b16 %v3280, %v3276
      %v3453 = vpack.c.b16 %v3285, %v3281
      %v3454 = vpack.c.b16 %v3286, %v3282
      %v3455 = vpack.c.b16 %v3287, %v3283
      %v3456 = vpack.c.b16 %v3288, %v3284
      %v3457 = vpack.c.b16 %v3293, %v3289
      %v3458 = vpack.c.b16 %v3294, %v3290
      %v3459 = vpack.c.b16 %v3295, %v3291
      %v3460 = vpack.c.b16 %v3296, %v3292
      %v3461 = vpack.c.b16 %v3301, %v3297
      %v3462 = vpack.c.b16 %v3302, %v3298
      %v3463 = vpack.c.b16 %v3303, %v3299
      %v3464 = vpack.c.b16 %v3304, %v3300
      %v3465 = vpack.c.b16 %v3309, %v3305
      %v3466 = vpack.c.b16 %v3310, %v3306
      %v3467 = vpack.c.b16 %v3311, %v3307
      %v3468 = vpack.c.b16 %v3312, %v3308
      %v3469 = vpack.c.b16 %v3317, %v3313
      %v3470 = vpack.c.b16 %v3318, %v3314
      %v3471 = vpack.c.b16 %v3319, %v3315
      %v3472 = vpack.c.b16 %v3320, %v3316
      %v3473 = vpack.c.b16 %v3325, %v3321
      %v3474 = vpack.c.b16 %v3326, %v3322
      %v3475 = vpack.c.b16 %v3327, %v3323
      %v3476 = vpack.c.b16 %v3328, %v3324
      %v3477 = vpack.c.b16 %v3333, %v3329
      %v3478 = vpack.c.b16 %v3334, %v3330
      %v3479 = vpack.c.b16 %v3335, %v3331
      %v3480 = vpack.c.b16 %v3336, %v3332
      %v3481 = vpack.c.b16 %v3341, %v3337
      %v3482 = vpack.c.b16 %v3342, %v3338
      %v3483 = vpack.c.b16 %v3343, %v3339
      %v3484 = vpack.c.b16 %v3344, %v3340
      %v3485 = vpack.c.b16 %v3349, %v3345
      %v3486 = vpack.c.b16 %v3350, %v3346
      %v3487 = vpack.c.b16 %v3351, %v3347
      %v3488 = vpack.c.b16 %v3352, %v3348
      %v3489 = vpack.c.b16 %v3357, %v3353
      %v3490 = vpack.c.b16 %v3358, %v3354
      %v3491 = vpack.c.b16 %v3359, %v3355
      %v3492 = vpack.c.b16 %v3360, %v3356
      %v3493 = vpack.c.b16 %v3365, %v3361
      %v3494 = vpack.c.b16 %v3366, %v3362
      %v3495 = vpack.c.b16 %v3367, %v3363
      %v3496 = vpack.c.b16 %v3368, %v3364
      %3625 = vmatprep.subr.bf16.mxu0 %v2474
      %3626 = vmatpush1.bf16.msra.mxu0 %v2473
      %3627 = vmatprep.subr.bf16.mxu0 %v2478
      %3628 = vmatpush1.bf16.msra.mxu0 %v2477
      %3629 = vmatprep.subr.bf16.mxu0 %v2482
      %3630 = vmatpush1.bf16.msra.mxu0 %v2481
      %3631 = vmatprep.subr.bf16.mxu0 %v2486
      %3632 = vmatpush1.bf16.msra.mxu0 %v2485
      %3633 = vmatprep.subr.bf16.mxu0 %v2490
      %3634 = vmatpush1.bf16.msra.mxu0 %v2489
      %3635 = vmatprep.subr.bf16.mxu0 %v2494
      %3636 = vmatpush1.bf16.msra.mxu0 %v2493
      %3637 = vmatprep.subr.bf16.mxu0 %v2498
      %3638 = vmatpush1.bf16.msra.mxu0 %v2497
      %3639 = vmatprep.subr.bf16.mxu0 %v2502
      %3640 = vmatpush1.bf16.msra.mxu0 %v2501
      %3641 = vmatprep.subr.bf16.mxu0 %v2506
      %3642 = vmatpush1.bf16.msra.mxu0 %v2505
      %3643 = vmatprep.subr.bf16.mxu0 %v2510
      %3644 = vmatpush1.bf16.msra.mxu0 %v2509
      %3645 = vmatprep.subr.bf16.mxu0 %v2514
      %3646 = vmatpush1.bf16.msra.mxu0 %v2513
      %3647 = vmatprep.subr.bf16.mxu0 %v2518
      %3648 = vmatpush1.bf16.msra.mxu0 %v2517
      %3649 = vmatprep.subr.bf16.mxu0 %v2522
      %3650 = vmatpush1.bf16.msra.mxu0 %v2521
      %3651 = vmatprep.subr.bf16.mxu0 %v2526
      %3652 = vmatpush1.bf16.msra.mxu0 %v2525
      %3653 = vmatprep.subr.bf16.mxu0 %v2530
      %3654 = vmatpush1.bf16.msra.mxu0 %v2529
      %3655 = vmatprep.subr.bf16.mxu0 %v2534
      %3656 = vmatpush1.bf16.msra.mxu0 %v2533
      %3657 = vmatprep.mubr.bf16.mxu0 %v3370
      %3658 = vmatmul.mubr.bf16.gmra.mrb[0].mxu0 %v3369
      %v3659 = vpop.f32.mrb[0].mxu0
      %v3660 = vadd.f32 %v2668, %v3659
      %v3661 = vpop.f32.mrb[0].mxu0
      %v3662 = vadd.f32 %v2668, %v3661
      %v3663 = vpop.f32.mrb[0].mxu0
      %v3664 = vadd.f32 %v2673, %v3663
      %v3665 = vpop.f32.mrb[0].mxu0
      %v3666 = vadd.f32 %v2673, %v3665
      %3667 = vmatprep.mubr.bf16.mxu0 %v3374
      %3668 = vmatmul.mubr.bf16.gmra.mrb[0].mxu0 %v3373
      %v3669 = vpop.f32.mrb[0].mxu0
      %v3670 = vadd.f32 %v2678, %v3669
      %v3671 = vpop.f32.mrb[0].mxu0
      %v3672 = vadd.f32 %v2678, %v3671
      %v3673 = vpop.f32.mrb[0].mxu0
      %v3674 = vadd.f32 %v2683, %v3673
      %v3675 = vpop.f32.mrb[0].mxu0
      %v3676 = vadd.f32 %v2683, %v3675
      %3677 = vmatprep.mubr.bf16.mxu0 %v3378
      %3678 = vmatmul.mubr.bf16.gmra.mrb[0].mxu0 %v3377
      %v3679 = vpop.f32.mrb[0].mxu0
      %v3680 = vadd.f32 %v2688, %v3679
      %v3681 = vpop.f32.mrb[0].mxu0
      %v3682 = vadd.f32 %v2688, %v3681
      %v3683 = vpop.f32.mrb[0].mxu0
      %v3684 = vadd.f32 %v2693, %v3683
      %v3685 = vpop.f32.mrb[0].mxu0
      %v3686 = vadd.f32 %v2693, %v3685
      %3687 = vmatprep.mubr.bf16.mxu0 %v3382
      %3688 = vmatmul.mubr.bf16.gmra.mrb[0].mxu0 %v3381
      %v3689 = vpop.f32.mrb[0].mxu0
      %v3690 = vadd.f32 %v2698, %v3689
      %v3691 = vpop.f32.mrb[0].mxu0
      %v3692 = vadd.f32 %v2698, %v3691
      %v3693 = vpop.f32.mrb[0].mxu0
      %v3694 = vadd.f32 %v2703, %v3693
      %v3695 = vpop.f32.mrb[0].mxu0
      %v3696 = vadd.f32 %v2703, %v3695
      %3697 = vmatprep.mubr.bf16.mxu0 %v3386
      %3698 = vmatmul.mubr.bf16.gmra.mrb[0].mxu0 %v3385
      %v3699 = vpop.f32.mrb[0].mxu0
      %v3700 = vadd.f32 %v2708, %v3699
      %v3701 = vpop.f32.mrb[0].mxu0
      %v3702 = vadd.f32 %v2708, %v3701
      %v3703 = vpop.f32.mrb[0].mxu0
      %v3704 = vadd.f32 %v2713, %v3703
      %v3705 = vpop.f32.mrb[0].mxu0
      %v3706 = vadd.f32 %v2713, %v3705
      %3707 = vmatprep.mubr.bf16.mxu0 %v3390
      %3708 = vmatmul.mubr.bf16.gmra.mrb[0].mxu0 %v3389
      %v3709 = vpop.f32.mrb[0].mxu0
      %v3710 = vadd.f32 %v2718, %v3709
      %v3711 = vpop.f32.mrb[0].mxu0
      %v3712 = vadd.f32 %v2718, %v3711
      %v3713 = vpop.f32.mrb[0].mxu0
      %v3714 = vadd.f32 %v2723, %v3713
      %v3715 = vpop.f32.mrb[0].mxu0
      %v3716 = vadd.f32 %v2723, %v3715
      %3717 = vmatprep.mubr.bf16.mxu0 %v3394
      %3718 = vmatmul.mubr.bf16.gmra.mrb[0].mxu0 %v3393
      %v3719 = vpop.f32.mrb[0].mxu0
      %v3720 = vadd.f32 %v2728, %v3719
      %v3721 = vpop.f32.mrb[0].mxu0
      %v3722 = vadd.f32 %v2728, %v3721
      %v3723 = vpop.f32.mrb[0].mxu0
      %v3724 = vadd.f32 %v2733, %v3723
      %v3725 = vpop.f32.mrb[0].mxu0
      %v3726 = vadd.f32 %v2733, %v3725
      %3727 = vmatprep.mubr.bf16.mxu0 %v3398
      %3728 = vmatmul.mubr.bf16.gmra.mrb[0].mxu0 %v3397
      %v3729 = vpop.f32.mrb[0].mxu0
      %v3730 = vadd.f32 %v2738, %v3729
      %v3731 = vpop.f32.mrb[0].mxu0
      %v3732 = vadd.f32 %v2738, %v3731
      %v3733 = vpop.f32.mrb[0].mxu0
      %v3734 = vadd.f32 %v2743, %v3733
      %v3735 = vpop.f32.mrb[0].mxu0
      %v3736 = vadd.f32 %v2743, %v3735
      %3737 = vmatprep.mubr.bf16.mxu0 %v3402
      %3738 = vmatmul.mubr.bf16.gmra.mrb[0].mxu0 %v3401
      %v3739 = vpop.f32.mrb[0].mxu0
      %v3740 = vadd.f32 %v2748, %v3739
      %v3741 = vpop.f32.mrb[0].mxu0
      %v3742 = vadd.f32 %v2748, %v3741
      %v3743 = vpop.f32.mrb[0].mxu0
      %v3744 = vadd.f32 %v2753, %v3743
      %v3745 = vpop.f32.mrb[0].mxu0
      %v3746 = vadd.f32 %v2753, %v3745
      %3747 = vmatprep.mubr.bf16.mxu0 %v3406
      %3748 = vmatmul.mubr.bf16.gmra.mrb[0].mxu0 %v3405
      %v3749 = vpop.f32.mrb[0].mxu0
      %v3750 = vadd.f32 %v2758, %v3749
      %v3751 = vpop.f32.mrb[0].mxu0
      %v3752 = vadd.f32 %v2758, %v3751
      %v3753 = vpop.f32.mrb[0].mxu0
      %v3754 = vadd.f32 %v2763, %v3753
      %v3755 = vpop.f32.mrb[0].mxu0
      %v3756 = vadd.f32 %v2763, %v3755
      %3757 = vmatprep.mubr.bf16.mxu0 %v3410
      %3758 = vmatmul.mubr.bf16.gmra.mrb[0].mxu0 %v3409
      %v3759 = vpop.f32.mrb[0].mxu0
      %v3760 = vadd.f32 %v2768, %v3759
      %v3761 = vpop.f32.mrb[0].mxu0
      %v3762 = vadd.f32 %v2768, %v3761
      %v3763 = vpop.f32.mrb[0].mxu0
      %v3764 = vadd.f32 %v2773, %v3763
      %v3765 = vpop.f32.mrb[0].mxu0
      %v3766 = vadd.f32 %v2773, %v3765
      %3767 = vmatprep.mubr.bf16.mxu0 %v3414
      %3768 = vmatmul.mubr.bf16.gmra.mrb[0].mxu0 %v3413
      %v3769 = vpop.f32.mrb[0].mxu0
      %v3770 = vadd.f32 %v2778, %v3769
      %v3771 = vpop.f32.mrb[0].mxu0
      %v3772 = vadd.f32 %v2778, %v3771
      %v3773 = vpop.f32.mrb[0].mxu0
      %v3774 = vadd.f32 %v2783, %v3773
      %v3775 = vpop.f32.mrb[0].mxu0
      %v3776 = vadd.f32 %v2783, %v3775
      %3777 = vmatprep.mubr.bf16.mxu0 %v3418
      %3778 = vmatmul.mubr.bf16.gmra.mrb[0].mxu0 %v3417
      %v3779 = vpop.f32.mrb[0].mxu0
      %v3780 = vadd.f32 %v2788, %v3779
      %v3781 = vpop.f32.mrb[0].mxu0
      %v3782 = vadd.f32 %v2788, %v3781
      %v3783 = vpop.f32.mrb[0].mxu0
      %v3784 = vadd.f32 %v2793, %v3783
      %v3785 = vpop.f32.mrb[0].mxu0
      %v3786 = vadd.f32 %v2793, %v3785
      %3787 = vmatprep.mubr.bf16.mxu0 %v3422
      %3788 = vmatmul.mubr.bf16.gmra.mrb[0].mxu0 %v3421
      %v3789 = vpop.f32.mrb[0].mxu0
      %v3790 = vadd.f32 %v2798, %v3789
      %v3791 = vpop.f32.mrb[0].mxu0
      %v3792 = vadd.f32 %v2798, %v3791
      %v3793 = vpop.f32.mrb[0].mxu0
      %v3794 = vadd.f32 %v2803, %v3793
      %v3795 = vpop.f32.mrb[0].mxu0
      %v3796 = vadd.f32 %v2803, %v3795
      %3797 = vmatprep.mubr.bf16.mxu0 %v3426
      %3798 = vmatmul.mubr.bf16.gmra.mrb[0].mxu0 %v3425
      %v3799 = vpop.f32.mrb[0].mxu0
      %v3800 = vadd.f32 %v2808, %v3799
      %v3801 = vpop.f32.mrb[0].mxu0
      %v3802 = vadd.f32 %v2808, %v3801
      %v3803 = vpop.f32.mrb[0].mxu0
      %v3804 = vadd.f32 %v2813, %v3803
      %v3805 = vpop.f32.mrb[0].mxu0
      %v3806 = vadd.f32 %v2813, %v3805
      %3807 = vmatprep.mubr.bf16.mxu0 %v3430
      %3808 = vmatmul.mubr.bf16.gmra.mrb[0].mxu0 %v3429
      %v3809 = vpop.f32.mrb[0].mxu0
      %v3810 = vadd.f32 %v2818, %v3809
      %v3811 = vpop.f32.mrb[0].mxu0
      %v3812 = vadd.f32 %v2818, %v3811
      %v3813 = vpop.f32.mrb[0].mxu0
      %v3814 = vadd.f32 %v2823, %v3813
      %v3815 = vpop.f32.mrb[0].mxu0
      %v3816 = vadd.f32 %v2823, %v3815
      %3817 = vmatprep.mubr.bf16.mxu0 %v3434
      %3818 = vmatmul.mubr.bf16.gmra.mrb[0].mxu0 %v3433
      %v3819 = vpop.f32.mrb[0].mxu0
      %v3820 = vadd.f32 %v2828, %v3819
      %v3821 = vpop.f32.mrb[0].mxu0
      %v3822 = vadd.f32 %v2828, %v3821
      %v3823 = vpop.f32.mrb[0].mxu0
      %v3824 = vadd.f32 %v2833, %v3823
      %v3825 = vpop.f32.mrb[0].mxu0
      %v3826 = vadd.f32 %v2833, %v3825
      %3827 = vmatprep.mubr.bf16.mxu0 %v3438
      %3828 = vmatmul.mubr.bf16.gmra.mrb[0].mxu0 %v3437
      %v3829 = vpop.f32.mrb[0].mxu0
      %v3830 = vadd.f32 %v2838, %v3829
      %v3831 = vpop.f32.mrb[0].mxu0
      %v3832 = vadd.f32 %v2838, %v3831
      %v3833 = vpop.f32.mrb[0].mxu0
      %v3834 = vadd.f32 %v2843, %v3833
      %v3835 = vpop.f32.mrb[0].mxu0
      %v3836 = vadd.f32 %v2843, %v3835
      %3837 = vmatprep.mubr.bf16.mxu0 %v3442
      %3838 = vmatmul.mubr.bf16.gmra.mrb[0].mxu0 %v3441
      %v3839 = vpop.f32.mrb[0].mxu0
      %v3840 = vadd.f32 %v2848, %v3839
      %v3841 = vpop.f32.mrb[0].mxu0
      %v3842 = vadd.f32 %v2848, %v3841
      %v3843 = vpop.f32.mrb[0].mxu0
      %v3844 = vadd.f32 %v2853, %v3843
      %v3845 = vpop.f32.mrb[0].mxu0
      %v3846 = vadd.f32 %v2853, %v3845
      %3847 = vmatprep.mubr.bf16.mxu0 %v3446
      %3848 = vmatmul.mubr.bf16.gmra.mrb[0].mxu0 %v3445
      %v3849 = vpop.f32.mrb[0].mxu0
      %v3850 = vadd.f32 %v2858, %v3849
      %v3851 = vpop.f32.mrb[0].mxu0
      %v3852 = vadd.f32 %v2858, %v3851
      %v3853 = vpop.f32.mrb[0].mxu0
      %v3854 = vadd.f32 %v2863, %v3853
      %v3855 = vpop.f32.mrb[0].mxu0
      %v3856 = vadd.f32 %v2863, %v3855
      %3857 = vmatprep.mubr.bf16.mxu0 %v3450
      %3858 = vmatmul.mubr.bf16.gmra.mrb[0].mxu0 %v3449
      %v3859 = vpop.f32.mrb[0].mxu0
      %v3860 = vadd.f32 %v2868, %v3859
      %v3861 = vpop.f32.mrb[0].mxu0
      %v3862 = vadd.f32 %v2868, %v3861
      %v3863 = vpop.f32.mrb[0].mxu0
      %v3864 = vadd.f32 %v2873, %v3863
      %v3865 = vpop.f32.mrb[0].mxu0
      %v3866 = vadd.f32 %v2873, %v3865
      %3867 = vmatprep.mubr.bf16.mxu0 %v3454
      %3868 = vmatmul.mubr.bf16.gmra.mrb[0].mxu0 %v3453
      %v3869 = vpop.f32.mrb[0].mxu0
      %v3870 = vadd.f32 %v2878, %v3869
      %v3871 = vpop.f32.mrb[0].mxu0
      %v3872 = vadd.f32 %v2878, %v3871
      %v3873 = vpop.f32.mrb[0].mxu0
      %v3874 = vadd.f32 %v2883, %v3873
      %v3875 = vpop.f32.mrb[0].mxu0
      %v3876 = vadd.f32 %v2883, %v3875
      %3877 = vmatprep.mubr.bf16.mxu0 %v3458
      %3878 = vmatmul.mubr.bf16.gmra.mrb[0].mxu0 %v3457
      %v3879 = vpop.f32.mrb[0].mxu0
      %v3880 = vadd.f32 %v2888, %v3879
      %v3881 = vpop.f32.mrb[0].mxu0
      %v3882 = vadd.f32 %v2888, %v3881
      %v3883 = vpop.f32.mrb[0].mxu0
      %v3884 = vadd.f32 %v2893, %v3883
      %v3885 = vpop.f32.mrb[0].mxu0
      %v3886 = vadd.f32 %v2893, %v3885
      %3887 = vmatprep.mubr.bf16.mxu0 %v3462
      %3888 = vmatmul.mubr.bf16.gmra.mrb[0].mxu0 %v3461
      %v3889 = vpop.f32.mrb[0].mxu0
      %v3890 = vadd.f32 %v2898, %v3889
      %v3891 = vpop.f32.mrb[0].mxu0
      %v3892 = vadd.f32 %v2898, %v3891
      %v3893 = vpop.f32.mrb[0].mxu0
      %v3894 = vadd.f32 %v2903, %v3893
      %v3895 = vpop.f32.mrb[0].mxu0
      %v3896 = vadd.f32 %v2903, %v3895
      %3897 = vmatprep.mubr.bf16.mxu0 %v3466
      %3898 = vmatmul.mubr.bf16.gmra.mrb[0].mxu0 %v3465
      %v3899 = vpop.f32.mrb[0].mxu0
      %v3900 = vadd.f32 %v2908, %v3899
      %v3901 = vpop.f32.mrb[0].mxu0
      %v3902 = vadd.f32 %v2908, %v3901
      %v3903 = vpop.f32.mrb[0].mxu0
      %v3904 = vadd.f32 %v2913, %v3903
      %v3905 = vpop.f32.mrb[0].mxu0
      %v3906 = vadd.f32 %v2913, %v3905
      %3907 = vmatprep.mubr.bf16.mxu0 %v3470
      %3908 = vmatmul.mubr.bf16.gmra.mrb[0].mxu0 %v3469
      %v3909 = vpop.f32.mrb[0].mxu0
      %v3910 = vadd.f32 %v2918, %v3909
      %v3911 = vpop.f32.mrb[0].mxu0
      %v3912 = vadd.f32 %v2918, %v3911
      %v3913 = vpop.f32.mrb[0].mxu0
      %v3914 = vadd.f32 %v2923, %v3913
      %v3915 = vpop.f32.mrb[0].mxu0
      %v3916 = vadd.f32 %v2923, %v3915
      %3917 = vmatprep.mubr.bf16.mxu0 %v3474
      %3918 = vmatmul.mubr.bf16.gmra.mrb[0].mxu0 %v3473
      %v3919 = vpop.f32.mrb[0].mxu0
      %v3920 = vadd.f32 %v2928, %v3919
      %v3921 = vpop.f32.mrb[0].mxu0
      %v3922 = vadd.f32 %v2928, %v3921
      %v3923 = vpop.f32.mrb[0].mxu0
      %v3924 = vadd.f32 %v2933, %v3923
      %v3925 = vpop.f32.mrb[0].mxu0
      %v3926 = vadd.f32 %v2933, %v3925
      %3927 = vmatprep.mubr.bf16.mxu0 %v3478
      %3928 = vmatmul.mubr.bf16.gmra.mrb[0].mxu0 %v3477
      %v3929 = vpop.f32.mrb[0].mxu0
      %v3930 = vadd.f32 %v2938, %v3929
      %v3931 = vpop.f32.mrb[0].mxu0
      %v3932 = vadd.f32 %v2938, %v3931
      %v3933 = vpop.f32.mrb[0].mxu0
      %v3934 = vadd.f32 %v2943, %v3933
      %v3935 = vpop.f32.mrb[0].mxu0
      %v3936 = vadd.f32 %v2943, %v3935
      %3937 = vmatprep.mubr.bf16.mxu0 %v3482
      %3938 = vmatmul.mubr.bf16.gmra.mrb[0].mxu0 %v3481
      %v3939 = vpop.f32.mrb[0].mxu0
      %v3940 = vadd.f32 %v2948, %v3939
      %v3941 = vpop.f32.mrb[0].mxu0
      %v3942 = vadd.f32 %v2948, %v3941
      %v3943 = vpop.f32.mrb[0].mxu0
      %v3944 = vadd.f32 %v2953, %v3943
      %v3945 = vpop.f32.mrb[0].mxu0
      %v3946 = vadd.f32 %v2953, %v3945
      %3947 = vmatprep.mubr.bf16.mxu0 %v3486
      %3948 = vmatmul.mubr.bf16.gmra.mrb[0].mxu0 %v3485
      %v3949 = vpop.f32.mrb[0].mxu0
      %v3950 = vadd.f32 %v2958, %v3949
      %v3951 = vpop.f32.mrb[0].mxu0
      %v3952 = vadd.f32 %v2958, %v3951
      %v3953 = vpop.f32.mrb[0].mxu0
      %v3954 = vadd.f32 %v2963, %v3953
      %v3955 = vpop.f32.mrb[0].mxu0
      %v3956 = vadd.f32 %v2963, %v3955
      %3957 = vmatprep.mubr.bf16.mxu0 %v3490
      %3958 = vmatmul.mubr.bf16.gmra.mrb[0].mxu0 %v3489
      %v3959 = vpop.f32.mrb[0].mxu0
      %v3960 = vadd.f32 %v2968, %v3959
      %v3961 = vpop.f32.mrb[0].mxu0
      %v3962 = vadd.f32 %v2968, %v3961
      %v3963 = vpop.f32.mrb[0].mxu0
      %v3964 = vadd.f32 %v2973, %v3963
      %v3965 = vpop.f32.mrb[0].mxu0
      %v3966 = vadd.f32 %v2973, %v3965
      %3967 = vmatprep.mubr.bf16.mxu0 %v3494
      %3968 = vmatmul.mubr.bf16.gmra.mrb[0].mxu0 %v3493
      %v3969 = vpop.f32.mrb[0].mxu0
      %v3970 = vadd.f32 %v2978, %v3969
      %v3971 = vpop.f32.mrb[0].mxu0
      %v3972 = vadd.f32 %v2978, %v3971
      %v3973 = vpop.f32.mrb[0].mxu0
      %v3974 = vadd.f32 %v2983, %v3973
      %v3975 = vpop.f32.mrb[0].mxu0
      %v3976 = vadd.f32 %v2983, %v3975
      %3977 = vdwg.mxu0
      %3978 = vmatprep.subr.bf16.mxu0 %v2538
      %3979 = vmatpush1.bf16.msra.mxu0 %v2537
      %3980 = vmatprep.subr.bf16.mxu0 %v2542
      %3981 = vmatpush1.bf16.msra.mxu0 %v2541
      %3982 = vmatprep.subr.bf16.mxu0 %v2546
      %3983 = vmatpush1.bf16.msra.mxu0 %v2545
      %3984 = vmatprep.subr.bf16.mxu0 %v2550
      %3985 = vmatpush1.bf16.msra.mxu0 %v2549
      %3986 = vmatprep.subr.bf16.mxu0 %v2554
      %3987 = vmatpush1.bf16.msra.mxu0 %v2553
      %3988 = vmatprep.subr.bf16.mxu0 %v2558
      %3989 = vmatpush1.bf16.msra.mxu0 %v2557
      %3990 = vmatprep.subr.bf16.mxu0 %v2562
      %3991 = vmatpush1.bf16.msra.mxu0 %v2561
      %3992 = vmatprep.subr.bf16.mxu0 %v2566
      %3993 = vmatpush1.bf16.msra.mxu0 %v2565
      %3994 = vmatprep.subr.bf16.mxu0 %v2570
      %3995 = vmatpush1.bf16.msra.mxu0 %v2569
      %3996 = vmatprep.subr.bf16.mxu0 %v2574
      %3997 = vmatpush1.bf16.msra.mxu0 %v2573
      %3998 = vmatprep.subr.bf16.mxu0 %v2578
      %3999 = vmatpush1.bf16.msra.mxu0 %v2577
      %4000 = vmatprep.subr.bf16.mxu0 %v2582
      %4001 = vmatpush1.bf16.msra.mxu0 %v2581
      %4002 = vmatprep.subr.bf16.mxu0 %v2586
      %4003 = vmatpush1.bf16.msra.mxu0 %v2585
      %4004 = vmatprep.subr.bf16.mxu0 %v2590
      %4005 = vmatpush1.bf16.msra.mxu0 %v2589
      %4006 = vmatprep.subr.bf16.mxu0 %v2594
      %4007 = vmatpush1.bf16.msra.mxu0 %v2593
      %4008 = vmatprep.subr.bf16.mxu0 %v2598
      %4009 = vmatpush1.bf16.msra.mxu0 %v2597
      %4010 = vmatprep.mubr.bf16.mxu0 %v3372
      %4011 = vmatmul.mubr.bf16.gmra.mrb[0].mxu0 %v3371
      %v4012 = vpop.f32.mrb[0].mxu0
      %v4013 = vadd.f32 %v3660, %v4012
      %v4014 = vpop.f32.mrb[0].mxu0
      %v4015 = vadd.f32 %v3662, %v4014
      %v4016 = vpop.f32.mrb[0].mxu0
      %v4017 = vadd.f32 %v3664, %v4016
      %v4018 = vpop.f32.mrb[0].mxu0
      %v4019 = vadd.f32 %v3666, %v4018
      %4020 = vmatprep.mubr.bf16.mxu0 %v3376
      %4021 = vmatmul.mubr.bf16.gmra.mrb[0].mxu0 %v3375
      %v4022 = vpop.f32.mrb[0].mxu0
      %v4023 = vadd.f32 %v3670, %v4022
      %v4024 = vpop.f32.mrb[0].mxu0
      %v4025 = vadd.f32 %v3672, %v4024
      %v4026 = vpop.f32.mrb[0].mxu0
      %v4027 = vadd.f32 %v3674, %v4026
      %v4028 = vpop.f32.mrb[0].mxu0
      %v4029 = vadd.f32 %v3676, %v4028
      %4030 = vmatprep.mubr.bf16.mxu0 %v3380
      %4031 = vmatmul.mubr.bf16.gmra.mrb[0].mxu0 %v3379
      %v4032 = vpop.f32.mrb[0].mxu0
      %v4033 = vadd.f32 %v3680, %v4032
      %v4034 = vpop.f32.mrb[0].mxu0
      %v4035 = vadd.f32 %v3682, %v4034
      %v4036 = vpop.f32.mrb[0].mxu0
      %v4037 = vadd.f32 %v3684, %v4036
      %v4038 = vpop.f32.mrb[0].mxu0
      %v4039 = vadd.f32 %v3686, %v4038
      %4040 = vmatprep.mubr.bf16.mxu0 %v3384
      %4041 = vmatmul.mubr.bf16.gmra.mrb[0].mxu0 %v3383
      %v4042 = vpop.f32.mrb[0].mxu0
      %v4043 = vadd.f32 %v3690, %v4042
      %v4044 = vpop.f32.mrb[0].mxu0
      %v4045 = vadd.f32 %v3692, %v4044
      %v4046 = vpop.f32.mrb[0].mxu0
      %v4047 = vadd.f32 %v3694, %v4046
      %v4048 = vpop.f32.mrb[0].mxu0
      %v4049 = vadd.f32 %v3696, %v4048
      %4050 = vmatprep.mubr.bf16.mxu0 %v3388
      %4051 = vmatmul.mubr.bf16.gmra.mrb[0].mxu0 %v3387
      %v4052 = vpop.f32.mrb[0].mxu0
      %v4053 = vadd.f32 %v3700, %v4052
      %v4054 = vpop.f32.mrb[0].mxu0
      %v4055 = vadd.f32 %v3702, %v4054
      %v4056 = vpop.f32.mrb[0].mxu0
      %v4057 = vadd.f32 %v3704, %v4056
      %v4058 = vpop.f32.mrb[0].mxu0
      %v4059 = vadd.f32 %v3706, %v4058
      %4060 = vmatprep.mubr.bf16.mxu0 %v3392
      %4061 = vmatmul.mubr.bf16.gmra.mrb[0].mxu0 %v3391
      %v4062 = vpop.f32.mrb[0].mxu0
      %v4063 = vadd.f32 %v3710, %v4062
      %v4064 = vpop.f32.mrb[0].mxu0
      %v4065 = vadd.f32 %v3712, %v4064
      %v4066 = vpop.f32.mrb[0].mxu0
      %v4067 = vadd.f32 %v3714, %v4066
      %v4068 = vpop.f32.mrb[0].mxu0
      %v4069 = vadd.f32 %v3716, %v4068
      %4070 = vmatprep.mubr.bf16.mxu0 %v3396
      %4071 = vmatmul.mubr.bf16.gmra.mrb[0].mxu0 %v3395
      %v4072 = vpop.f32.mrb[0].mxu0
      %v4073 = vadd.f32 %v3720, %v4072
      %v4074 = vpop.f32.mrb[0].mxu0
      %v4075 = vadd.f32 %v3722, %v4074
      %v4076 = vpop.f32.mrb[0].mxu0
      %v4077 = vadd.f32 %v3724, %v4076
      %v4078 = vpop.f32.mrb[0].mxu0
      %v4079 = vadd.f32 %v3726, %v4078
      %4080 = vmatprep.mubr.bf16.mxu0 %v3400
      %4081 = vmatmul.mubr.bf16.gmra.mrb[0].mxu0 %v3399
      %v4082 = vpop.f32.mrb[0].mxu0
      %v4083 = vadd.f32 %v3730, %v4082
      %v4084 = vpop.f32.mrb[0].mxu0
      %v4085 = vadd.f32 %v3732, %v4084
      %v4086 = vpop.f32.mrb[0].mxu0
      %v4087 = vadd.f32 %v3734, %v4086
      %v4088 = vpop.f32.mrb[0].mxu0
      %v4089 = vadd.f32 %v3736, %v4088
      %4090 = vmatprep.mubr.bf16.mxu0 %v3404
      %4091 = vmatmul.mubr.bf16.gmra.mrb[0].mxu0 %v3403
      %v4092 = vpop.f32.mrb[0].mxu0
      %v4093 = vadd.f32 %v3740, %v4092
      %v4094 = vpop.f32.mrb[0].mxu0
      %v4095 = vadd.f32 %v3742, %v4094
      %v4096 = vpop.f32.mrb[0].mxu0
      %v4097 = vadd.f32 %v3744, %v4096
      %v4098 = vpop.f32.mrb[0].mxu0
      %v4099 = vadd.f32 %v3746, %v4098
      %4100 = vmatprep.mubr.bf16.mxu0 %v3408
      %4101 = vmatmul.mubr.bf16.gmra.mrb[0].mxu0 %v3407
      %v4102 = vpop.f32.mrb[0].mxu0
      %v4103 = vadd.f32 %v3750, %v4102
      %v4104 = vpop.f32.mrb[0].mxu0
      %v4105 = vadd.f32 %v3752, %v4104
      %v4106 = vpop.f32.mrb[0].mxu0
      %v4107 = vadd.f32 %v3754, %v4106
      %v4108 = vpop.f32.mrb[0].mxu0
      %v4109 = vadd.f32 %v3756, %v4108
      %4110 = vmatprep.mubr.bf16.mxu0 %v3412
      %4111 = vmatmul.mubr.bf16.gmra.mrb[0].mxu0 %v3411
      %v4112 = vpop.f32.mrb[0].mxu0
      %v4113 = vadd.f32 %v3760, %v4112
      %v4114 = vpop.f32.mrb[0].mxu0
      %v4115 = vadd.f32 %v3762, %v4114
      %v4116 = vpop.f32.mrb[0].mxu0
      %v4117 = vadd.f32 %v3764, %v4116
      %v4118 = vpop.f32.mrb[0].mxu0
      %v4119 = vadd.f32 %v3766, %v4118
      %4120 = vmatprep.mubr.bf16.mxu0 %v3416
      %4121 = vmatmul.mubr.bf16.gmra.mrb[0].mxu0 %v3415
      %v4122 = vpop.f32.mrb[0].mxu0
      %v4123 = vadd.f32 %v3770, %v4122
      %v4124 = vpop.f32.mrb[0].mxu0
      %v4125 = vadd.f32 %v3772, %v4124
      %v4126 = vpop.f32.mrb[0].mxu0
      %v4127 = vadd.f32 %v3774, %v4126
      %v4128 = vpop.f32.mrb[0].mxu0
      %v4129 = vadd.f32 %v3776, %v4128
      %4130 = vmatprep.mubr.bf16.mxu0 %v3420
      %4131 = vmatmul.mubr.bf16.gmra.mrb[0].mxu0 %v3419
      %v4132 = vpop.f32.mrb[0].mxu0
      %v4133 = vadd.f32 %v3780, %v4132
      %v4134 = vpop.f32.mrb[0].mxu0
      %v4135 = vadd.f32 %v3782, %v4134
      %v4136 = vpop.f32.mrb[0].mxu0
      %v4137 = vadd.f32 %v3784, %v4136
      %v4138 = vpop.f32.mrb[0].mxu0
      %v4139 = vadd.f32 %v3786, %v4138
      %4140 = vmatprep.mubr.bf16.mxu0 %v3424
      %4141 = vmatmul.mubr.bf16.gmra.mrb[0].mxu0 %v3423
      %v4142 = vpop.f32.mrb[0].mxu0
      %v4143 = vadd.f32 %v3790, %v4142
      %v4144 = vpop.f32.mrb[0].mxu0
      %v4145 = vadd.f32 %v3792, %v4144
      %v4146 = vpop.f32.mrb[0].mxu0
      %v4147 = vadd.f32 %v3794, %v4146
      %v4148 = vpop.f32.mrb[0].mxu0
      %v4149 = vadd.f32 %v3796, %v4148
      %4150 = vmatprep.mubr.bf16.mxu0 %v3428
      %4151 = vmatmul.mubr.bf16.gmra.mrb[0].mxu0 %v3427
      %v4152 = vpop.f32.mrb[0].mxu0
      %v4153 = vadd.f32 %v3800, %v4152
      %v4154 = vpop.f32.mrb[0].mxu0
      %v4155 = vadd.f32 %v3802, %v4154
      %v4156 = vpop.f32.mrb[0].mxu0
      %v4157 = vadd.f32 %v3804, %v4156
      %v4158 = vpop.f32.mrb[0].mxu0
      %v4159 = vadd.f32 %v3806, %v4158
      %4160 = vmatprep.mubr.bf16.mxu0 %v3432
      %4161 = vmatmul.mubr.bf16.gmra.mrb[0].mxu0 %v3431
      %v4162 = vpop.f32.mrb[0].mxu0
      %v4163 = vadd.f32 %v3810, %v4162
      %v4164 = vpop.f32.mrb[0].mxu0
      %v4165 = vadd.f32 %v3812, %v4164
      %v4166 = vpop.f32.mrb[0].mxu0
      %v4167 = vadd.f32 %v3814, %v4166
      %v4168 = vpop.f32.mrb[0].mxu0
      %v4169 = vadd.f32 %v3816, %v4168
      %4170 = vmatprep.mubr.bf16.mxu0 %v3436
      %4171 = vmatmul.mubr.bf16.gmra.mrb[0].mxu0 %v3435
      %v4172 = vpop.f32.mrb[0].mxu0
      %v4173 = vadd.f32 %v3820, %v4172
      %v4174 = vpop.f32.mrb[0].mxu0
      %v4175 = vadd.f32 %v3822, %v4174
      %v4176 = vpop.f32.mrb[0].mxu0
      %v4177 = vadd.f32 %v3824, %v4176
      %v4178 = vpop.f32.mrb[0].mxu0
      %v4179 = vadd.f32 %v3826, %v4178
      %4180 = vmatprep.mubr.bf16.mxu0 %v3440
      %4181 = vmatmul.mubr.bf16.gmra.mrb[0].mxu0 %v3439
      %v4182 = vpop.f32.mrb[0].mxu0
      %v4183 = vadd.f32 %v3830, %v4182
      %v4184 = vpop.f32.mrb[0].mxu0
      %v4185 = vadd.f32 %v3832, %v4184
      %v4186 = vpop.f32.mrb[0].mxu0
      %v4187 = vadd.f32 %v3834, %v4186
      %v4188 = vpop.f32.mrb[0].mxu0
      %v4189 = vadd.f32 %v3836, %v4188
      %4190 = vmatprep.mubr.bf16.mxu0 %v3444
      %4191 = vmatmul.mubr.bf16.gmra.mrb[0].mxu0 %v3443
      %v4192 = vpop.f32.mrb[0].mxu0
      %v4193 = vadd.f32 %v3840, %v4192
      %v4194 = vpop.f32.mrb[0].mxu0
      %v4195 = vadd.f32 %v3842, %v4194
      %v4196 = vpop.f32.mrb[0].mxu0
      %v4197 = vadd.f32 %v3844, %v4196
      %v4198 = vpop.f32.mrb[0].mxu0
      %v4199 = vadd.f32 %v3846, %v4198
      %4200 = vmatprep.mubr.bf16.mxu0 %v3448
      %4201 = vmatmul.mubr.bf16.gmra.mrb[0].mxu0 %v3447
      %v4202 = vpop.f32.mrb[0].mxu0
      %v4203 = vadd.f32 %v3850, %v4202
      %v4204 = vpop.f32.mrb[0].mxu0
      %v4205 = vadd.f32 %v3852, %v4204
      %v4206 = vpop.f32.mrb[0].mxu0
      %v4207 = vadd.f32 %v3854, %v4206
      %v4208 = vpop.f32.mrb[0].mxu0
      %v4209 = vadd.f32 %v3856, %v4208
      %4210 = vmatprep.mubr.bf16.mxu0 %v3452
      %4211 = vmatmul.mubr.bf16.gmra.mrb[0].mxu0 %v3451
      %v4212 = vpop.f32.mrb[0].mxu0
      %v4213 = vadd.f32 %v3860, %v4212
      %v4214 = vpop.f32.mrb[0].mxu0
      %v4215 = vadd.f32 %v3862, %v4214
      %v4216 = vpop.f32.mrb[0].mxu0
      %v4217 = vadd.f32 %v3864, %v4216
      %v4218 = vpop.f32.mrb[0].mxu0
      %v4219 = vadd.f32 %v3866, %v4218
      %4220 = vmatprep.mubr.bf16.mxu0 %v3456
      %4221 = vmatmul.mubr.bf16.gmra.mrb[0].mxu0 %v3455
      %v4222 = vpop.f32.mrb[0].mxu0
      %v4223 = vadd.f32 %v3870, %v4222
      %v4224 = vpop.f32.mrb[0].mxu0
      %v4225 = vadd.f32 %v3872, %v4224
      %v4226 = vpop.f32.mrb[0].mxu0
      %v4227 = vadd.f32 %v3874, %v4226
      %v4228 = vpop.f32.mrb[0].mxu0
      %v4229 = vadd.f32 %v3876, %v4228
      %4230 = vmatprep.mubr.bf16.mxu0 %v3460
      %4231 = vmatmul.mubr.bf16.gmra.mrb[0].mxu0 %v3459
      %v4232 = vpop.f32.mrb[0].mxu0
      %v4233 = vadd.f32 %v3880, %v4232
      %v4234 = vpop.f32.mrb[0].mxu0
      %v4235 = vadd.f32 %v3882, %v4234
      %v4236 = vpop.f32.mrb[0].mxu0
      %v4237 = vadd.f32 %v3884, %v4236
      %v4238 = vpop.f32.mrb[0].mxu0
      %v4239 = vadd.f32 %v3886, %v4238
      %4240 = vmatprep.mubr.bf16.mxu0 %v3464
      %4241 = vmatmul.mubr.bf16.gmra.mrb[0].mxu0 %v3463
      %v4242 = vpop.f32.mrb[0].mxu0
      %v4243 = vadd.f32 %v3890, %v4242
      %v4244 = vpop.f32.mrb[0].mxu0
      %v4245 = vadd.f32 %v3892, %v4244
      %v4246 = vpop.f32.mrb[0].mxu0
      %v4247 = vadd.f32 %v3894, %v4246
      %v4248 = vpop.f32.mrb[0].mxu0
      %v4249 = vadd.f32 %v3896, %v4248
      %4250 = vmatprep.mubr.bf16.mxu0 %v3468
      %4251 = vmatmul.mubr.bf16.gmra.mrb[0].mxu0 %v3467
      %v4252 = vpop.f32.mrb[0].mxu0
      %v4253 = vadd.f32 %v3900, %v4252
      %v4254 = vpop.f32.mrb[0].mxu0
      %v4255 = vadd.f32 %v3902, %v4254
      %v4256 = vpop.f32.mrb[0].mxu0
      %v4257 = vadd.f32 %v3904, %v4256
      %v4258 = vpop.f32.mrb[0].mxu0
      %v4259 = vadd.f32 %v3906, %v4258
      %4260 = vmatprep.mubr.bf16.mxu0 %v3472
      %4261 = vmatmul.mubr.bf16.gmra.mrb[0].mxu0 %v3471
      %v4262 = vpop.f32.mrb[0].mxu0
      %v4263 = vadd.f32 %v3910, %v4262
      %v4264 = vpop.f32.mrb[0].mxu0
      %v4265 = vadd.f32 %v3912, %v4264
      %v4266 = vpop.f32.mrb[0].mxu0
      %v4267 = vadd.f32 %v3914, %v4266
      %v4268 = vpop.f32.mrb[0].mxu0
      %v4269 = vadd.f32 %v3916, %v4268
      %4270 = vmatprep.mubr.bf16.mxu0 %v3476
      %4271 = vmatmul.mubr.bf16.gmra.mrb[0].mxu0 %v3475
      %v4272 = vpop.f32.mrb[0].mxu0
      %v4273 = vadd.f32 %v3920, %v4272
      %v4274 = vpop.f32.mrb[0].mxu0
      %v4275 = vadd.f32 %v3922, %v4274
      %v4276 = vpop.f32.mrb[0].mxu0
      %v4277 = vadd.f32 %v3924, %v4276
      %v4278 = vpop.f32.mrb[0].mxu0
      %v4279 = vadd.f32 %v3926, %v4278
      %4280 = vmatprep.mubr.bf16.mxu0 %v3480
      %4281 = vmatmul.mubr.bf16.gmra.mrb[0].mxu0 %v3479
      %v4282 = vpop.f32.mrb[0].mxu0
      %v4283 = vadd.f32 %v3930, %v4282
      %v4284 = vpop.f32.mrb[0].mxu0
      %v4285 = vadd.f32 %v3932, %v4284
      %v4286 = vpop.f32.mrb[0].mxu0
      %v4287 = vadd.f32 %v3934, %v4286
      %v4288 = vpop.f32.mrb[0].mxu0
      %v4289 = vadd.f32 %v3936, %v4288
      %4290 = vmatprep.mubr.bf16.mxu0 %v3484
      %4291 = vmatmul.mubr.bf16.gmra.mrb[0].mxu0 %v3483
      %v4292 = vpop.f32.mrb[0].mxu0
      %v4293 = vadd.f32 %v3940, %v4292
      %v4294 = vpop.f32.mrb[0].mxu0
      %v4295 = vadd.f32 %v3942, %v4294
      %v4296 = vpop.f32.mrb[0].mxu0
      %v4297 = vadd.f32 %v3944, %v4296
      %v4298 = vpop.f32.mrb[0].mxu0
      %v4299 = vadd.f32 %v3946, %v4298
      %4300 = vmatprep.mubr.bf16.mxu0 %v3488
      %4301 = vmatmul.mubr.bf16.gmra.mrb[0].mxu0 %v3487
      %v4302 = vpop.f32.mrb[0].mxu0
      %v4303 = vadd.f32 %v3950, %v4302
      %v4304 = vpop.f32.mrb[0].mxu0
      %v4305 = vadd.f32 %v3952, %v4304
      %v4306 = vpop.f32.mrb[0].mxu0
      %v4307 = vadd.f32 %v3954, %v4306
      %v4308 = vpop.f32.mrb[0].mxu0
      %v4309 = vadd.f32 %v3956, %v4308
      %4310 = vmatprep.mubr.bf16.mxu0 %v3492
      %4311 = vmatmul.mubr.bf16.gmra.mrb[0].mxu0 %v3491
      %v4312 = vpop.f32.mrb[0].mxu0
      %v4313 = vadd.f32 %v3960, %v4312
      %v4314 = vpop.f32.mrb[0].mxu0
      %v4315 = vadd.f32 %v3962, %v4314
      %v4316 = vpop.f32.mrb[0].mxu0
      %v4317 = vadd.f32 %v3964, %v4316
      %v4318 = vpop.f32.mrb[0].mxu0
      %v4319 = vadd.f32 %v3966, %v4318
      %4320 = vmatprep.mubr.bf16.mxu0 %v3496
      %4321 = vmatmul.mubr.bf16.gmra.mrb[0].mxu0 %v3495
      %v4322 = vpop.f32.mrb[0].mxu0
      %v4323 = vadd.f32 %v3970, %v4322
      %v4324 = vpop.f32.mrb[0].mxu0
      %v4325 = vadd.f32 %v3972, %v4324
      %v4326 = vpop.f32.mrb[0].mxu0
      %v4327 = vadd.f32 %v3974, %v4326
      %v4328 = vpop.f32.mrb[0].mxu0
      %v4329 = vadd.f32 %v3976, %v4328
      %4330 = vdwg.mxu0
      %4331 = vmatprep.subr.bf16.mxu0 %v2476
      %4332 = vmatpush1.bf16.msra.mxu0 %v2475
      %4333 = vmatprep.subr.bf16.mxu0 %v2480
      %4334 = vmatpush1.bf16.msra.mxu0 %v2479
      %4335 = vmatprep.subr.bf16.mxu0 %v2484
      %4336 = vmatpush1.bf16.msra.mxu0 %v2483
      %4337 = vmatprep.subr.bf16.mxu0 %v2488
      %4338 = vmatpush1.bf16.msra.mxu0 %v2487
      %4339 = vmatprep.subr.bf16.mxu0 %v2492
      %4340 = vmatpush1.bf16.msra.mxu0 %v2491
      %4341 = vmatprep.subr.bf16.mxu0 %v2496
      %4342 = vmatpush1.bf16.msra.mxu0 %v2495
      %4343 = vmatprep.subr.bf16.mxu0 %v2500
      %4344 = vmatpush1.bf16.msra.mxu0 %v2499
      %4345 = vmatprep.subr.bf16.mxu0 %v2504
      %4346 = vmatpush1.bf16.msra.mxu0 %v2503
      %4347 = vmatprep.subr.bf16.mxu0 %v2508
      %4348 = vmatpush1.bf16.msra.mxu0 %v2507
      %4349 = vmatprep.subr.bf16.mxu0 %v2512
      %4350 = vmatpush1.bf16.msra.mxu0 %v2511
      %4351 = vmatprep.subr.bf16.mxu0 %v2516
      %4352 = vmatpush1.bf16.msra.mxu0 %v2515
      %4353 = vmatprep.subr.bf16.mxu0 %v2520
      %4354 = vmatpush1.bf16.msra.mxu0 %v2519
      %4355 = vmatprep.subr.bf16.mxu0 %v2524
      %4356 = vmatpush1.bf16.msra.mxu0 %v2523
      %4357 = vmatprep.subr.bf16.mxu0 %v2528
      %4358 = vmatpush1.bf16.msra.mxu0 %v2527
      %4359 = vmatprep.subr.bf16.mxu0 %v2532
      %4360 = vmatpush1.bf16.msra.mxu0 %v2531
      %4361 = vmatprep.subr.bf16.mxu0 %v2536
      %4362 = vmatpush1.bf16.msra.mxu0 %v2535
      %4363 = vmatprep.mubr.bf16.mxu0 %v3370
      %4364 = vmatmul.mubr.bf16.gmra.mrb[0].mxu0 %v3369
      %v4365 = vpop.f32.mrb[0].mxu0
      %v4366 = vadd.f32 %v2668, %v4365
      %v4367 = vpop.f32.mrb[0].mxu0
      %v4368 = vadd.f32 %v2668, %v4367
      %v4369 = vpop.f32.mrb[0].mxu0
      %v4370 = vadd.f32 %v2673, %v4369
      %v4371 = vpop.f32.mrb[0].mxu0
      %v4372 = vadd.f32 %v2673, %v4371
      %4373 = vmatprep.mubr.bf16.mxu0 %v3374
      %4374 = vmatmul.mubr.bf16.gmra.mrb[0].mxu0 %v3373
      %v4375 = vpop.f32.mrb[0].mxu0
      %v4376 = vadd.f32 %v2678, %v4375
      %v4377 = vpop.f32.mrb[0].mxu0
      %v4378 = vadd.f32 %v2678, %v4377
      %v4379 = vpop.f32.mrb[0].mxu0
      %v4380 = vadd.f32 %v2683, %v4379
      %v4381 = vpop.f32.mrb[0].mxu0
      %v4382 = vadd.f32 %v2683, %v4381
      %4383 = vmatprep.mubr.bf16.mxu0 %v3378
      %4384 = vmatmul.mubr.bf16.gmra.mrb[0].mxu0 %v3377
      %v4385 = vpop.f32.mrb[0].mxu0
      %v4386 = vadd.f32 %v2688, %v4385
      %v4387 = vpop.f32.mrb[0].mxu0
      %v4388 = vadd.f32 %v2688, %v4387
      %v4389 = vpop.f32.mrb[0].mxu0
      %v4390 = vadd.f32 %v2693, %v4389
      %v4391 = vpop.f32.mrb[0].mxu0
      %v4392 = vadd.f32 %v2693, %v4391
      %4393 = vmatprep.mubr.bf16.mxu0 %v3382
      %4394 = vmatmul.mubr.bf16.gmra.mrb[0].mxu0 %v3381
      %v4395 = vpop.f32.mrb[0].mxu0
      %v4396 = vadd.f32 %v2698, %v4395
      %v4397 = vpop.f32.mrb[0].mxu0
      %v4398 = vadd.f32 %v2698, %v4397
      %v4399 = vpop.f32.mrb[0].mxu0
      %v4400 = vadd.f32 %v2703, %v4399
      %v4401 = vpop.f32.mrb[0].mxu0
      %v4402 = vadd.f32 %v2703, %v4401
      %4403 = vmatprep.mubr.bf16.mxu0 %v3386
      %4404 = vmatmul.mubr.bf16.gmra.mrb[0].mxu0 %v3385
      %v4405 = vpop.f32.mrb[0].mxu0
      %v4406 = vadd.f32 %v2708, %v4405
      %v4407 = vpop.f32.mrb[0].mxu0
      %v4408 = vadd.f32 %v2708, %v4407
      %v4409 = vpop.f32.mrb[0].mxu0
      %v4410 = vadd.f32 %v2713, %v4409
      %v4411 = vpop.f32.mrb[0].mxu0
      %v4412 = vadd.f32 %v2713, %v4411
      %4413 = vmatprep.mubr.bf16.mxu0 %v3390
      %4414 = vmatmul.mubr.bf16.gmra.mrb[0].mxu0 %v3389
      %v4415 = vpop.f32.mrb[0].mxu0
      %v4416 = vadd.f32 %v2718, %v4415
      %v4417 = vpop.f32.mrb[0].mxu0
      %v4418 = vadd.f32 %v2718, %v4417
      %v4419 = vpop.f32.mrb[0].mxu0
      %v4420 = vadd.f32 %v2723, %v4419
      %v4421 = vpop.f32.mrb[0].mxu0
      %v4422 = vadd.f32 %v2723, %v4421
      %4423 = vmatprep.mubr.bf16.mxu0 %v3394
      %4424 = vmatmul.mubr.bf16.gmra.mrb[0].mxu0 %v3393
      %v4425 = vpop.f32.mrb[0].mxu0
      %v4426 = vadd.f32 %v2728, %v4425
      %v4427 = vpop.f32.mrb[0].mxu0
      %v4428 = vadd.f32 %v2728, %v4427
      %v4429 = vpop.f32.mrb[0].mxu0
      %v4430 = vadd.f32 %v2733, %v4429
      %v4431 = vpop.f32.mrb[0].mxu0
      %v4432 = vadd.f32 %v2733, %v4431
      %4433 = vmatprep.mubr.bf16.mxu0 %v3398
      %4434 = vmatmul.mubr.bf16.gmra.mrb[0].mxu0 %v3397
      %v4435 = vpop.f32.mrb[0].mxu0
      %v4436 = vadd.f32 %v2738, %v4435
      %v4437 = vpop.f32.mrb[0].mxu0
      %v4438 = vadd.f32 %v2738, %v4437
      %v4439 = vpop.f32.mrb[0].mxu0
      %v4440 = vadd.f32 %v2743, %v4439
      %v4441 = vpop.f32.mrb[0].mxu0
      %v4442 = vadd.f32 %v2743, %v4441
      %4443 = vmatprep.mubr.bf16.mxu0 %v3402
      %4444 = vmatmul.mubr.bf16.gmra.mrb[0].mxu0 %v3401
      %v4445 = vpop.f32.mrb[0].mxu0
      %v4446 = vadd.f32 %v2748, %v4445
      %v4447 = vpop.f32.mrb[0].mxu0
      %v4448 = vadd.f32 %v2748, %v4447
      %v4449 = vpop.f32.mrb[0].mxu0
      %v4450 = vadd.f32 %v2753, %v4449
      %v4451 = vpop.f32.mrb[0].mxu0
      %v4452 = vadd.f32 %v2753, %v4451
      %4453 = vmatprep.mubr.bf16.mxu0 %v3406
      %4454 = vmatmul.mubr.bf16.gmra.mrb[0].mxu0 %v3405
      %v4455 = vpop.f32.mrb[0].mxu0
      %v4456 = vadd.f32 %v2758, %v4455
      %v4457 = vpop.f32.mrb[0].mxu0
      %v4458 = vadd.f32 %v2758, %v4457
      %v4459 = vpop.f32.mrb[0].mxu0
      %v4460 = vadd.f32 %v2763, %v4459
      %v4461 = vpop.f32.mrb[0].mxu0
      %v4462 = vadd.f32 %v2763, %v4461
      %4463 = vmatprep.mubr.bf16.mxu0 %v3410
      %4464 = vmatmul.mubr.bf16.gmra.mrb[0].mxu0 %v3409
      %v4465 = vpop.f32.mrb[0].mxu0
      %v4466 = vadd.f32 %v2768, %v4465
      %v4467 = vpop.f32.mrb[0].mxu0
      %v4468 = vadd.f32 %v2768, %v4467
      %v4469 = vpop.f32.mrb[0].mxu0
      %v4470 = vadd.f32 %v2773, %v4469
      %v4471 = vpop.f32.mrb[0].mxu0
      %v4472 = vadd.f32 %v2773, %v4471
      %4473 = vmatprep.mubr.bf16.mxu0 %v3414
      %4474 = vmatmul.mubr.bf16.gmra.mrb[0].mxu0 %v3413
      %v4475 = vpop.f32.mrb[0].mxu0
      %v4476 = vadd.f32 %v2778, %v4475
      %v4477 = vpop.f32.mrb[0].mxu0
      %v4478 = vadd.f32 %v2778, %v4477
      %v4479 = vpop.f32.mrb[0].mxu0
      %v4480 = vadd.f32 %v2783, %v4479
      %v4481 = vpop.f32.mrb[0].mxu0
      %v4482 = vadd.f32 %v2783, %v4481
      %4483 = vmatprep.mubr.bf16.mxu0 %v3418
      %4484 = vmatmul.mubr.bf16.gmra.mrb[0].mxu0 %v3417
      %v4485 = vpop.f32.mrb[0].mxu0
      %v4486 = vadd.f32 %v2788, %v4485
      %v4487 = vpop.f32.mrb[0].mxu0
      %v4488 = vadd.f32 %v2788, %v4487
      %v4489 = vpop.f32.mrb[0].mxu0
      %v4490 = vadd.f32 %v2793, %v4489
      %v4491 = vpop.f32.mrb[0].mxu0
      %v4492 = vadd.f32 %v2793, %v4491
      %4493 = vmatprep.mubr.bf16.mxu0 %v3422
      %4494 = vmatmul.mubr.bf16.gmra.mrb[0].mxu0 %v3421
      %v4495 = vpop.f32.mrb[0].mxu0
      %v4496 = vadd.f32 %v2798, %v4495
      %v4497 = vpop.f32.mrb[0].mxu0
      %v4498 = vadd.f32 %v2798, %v4497
      %v4499 = vpop.f32.mrb[0].mxu0
      %v4500 = vadd.f32 %v2803, %v4499
      %v4501 = vpop.f32.mrb[0].mxu0
      %v4502 = vadd.f32 %v2803, %v4501
      %4503 = vmatprep.mubr.bf16.mxu0 %v3426
      %4504 = vmatmul.mubr.bf16.gmra.mrb[0].mxu0 %v3425
      %v4505 = vpop.f32.mrb[0].mxu0
      %v4506 = vadd.f32 %v2808, %v4505
      %v4507 = vpop.f32.mrb[0].mxu0
      %v4508 = vadd.f32 %v2808, %v4507
      %v4509 = vpop.f32.mrb[0].mxu0
      %v4510 = vadd.f32 %v2813, %v4509
      %v4511 = vpop.f32.mrb[0].mxu0
      %v4512 = vadd.f32 %v2813, %v4511
      %4513 = vmatprep.mubr.bf16.mxu0 %v3430
      %4514 = vmatmul.mubr.bf16.gmra.mrb[0].mxu0 %v3429
      %v4515 = vpop.f32.mrb[0].mxu0
      %v4516 = vadd.f32 %v2818, %v4515
      %v4517 = vpop.f32.mrb[0].mxu0
      %v4518 = vadd.f32 %v2818, %v4517
      %v4519 = vpop.f32.mrb[0].mxu0
      %v4520 = vadd.f32 %v2823, %v4519
      %v4521 = vpop.f32.mrb[0].mxu0
      %v4522 = vadd.f32 %v2823, %v4521
      %4523 = vmatprep.mubr.bf16.mxu0 %v3434
      %4524 = vmatmul.mubr.bf16.gmra.mrb[0].mxu0 %v3433
      %v4525 = vpop.f32.mrb[0].mxu0
      %v4526 = vadd.f32 %v2828, %v4525
      %v4527 = vpop.f32.mrb[0].mxu0
      %v4528 = vadd.f32 %v2828, %v4527
      %v4529 = vpop.f32.mrb[0].mxu0
      %v4530 = vadd.f32 %v2833, %v4529
      %v4531 = vpop.f32.mrb[0].mxu0
      %v4532 = vadd.f32 %v2833, %v4531
      %4533 = vmatprep.mubr.bf16.mxu0 %v3438
      %4534 = vmatmul.mubr.bf16.gmra.mrb[0].mxu0 %v3437
      %v4535 = vpop.f32.mrb[0].mxu0
      %v4536 = vadd.f32 %v2838, %v4535
      %v4537 = vpop.f32.mrb[0].mxu0
      %v4538 = vadd.f32 %v2838, %v4537
      %v4539 = vpop.f32.mrb[0].mxu0
      %v4540 = vadd.f32 %v2843, %v4539
      %v4541 = vpop.f32.mrb[0].mxu0
      %v4542 = vadd.f32 %v2843, %v4541
      %4543 = vmatprep.mubr.bf16.mxu0 %v3442
      %4544 = vmatmul.mubr.bf16.gmra.mrb[0].mxu0 %v3441
      %v4545 = vpop.f32.mrb[0].mxu0
      %v4546 = vadd.f32 %v2848, %v4545
      %v4547 = vpop.f32.mrb[0].mxu0
      %v4548 = vadd.f32 %v2848, %v4547
      %v4549 = vpop.f32.mrb[0].mxu0
      %v4550 = vadd.f32 %v2853, %v4549
      %v4551 = vpop.f32.mrb[0].mxu0
      %v4552 = vadd.f32 %v2853, %v4551
      %4553 = vmatprep.mubr.bf16.mxu0 %v3446
      %4554 = vmatmul.mubr.bf16.gmra.mrb[0].mxu0 %v3445
      %v4555 = vpop.f32.mrb[0].mxu0
      %v4556 = vadd.f32 %v2858, %v4555
      %v4557 = vpop.f32.mrb[0].mxu0
      %v4558 = vadd.f32 %v2858, %v4557
      %v4559 = vpop.f32.mrb[0].mxu0
      %v4560 = vadd.f32 %v2863, %v4559
      %v4561 = vpop.f32.mrb[0].mxu0
      %v4562 = vadd.f32 %v2863, %v4561
      %4563 = vmatprep.mubr.bf16.mxu0 %v3450
      %4564 = vmatmul.mubr.bf16.gmra.mrb[0].mxu0 %v3449
      %v4565 = vpop.f32.mrb[0].mxu0
      %v4566 = vadd.f32 %v2868, %v4565
      %v4567 = vpop.f32.mrb[0].mxu0
      %v4568 = vadd.f32 %v2868, %v4567
      %v4569 = vpop.f32.mrb[0].mxu0
      %v4570 = vadd.f32 %v2873, %v4569
      %v4571 = vpop.f32.mrb[0].mxu0
      %v4572 = vadd.f32 %v2873, %v4571
      %4573 = vmatprep.mubr.bf16.mxu0 %v3454
      %4574 = vmatmul.mubr.bf16.gmra.mrb[0].mxu0 %v3453
      %v4575 = vpop.f32.mrb[0].mxu0
      %v4576 = vadd.f32 %v2878, %v4575
      %v4577 = vpop.f32.mrb[0].mxu0
      %v4578 = vadd.f32 %v2878, %v4577
      %v4579 = vpop.f32.mrb[0].mxu0
      %v4580 = vadd.f32 %v2883, %v4579
      %v4581 = vpop.f32.mrb[0].mxu0
      %v4582 = vadd.f32 %v2883, %v4581
      %4583 = vmatprep.mubr.bf16.mxu0 %v3458
      %4584 = vmatmul.mubr.bf16.gmra.mrb[0].mxu0 %v3457
      %v4585 = vpop.f32.mrb[0].mxu0
      %v4586 = vadd.f32 %v2888, %v4585
      %v4587 = vpop.f32.mrb[0].mxu0
      %v4588 = vadd.f32 %v2888, %v4587
      %v4589 = vpop.f32.mrb[0].mxu0
      %v4590 = vadd.f32 %v2893, %v4589
      %v4591 = vpop.f32.mrb[0].mxu0
      %v4592 = vadd.f32 %v2893, %v4591
      %4593 = vmatprep.mubr.bf16.mxu0 %v3462
      %4594 = vmatmul.mubr.bf16.gmra.mrb[0].mxu0 %v3461
      %v4595 = vpop.f32.mrb[0].mxu0
      %v4596 = vadd.f32 %v2898, %v4595
      %v4597 = vpop.f32.mrb[0].mxu0
      %v4598 = vadd.f32 %v2898, %v4597
      %v4599 = vpop.f32.mrb[0].mxu0
      %v4600 = vadd.f32 %v2903, %v4599
      %v4601 = vpop.f32.mrb[0].mxu0
      %v4602 = vadd.f32 %v2903, %v4601
      %4603 = vmatprep.mubr.bf16.mxu0 %v3466
      %4604 = vmatmul.mubr.bf16.gmra.mrb[0].mxu0 %v3465
      %v4605 = vpop.f32.mrb[0].mxu0
      %v4606 = vadd.f32 %v2908, %v4605
      %v4607 = vpop.f32.mrb[0].mxu0
      %v4608 = vadd.f32 %v2908, %v4607
      %v4609 = vpop.f32.mrb[0].mxu0
      %v4610 = vadd.f32 %v2913, %v4609
      %v4611 = vpop.f32.mrb[0].mxu0
      %v4612 = vadd.f32 %v2913, %v4611
      %4613 = vmatprep.mubr.bf16.mxu0 %v3470
      %4614 = vmatmul.mubr.bf16.gmra.mrb[0].mxu0 %v3469
      %v4615 = vpop.f32.mrb[0].mxu0
      %v4616 = vadd.f32 %v2918, %v4615
      %v4617 = vpop.f32.mrb[0].mxu0
      %v4618 = vadd.f32 %v2918, %v4617
      %v4619 = vpop.f32.mrb[0].mxu0
      %v4620 = vadd.f32 %v2923, %v4619
      %v4621 = vpop.f32.mrb[0].mxu0
      %v4622 = vadd.f32 %v2923, %v4621
      %4623 = vmatprep.mubr.bf16.mxu0 %v3474
      %4624 = vmatmul.mubr.bf16.gmra.mrb[0].mxu0 %v3473
      %v4625 = vpop.f32.mrb[0].mxu0
      %v4626 = vadd.f32 %v2928, %v4625
      %v4627 = vpop.f32.mrb[0].mxu0
      %v4628 = vadd.f32 %v2928, %v4627
      %v4629 = vpop.f32.mrb[0].mxu0
      %v4630 = vadd.f32 %v2933, %v4629
      %v4631 = vpop.f32.mrb[0].mxu0
      %v4632 = vadd.f32 %v2933, %v4631
      %4633 = vmatprep.mubr.bf16.mxu0 %v3478
      %4634 = vmatmul.mubr.bf16.gmra.mrb[0].mxu0 %v3477
      %v4635 = vpop.f32.mrb[0].mxu0
      %v4636 = vadd.f32 %v2938, %v4635
      %v4637 = vpop.f32.mrb[0].mxu0
      %v4638 = vadd.f32 %v2938, %v4637
      %v4639 = vpop.f32.mrb[0].mxu0
      %v4640 = vadd.f32 %v2943, %v4639
      %v4641 = vpop.f32.mrb[0].mxu0
      %v4642 = vadd.f32 %v2943, %v4641
      %4643 = vmatprep.mubr.bf16.mxu0 %v3482
      %4644 = vmatmul.mubr.bf16.gmra.mrb[0].mxu0 %v3481
      %v4645 = vpop.f32.mrb[0].mxu0
      %v4646 = vadd.f32 %v2948, %v4645
      %v4647 = vpop.f32.mrb[0].mxu0
      %v4648 = vadd.f32 %v2948, %v4647
      %v4649 = vpop.f32.mrb[0].mxu0
      %v4650 = vadd.f32 %v2953, %v4649
      %v4651 = vpop.f32.mrb[0].mxu0
      %v4652 = vadd.f32 %v2953, %v4651
      %4653 = vmatprep.mubr.bf16.mxu0 %v3486
      %4654 = vmatmul.mubr.bf16.gmra.mrb[0].mxu0 %v3485
      %v4655 = vpop.f32.mrb[0].mxu0
      %v4656 = vadd.f32 %v2958, %v4655
      %v4657 = vpop.f32.mrb[0].mxu0
      %v4658 = vadd.f32 %v2958, %v4657
      %v4659 = vpop.f32.mrb[0].mxu0
      %v4660 = vadd.f32 %v2963, %v4659
      %v4661 = vpop.f32.mrb[0].mxu0
      %v4662 = vadd.f32 %v2963, %v4661
      %4663 = vmatprep.mubr.bf16.mxu0 %v3490
      %4664 = vmatmul.mubr.bf16.gmra.mrb[0].mxu0 %v3489
      %v4665 = vpop.f32.mrb[0].mxu0
      %v4666 = vadd.f32 %v2968, %v4665
      %v4667 = vpop.f32.mrb[0].mxu0
      %v4668 = vadd.f32 %v2968, %v4667
      %v4669 = vpop.f32.mrb[0].mxu0
      %v4670 = vadd.f32 %v2973, %v4669
      %v4671 = vpop.f32.mrb[0].mxu0
      %v4672 = vadd.f32 %v2973, %v4671
      %4673 = vmatprep.mubr.bf16.mxu0 %v3494
      %4674 = vmatmul.mubr.bf16.gmra.mrb[0].mxu0 %v3493
      %v4675 = vpop.f32.mrb[0].mxu0
      %v4676 = vadd.f32 %v2978, %v4675
      %v4677 = vpop.f32.mrb[0].mxu0
      %v4678 = vadd.f32 %v2978, %v4677
      %v4679 = vpop.f32.mrb[0].mxu0
      %v4680 = vadd.f32 %v2983, %v4679
      %v4681 = vpop.f32.mrb[0].mxu0
      %v4682 = vadd.f32 %v2983, %v4681
      %4683 = vdwg.mxu0
      %4684 = vmatprep.subr.bf16.mxu0 %v2540
      %4685 = vmatpush1.bf16.msra.mxu0 %v2539
      %4686 = vmatprep.subr.bf16.mxu0 %v2544
      %4687 = vmatpush1.bf16.msra.mxu0 %v2543
      %4688 = vmatprep.subr.bf16.mxu0 %v2548
      %4689 = vmatpush1.bf16.msra.mxu0 %v2547
      %4690 = vmatprep.subr.bf16.mxu0 %v2552
      %4691 = vmatpush1.bf16.msra.mxu0 %v2551
      %4692 = vmatprep.subr.bf16.mxu0 %v2556
      %4693 = vmatpush1.bf16.msra.mxu0 %v2555
      %4694 = vmatprep.subr.bf16.mxu0 %v2560
      %4695 = vmatpush1.bf16.msra.mxu0 %v2559
      %4696 = vmatprep.subr.bf16.mxu0 %v2564
      %4697 = vmatpush1.bf16.msra.mxu0 %v2563
      %4698 = vmatprep.subr.bf16.mxu0 %v2568
      %4699 = vmatpush1.bf16.msra.mxu0 %v2567
      %4700 = vmatprep.subr.bf16.mxu0 %v2572
      %4701 = vmatpush1.bf16.msra.mxu0 %v2571
      %4702 = vmatprep.subr.bf16.mxu0 %v2576
      %4703 = vmatpush1.bf16.msra.mxu0 %v2575
      %4704 = vmatprep.subr.bf16.mxu0 %v2580
      %4705 = vmatpush1.bf16.msra.mxu0 %v2579
      %4706 = vmatprep.subr.bf16.mxu0 %v2584
      %4707 = vmatpush1.bf16.msra.mxu0 %v2583
      %4708 = vmatprep.subr.bf16.mxu0 %v2588
      %4709 = vmatpush1.bf16.msra.mxu0 %v2587
      %4710 = vmatprep.subr.bf16.mxu0 %v2592
      %4711 = vmatpush1.bf16.msra.mxu0 %v2591
      %4712 = vmatprep.subr.bf16.mxu0 %v2596
      %4713 = vmatpush1.bf16.msra.mxu0 %v2595
      %4714 = vmatprep.subr.bf16.mxu0 %v2600
      %4715 = vmatpush1.bf16.msra.mxu0 %v2599
      %4716 = vmatprep.mubr.bf16.mxu0 %v3372
      %4717 = vmatmul.mubr.bf16.gmra.mrb[0].mxu0 %v3371
      %v4718 = vpop.f32.mrb[0].mxu0
      %v4719 = vadd.f32 %v4366, %v4718
      %v4720 = vpop.f32.mrb[0].mxu0
      %v4721 = vadd.f32 %v4368, %v4720
      %v4722 = vpop.f32.mrb[0].mxu0
      %v4723 = vadd.f32 %v4370, %v4722
      %v4724 = vpop.f32.mrb[0].mxu0
      %v4725 = vadd.f32 %v4372, %v4724
      %4726 = vmatprep.mubr.bf16.mxu0 %v3376
      %4727 = vmatmul.mubr.bf16.gmra.mrb[0].mxu0 %v3375
      %v4728 = vpop.f32.mrb[0].mxu0
      %v4729 = vadd.f32 %v4376, %v4728
      %v4730 = vpop.f32.mrb[0].mxu0
      %v4731 = vadd.f32 %v4378, %v4730
      %v4732 = vpop.f32.mrb[0].mxu0
      %v4733 = vadd.f32 %v4380, %v4732
      %v4734 = vpop.f32.mrb[0].mxu0
      %v4735 = vadd.f32 %v4382, %v4734
      %4736 = vmatprep.mubr.bf16.mxu0 %v3380
      %4737 = vmatmul.mubr.bf16.gmra.mrb[0].mxu0 %v3379
      %v4738 = vpop.f32.mrb[0].mxu0
      %v4739 = vadd.f32 %v4386, %v4738
      %v4740 = vpop.f32.mrb[0].mxu0
      %v4741 = vadd.f32 %v4388, %v4740
      %v4742 = vpop.f32.mrb[0].mxu0
      %v4743 = vadd.f32 %v4390, %v4742
      %v4744 = vpop.f32.mrb[0].mxu0
      %v4745 = vadd.f32 %v4392, %v4744
      %4746 = vmatprep.mubr.bf16.mxu0 %v3384
      %4747 = vmatmul.mubr.bf16.gmra.mrb[0].mxu0 %v3383
      %v4748 = vpop.f32.mrb[0].mxu0
      %v4749 = vadd.f32 %v4396, %v4748
      %v4750 = vpop.f32.mrb[0].mxu0
      %v4751 = vadd.f32 %v4398, %v4750
      %v4752 = vpop.f32.mrb[0].mxu0
      %v4753 = vadd.f32 %v4400, %v4752
      %v4754 = vpop.f32.mrb[0].mxu0
      %v4755 = vadd.f32 %v4402, %v4754
      %4756 = vmatprep.mubr.bf16.mxu0 %v3388
      %4757 = vmatmul.mubr.bf16.gmra.mrb[0].mxu0 %v3387
      %v4758 = vpop.f32.mrb[0].mxu0
      %v4759 = vadd.f32 %v4406, %v4758
      %v4760 = vpop.f32.mrb[0].mxu0
      %v4761 = vadd.f32 %v4408, %v4760
      %v4762 = vpop.f32.mrb[0].mxu0
      %v4763 = vadd.f32 %v4410, %v4762
      %v4764 = vpop.f32.mrb[0].mxu0
      %v4765 = vadd.f32 %v4412, %v4764
      %4766 = vmatprep.mubr.bf16.mxu0 %v3392
      %4767 = vmatmul.mubr.bf16.gmra.mrb[0].mxu0 %v3391
      %v4768 = vpop.f32.mrb[0].mxu0
      %v4769 = vadd.f32 %v4416, %v4768
      %v4770 = vpop.f32.mrb[0].mxu0
      %v4771 = vadd.f32 %v4418, %v4770
      %v4772 = vpop.f32.mrb[0].mxu0
      %v4773 = vadd.f32 %v4420, %v4772
      %v4774 = vpop.f32.mrb[0].mxu0
      %v4775 = vadd.f32 %v4422, %v4774
      %4776 = vmatprep.mubr.bf16.mxu0 %v3396
      %4777 = vmatmul.mubr.bf16.gmra.mrb[0].mxu0 %v3395
      %v4778 = vpop.f32.mrb[0].mxu0
      %v4779 = vadd.f32 %v4426, %v4778
      %v4780 = vpop.f32.mrb[0].mxu0
      %v4781 = vadd.f32 %v4428, %v4780
      %v4782 = vpop.f32.mrb[0].mxu0
      %v4783 = vadd.f32 %v4430, %v4782
      %v4784 = vpop.f32.mrb[0].mxu0
      %v4785 = vadd.f32 %v4432, %v4784
      %4786 = vmatprep.mubr.bf16.mxu0 %v3400
      %4787 = vmatmul.mubr.bf16.gmra.mrb[0].mxu0 %v3399
      %v4788 = vpop.f32.mrb[0].mxu0
      %v4789 = vadd.f32 %v4436, %v4788
      %v4790 = vpop.f32.mrb[0].mxu0
      %v4791 = vadd.f32 %v4438, %v4790
      %v4792 = vpop.f32.mrb[0].mxu0
      %v4793 = vadd.f32 %v4440, %v4792
      %v4794 = vpop.f32.mrb[0].mxu0
      %v4795 = vadd.f32 %v4442, %v4794
      %4796 = vmatprep.mubr.bf16.mxu0 %v3404
      %4797 = vmatmul.mubr.bf16.gmra.mrb[0].mxu0 %v3403
      %v4798 = vpop.f32.mrb[0].mxu0
      %v4799 = vadd.f32 %v4446, %v4798
      %v4800 = vpop.f32.mrb[0].mxu0
      %v4801 = vadd.f32 %v4448, %v4800
      %v4802 = vpop.f32.mrb[0].mxu0
      %v4803 = vadd.f32 %v4450, %v4802
      %v4804 = vpop.f32.mrb[0].mxu0
      %v4805 = vadd.f32 %v4452, %v4804
      %4806 = vmatprep.mubr.bf16.mxu0 %v3408
      %4807 = vmatmul.mubr.bf16.gmra.mrb[0].mxu0 %v3407
      %v4808 = vpop.f32.mrb[0].mxu0
      %v4809 = vadd.f32 %v4456, %v4808
      %v4810 = vpop.f32.mrb[0].mxu0
      %v4811 = vadd.f32 %v4458, %v4810
      %v4812 = vpop.f32.mrb[0].mxu0
      %v4813 = vadd.f32 %v4460, %v4812
      %v4814 = vpop.f32.mrb[0].mxu0
      %v4815 = vadd.f32 %v4462, %v4814
      %4816 = vmatprep.mubr.bf16.mxu0 %v3412
      %4817 = vmatmul.mubr.bf16.gmra.mrb[0].mxu0 %v3411
      %v4818 = vpop.f32.mrb[0].mxu0
      %v4819 = vadd.f32 %v4466, %v4818
      %v4820 = vpop.f32.mrb[0].mxu0
      %v4821 = vadd.f32 %v4468, %v4820
      %v4822 = vpop.f32.mrb[0].mxu0
      %v4823 = vadd.f32 %v4470, %v4822
      %v4824 = vpop.f32.mrb[0].mxu0
      %v4825 = vadd.f32 %v4472, %v4824
      %4826 = vmatprep.mubr.bf16.mxu0 %v3416
      %4827 = vmatmul.mubr.bf16.gmra.mrb[0].mxu0 %v3415
      %v4828 = vpop.f32.mrb[0].mxu0
      %v4829 = vadd.f32 %v4476, %v4828
      %v4830 = vpop.f32.mrb[0].mxu0
      %v4831 = vadd.f32 %v4478, %v4830
      %v4832 = vpop.f32.mrb[0].mxu0
      %v4833 = vadd.f32 %v4480, %v4832
      %v4834 = vpop.f32.mrb[0].mxu0
      %v4835 = vadd.f32 %v4482, %v4834
      %4836 = vmatprep.mubr.bf16.mxu0 %v3420
      %4837 = vmatmul.mubr.bf16.gmra.mrb[0].mxu0 %v3419
      %v4838 = vpop.f32.mrb[0].mxu0
      %v4839 = vadd.f32 %v4486, %v4838
      %v4840 = vpop.f32.mrb[0].mxu0
      %v4841 = vadd.f32 %v4488, %v4840
      %v4842 = vpop.f32.mrb[0].mxu0
      %v4843 = vadd.f32 %v4490, %v4842
      %v4844 = vpop.f32.mrb[0].mxu0
      %v4845 = vadd.f32 %v4492, %v4844
      %4846 = vmatprep.mubr.bf16.mxu0 %v3424
      %4847 = vmatmul.mubr.bf16.gmra.mrb[0].mxu0 %v3423
      %v4848 = vpop.f32.mrb[0].mxu0
      %v4849 = vadd.f32 %v4496, %v4848
      %v4850 = vpop.f32.mrb[0].mxu0
      %v4851 = vadd.f32 %v4498, %v4850
      %v4852 = vpop.f32.mrb[0].mxu0
      %v4853 = vadd.f32 %v4500, %v4852
      %v4854 = vpop.f32.mrb[0].mxu0
      %v4855 = vadd.f32 %v4502, %v4854
      %4856 = vmatprep.mubr.bf16.mxu0 %v3428
      %4857 = vmatmul.mubr.bf16.gmra.mrb[0].mxu0 %v3427
      %v4858 = vpop.f32.mrb[0].mxu0
      %v4859 = vadd.f32 %v4506, %v4858
      %v4860 = vpop.f32.mrb[0].mxu0
      %v4861 = vadd.f32 %v4508, %v4860
      %v4862 = vpop.f32.mrb[0].mxu0
      %v4863 = vadd.f32 %v4510, %v4862
      %v4864 = vpop.f32.mrb[0].mxu0
      %v4865 = vadd.f32 %v4512, %v4864
      %4866 = vmatprep.mubr.bf16.mxu0 %v3432
      %4867 = vmatmul.mubr.bf16.gmra.mrb[0].mxu0 %v3431
      %v4868 = vpop.f32.mrb[0].mxu0
      %v4869 = vadd.f32 %v4516, %v4868
      %v4870 = vpop.f32.mrb[0].mxu0
      %v4871 = vadd.f32 %v4518, %v4870
      %v4872 = vpop.f32.mrb[0].mxu0
      %v4873 = vadd.f32 %v4520, %v4872
      %v4874 = vpop.f32.mrb[0].mxu0
      %v4875 = vadd.f32 %v4522, %v4874
      %4876 = vmatprep.mubr.bf16.mxu0 %v3436
      %4877 = vmatmul.mubr.bf16.gmra.mrb[0].mxu0 %v3435
      %v4878 = vpop.f32.mrb[0].mxu0
      %v4879 = vadd.f32 %v4526, %v4878
      %v4880 = vpop.f32.mrb[0].mxu0
      %v4881 = vadd.f32 %v4528, %v4880
      %v4882 = vpop.f32.mrb[0].mxu0
      %v4883 = vadd.f32 %v4530, %v4882
      %v4884 = vpop.f32.mrb[0].mxu0
      %v4885 = vadd.f32 %v4532, %v4884
      %4886 = vmatprep.mubr.bf16.mxu0 %v3440
      %4887 = vmatmul.mubr.bf16.gmra.mrb[0].mxu0 %v3439
      %v4888 = vpop.f32.mrb[0].mxu0
      %v4889 = vadd.f32 %v4536, %v4888
      %v4890 = vpop.f32.mrb[0].mxu0
      %v4891 = vadd.f32 %v4538, %v4890
      %v4892 = vpop.f32.mrb[0].mxu0
      %v4893 = vadd.f32 %v4540, %v4892
      %v4894 = vpop.f32.mrb[0].mxu0
      %v4895 = vadd.f32 %v4542, %v4894
      %4896 = vmatprep.mubr.bf16.mxu0 %v3444
      %4897 = vmatmul.mubr.bf16.gmra.mrb[0].mxu0 %v3443
      %v4898 = vpop.f32.mrb[0].mxu0
      %v4899 = vadd.f32 %v4546, %v4898
      %v4900 = vpop.f32.mrb[0].mxu0
      %v4901 = vadd.f32 %v4548, %v4900
      %v4902 = vpop.f32.mrb[0].mxu0
      %v4903 = vadd.f32 %v4550, %v4902
      %v4904 = vpop.f32.mrb[0].mxu0
      %v4905 = vadd.f32 %v4552, %v4904
      %4906 = vmatprep.mubr.bf16.mxu0 %v3448
      %4907 = vmatmul.mubr.bf16.gmra.mrb[0].mxu0 %v3447
      %v4908 = vpop.f32.mrb[0].mxu0
      %v4909 = vadd.f32 %v4556, %v4908
      %v4910 = vpop.f32.mrb[0].mxu0
      %v4911 = vadd.f32 %v4558, %v4910
      %v4912 = vpop.f32.mrb[0].mxu0
      %v4913 = vadd.f32 %v4560, %v4912
      %v4914 = vpop.f32.mrb[0].mxu0
      %v4915 = vadd.f32 %v4562, %v4914
      %4916 = vmatprep.mubr.bf16.mxu0 %v3452
      %4917 = vmatmul.mubr.bf16.gmra.mrb[0].mxu0 %v3451
      %v4918 = vpop.f32.mrb[0].mxu0
      %v4919 = vadd.f32 %v4566, %v4918
      %v4920 = vpop.f32.mrb[0].mxu0
      %v4921 = vadd.f32 %v4568, %v4920
      %v4922 = vpop.f32.mrb[0].mxu0
      %v4923 = vadd.f32 %v4570, %v4922
      %v4924 = vpop.f32.mrb[0].mxu0
      %v4925 = vadd.f32 %v4572, %v4924
      %4926 = vmatprep.mubr.bf16.mxu0 %v3456
      %4927 = vmatmul.mubr.bf16.gmra.mrb[0].mxu0 %v3455
      %v4928 = vpop.f32.mrb[0].mxu0
      %v4929 = vadd.f32 %v4576, %v4928
      %v4930 = vpop.f32.mrb[0].mxu0
      %v4931 = vadd.f32 %v4578, %v4930
      %v4932 = vpop.f32.mrb[0].mxu0
      %v4933 = vadd.f32 %v4580, %v4932
      %v4934 = vpop.f32.mrb[0].mxu0
      %v4935 = vadd.f32 %v4582, %v4934
      %4936 = vmatprep.mubr.bf16.mxu0 %v3460
      %4937 = vmatmul.mubr.bf16.gmra.mrb[0].mxu0 %v3459
      %v4938 = vpop.f32.mrb[0].mxu0
      %v4939 = vadd.f32 %v4586, %v4938
      %v4940 = vpop.f32.mrb[0].mxu0
      %v4941 = vadd.f32 %v4588, %v4940
      %v4942 = vpop.f32.mrb[0].mxu0
      %v4943 = vadd.f32 %v4590, %v4942
      %v4944 = vpop.f32.mrb[0].mxu0
      %v4945 = vadd.f32 %v4592, %v4944
      %4946 = vmatprep.mubr.bf16.mxu0 %v3464
      %4947 = vmatmul.mubr.bf16.gmra.mrb[0].mxu0 %v3463
      %v4948 = vpop.f32.mrb[0].mxu0
      %v4949 = vadd.f32 %v4596, %v4948
      %v4950 = vpop.f32.mrb[0].mxu0
      %v4951 = vadd.f32 %v4598, %v4950
      %v4952 = vpop.f32.mrb[0].mxu0
      %v4953 = vadd.f32 %v4600, %v4952
      %v4954 = vpop.f32.mrb[0].mxu0
      %v4955 = vadd.f32 %v4602, %v4954
      %4956 = vmatprep.mubr.bf16.mxu0 %v3468
      %4957 = vmatmul.mubr.bf16.gmra.mrb[0].mxu0 %v3467
      %v4958 = vpop.f32.mrb[0].mxu0
      %v4959 = vadd.f32 %v4606, %v4958
      %v4960 = vpop.f32.mrb[0].mxu0
      %v4961 = vadd.f32 %v4608, %v4960
      %v4962 = vpop.f32.mrb[0].mxu0
      %v4963 = vadd.f32 %v4610, %v4962
      %v4964 = vpop.f32.mrb[0].mxu0
      %v4965 = vadd.f32 %v4612, %v4964
      %4966 = vmatprep.mubr.bf16.mxu0 %v3472
      %4967 = vmatmul.mubr.bf16.gmra.mrb[0].mxu0 %v3471
      %v4968 = vpop.f32.mrb[0].mxu0
      %v4969 = vadd.f32 %v4616, %v4968
      %v4970 = vpop.f32.mrb[0].mxu0
      %v4971 = vadd.f32 %v4618, %v4970
      %v4972 = vpop.f32.mrb[0].mxu0
      %v4973 = vadd.f32 %v4620, %v4972
      %v4974 = vpop.f32.mrb[0].mxu0
      %v4975 = vadd.f32 %v4622, %v4974
      %4976 = vmatprep.mubr.bf16.mxu0 %v3476
      %4977 = vmatmul.mubr.bf16.gmra.mrb[0].mxu0 %v3475
      %v4978 = vpop.f32.mrb[0].mxu0
      %v4979 = vadd.f32 %v4626, %v4978
      %v4980 = vpop.f32.mrb[0].mxu0
      %v4981 = vadd.f32 %v4628, %v4980
      %v4982 = vpop.f32.mrb[0].mxu0
      %v4983 = vadd.f32 %v4630, %v4982
      %v4984 = vpop.f32.mrb[0].mxu0
      %v4985 = vadd.f32 %v4632, %v4984
      %4986 = vmatprep.mubr.bf16.mxu0 %v3480
      %4987 = vmatmul.mubr.bf16.gmra.mrb[0].mxu0 %v3479
      %v4988 = vpop.f32.mrb[0].mxu0
      %v4989 = vadd.f32 %v4636, %v4988
      %v4990 = vpop.f32.mrb[0].mxu0
      %v4991 = vadd.f32 %v4638, %v4990
      %v4992 = vpop.f32.mrb[0].mxu0
      %v4993 = vadd.f32 %v4640, %v4992
      %v4994 = vpop.f32.mrb[0].mxu0
      %v4995 = vadd.f32 %v4642, %v4994
      %4996 = vmatprep.mubr.bf16.mxu0 %v3484
      %4997 = vmatmul.mubr.bf16.gmra.mrb[0].mxu0 %v3483
      %v4998 = vpop.f32.mrb[0].mxu0
      %v4999 = vadd.f32 %v4646, %v4998
      %v5000 = vpop.f32.mrb[0].mxu0
      %v5001 = vadd.f32 %v4648, %v5000
      %v5002 = vpop.f32.mrb[0].mxu0
      %v5003 = vadd.f32 %v4650, %v5002
      %v5004 = vpop.f32.mrb[0].mxu0
      %v5005 = vadd.f32 %v4652, %v5004
      %5006 = vmatprep.mubr.bf16.mxu0 %v3488
      %5007 = vmatmul.mubr.bf16.gmra.mrb[0].mxu0 %v3487
      %v5008 = vpop.f32.mrb[0].mxu0
      %v5009 = vadd.f32 %v4656, %v5008
      %v5010 = vpop.f32.mrb[0].mxu0
      %v5011 = vadd.f32 %v4658, %v5010
      %v5012 = vpop.f32.mrb[0].mxu0
      %v5013 = vadd.f32 %v4660, %v5012
      %v5014 = vpop.f32.mrb[0].mxu0
      %v5015 = vadd.f32 %v4662, %v5014
      %5016 = vmatprep.mubr.bf16.mxu0 %v3492
      %5017 = vmatmul.mubr.bf16.gmra.mrb[0].mxu0 %v3491
      %v5018 = vpop.f32.mrb[0].mxu0
      %v5019 = vadd.f32 %v4666, %v5018
      %v5020 = vpop.f32.mrb[0].mxu0
      %v5021 = vadd.f32 %v4668, %v5020
      %v5022 = vpop.f32.mrb[0].mxu0
      %v5023 = vadd.f32 %v4670, %v5022
      %v5024 = vpop.f32.mrb[0].mxu0
      %v5025 = vadd.f32 %v4672, %v5024
      %5026 = vmatprep.mubr.bf16.mxu0 %v3496
      %5027 = vmatmul.mubr.bf16.gmra.mrb[0].mxu0 %v3495
      %v5028 = vpop.f32.mrb[0].mxu0
      %v5029 = vadd.f32 %v4676, %v5028
      %v5030 = vpop.f32.mrb[0].mxu0
      %v5031 = vadd.f32 %v4678, %v5030
      %v5032 = vpop.f32.mrb[0].mxu0
      %v5033 = vadd.f32 %v4680, %v5032
      %v5034 = vpop.f32.mrb[0].mxu0
      %v5035 = vadd.f32 %v4682, %v5034
      %5036 = vdwg.mxu0
      %v5037 = vmax.f32 %v4013, 0.0
      %v5038 = vmax.f32 %v4015, 0.0
      %v5039 = vmax.f32 %v4719, 0.0
      %v5040 = vmax.f32 %v4721, 0.0
      %v5041 = vmax.f32 %v4017, 0.0
      %v5042 = vmax.f32 %v4019, 0.0
      %v5043 = vmax.f32 %v4723, 0.0
      %v5044 = vmax.f32 %v4725, 0.0
      %v5045 = vmax.f32 %v4023, 0.0
      %v5046 = vmax.f32 %v4025, 0.0
      %v5047 = vmax.f32 %v4729, 0.0
      %v5048 = vmax.f32 %v4731, 0.0
      %v5049 = vmax.f32 %v4027, 0.0
      %v5050 = vmax.f32 %v4029, 0.0
      %v5051 = vmax.f32 %v4733, 0.0
      %v5052 = vmax.f32 %v4735, 0.0
      %v5053 = vmax.f32 %v4033, 0.0
      %v5054 = vmax.f32 %v4035, 0.0
      %v5055 = vmax.f32 %v4739, 0.0
      %v5056 = vmax.f32 %v4741, 0.0
      %v5057 = vmax.f32 %v4037, 0.0
      %v5058 = vmax.f32 %v4039, 0.0
      %v5059 = vmax.f32 %v4743, 0.0
      %v5060 = vmax.f32 %v4745, 0.0
      %v5061 = vmax.f32 %v4043, 0.0
      %v5062 = vmax.f32 %v4045, 0.0
      %v5063 = vmax.f32 %v4749, 0.0
      %v5064 = vmax.f32 %v4751, 0.0
      %v5065 = vmax.f32 %v4047, 0.0
      %v5066 = vmax.f32 %v4049, 0.0
      %v5067 = vmax.f32 %v4753, 0.0
      %v5068 = vmax.f32 %v4755, 0.0
      %v5069 = vmax.f32 %v4053, 0.0
      %v5070 = vmax.f32 %v4055, 0.0
      %v5071 = vmax.f32 %v4759, 0.0
      %v5072 = vmax.f32 %v4761, 0.0
      %v5073 = vmax.f32 %v4057, 0.0
      %v5074 = vmax.f32 %v4059, 0.0
      %v5075 = vmax.f32 %v4763, 0.0
      %v5076 = vmax.f32 %v4765, 0.0
      %v5077 = vmax.f32 %v4063, 0.0
      %v5078 = vmax.f32 %v4065, 0.0
      %v5079 = vmax.f32 %v4769, 0.0
      %v5080 = vmax.f32 %v4771, 0.0
      %v5081 = vmax.f32 %v4067, 0.0
      %v5082 = vmax.f32 %v4069, 0.0
      %v5083 = vmax.f32 %v4773, 0.0
      %v5084 = vmax.f32 %v4775, 0.0
      %v5085 = vmax.f32 %v4073, 0.0
      %v5086 = vmax.f32 %v4075, 0.0
      %v5087 = vmax.f32 %v4779, 0.0
      %v5088 = vmax.f32 %v4781, 0.0
      %v5089 = vmax.f32 %v4077, 0.0
      %v5090 = vmax.f32 %v4079, 0.0
      %v5091 = vmax.f32 %v4783, 0.0
      %v5092 = vmax.f32 %v4785, 0.0
      %v5093 = vmax.f32 %v4083, 0.0
      %v5094 = vmax.f32 %v4085, 0.0
      %v5095 = vmax.f32 %v4789, 0.0
      %v5096 = vmax.f32 %v4791, 0.0
      %v5097 = vmax.f32 %v4087, 0.0
      %v5098 = vmax.f32 %v4089, 0.0
      %v5099 = vmax.f32 %v4793, 0.0
      %v5100 = vmax.f32 %v4795, 0.0
      %v5101 = vmax.f32 %v4093, 0.0
      %v5102 = vmax.f32 %v4095, 0.0
      %v5103 = vmax.f32 %v4799, 0.0
      %v5104 = vmax.f32 %v4801, 0.0
      %v5105 = vmax.f32 %v4097, 0.0
      %v5106 = vmax.f32 %v4099, 0.0
      %v5107 = vmax.f32 %v4803, 0.0
      %v5108 = vmax.f32 %v4805, 0.0
      %v5109 = vmax.f32 %v4103, 0.0
      %v5110 = vmax.f32 %v4105, 0.0
      %v5111 = vmax.f32 %v4809, 0.0
      %v5112 = vmax.f32 %v4811, 0.0
      %v5113 = vmax.f32 %v4107, 0.0
      %v5114 = vmax.f32 %v4109, 0.0
      %v5115 = vmax.f32 %v4813, 0.0
      %v5116 = vmax.f32 %v4815, 0.0
      %v5117 = vmax.f32 %v4113, 0.0
      %v5118 = vmax.f32 %v4115, 0.0
      %v5119 = vmax.f32 %v4819, 0.0
      %v5120 = vmax.f32 %v4821, 0.0
      %v5121 = vmax.f32 %v4117, 0.0
      %v5122 = vmax.f32 %v4119, 0.0
      %v5123 = vmax.f32 %v4823, 0.0
      %v5124 = vmax.f32 %v4825, 0.0
      %v5125 = vmax.f32 %v4123, 0.0
      %v5126 = vmax.f32 %v4125, 0.0
      %v5127 = vmax.f32 %v4829, 0.0
      %v5128 = vmax.f32 %v4831, 0.0
      %v5129 = vmax.f32 %v4127, 0.0
      %v5130 = vmax.f32 %v4129, 0.0
      %v5131 = vmax.f32 %v4833, 0.0
      %v5132 = vmax.f32 %v4835, 0.0
      %v5133 = vmax.f32 %v4133, 0.0
      %v5134 = vmax.f32 %v4135, 0.0
      %v5135 = vmax.f32 %v4839, 0.0
      %v5136 = vmax.f32 %v4841, 0.0
      %v5137 = vmax.f32 %v4137, 0.0
      %v5138 = vmax.f32 %v4139, 0.0
      %v5139 = vmax.f32 %v4843, 0.0
      %v5140 = vmax.f32 %v4845, 0.0
      %v5141 = vmax.f32 %v4143, 0.0
      %v5142 = vmax.f32 %v4145, 0.0
      %v5143 = vmax.f32 %v4849, 0.0
      %v5144 = vmax.f32 %v4851, 0.0
      %v5145 = vmax.f32 %v4147, 0.0
      %v5146 = vmax.f32 %v4149, 0.0
      %v5147 = vmax.f32 %v4853, 0.0
      %v5148 = vmax.f32 %v4855, 0.0
      %v5149 = vmax.f32 %v4153, 0.0
      %v5150 = vmax.f32 %v4155, 0.0
      %v5151 = vmax.f32 %v4859, 0.0
      %v5152 = vmax.f32 %v4861, 0.0
      %v5153 = vmax.f32 %v4157, 0.0
      %v5154 = vmax.f32 %v4159, 0.0
      %v5155 = vmax.f32 %v4863, 0.0
      %v5156 = vmax.f32 %v4865, 0.0
      %v5157 = vmax.f32 %v4163, 0.0
      %v5158 = vmax.f32 %v4165, 0.0
      %v5159 = vmax.f32 %v4869, 0.0
      %v5160 = vmax.f32 %v4871, 0.0
      %v5161 = vmax.f32 %v4167, 0.0
      %v5162 = vmax.f32 %v4169, 0.0
      %v5163 = vmax.f32 %v4873, 0.0
      %v5164 = vmax.f32 %v4875, 0.0
      %v5165 = vmax.f32 %v4173, 0.0
      %v5166 = vmax.f32 %v4175, 0.0
      %v5167 = vmax.f32 %v4879, 0.0
      %v5168 = vmax.f32 %v4881, 0.0
      %v5169 = vmax.f32 %v4177, 0.0
      %v5170 = vmax.f32 %v4179, 0.0
      %v5171 = vmax.f32 %v4883, 0.0
      %v5172 = vmax.f32 %v4885, 0.0
      %v5173 = vmax.f32 %v4183, 0.0
      %v5174 = vmax.f32 %v4185, 0.0
      %v5175 = vmax.f32 %v4889, 0.0
      %v5176 = vmax.f32 %v4891, 0.0
      %v5177 = vmax.f32 %v4187, 0.0
      %v5178 = vmax.f32 %v4189, 0.0
      %v5179 = vmax.f32 %v4893, 0.0
      %v5180 = vmax.f32 %v4895, 0.0
      %v5181 = vmax.f32 %v4193, 0.0
      %v5182 = vmax.f32 %v4195, 0.0
      %v5183 = vmax.f32 %v4899, 0.0
      %v5184 = vmax.f32 %v4901, 0.0
      %v5185 = vmax.f32 %v4197, 0.0
      %v5186 = vmax.f32 %v4199, 0.0
      %v5187 = vmax.f32 %v4903, 0.0
      %v5188 = vmax.f32 %v4905, 0.0
      %v5189 = vmax.f32 %v4203, 0.0
      %v5190 = vmax.f32 %v4205, 0.0
      %v5191 = vmax.f32 %v4909, 0.0
      %v5192 = vmax.f32 %v4911, 0.0
      %v5193 = vmax.f32 %v4207, 0.0
      %v5194 = vmax.f32 %v4209, 0.0
      %v5195 = vmax.f32 %v4913, 0.0
      %v5196 = vmax.f32 %v4915, 0.0
      %v5197 = vmax.f32 %v4213, 0.0
      %v5198 = vmax.f32 %v4215, 0.0
      %v5199 = vmax.f32 %v4919, 0.0
      %v5200 = vmax.f32 %v4921, 0.0
      %v5201 = vmax.f32 %v4217, 0.0
      %v5202 = vmax.f32 %v4219, 0.0
      %v5203 = vmax.f32 %v4923, 0.0
      %v5204 = vmax.f32 %v4925, 0.0
      %v5205 = vmax.f32 %v4223, 0.0
      %v5206 = vmax.f32 %v4225, 0.0
      %v5207 = vmax.f32 %v4929, 0.0
      %v5208 = vmax.f32 %v4931, 0.0
      %v5209 = vmax.f32 %v4227, 0.0
      %v5210 = vmax.f32 %v4229, 0.0
      %v5211 = vmax.f32 %v4933, 0.0
      %v5212 = vmax.f32 %v4935, 0.0
      %v5213 = vmax.f32 %v4233, 0.0
      %v5214 = vmax.f32 %v4235, 0.0
      %v5215 = vmax.f32 %v4939, 0.0
      %v5216 = vmax.f32 %v4941, 0.0
      %v5217 = vmax.f32 %v4237, 0.0
      %v5218 = vmax.f32 %v4239, 0.0
      %v5219 = vmax.f32 %v4943, 0.0
      %v5220 = vmax.f32 %v4945, 0.0
      %v5221 = vmax.f32 %v4243, 0.0
      %v5222 = vmax.f32 %v4245, 0.0
      %v5223 = vmax.f32 %v4949, 0.0
      %v5224 = vmax.f32 %v4951, 0.0
      %v5225 = vmax.f32 %v4247, 0.0
      %v5226 = vmax.f32 %v4249, 0.0
      %v5227 = vmax.f32 %v4953, 0.0
      %v5228 = vmax.f32 %v4955, 0.0
      %v5229 = vmax.f32 %v4253, 0.0
      %v5230 = vmax.f32 %v4255, 0.0
      %v5231 = vmax.f32 %v4959, 0.0
      %v5232 = vmax.f32 %v4961, 0.0
      %v5233 = vmax.f32 %v4257, 0.0
      %v5234 = vmax.f32 %v4259, 0.0
      %v5235 = vmax.f32 %v4963, 0.0
      %v5236 = vmax.f32 %v4965, 0.0
      %v5237 = vmax.f32 %v4263, 0.0
      %v5238 = vmax.f32 %v4265, 0.0
      %v5239 = vmax.f32 %v4969, 0.0
      %v5240 = vmax.f32 %v4971, 0.0
      %v5241 = vmax.f32 %v4267, 0.0
      %v5242 = vmax.f32 %v4269, 0.0
      %v5243 = vmax.f32 %v4973, 0.0
      %v5244 = vmax.f32 %v4975, 0.0
      %v5245 = vmax.f32 %v4273, 0.0
      %v5246 = vmax.f32 %v4275, 0.0
      %v5247 = vmax.f32 %v4979, 0.0
      %v5248 = vmax.f32 %v4981, 0.0
      %v5249 = vmax.f32 %v4277, 0.0
      %v5250 = vmax.f32 %v4279, 0.0
      %v5251 = vmax.f32 %v4983, 0.0
      %v5252 = vmax.f32 %v4985, 0.0
      %v5253 = vmax.f32 %v4283, 0.0
      %v5254 = vmax.f32 %v4285, 0.0
      %v5255 = vmax.f32 %v4989, 0.0
      %v5256 = vmax.f32 %v4991, 0.0
      %v5257 = vmax.f32 %v4287, 0.0
      %v5258 = vmax.f32 %v4289, 0.0
      %v5259 = vmax.f32 %v4993, 0.0
      %v5260 = vmax.f32 %v4995, 0.0
      %v5261 = vmax.f32 %v4293, 0.0
      %v5262 = vmax.f32 %v4295, 0.0
      %v5263 = vmax.f32 %v4999, 0.0
      %v5264 = vmax.f32 %v5001, 0.0
      %v5265 = vmax.f32 %v4297, 0.0
      %v5266 = vmax.f32 %v4299, 0.0
      %v5267 = vmax.f32 %v5003, 0.0
      %v5268 = vmax.f32 %v5005, 0.0
      %v5269 = vmax.f32 %v4303, 0.0
      %v5270 = vmax.f32 %v4305, 0.0
      %v5271 = vmax.f32 %v5009, 0.0
      %v5272 = vmax.f32 %v5011, 0.0
      %v5273 = vmax.f32 %v4307, 0.0
      %v5274 = vmax.f32 %v4309, 0.0
      %v5275 = vmax.f32 %v5013, 0.0
      %v5276 = vmax.f32 %v5015, 0.0
      %v5277 = vmax.f32 %v4313, 0.0
      %v5278 = vmax.f32 %v4315, 0.0
      %v5279 = vmax.f32 %v5019, 0.0
      %v5280 = vmax.f32 %v5021, 0.0
      %v5281 = vmax.f32 %v4317, 0.0
      %v5282 = vmax.f32 %v4319, 0.0
      %v5283 = vmax.f32 %v5023, 0.0
      %v5284 = vmax.f32 %v5025, 0.0
      %v5285 = vmax.f32 %v4323, 0.0
      %v5286 = vmax.f32 %v4325, 0.0
      %v5287 = vmax.f32 %v5029, 0.0
      %v5288 = vmax.f32 %v5031, 0.0
      %v5289 = vmax.f32 %v4327, 0.0
      %v5290 = vmax.f32 %v4329, 0.0
      %v5291 = vmax.f32 %v5033, 0.0
      %v5292 = vmax.f32 %v5035, 0.0
      %v5293 = vld [vmem:[%s5] sm:$0xff]
      %v5294 = vld [vmem:[%s5 + $0x8] sm:$0xff]
      %v5295 = vld [vmem:[%s5 + $0x10] sm:$0xff]
      %v5296 = vld [vmem:[%s5 + $0x18] sm:$0xff]
      %v5297 = vld [vmem:[%s5 + $0x20] sm:$0xff]
      %v5298 = vld [vmem:[%s5 + $0x28] sm:$0xff]
      %v5299 = vld [vmem:[%s5 + $0x30] sm:$0xff]
      %v5300 = vld [vmem:[%s5 + $0x38] sm:$0xff]
      %v5301 = vld [vmem:[%s5 + $0x40] sm:$0xff]
      %v5302 = vld [vmem:[%s5 + $0x48] sm:$0xff]
      %v5303 = vld [vmem:[%s5 + $0x50] sm:$0xff]
      %v5304 = vld [vmem:[%s5 + $0x58] sm:$0xff]
      %v5305 = vld [vmem:[%s5 + $0x60] sm:$0xff]
      %v5306 = vld [vmem:[%s5 + $0x68] sm:$0xff]
      %v5307 = vld [vmem:[%s5 + $0x70] sm:$0xff]
      %v5308 = vld [vmem:[%s5 + $0x78] sm:$0xff]
      %v5309 = vld [vmem:[%s5 + $0x80] sm:$0xff]
      %v5310 = vld [vmem:[%s5 + $0x88] sm:$0xff]
      %v5311 = vld [vmem:[%s5 + $0x90] sm:$0xff]
      %v5312 = vld [vmem:[%s5 + $0x98] sm:$0xff]
      %v5313 = vld [vmem:[%s5 + $0xa0] sm:$0xff]
      %v5314 = vld [vmem:[%s5 + $0xa8] sm:$0xff]
      %v5315 = vld [vmem:[%s5 + $0xb0] sm:$0xff]
      %v5316 = vld [vmem:[%s5 + $0xb8] sm:$0xff]
      %v5317 = vld [vmem:[%s5 + $0xc0] sm:$0xff]
      %v5318 = vld [vmem:[%s5 + $0xc8] sm:$0xff]
      %v5319 = vld [vmem:[%s5 + $0xd0] sm:$0xff]
      %v5320 = vld [vmem:[%s5 + $0xd8] sm:$0xff]
      %v5321 = vld [vmem:[%s5 + $0xe0] sm:$0xff]
      %v5322 = vld [vmem:[%s5 + $0xe8] sm:$0xff]
      %v5323 = vld [vmem:[%s5 + $0xf0] sm:$0xff]
      %v5324 = vld [vmem:[%s5 + $0xf8] sm:$0xff]
      %v5325 = vld [vmem:[%s5 + $0x100] sm:$0xff]
      %v5326 = vld [vmem:[%s5 + $0x108] sm:$0xff]
      %v5327 = vld [vmem:[%s5 + $0x110] sm:$0xff]
      %v5328 = vld [vmem:[%s5 + $0x118] sm:$0xff]
      %v5329 = vld [vmem:[%s5 + $0x120] sm:$0xff]
      %v5330 = vld [vmem:[%s5 + $0x128] sm:$0xff]
      %v5331 = vld [vmem:[%s5 + $0x130] sm:$0xff]
      %v5332 = vld [vmem:[%s5 + $0x138] sm:$0xff]
      %v5333 = vld [vmem:[%s5 + $0x140] sm:$0xff]
      %v5334 = vld [vmem:[%s5 + $0x148] sm:$0xff]
      %v5335 = vld [vmem:[%s5 + $0x150] sm:$0xff]
      %v5336 = vld [vmem:[%s5 + $0x158] sm:$0xff]
      %v5337 = vld [vmem:[%s5 + $0x160] sm:$0xff]
      %v5338 = vld [vmem:[%s5 + $0x168] sm:$0xff]
      %v5339 = vld [vmem:[%s5 + $0x170] sm:$0xff]
      %v5340 = vld [vmem:[%s5 + $0x178] sm:$0xff]
      %v5341 = vld [vmem:[%s5 + $0x180] sm:$0xff]
      %v5342 = vld [vmem:[%s5 + $0x188] sm:$0xff]
      %v5343 = vld [vmem:[%s5 + $0x190] sm:$0xff]
      %v5344 = vld [vmem:[%s5 + $0x198] sm:$0xff]
      %v5345 = vld [vmem:[%s5 + $0x1a0] sm:$0xff]
      %v5346 = vld [vmem:[%s5 + $0x1a8] sm:$0xff]
      %v5347 = vld [vmem:[%s5 + $0x1b0] sm:$0xff]
      %v5348 = vld [vmem:[%s5 + $0x1b8] sm:$0xff]
      %v5349 = vld [vmem:[%s5 + $0x1c0] sm:$0xff]
      %v5350 = vld [vmem:[%s5 + $0x1c8] sm:$0xff]
      %v5351 = vld [vmem:[%s5 + $0x1d0] sm:$0xff]
      %v5352 = vld [vmem:[%s5 + $0x1d8] sm:$0xff]
      %v5353 = vld [vmem:[%s5 + $0x1e0] sm:$0xff]
      %v5354 = vld [vmem:[%s5 + $0x1e8] sm:$0xff]
      %v5355 = vld [vmem:[%s5 + $0x1f0] sm:$0xff]
      %v5356 = vld [vmem:[%s5 + $0x1f8] sm:$0xff]
      %v5357 = vpack.c.bf16 %v5041, %v5037
      %v5358 = vpack.c.bf16 %v5042, %v5038
      %v5359 = vpack.c.bf16 %v5043, %v5039
      %v5360 = vpack.c.bf16 %v5044, %v5040
      %v5361 = vpack.c.bf16 %v5049, %v5045
      %v5362 = vpack.c.bf16 %v5050, %v5046
      %v5363 = vpack.c.bf16 %v5051, %v5047
      %v5364 = vpack.c.bf16 %v5052, %v5048
      %v5365 = vpack.c.bf16 %v5057, %v5053
      %v5366 = vpack.c.bf16 %v5058, %v5054
      %v5367 = vpack.c.bf16 %v5059, %v5055
      %v5368 = vpack.c.bf16 %v5060, %v5056
      %v5369 = vpack.c.bf16 %v5065, %v5061
      %v5370 = vpack.c.bf16 %v5066, %v5062
      %v5371 = vpack.c.bf16 %v5067, %v5063
      %v5372 = vpack.c.bf16 %v5068, %v5064
      %v5373 = vpack.c.bf16 %v5073, %v5069
      %v5374 = vpack.c.bf16 %v5074, %v5070
      %v5375 = vpack.c.bf16 %v5075, %v5071
      %v5376 = vpack.c.bf16 %v5076, %v5072
      %v5377 = vpack.c.bf16 %v5081, %v5077
      %v5378 = vpack.c.bf16 %v5082, %v5078
      %v5379 = vpack.c.bf16 %v5083, %v5079
      %v5380 = vpack.c.bf16 %v5084, %v5080
      %v5381 = vpack.c.bf16 %v5089, %v5085
      %v5382 = vpack.c.bf16 %v5090, %v5086
      %v5383 = vpack.c.bf16 %v5091, %v5087
      %v5384 = vpack.c.bf16 %v5092, %v5088
      %v5385 = vpack.c.bf16 %v5097, %v5093
      %v5386 = vpack.c.bf16 %v5098, %v5094
      %v5387 = vpack.c.bf16 %v5099, %v5095
      %v5388 = vpack.c.bf16 %v5100, %v5096
      %v5389 = vpack.c.bf16 %v5105, %v5101
      %v5390 = vpack.c.bf16 %v5106, %v5102
      %v5391 = vpack.c.bf16 %v5107, %v5103
      %v5392 = vpack.c.bf16 %v5108, %v5104
      %v5393 = vpack.c.bf16 %v5113, %v5109
      %v5394 = vpack.c.bf16 %v5114, %v5110
      %v5395 = vpack.c.bf16 %v5115, %v5111
      %v5396 = vpack.c.bf16 %v5116, %v5112
      %v5397 = vpack.c.bf16 %v5121, %v5117
      %v5398 = vpack.c.bf16 %v5122, %v5118
      %v5399 = vpack.c.bf16 %v5123, %v5119
      %v5400 = vpack.c.bf16 %v5124, %v5120
      %v5401 = vpack.c.bf16 %v5129, %v5125
      %v5402 = vpack.c.bf16 %v5130, %v5126
      %v5403 = vpack.c.bf16 %v5131, %v5127
      %v5404 = vpack.c.bf16 %v5132, %v5128
      %v5405 = vpack.c.bf16 %v5137, %v5133
      %v5406 = vpack.c.bf16 %v5138, %v5134
      %v5407 = vpack.c.bf16 %v5139, %v5135
      %v5408 = vpack.c.bf16 %v5140, %v5136
      %v5409 = vpack.c.bf16 %v5145, %v5141
      %v5410 = vpack.c.bf16 %v5146, %v5142
      %v5411 = vpack.c.bf16 %v5147, %v5143
      %v5412 = vpack.c.bf16 %v5148, %v5144
      %v5413 = vpack.c.bf16 %v5153, %v5149
      %v5414 = vpack.c.bf16 %v5154, %v5150
      %v5415 = vpack.c.bf16 %v5155, %v5151
      %v5416 = vpack.c.bf16 %v5156, %v5152
      %v5417 = vpack.c.bf16 %v5161, %v5157
      %v5418 = vpack.c.bf16 %v5162, %v5158
      %v5419 = vpack.c.bf16 %v5163, %v5159
      %v5420 = vpack.c.bf16 %v5164, %v5160
      %v5421 = vpack.c.bf16 %v5169, %v5165
      %v5422 = vpack.c.bf16 %v5170, %v5166
      %v5423 = vpack.c.bf16 %v5171, %v5167
      %v5424 = vpack.c.bf16 %v5172, %v5168
      %v5425 = vpack.c.bf16 %v5177, %v5173
      %v5426 = vpack.c.bf16 %v5178, %v5174
      %v5427 = vpack.c.bf16 %v5179, %v5175
      %v5428 = vpack.c.bf16 %v5180, %v5176
      %v5429 = vpack.c.bf16 %v5185, %v5181
      %v5430 = vpack.c.bf16 %v5186, %v5182
      %v5431 = vpack.c.bf16 %v5187, %v5183
      %v5432 = vpack.c.bf16 %v5188, %v5184
      %v5433 = vpack.c.bf16 %v5193, %v5189
      %v5434 = vpack.c.bf16 %v5194, %v5190
      %v5435 = vpack.c.bf16 %v5195, %v5191
      %v5436 = vpack.c.bf16 %v5196, %v5192
      %v5437 = vpack.c.bf16 %v5201, %v5197
      %v5438 = vpack.c.bf16 %v5202, %v5198
      %v5439 = vpack.c.bf16 %v5203, %v5199
      %v5440 = vpack.c.bf16 %v5204, %v5200
      %v5441 = vpack.c.bf16 %v5209, %v5205
      %v5442 = vpack.c.bf16 %v5210, %v5206
      %v5443 = vpack.c.bf16 %v5211, %v5207
      %v5444 = vpack.c.bf16 %v5212, %v5208
      %v5445 = vpack.c.bf16 %v5217, %v5213
      %v5446 = vpack.c.bf16 %v5218, %v5214
      %v5447 = vpack.c.bf16 %v5219, %v5215
      %v5448 = vpack.c.bf16 %v5220, %v5216
      %v5449 = vpack.c.bf16 %v5225, %v5221
      %v5450 = vpack.c.bf16 %v5226, %v5222
      %v5451 = vpack.c.bf16 %v5227, %v5223
      %v5452 = vpack.c.bf16 %v5228, %v5224
      %v5453 = vpack.c.bf16 %v5233, %v5229
      %v5454 = vpack.c.bf16 %v5234, %v5230
      %v5455 = vpack.c.bf16 %v5235, %v5231
      %v5456 = vpack.c.bf16 %v5236, %v5232
      %v5457 = vpack.c.bf16 %v5241, %v5237
      %v5458 = vpack.c.bf16 %v5242, %v5238
      %v5459 = vpack.c.bf16 %v5243, %v5239
      %v5460 = vpack.c.bf16 %v5244, %v5240
      %v5461 = vpack.c.bf16 %v5249, %v5245
      %v5462 = vpack.c.bf16 %v5250, %v5246
      %v5463 = vpack.c.bf16 %v5251, %v5247
      %v5464 = vpack.c.bf16 %v5252, %v5248
      %v5465 = vpack.c.bf16 %v5257, %v5253
      %v5466 = vpack.c.bf16 %v5258, %v5254
      %v5467 = vpack.c.bf16 %v5259, %v5255
      %v5468 = vpack.c.bf16 %v5260, %v5256
      %v5469 = vpack.c.bf16 %v5265, %v5261
      %v5470 = vpack.c.bf16 %v5266, %v5262
      %v5471 = vpack.c.bf16 %v5267, %v5263
      %v5472 = vpack.c.bf16 %v5268, %v5264
      %v5473 = vpack.c.bf16 %v5273, %v5269
      %v5474 = vpack.c.bf16 %v5274, %v5270
      %v5475 = vpack.c.bf16 %v5275, %v5271
      %v5476 = vpack.c.bf16 %v5276, %v5272
      %v5477 = vpack.c.bf16 %v5281, %v5277
      %v5478 = vpack.c.bf16 %v5282, %v5278
      %v5479 = vpack.c.bf16 %v5283, %v5279
      %v5480 = vpack.c.bf16 %v5284, %v5280
      %v5481 = vpack.c.bf16 %v5289, %v5285
      %v5482 = vpack.c.bf16 %v5290, %v5286
      %v5483 = vpack.c.bf16 %v5291, %v5287
      %v5484 = vpack.c.bf16 %v5292, %v5288
      %v5485 = vld [vmem:[%s6] sm:$0xff]
      %v5486 = vld [vmem:[%s6 + $0x8] sm:$0xff]
      %v5487 = vld [vmem:[%s6 + $0x10] sm:$0xff]
      %v5488 = vld [vmem:[%s6 + $0x18] sm:$0xff]
      %v5489 = vld [vmem:[%s6 + $0x20] sm:$0xff]
      %v5490 = vld [vmem:[%s6 + $0x28] sm:$0xff]
      %v5491 = vld [vmem:[%s6 + $0x30] sm:$0xff]
      %v5492 = vld [vmem:[%s6 + $0x38] sm:$0xff]
      %v5493 = vld [vmem:[%s6 + $0x40] sm:$0xff]
      %v5494 = vld [vmem:[%s6 + $0x48] sm:$0xff]
      %v5495 = vld [vmem:[%s6 + $0x50] sm:$0xff]
      %v5496 = vld [vmem:[%s6 + $0x58] sm:$0xff]
      %v5497 = vld [vmem:[%s6 + $0x60] sm:$0xff]
      %v5498 = vld [vmem:[%s6 + $0x68] sm:$0xff]
      %v5499 = vld [vmem:[%s6 + $0x70] sm:$0xff]
      %v5500 = vld [vmem:[%s6 + $0x78] sm:$0xff]
      %v5501 = vld [vmem:[%s6 + $0x80] sm:$0xff]
      %v5502 = vld [vmem:[%s6 + $0x88] sm:$0xff]
      %v5503 = vld [vmem:[%s6 + $0x90] sm:$0xff]
      %v5504 = vld [vmem:[%s6 + $0x98] sm:$0xff]
      %v5505 = vld [vmem:[%s6 + $0xa0] sm:$0xff]
      %v5506 = vld [vmem:[%s6 + $0xa8] sm:$0xff]
      %v5507 = vld [vmem:[%s6 + $0xb0] sm:$0xff]
      %v5508 = vld [vmem:[%s6 + $0xb8] sm:$0xff]
      %v5509 = vld [vmem:[%s6 + $0xc0] sm:$0xff]
      %v5510 = vld [vmem:[%s6 + $0xc8] sm:$0xff]
      %v5511 = vld [vmem:[%s6 + $0xd0] sm:$0xff]
      %v5512 = vld [vmem:[%s6 + $0xd8] sm:$0xff]
      %v5513 = vld [vmem:[%s6 + $0xe0] sm:$0xff]
      %v5514 = vld [vmem:[%s6 + $0xe8] sm:$0xff]
      %v5515 = vld [vmem:[%s6 + $0xf0] sm:$0xff]
      %v5516 = vld [vmem:[%s6 + $0xf8] sm:$0xff]
      %5518 = vset.pattern.permute.xlu0 0
      %5519 = vperm.xlu0 %5518, %v5485
      %v5520 = vpop.permute.xlu0 %5519
      %5523 = vset.pattern.permute.xlu0 0
      %5524 = vperm.xlu0 %5523, %v5486
      %v5525 = vpop.permute.xlu0 %5524
      %5528 = vset.pattern.permute.xlu0 0
      %5529 = vperm.xlu0 %5528, %v5487
      %v5530 = vpop.permute.xlu0 %5529
      %5533 = vset.pattern.permute.xlu0 0
      %5534 = vperm.xlu0 %5533, %v5488
      %v5535 = vpop.permute.xlu0 %5534
      %5538 = vset.pattern.permute.xlu0 0
      %5539 = vperm.xlu0 %5538, %v5489
      %v5540 = vpop.permute.xlu0 %5539
      %5543 = vset.pattern.permute.xlu0 0
      %5544 = vperm.xlu0 %5543, %v5490
      %v5545 = vpop.permute.xlu0 %5544
      %5548 = vset.pattern.permute.xlu0 0
      %5549 = vperm.xlu0 %5548, %v5491
      %v5550 = vpop.permute.xlu0 %5549
      %5553 = vset.pattern.permute.xlu0 0
      %5554 = vperm.xlu0 %5553, %v5492
      %v5555 = vpop.permute.xlu0 %5554
      %5558 = vset.pattern.permute.xlu0 0
      %5559 = vperm.xlu0 %5558, %v5493
      %v5560 = vpop.permute.xlu0 %5559
      %5563 = vset.pattern.permute.xlu0 0
      %5564 = vperm.xlu0 %5563, %v5494
      %v5565 = vpop.permute.xlu0 %5564
      %5568 = vset.pattern.permute.xlu0 0
      %5569 = vperm.xlu0 %5568, %v5495
      %v5570 = vpop.permute.xlu0 %5569
      %5573 = vset.pattern.permute.xlu0 0
      %5574 = vperm.xlu0 %5573, %v5496
      %v5575 = vpop.permute.xlu0 %5574
      %5578 = vset.pattern.permute.xlu0 0
      %5579 = vperm.xlu0 %5578, %v5497
      %v5580 = vpop.permute.xlu0 %5579
      %5583 = vset.pattern.permute.xlu0 0
      %5584 = vperm.xlu0 %5583, %v5498
      %v5585 = vpop.permute.xlu0 %5584
      %5588 = vset.pattern.permute.xlu0 0
      %5589 = vperm.xlu0 %5588, %v5499
      %v5590 = vpop.permute.xlu0 %5589
      %5593 = vset.pattern.permute.xlu0 0
      %5594 = vperm.xlu0 %5593, %v5500
      %v5595 = vpop.permute.xlu0 %5594
      %5598 = vset.pattern.permute.xlu0 0
      %5599 = vperm.xlu0 %5598, %v5501
      %v5600 = vpop.permute.xlu0 %5599
      %5603 = vset.pattern.permute.xlu0 0
      %5604 = vperm.xlu0 %5603, %v5502
      %v5605 = vpop.permute.xlu0 %5604
      %5608 = vset.pattern.permute.xlu0 0
      %5609 = vperm.xlu0 %5608, %v5503
      %v5610 = vpop.permute.xlu0 %5609
      %5613 = vset.pattern.permute.xlu0 0
      %5614 = vperm.xlu0 %5613, %v5504
      %v5615 = vpop.permute.xlu0 %5614
      %5618 = vset.pattern.permute.xlu0 0
      %5619 = vperm.xlu0 %5618, %v5505
      %v5620 = vpop.permute.xlu0 %5619
      %5623 = vset.pattern.permute.xlu0 0
      %5624 = vperm.xlu0 %5623, %v5506
      %v5625 = vpop.permute.xlu0 %5624
      %5628 = vset.pattern.permute.xlu0 0
      %5629 = vperm.xlu0 %5628, %v5507
      %v5630 = vpop.permute.xlu0 %5629
      %5633 = vset.pattern.permute.xlu0 0
      %5634 = vperm.xlu0 %5633, %v5508
      %v5635 = vpop.permute.xlu0 %5634
      %5638 = vset.pattern.permute.xlu0 0
      %5639 = vperm.xlu0 %5638, %v5509
      %v5640 = vpop.permute.xlu0 %5639
      %5643 = vset.pattern.permute.xlu0 0
      %5644 = vperm.xlu0 %5643, %v5510
      %v5645 = vpop.permute.xlu0 %5644
      %5648 = vset.pattern.permute.xlu0 0
      %5649 = vperm.xlu0 %5648, %v5511
      %v5650 = vpop.permute.xlu0 %5649
      %5653 = vset.pattern.permute.xlu0 0
      %5654 = vperm.xlu0 %5653, %v5512
      %v5655 = vpop.permute.xlu0 %5654
      %5658 = vset.pattern.permute.xlu0 0
      %5659 = vperm.xlu0 %5658, %v5513
      %v5660 = vpop.permute.xlu0 %5659
      %5663 = vset.pattern.permute.xlu0 0
      %5664 = vperm.xlu0 %5663, %v5514
      %v5665 = vpop.permute.xlu0 %5664
      %5668 = vset.pattern.permute.xlu0 0
      %5669 = vperm.xlu0 %5668, %v5515
      %v5670 = vpop.permute.xlu0 %5669
      %5673 = vset.pattern.permute.xlu0 0
      %5674 = vperm.xlu0 %5673, %v5516
      %v5675 = vpop.permute.xlu0 %5674
      %v5741 = vunpack.c.l.b16 %v5293
      %v5742 = vunpack.c.h.b16 %v5293
      %v5743 = vunpack.c.l.b16 %v5294
      %v5744 = vunpack.c.h.b16 %v5294
      %v5745 = vunpack.c.l.b16 %v5295
      %v5746 = vunpack.c.h.b16 %v5295
      %v5747 = vunpack.c.l.b16 %v5296
      %v5748 = vunpack.c.h.b16 %v5296
      %v5749 = vunpack.c.l.b16 %v5297
      %v5750 = vunpack.c.h.b16 %v5297
      %v5751 = vunpack.c.l.b16 %v5298
      %v5752 = vunpack.c.h.b16 %v5298
      %v5753 = vunpack.c.l.b16 %v5299
      %v5754 = vunpack.c.h.b16 %v5299
      %v5755 = vunpack.c.l.b16 %v5300
      %v5756 = vunpack.c.h.b16 %v5300
      %v5757 = vunpack.c.l.b16 %v5301
      %v5758 = vunpack.c.h.b16 %v5301
      %v5759 = vunpack.c.l.b16 %v5302
      %v5760 = vunpack.c.h.b16 %v5302
      %v5761 = vunpack.c.l.b16 %v5303
      %v5762 = vunpack.c.h.b16 %v5303
      %v5763 = vunpack.c.l.b16 %v5304
      %v5764 = vunpack.c.h.b16 %v5304
      %v5765 = vunpack.c.l.b16 %v5305
      %v5766 = vunpack.c.h.b16 %v5305
      %v5767 = vunpack.c.l.b16 %v5306
      %v5768 = vunpack.c.h.b16 %v5306
      %v5769 = vunpack.c.l.b16 %v5307
      %v5770 = vunpack.c.h.b16 %v5307
      %v5771 = vunpack.c.l.b16 %v5308
      %v5772 = vunpack.c.h.b16 %v5308
      %v5773 = vunpack.c.l.b16 %v5309
      %v5774 = vunpack.c.h.b16 %v5309
      %v5775 = vunpack.c.l.b16 %v5310
      %v5776 = vunpack.c.h.b16 %v5310
      %v5777 = vunpack.c.l.b16 %v5311
      %v5778 = vunpack.c.h.b16 %v5311
      %v5779 = vunpack.c.l.b16 %v5312
      %v5780 = vunpack.c.h.b16 %v5312
      %v5781 = vunpack.c.l.b16 %v5313
      %v5782 = vunpack.c.h.b16 %v5313
      %v5783 = vunpack.c.l.b16 %v5314
      %v5784 = vunpack.c.h.b16 %v5314
      %v5785 = vunpack.c.l.b16 %v5315
      %v5786 = vunpack.c.h.b16 %v5315
      %v5787 = vunpack.c.l.b16 %v5316
      %v5788 = vunpack.c.h.b16 %v5316
      %v5789 = vunpack.c.l.b16 %v5317
      %v5790 = vunpack.c.h.b16 %v5317
      %v5791 = vunpack.c.l.b16 %v5318
      %v5792 = vunpack.c.h.b16 %v5318
      %v5793 = vunpack.c.l.b16 %v5319
      %v5794 = vunpack.c.h.b16 %v5319
      %v5795 = vunpack.c.l.b16 %v5320
      %v5796 = vunpack.c.h.b16 %v5320
      %v5797 = vunpack.c.l.b16 %v5321
      %v5798 = vunpack.c.h.b16 %v5321
      %v5799 = vunpack.c.l.b16 %v5322
      %v5800 = vunpack.c.h.b16 %v5322
      %v5801 = vunpack.c.l.b16 %v5323
      %v5802 = vunpack.c.h.b16 %v5323
      %v5803 = vunpack.c.l.b16 %v5324
      %v5804 = vunpack.c.h.b16 %v5324
      %v5805 = vunpack.c.l.b16 %v5325
      %v5806 = vunpack.c.h.b16 %v5325
      %v5807 = vunpack.c.l.b16 %v5326
      %v5808 = vunpack.c.h.b16 %v5326
      %v5809 = vunpack.c.l.b16 %v5327
      %v5810 = vunpack.c.h.b16 %v5327
      %v5811 = vunpack.c.l.b16 %v5328
      %v5812 = vunpack.c.h.b16 %v5328
      %v5813 = vunpack.c.l.b16 %v5329
      %v5814 = vunpack.c.h.b16 %v5329
      %v5815 = vunpack.c.l.b16 %v5330
      %v5816 = vunpack.c.h.b16 %v5330
      %v5817 = vunpack.c.l.b16 %v5331
      %v5818 = vunpack.c.h.b16 %v5331
      %v5819 = vunpack.c.l.b16 %v5332
      %v5820 = vunpack.c.h.b16 %v5332
      %v5821 = vunpack.c.l.b16 %v5333
      %v5822 = vunpack.c.h.b16 %v5333
      %v5823 = vunpack.c.l.b16 %v5334
      %v5824 = vunpack.c.h.b16 %v5334
      %v5825 = vunpack.c.l.b16 %v5335
      %v5826 = vunpack.c.h.b16 %v5335
      %v5827 = vunpack.c.l.b16 %v5336
      %v5828 = vunpack.c.h.b16 %v5336
      %v5829 = vunpack.c.l.b16 %v5337
      %v5830 = vunpack.c.h.b16 %v5337
      %v5831 = vunpack.c.l.b16 %v5338
      %v5832 = vunpack.c.h.b16 %v5338
      %v5833 = vunpack.c.l.b16 %v5339
      %v5834 = vunpack.c.h.b16 %v5339
      %v5835 = vunpack.c.l.b16 %v5340
      %v5836 = vunpack.c.h.b16 %v5340
      %v5837 = vunpack.c.l.b16 %v5341
      %v5838 = vunpack.c.h.b16 %v5341
      %v5839 = vunpack.c.l.b16 %v5342
      %v5840 = vunpack.c.h.b16 %v5342
      %v5841 = vunpack.c.l.b16 %v5343
      %v5842 = vunpack.c.h.b16 %v5343
      %v5843 = vunpack.c.l.b16 %v5344
      %v5844 = vunpack.c.h.b16 %v5344
      %v5845 = vunpack.c.l.b16 %v5345
      %v5846 = vunpack.c.h.b16 %v5345
      %v5847 = vunpack.c.l.b16 %v5346
      %v5848 = vunpack.c.h.b16 %v5346
      %v5849 = vunpack.c.l.b16 %v5347
      %v5850 = vunpack.c.h.b16 %v5347
      %v5851 = vunpack.c.l.b16 %v5348
      %v5852 = vunpack.c.h.b16 %v5348
      %v5853 = vunpack.c.l.b16 %v5349
      %v5854 = vunpack.c.h.b16 %v5349
      %v5855 = vunpack.c.l.b16 %v5350
      %v5856 = vunpack.c.h.b16 %v5350
      %v5857 = vunpack.c.l.b16 %v5351
      %v5858 = vunpack.c.h.b16 %v5351
      %v5859 = vunpack.c.l.b16 %v5352
      %v5860 = vunpack.c.h.b16 %v5352
      %v5861 = vunpack.c.l.b16 %v5353
      %v5862 = vunpack.c.h.b16 %v5353
      %v5863 = vunpack.c.l.b16 %v5354
      %v5864 = vunpack.c.h.b16 %v5354
      %v5865 = vunpack.c.l.b16 %v5355
      %v5866 = vunpack.c.h.b16 %v5355
      %v5867 = vunpack.c.l.b16 %v5356
      %v5868 = vunpack.c.h.b16 %v5356
      %v5869 = vpack.c.b16 %v5745, %v5741
      %v5870 = vpack.c.b16 %v5746, %v5742
      %v5871 = vpack.c.b16 %v5747, %v5743
      %v5872 = vpack.c.b16 %v5748, %v5744
      %v5873 = vpack.c.b16 %v5753, %v5749
      %v5874 = vpack.c.b16 %v5754, %v5750
      %v5875 = vpack.c.b16 %v5755, %v5751
      %v5876 = vpack.c.b16 %v5756, %v5752
      %v5877 = vpack.c.b16 %v5761, %v5757
      %v5878 = vpack.c.b16 %v5762, %v5758
      %v5879 = vpack.c.b16 %v5763, %v5759
      %v5880 = vpack.c.b16 %v5764, %v5760
      %v5881 = vpack.c.b16 %v5769, %v5765
      %v5882 = vpack.c.b16 %v5770, %v5766
      %v5883 = vpack.c.b16 %v5771, %v5767
      %v5884 = vpack.c.b16 %v5772, %v5768
      %v5885 = vpack.c.b16 %v5777, %v5773
      %v5886 = vpack.c.b16 %v5778, %v5774
      %v5887 = vpack.c.b16 %v5779, %v5775
      %v5888 = vpack.c.b16 %v5780, %v5776
      %v5889 = vpack.c.b16 %v5785, %v5781
      %v5890 = vpack.c.b16 %v5786, %v5782
      %v5891 = vpack.c.b16 %v5787, %v5783
      %v5892 = vpack.c.b16 %v5788, %v5784
      %v5893 = vpack.c.b16 %v5793, %v5789
      %v5894 = vpack.c.b16 %v5794, %v5790
      %v5895 = vpack.c.b16 %v5795, %v5791
      %v5896 = vpack.c.b16 %v5796, %v5792
      %v5897 = vpack.c.b16 %v5801, %v5797
      %v5898 = vpack.c.b16 %v5802, %v5798
      %v5899 = vpack.c.b16 %v5803, %v5799
      %v5900 = vpack.c.b16 %v5804, %v5800
      %v5901 = vpack.c.b16 %v5809, %v5805
      %v5902 = vpack.c.b16 %v5810, %v5806
      %v5903 = vpack.c.b16 %v5811, %v5807
      %v5904 = vpack.c.b16 %v5812, %v5808
      %v5905 = vpack.c.b16 %v5817, %v5813
      %v5906 = vpack.c.b16 %v5818, %v5814
      %v5907 = vpack.c.b16 %v5819, %v5815
      %v5908 = vpack.c.b16 %v5820, %v5816
      %v5909 = vpack.c.b16 %v5825, %v5821
      %v5910 = vpack.c.b16 %v5826, %v5822
      %v5911 = vpack.c.b16 %v5827, %v5823
      %v5912 = vpack.c.b16 %v5828, %v5824
      %v5913 = vpack.c.b16 %v5833, %v5829
      %v5914 = vpack.c.b16 %v5834, %v5830
      %v5915 = vpack.c.b16 %v5835, %v5831
      %v5916 = vpack.c.b16 %v5836, %v5832
      %v5917 = vpack.c.b16 %v5841, %v5837
      %v5918 = vpack.c.b16 %v5842, %v5838
      %v5919 = vpack.c.b16 %v5843, %v5839
      %v5920 = vpack.c.b16 %v5844, %v5840
      %v5921 = vpack.c.b16 %v5849, %v5845
      %v5922 = vpack.c.b16 %v5850, %v5846
      %v5923 = vpack.c.b16 %v5851, %v5847
      %v5924 = vpack.c.b16 %v5852, %v5848
      %v5925 = vpack.c.b16 %v5857, %v5853
      %v5926 = vpack.c.b16 %v5858, %v5854
      %v5927 = vpack.c.b16 %v5859, %v5855
      %v5928 = vpack.c.b16 %v5860, %v5856
      %v5929 = vpack.c.b16 %v5865, %v5861
      %v5930 = vpack.c.b16 %v5866, %v5862
      %v5931 = vpack.c.b16 %v5867, %v5863
      %v5932 = vpack.c.b16 %v5868, %v5864
      %5997 = vmatprep.subr.bf16.mxu0 %v5358
      %5998 = vmatpush1.bf16.msra.mxu0 %v5357
      %5999 = vmatprep.subr.bf16.mxu0 %v5362
      %6000 = vmatpush1.bf16.msra.mxu0 %v5361
      %6001 = vmatprep.subr.bf16.mxu0 %v5366
      %6002 = vmatpush1.bf16.msra.mxu0 %v5365
      %6003 = vmatprep.subr.bf16.mxu0 %v5370
      %6004 = vmatpush1.bf16.msra.mxu0 %v5369
      %6005 = vmatprep.subr.bf16.mxu0 %v5374
      %6006 = vmatpush1.bf16.msra.mxu0 %v5373
      %6007 = vmatprep.subr.bf16.mxu0 %v5378
      %6008 = vmatpush1.bf16.msra.mxu0 %v5377
      %6009 = vmatprep.subr.bf16.mxu0 %v5382
      %6010 = vmatpush1.bf16.msra.mxu0 %v5381
      %6011 = vmatprep.subr.bf16.mxu0 %v5386
      %6012 = vmatpush1.bf16.msra.mxu0 %v5385
      %6013 = vmatprep.subr.bf16.mxu0 %v5390
      %6014 = vmatpush1.bf16.msra.mxu0 %v5389
      %6015 = vmatprep.subr.bf16.mxu0 %v5394
      %6016 = vmatpush1.bf16.msra.mxu0 %v5393
      %6017 = vmatprep.subr.bf16.mxu0 %v5398
      %6018 = vmatpush1.bf16.msra.mxu0 %v5397
      %6019 = vmatprep.subr.bf16.mxu0 %v5402
      %6020 = vmatpush1.bf16.msra.mxu0 %v5401
      %6021 = vmatprep.subr.bf16.mxu0 %v5406
      %6022 = vmatpush1.bf16.msra.mxu0 %v5405
      %6023 = vmatprep.subr.bf16.mxu0 %v5410
      %6024 = vmatpush1.bf16.msra.mxu0 %v5409
      %6025 = vmatprep.subr.bf16.mxu0 %v5414
      %6026 = vmatpush1.bf16.msra.mxu0 %v5413
      %6027 = vmatprep.subr.bf16.mxu0 %v5418
      %6028 = vmatpush1.bf16.msra.mxu0 %v5417
      %6029 = vmatprep.mubr.bf16.mxu0 %v5870
      %6030 = vmatmul.mubr.bf16.gmra.mrb[0].mxu0 %v5869
      %v6031 = vpop.f32.mrb[0].mxu0
      %v6032 = vadd.f32 %v5520, %v6031
      %v6033 = vpop.f32.mrb[0].mxu0
      %v6034 = vadd.f32 %v5520, %v6033
      %v6035 = vpop.f32.mrb[0].mxu0
      %v6036 = vadd.f32 %v5525, %v6035
      %v6037 = vpop.f32.mrb[0].mxu0
      %v6038 = vadd.f32 %v5525, %v6037
      %6039 = vmatprep.mubr.bf16.mxu0 %v5874
      %6040 = vmatmul.mubr.bf16.gmra.mrb[0].mxu0 %v5873
      %v6041 = vpop.f32.mrb[0].mxu0
      %v6042 = vadd.f32 %v5530, %v6041
      %v6043 = vpop.f32.mrb[0].mxu0
      %v6044 = vadd.f32 %v5530, %v6043
      %v6045 = vpop.f32.mrb[0].mxu0
      %v6046 = vadd.f32 %v5535, %v6045
      %v6047 = vpop.f32.mrb[0].mxu0
      %v6048 = vadd.f32 %v5535, %v6047
      %6049 = vmatprep.mubr.bf16.mxu0 %v5878
      %6050 = vmatmul.mubr.bf16.gmra.mrb[0].mxu0 %v5877
      %v6051 = vpop.f32.mrb[0].mxu0
      %v6052 = vadd.f32 %v5540, %v6051
      %v6053 = vpop.f32.mrb[0].mxu0
      %v6054 = vadd.f32 %v5540, %v6053
      %v6055 = vpop.f32.mrb[0].mxu0
      %v6056 = vadd.f32 %v5545, %v6055
      %v6057 = vpop.f32.mrb[0].mxu0
      %v6058 = vadd.f32 %v5545, %v6057
      %6059 = vmatprep.mubr.bf16.mxu0 %v5882
      %6060 = vmatmul.mubr.bf16.gmra.mrb[0].mxu0 %v5881
      %v6061 = vpop.f32.mrb[0].mxu0
      %v6062 = vadd.f32 %v5550, %v6061
      %v6063 = vpop.f32.mrb[0].mxu0
      %v6064 = vadd.f32 %v5550, %v6063
      %v6065 = vpop.f32.mrb[0].mxu0
      %v6066 = vadd.f32 %v5555, %v6065
      %v6067 = vpop.f32.mrb[0].mxu0
      %v6068 = vadd.f32 %v5555, %v6067
      %6069 = vmatprep.mubr.bf16.mxu0 %v5886
      %6070 = vmatmul.mubr.bf16.gmra.mrb[0].mxu0 %v5885
      %v6071 = vpop.f32.mrb[0].mxu0
      %v6072 = vadd.f32 %v5560, %v6071
      %v6073 = vpop.f32.mrb[0].mxu0
      %v6074 = vadd.f32 %v5560, %v6073
      %v6075 = vpop.f32.mrb[0].mxu0
      %v6076 = vadd.f32 %v5565, %v6075
      %v6077 = vpop.f32.mrb[0].mxu0
      %v6078 = vadd.f32 %v5565, %v6077
      %6079 = vmatprep.mubr.bf16.mxu0 %v5890
      %6080 = vmatmul.mubr.bf16.gmra.mrb[0].mxu0 %v5889
      %v6081 = vpop.f32.mrb[0].mxu0
      %v6082 = vadd.f32 %v5570, %v6081
      %v6083 = vpop.f32.mrb[0].mxu0
      %v6084 = vadd.f32 %v5570, %v6083
      %v6085 = vpop.f32.mrb[0].mxu0
      %v6086 = vadd.f32 %v5575, %v6085
      %v6087 = vpop.f32.mrb[0].mxu0
      %v6088 = vadd.f32 %v5575, %v6087
      %6089 = vmatprep.mubr.bf16.mxu0 %v5894
      %6090 = vmatmul.mubr.bf16.gmra.mrb[0].mxu0 %v5893
      %v6091 = vpop.f32.mrb[0].mxu0
      %v6092 = vadd.f32 %v5580, %v6091
      %v6093 = vpop.f32.mrb[0].mxu0
      %v6094 = vadd.f32 %v5580, %v6093
      %v6095 = vpop.f32.mrb[0].mxu0
      %v6096 = vadd.f32 %v5585, %v6095
      %v6097 = vpop.f32.mrb[0].mxu0
      %v6098 = vadd.f32 %v5585, %v6097
      %6099 = vmatprep.mubr.bf16.mxu0 %v5898
      %6100 = vmatmul.mubr.bf16.gmra.mrb[0].mxu0 %v5897
      %v6101 = vpop.f32.mrb[0].mxu0
      %v6102 = vadd.f32 %v5590, %v6101
      %v6103 = vpop.f32.mrb[0].mxu0
      %v6104 = vadd.f32 %v5590, %v6103
      %v6105 = vpop.f32.mrb[0].mxu0
      %v6106 = vadd.f32 %v5595, %v6105
      %v6107 = vpop.f32.mrb[0].mxu0
      %v6108 = vadd.f32 %v5595, %v6107
      %6109 = vmatprep.mubr.bf16.mxu0 %v5902
      %6110 = vmatmul.mubr.bf16.gmra.mrb[0].mxu0 %v5901
      %v6111 = vpop.f32.mrb[0].mxu0
      %v6112 = vadd.f32 %v5600, %v6111
      %v6113 = vpop.f32.mrb[0].mxu0
      %v6114 = vadd.f32 %v5600, %v6113
      %v6115 = vpop.f32.mrb[0].mxu0
      %v6116 = vadd.f32 %v5605, %v6115
      %v6117 = vpop.f32.mrb[0].mxu0
      %v6118 = vadd.f32 %v5605, %v6117
      %6119 = vmatprep.mubr.bf16.mxu0 %v5906
      %6120 = vmatmul.mubr.bf16.gmra.mrb[0].mxu0 %v5905
      %v6121 = vpop.f32.mrb[0].mxu0
      %v6122 = vadd.f32 %v5610, %v6121
      %v6123 = vpop.f32.mrb[0].mxu0
      %v6124 = vadd.f32 %v5610, %v6123
      %v6125 = vpop.f32.mrb[0].mxu0
      %v6126 = vadd.f32 %v5615, %v6125
      %v6127 = vpop.f32.mrb[0].mxu0
      %v6128 = vadd.f32 %v5615, %v6127
      %6129 = vmatprep.mubr.bf16.mxu0 %v5910
      %6130 = vmatmul.mubr.bf16.gmra.mrb[0].mxu0 %v5909
      %v6131 = vpop.f32.mrb[0].mxu0
      %v6132 = vadd.f32 %v5620, %v6131
      %v6133 = vpop.f32.mrb[0].mxu0
      %v6134 = vadd.f32 %v5620, %v6133
      %v6135 = vpop.f32.mrb[0].mxu0
      %v6136 = vadd.f32 %v5625, %v6135
      %v6137 = vpop.f32.mrb[0].mxu0
      %v6138 = vadd.f32 %v5625, %v6137
      %6139 = vmatprep.mubr.bf16.mxu0 %v5914
      %6140 = vmatmul.mubr.bf16.gmra.mrb[0].mxu0 %v5913
      %v6141 = vpop.f32.mrb[0].mxu0
      %v6142 = vadd.f32 %v5630, %v6141
      %v6143 = vpop.f32.mrb[0].mxu0
      %v6144 = vadd.f32 %v5630, %v6143
      %v6145 = vpop.f32.mrb[0].mxu0
      %v6146 = vadd.f32 %v5635, %v6145
      %v6147 = vpop.f32.mrb[0].mxu0
      %v6148 = vadd.f32 %v5635, %v6147
      %6149 = vmatprep.mubr.bf16.mxu0 %v5918
      %6150 = vmatmul.mubr.bf16.gmra.mrb[0].mxu0 %v5917
      %v6151 = vpop.f32.mrb[0].mxu0
      %v6152 = vadd.f32 %v5640, %v6151
      %v6153 = vpop.f32.mrb[0].mxu0
      %v6154 = vadd.f32 %v5640, %v6153
      %v6155 = vpop.f32.mrb[0].mxu0
      %v6156 = vadd.f32 %v5645, %v6155
      %v6157 = vpop.f32.mrb[0].mxu0
      %v6158 = vadd.f32 %v5645, %v6157
      %6159 = vmatprep.mubr.bf16.mxu0 %v5922
      %6160 = vmatmul.mubr.bf16.gmra.mrb[0].mxu0 %v5921
      %v6161 = vpop.f32.mrb[0].mxu0
      %v6162 = vadd.f32 %v5650, %v6161
      %v6163 = vpop.f32.mrb[0].mxu0
      %v6164 = vadd.f32 %v5650, %v6163
      %v6165 = vpop.f32.mrb[0].mxu0
      %v6166 = vadd.f32 %v5655, %v6165
      %v6167 = vpop.f32.mrb[0].mxu0
      %v6168 = vadd.f32 %v5655, %v6167
      %6169 = vmatprep.mubr.bf16.mxu0 %v5926
      %6170 = vmatmul.mubr.bf16.gmra.mrb[0].mxu0 %v5925
      %v6171 = vpop.f32.mrb[0].mxu0
      %v6172 = vadd.f32 %v5660, %v6171
      %v6173 = vpop.f32.mrb[0].mxu0
      %v6174 = vadd.f32 %v5660, %v6173
      %v6175 = vpop.f32.mrb[0].mxu0
      %v6176 = vadd.f32 %v5665, %v6175
      %v6177 = vpop.f32.mrb[0].mxu0
      %v6178 = vadd.f32 %v5665, %v6177
      %6179 = vmatprep.mubr.bf16.mxu0 %v5930
      %6180 = vmatmul.mubr.bf16.gmra.mrb[0].mxu0 %v5929
      %v6181 = vpop.f32.mrb[0].mxu0
      %v6182 = vadd.f32 %v5670, %v6181
      %v6183 = vpop.f32.mrb[0].mxu0
      %v6184 = vadd.f32 %v5670, %v6183
      %v6185 = vpop.f32.mrb[0].mxu0
      %v6186 = vadd.f32 %v5675, %v6185
      %v6187 = vpop.f32.mrb[0].mxu0
      %v6188 = vadd.f32 %v5675, %v6187
      %6189 = vdwg.mxu0
      %6190 = vmatprep.subr.bf16.mxu0 %v5422
      %6191 = vmatpush1.bf16.msra.mxu0 %v5421
      %6192 = vmatprep.subr.bf16.mxu0 %v5426
      %6193 = vmatpush1.bf16.msra.mxu0 %v5425
      %6194 = vmatprep.subr.bf16.mxu0 %v5430
      %6195 = vmatpush1.bf16.msra.mxu0 %v5429
      %6196 = vmatprep.subr.bf16.mxu0 %v5434
      %6197 = vmatpush1.bf16.msra.mxu0 %v5433
      %6198 = vmatprep.subr.bf16.mxu0 %v5438
      %6199 = vmatpush1.bf16.msra.mxu0 %v5437
      %6200 = vmatprep.subr.bf16.mxu0 %v5442
      %6201 = vmatpush1.bf16.msra.mxu0 %v5441
      %6202 = vmatprep.subr.bf16.mxu0 %v5446
      %6203 = vmatpush1.bf16.msra.mxu0 %v5445
      %6204 = vmatprep.subr.bf16.mxu0 %v5450
      %6205 = vmatpush1.bf16.msra.mxu0 %v5449
      %6206 = vmatprep.subr.bf16.mxu0 %v5454
      %6207 = vmatpush1.bf16.msra.mxu0 %v5453
      %6208 = vmatprep.subr.bf16.mxu0 %v5458
      %6209 = vmatpush1.bf16.msra.mxu0 %v5457
      %6210 = vmatprep.subr.bf16.mxu0 %v5462
      %6211 = vmatpush1.bf16.msra.mxu0 %v5461
      %6212 = vmatprep.subr.bf16.mxu0 %v5466
      %6213 = vmatpush1.bf16.msra.mxu0 %v5465
      %6214 = vmatprep.subr.bf16.mxu0 %v5470
      %6215 = vmatpush1.bf16.msra.mxu0 %v5469
      %6216 = vmatprep.subr.bf16.mxu0 %v5474
      %6217 = vmatpush1.bf16.msra.mxu0 %v5473
      %6218 = vmatprep.subr.bf16.mxu0 %v5478
      %6219 = vmatpush1.bf16.msra.mxu0 %v5477
      %6220 = vmatprep.subr.bf16.mxu0 %v5482
      %6221 = vmatpush1.bf16.msra.mxu0 %v5481
      %6222 = vmatprep.mubr.bf16.mxu0 %v5872
      %6223 = vmatmul.mubr.bf16.gmra.mrb[0].mxu0 %v5871
      %v6224 = vpop.f32.mrb[0].mxu0
      %v6225 = vadd.f32 %v6032, %v6224
      %v6226 = vpop.f32.mrb[0].mxu0
      %v6227 = vadd.f32 %v6034, %v6226
      %v6228 = vpop.f32.mrb[0].mxu0
      %v6229 = vadd.f32 %v6036, %v6228
      %v6230 = vpop.f32.mrb[0].mxu0
      %v6231 = vadd.f32 %v6038, %v6230
      %6232 = vmatprep.mubr.bf16.mxu0 %v5876
      %6233 = vmatmul.mubr.bf16.gmra.mrb[0].mxu0 %v5875
      %v6234 = vpop.f32.mrb[0].mxu0
      %v6235 = vadd.f32 %v6042, %v6234
      %v6236 = vpop.f32.mrb[0].mxu0
      %v6237 = vadd.f32 %v6044, %v6236
      %v6238 = vpop.f32.mrb[0].mxu0
      %v6239 = vadd.f32 %v6046, %v6238
      %v6240 = vpop.f32.mrb[0].mxu0
      %v6241 = vadd.f32 %v6048, %v6240
      %6242 = vmatprep.mubr.bf16.mxu0 %v5880
      %6243 = vmatmul.mubr.bf16.gmra.mrb[0].mxu0 %v5879
      %v6244 = vpop.f32.mrb[0].mxu0
      %v6245 = vadd.f32 %v6052, %v6244
      %v6246 = vpop.f32.mrb[0].mxu0
      %v6247 = vadd.f32 %v6054, %v6246
      %v6248 = vpop.f32.mrb[0].mxu0
      %v6249 = vadd.f32 %v6056, %v6248
      %v6250 = vpop.f32.mrb[0].mxu0
      %v6251 = vadd.f32 %v6058, %v6250
      %6252 = vmatprep.mubr.bf16.mxu0 %v5884
      %6253 = vmatmul.mubr.bf16.gmra.mrb[0].mxu0 %v5883
      %v6254 = vpop.f32.mrb[0].mxu0
      %v6255 = vadd.f32 %v6062, %v6254
      %v6256 = vpop.f32.mrb[0].mxu0
      %v6257 = vadd.f32 %v6064, %v6256
      %v6258 = vpop.f32.mrb[0].mxu0
      %v6259 = vadd.f32 %v6066, %v6258
      %v6260 = vpop.f32.mrb[0].mxu0
      %v6261 = vadd.f32 %v6068, %v6260
      %6262 = vmatprep.mubr.bf16.mxu0 %v5888
      %6263 = vmatmul.mubr.bf16.gmra.mrb[0].mxu0 %v5887
      %v6264 = vpop.f32.mrb[0].mxu0
      %v6265 = vadd.f32 %v6072, %v6264
      %v6266 = vpop.f32.mrb[0].mxu0
      %v6267 = vadd.f32 %v6074, %v6266
      %v6268 = vpop.f32.mrb[0].mxu0
      %v6269 = vadd.f32 %v6076, %v6268
      %v6270 = vpop.f32.mrb[0].mxu0
      %v6271 = vadd.f32 %v6078, %v6270
      %6272 = vmatprep.mubr.bf16.mxu0 %v5892
      %6273 = vmatmul.mubr.bf16.gmra.mrb[0].mxu0 %v5891
      %v6274 = vpop.f32.mrb[0].mxu0
      %v6275 = vadd.f32 %v6082, %v6274
      %v6276 = vpop.f32.mrb[0].mxu0
      %v6277 = vadd.f32 %v6084, %v6276
      %v6278 = vpop.f32.mrb[0].mxu0
      %v6279 = vadd.f32 %v6086, %v6278
      %v6280 = vpop.f32.mrb[0].mxu0
      %v6281 = vadd.f32 %v6088, %v6280
      %6282 = vmatprep.mubr.bf16.mxu0 %v5896
      %6283 = vmatmul.mubr.bf16.gmra.mrb[0].mxu0 %v5895
      %v6284 = vpop.f32.mrb[0].mxu0
      %v6285 = vadd.f32 %v6092, %v6284
      %v6286 = vpop.f32.mrb[0].mxu0
      %v6287 = vadd.f32 %v6094, %v6286
      %v6288 = vpop.f32.mrb[0].mxu0
      %v6289 = vadd.f32 %v6096, %v6288
      %v6290 = vpop.f32.mrb[0].mxu0
      %v6291 = vadd.f32 %v6098, %v6290
      %6292 = vmatprep.mubr.bf16.mxu0 %v5900
      %6293 = vmatmul.mubr.bf16.gmra.mrb[0].mxu0 %v5899
      %v6294 = vpop.f32.mrb[0].mxu0
      %v6295 = vadd.f32 %v6102, %v6294
      %v6296 = vpop.f32.mrb[0].mxu0
      %v6297 = vadd.f32 %v6104, %v6296
      %v6298 = vpop.f32.mrb[0].mxu0
      %v6299 = vadd.f32 %v6106, %v6298
      %v6300 = vpop.f32.mrb[0].mxu0
      %v6301 = vadd.f32 %v6108, %v6300
      %6302 = vmatprep.mubr.bf16.mxu0 %v5904
      %6303 = vmatmul.mubr.bf16.gmra.mrb[0].mxu0 %v5903
      %v6304 = vpop.f32.mrb[0].mxu0
      %v6305 = vadd.f32 %v6112, %v6304
      %v6306 = vpop.f32.mrb[0].mxu0
      %v6307 = vadd.f32 %v6114, %v6306
      %v6308 = vpop.f32.mrb[0].mxu0
      %v6309 = vadd.f32 %v6116, %v6308
      %v6310 = vpop.f32.mrb[0].mxu0
      %v6311 = vadd.f32 %v6118, %v6310
      %6312 = vmatprep.mubr.bf16.mxu0 %v5908
      %6313 = vmatmul.mubr.bf16.gmra.mrb[0].mxu0 %v5907
      %v6314 = vpop.f32.mrb[0].mxu0
      %v6315 = vadd.f32 %v6122, %v6314
      %v6316 = vpop.f32.mrb[0].mxu0
      %v6317 = vadd.f32 %v6124, %v6316
      %v6318 = vpop.f32.mrb[0].mxu0
      %v6319 = vadd.f32 %v6126, %v6318
      %v6320 = vpop.f32.mrb[0].mxu0
      %v6321 = vadd.f32 %v6128, %v6320
      %6322 = vmatprep.mubr.bf16.mxu0 %v5912
      %6323 = vmatmul.mubr.bf16.gmra.mrb[0].mxu0 %v5911
      %v6324 = vpop.f32.mrb[0].mxu0
      %v6325 = vadd.f32 %v6132, %v6324
      %v6326 = vpop.f32.mrb[0].mxu0
      %v6327 = vadd.f32 %v6134, %v6326
      %v6328 = vpop.f32.mrb[0].mxu0
      %v6329 = vadd.f32 %v6136, %v6328
      %v6330 = vpop.f32.mrb[0].mxu0
      %v6331 = vadd.f32 %v6138, %v6330
      %6332 = vmatprep.mubr.bf16.mxu0 %v5916
      %6333 = vmatmul.mubr.bf16.gmra.mrb[0].mxu0 %v5915
      %v6334 = vpop.f32.mrb[0].mxu0
      %v6335 = vadd.f32 %v6142, %v6334
      %v6336 = vpop.f32.mrb[0].mxu0
      %v6337 = vadd.f32 %v6144, %v6336
      %v6338 = vpop.f32.mrb[0].mxu0
      %v6339 = vadd.f32 %v6146, %v6338
      %v6340 = vpop.f32.mrb[0].mxu0
      %v6341 = vadd.f32 %v6148, %v6340
      %6342 = vmatprep.mubr.bf16.mxu0 %v5920
      %6343 = vmatmul.mubr.bf16.gmra.mrb[0].mxu0 %v5919
      %v6344 = vpop.f32.mrb[0].mxu0
      %v6345 = vadd.f32 %v6152, %v6344
      %v6346 = vpop.f32.mrb[0].mxu0
      %v6347 = vadd.f32 %v6154, %v6346
      %v6348 = vpop.f32.mrb[0].mxu0
      %v6349 = vadd.f32 %v6156, %v6348
      %v6350 = vpop.f32.mrb[0].mxu0
      %v6351 = vadd.f32 %v6158, %v6350
      %6352 = vmatprep.mubr.bf16.mxu0 %v5924
      %6353 = vmatmul.mubr.bf16.gmra.mrb[0].mxu0 %v5923
      %v6354 = vpop.f32.mrb[0].mxu0
      %v6355 = vadd.f32 %v6162, %v6354
      %v6356 = vpop.f32.mrb[0].mxu0
      %v6357 = vadd.f32 %v6164, %v6356
      %v6358 = vpop.f32.mrb[0].mxu0
      %v6359 = vadd.f32 %v6166, %v6358
      %v6360 = vpop.f32.mrb[0].mxu0
      %v6361 = vadd.f32 %v6168, %v6360
      %6362 = vmatprep.mubr.bf16.mxu0 %v5928
      %6363 = vmatmul.mubr.bf16.gmra.mrb[0].mxu0 %v5927
      %v6364 = vpop.f32.mrb[0].mxu0
      %v6365 = vadd.f32 %v6172, %v6364
      %v6366 = vpop.f32.mrb[0].mxu0
      %v6367 = vadd.f32 %v6174, %v6366
      %v6368 = vpop.f32.mrb[0].mxu0
      %v6369 = vadd.f32 %v6176, %v6368
      %v6370 = vpop.f32.mrb[0].mxu0
      %v6371 = vadd.f32 %v6178, %v6370
      %6372 = vmatprep.mubr.bf16.mxu0 %v5932
      %6373 = vmatmul.mubr.bf16.gmra.mrb[0].mxu0 %v5931
      %v6374 = vpop.f32.mrb[0].mxu0
      %v6375 = vadd.f32 %v6182, %v6374
      %v6376 = vpop.f32.mrb[0].mxu0
      %v6377 = vadd.f32 %v6184, %v6376
      %v6378 = vpop.f32.mrb[0].mxu0
      %v6379 = vadd.f32 %v6186, %v6378
      %v6380 = vpop.f32.mrb[0].mxu0
      %v6381 = vadd.f32 %v6188, %v6380
      %6382 = vdwg.mxu0
      %6383 = vmatprep.subr.bf16.mxu0 %v5360
      %6384 = vmatpush1.bf16.msra.mxu0 %v5359
      %6385 = vmatprep.subr.bf16.mxu0 %v5364
      %6386 = vmatpush1.bf16.msra.mxu0 %v5363
      %6387 = vmatprep.subr.bf16.mxu0 %v5368
      %6388 = vmatpush1.bf16.msra.mxu0 %v5367
      %6389 = vmatprep.subr.bf16.mxu0 %v5372
      %6390 = vmatpush1.bf16.msra.mxu0 %v5371
      %6391 = vmatprep.subr.bf16.mxu0 %v5376
      %6392 = vmatpush1.bf16.msra.mxu0 %v5375
      %6393 = vmatprep.subr.bf16.mxu0 %v5380
      %6394 = vmatpush1.bf16.msra.mxu0 %v5379
      %6395 = vmatprep.subr.bf16.mxu0 %v5384
      %6396 = vmatpush1.bf16.msra.mxu0 %v5383
      %6397 = vmatprep.subr.bf16.mxu0 %v5388
      %6398 = vmatpush1.bf16.msra.mxu0 %v5387
      %6399 = vmatprep.subr.bf16.mxu0 %v5392
      %6400 = vmatpush1.bf16.msra.mxu0 %v5391
      %6401 = vmatprep.subr.bf16.mxu0 %v5396
      %6402 = vmatpush1.bf16.msra.mxu0 %v5395
      %6403 = vmatprep.subr.bf16.mxu0 %v5400
      %6404 = vmatpush1.bf16.msra.mxu0 %v5399
      %6405 = vmatprep.subr.bf16.mxu0 %v5404
      %6406 = vmatpush1.bf16.msra.mxu0 %v5403
      %6407 = vmatprep.subr.bf16.mxu0 %v5408
      %6408 = vmatpush1.bf16.msra.mxu0 %v5407
      %6409 = vmatprep.subr.bf16.mxu0 %v5412
      %6410 = vmatpush1.bf16.msra.mxu0 %v5411
      %6411 = vmatprep.subr.bf16.mxu0 %v5416
      %6412 = vmatpush1.bf16.msra.mxu0 %v5415
      %6413 = vmatprep.subr.bf16.mxu0 %v5420
      %6414 = vmatpush1.bf16.msra.mxu0 %v5419
      %6415 = vmatprep.mubr.bf16.mxu0 %v5870
      %6416 = vmatmul.mubr.bf16.gmra.mrb[0].mxu0 %v5869
      %v6417 = vpop.f32.mrb[0].mxu0
      %v6418 = vadd.f32 %v5520, %v6417
      %v6419 = vpop.f32.mrb[0].mxu0
      %v6420 = vadd.f32 %v5520, %v6419
      %v6421 = vpop.f32.mrb[0].mxu0
      %v6422 = vadd.f32 %v5525, %v6421
      %v6423 = vpop.f32.mrb[0].mxu0
      %v6424 = vadd.f32 %v5525, %v6423
      %6425 = vmatprep.mubr.bf16.mxu0 %v5874
      %6426 = vmatmul.mubr.bf16.gmra.mrb[0].mxu0 %v5873
      %v6427 = vpop.f32.mrb[0].mxu0
      %v6428 = vadd.f32 %v5530, %v6427
      %v6429 = vpop.f32.mrb[0].mxu0
      %v6430 = vadd.f32 %v5530, %v6429
      %v6431 = vpop.f32.mrb[0].mxu0
      %v6432 = vadd.f32 %v5535, %v6431
      %v6433 = vpop.f32.mrb[0].mxu0
      %v6434 = vadd.f32 %v5535, %v6433
      %6435 = vmatprep.mubr.bf16.mxu0 %v5878
      %6436 = vmatmul.mubr.bf16.gmra.mrb[0].mxu0 %v5877
      %v6437 = vpop.f32.mrb[0].mxu0
      %v6438 = vadd.f32 %v5540, %v6437
      %v6439 = vpop.f32.mrb[0].mxu0
      %v6440 = vadd.f32 %v5540, %v6439
      %v6441 = vpop.f32.mrb[0].mxu0
      %v6442 = vadd.f32 %v5545, %v6441
      %v6443 = vpop.f32.mrb[0].mxu0
      %v6444 = vadd.f32 %v5545, %v6443
      %6445 = vmatprep.mubr.bf16.mxu0 %v5882
      %6446 = vmatmul.mubr.bf16.gmra.mrb[0].mxu0 %v5881
      %v6447 = vpop.f32.mrb[0].mxu0
      %v6448 = vadd.f32 %v5550, %v6447
      %v6449 = vpop.f32.mrb[0].mxu0
      %v6450 = vadd.f32 %v5550, %v6449
      %v6451 = vpop.f32.mrb[0].mxu0
      %v6452 = vadd.f32 %v5555, %v6451
      %v6453 = vpop.f32.mrb[0].mxu0
      %v6454 = vadd.f32 %v5555, %v6453
      %6455 = vmatprep.mubr.bf16.mxu0 %v5886
      %6456 = vmatmul.mubr.bf16.gmra.mrb[0].mxu0 %v5885
      %v6457 = vpop.f32.mrb[0].mxu0
      %v6458 = vadd.f32 %v5560, %v6457
      %v6459 = vpop.f32.mrb[0].mxu0
      %v6460 = vadd.f32 %v5560, %v6459
      %v6461 = vpop.f32.mrb[0].mxu0
      %v6462 = vadd.f32 %v5565, %v6461
      %v6463 = vpop.f32.mrb[0].mxu0
      %v6464 = vadd.f32 %v5565, %v6463
      %6465 = vmatprep.mubr.bf16.mxu0 %v5890
      %6466 = vmatmul.mubr.bf16.gmra.mrb[0].mxu0 %v5889
      %v6467 = vpop.f32.mrb[0].mxu0
      %v6468 = vadd.f32 %v5570, %v6467
      %v6469 = vpop.f32.mrb[0].mxu0
      %v6470 = vadd.f32 %v5570, %v6469
      %v6471 = vpop.f32.mrb[0].mxu0
      %v6472 = vadd.f32 %v5575, %v6471
      %v6473 = vpop.f32.mrb[0].mxu0
      %v6474 = vadd.f32 %v5575, %v6473
      %6475 = vmatprep.mubr.bf16.mxu0 %v5894
      %6476 = vmatmul.mubr.bf16.gmra.mrb[0].mxu0 %v5893
      %v6477 = vpop.f32.mrb[0].mxu0
      %v6478 = vadd.f32 %v5580, %v6477
      %v6479 = vpop.f32.mrb[0].mxu0
      %v6480 = vadd.f32 %v5580, %v6479
      %v6481 = vpop.f32.mrb[0].mxu0
      %v6482 = vadd.f32 %v5585, %v6481
      %v6483 = vpop.f32.mrb[0].mxu0
      %v6484 = vadd.f32 %v5585, %v6483
      %6485 = vmatprep.mubr.bf16.mxu0 %v5898
      %6486 = vmatmul.mubr.bf16.gmra.mrb[0].mxu0 %v5897
      %v6487 = vpop.f32.mrb[0].mxu0
      %v6488 = vadd.f32 %v5590, %v6487
      %v6489 = vpop.f32.mrb[0].mxu0
      %v6490 = vadd.f32 %v5590, %v6489
      %v6491 = vpop.f32.mrb[0].mxu0
      %v6492 = vadd.f32 %v5595, %v6491
      %v6493 = vpop.f32.mrb[0].mxu0
      %v6494 = vadd.f32 %v5595, %v6493
      %6495 = vmatprep.mubr.bf16.mxu0 %v5902
      %6496 = vmatmul.mubr.bf16.gmra.mrb[0].mxu0 %v5901
      %v6497 = vpop.f32.mrb[0].mxu0
      %v6498 = vadd.f32 %v5600, %v6497
      %v6499 = vpop.f32.mrb[0].mxu0
      %v6500 = vadd.f32 %v5600, %v6499
      %v6501 = vpop.f32.mrb[0].mxu0
      %v6502 = vadd.f32 %v5605, %v6501
      %v6503 = vpop.f32.mrb[0].mxu0
      %v6504 = vadd.f32 %v5605, %v6503
      %6505 = vmatprep.mubr.bf16.mxu0 %v5906
      %6506 = vmatmul.mubr.bf16.gmra.mrb[0].mxu0 %v5905
      %v6507 = vpop.f32.mrb[0].mxu0
      %v6508 = vadd.f32 %v5610, %v6507
      %v6509 = vpop.f32.mrb[0].mxu0
      %v6510 = vadd.f32 %v5610, %v6509
      %v6511 = vpop.f32.mrb[0].mxu0
      %v6512 = vadd.f32 %v5615, %v6511
      %v6513 = vpop.f32.mrb[0].mxu0
      %v6514 = vadd.f32 %v5615, %v6513
      %6515 = vmatprep.mubr.bf16.mxu0 %v5910
      %6516 = vmatmul.mubr.bf16.gmra.mrb[0].mxu0 %v5909
      %v6517 = vpop.f32.mrb[0].mxu0
      %v6518 = vadd.f32 %v5620, %v6517
      %v6519 = vpop.f32.mrb[0].mxu0
      %v6520 = vadd.f32 %v5620, %v6519
      %v6521 = vpop.f32.mrb[0].mxu0
      %v6522 = vadd.f32 %v5625, %v6521
      %v6523 = vpop.f32.mrb[0].mxu0
      %v6524 = vadd.f32 %v5625, %v6523
      %6525 = vmatprep.mubr.bf16.mxu0 %v5914
      %6526 = vmatmul.mubr.bf16.gmra.mrb[0].mxu0 %v5913
      %v6527 = vpop.f32.mrb[0].mxu0
      %v6528 = vadd.f32 %v5630, %v6527
      %v6529 = vpop.f32.mrb[0].mxu0
      %v6530 = vadd.f32 %v5630, %v6529
      %v6531 = vpop.f32.mrb[0].mxu0
      %v6532 = vadd.f32 %v5635, %v6531
      %v6533 = vpop.f32.mrb[0].mxu0
      %v6534 = vadd.f32 %v5635, %v6533
      %6535 = vmatprep.mubr.bf16.mxu0 %v5918
      %6536 = vmatmul.mubr.bf16.gmra.mrb[0].mxu0 %v5917
      %v6537 = vpop.f32.mrb[0].mxu0
      %v6538 = vadd.f32 %v5640, %v6537
      %v6539 = vpop.f32.mrb[0].mxu0
      %v6540 = vadd.f32 %v5640, %v6539
      %v6541 = vpop.f32.mrb[0].mxu0
      %v6542 = vadd.f32 %v5645, %v6541
      %v6543 = vpop.f32.mrb[0].mxu0
      %v6544 = vadd.f32 %v5645, %v6543
      %6545 = vmatprep.mubr.bf16.mxu0 %v5922
      %6546 = vmatmul.mubr.bf16.gmra.mrb[0].mxu0 %v5921
      %v6547 = vpop.f32.mrb[0].mxu0
      %v6548 = vadd.f32 %v5650, %v6547
      %v6549 = vpop.f32.mrb[0].mxu0
      %v6550 = vadd.f32 %v5650, %v6549
      %v6551 = vpop.f32.mrb[0].mxu0
      %v6552 = vadd.f32 %v5655, %v6551
      %v6553 = vpop.f32.mrb[0].mxu0
      %v6554 = vadd.f32 %v5655, %v6553
      %6555 = vmatprep.mubr.bf16.mxu0 %v5926
      %6556 = vmatmul.mubr.bf16.gmra.mrb[0].mxu0 %v5925
      %v6557 = vpop.f32.mrb[0].mxu0
      %v6558 = vadd.f32 %v5660, %v6557
      %v6559 = vpop.f32.mrb[0].mxu0
      %v6560 = vadd.f32 %v5660, %v6559
      %v6561 = vpop.f32.mrb[0].mxu0
      %v6562 = vadd.f32 %v5665, %v6561
      %v6563 = vpop.f32.mrb[0].mxu0
      %v6564 = vadd.f32 %v5665, %v6563
      %6565 = vmatprep.mubr.bf16.mxu0 %v5930
      %6566 = vmatmul.mubr.bf16.gmra.mrb[0].mxu0 %v5929
      %v6567 = vpop.f32.mrb[0].mxu0
      %v6568 = vadd.f32 %v5670, %v6567
      %v6569 = vpop.f32.mrb[0].mxu0
      %v6570 = vadd.f32 %v5670, %v6569
      %v6571 = vpop.f32.mrb[0].mxu0
      %v6572 = vadd.f32 %v5675, %v6571
      %v6573 = vpop.f32.mrb[0].mxu0
      %v6574 = vadd.f32 %v5675, %v6573
      %6575 = vdwg.mxu0
      %6576 = vmatprep.subr.bf16.mxu0 %v5424
      %6577 = vmatpush1.bf16.msra.mxu0 %v5423
      %6578 = vmatprep.subr.bf16.mxu0 %v5428
      %6579 = vmatpush1.bf16.msra.mxu0 %v5427
      %6580 = vmatprep.subr.bf16.mxu0 %v5432
      %6581 = vmatpush1.bf16.msra.mxu0 %v5431
      %6582 = vmatprep.subr.bf16.mxu0 %v5436
      %6583 = vmatpush1.bf16.msra.mxu0 %v5435
      %6584 = vmatprep.subr.bf16.mxu0 %v5440
      %6585 = vmatpush1.bf16.msra.mxu0 %v5439
      %6586 = vmatprep.subr.bf16.mxu0 %v5444
      %6587 = vmatpush1.bf16.msra.mxu0 %v5443
      %6588 = vmatprep.subr.bf16.mxu0 %v5448
      %6589 = vmatpush1.bf16.msra.mxu0 %v5447
      %6590 = vmatprep.subr.bf16.mxu0 %v5452
      %6591 = vmatpush1.bf16.msra.mxu0 %v5451
      %6592 = vmatprep.subr.bf16.mxu0 %v5456
      %6593 = vmatpush1.bf16.msra.mxu0 %v5455
      %6594 = vmatprep.subr.bf16.mxu0 %v5460
      %6595 = vmatpush1.bf16.msra.mxu0 %v5459
      %6596 = vmatprep.subr.bf16.mxu0 %v5464
      %6597 = vmatpush1.bf16.msra.mxu0 %v5463
      %6598 = vmatprep.subr.bf16.mxu0 %v5468
      %6599 = vmatpush1.bf16.msra.mxu0 %v5467
      %6600 = vmatprep.subr.bf16.mxu0 %v5472
      %6601 = vmatpush1.bf16.msra.mxu0 %v5471
      %6602 = vmatprep.subr.bf16.mxu0 %v5476
      %6603 = vmatpush1.bf16.msra.mxu0 %v5475
      %6604 = vmatprep.subr.bf16.mxu0 %v5480
      %6605 = vmatpush1.bf16.msra.mxu0 %v5479
      %6606 = vmatprep.subr.bf16.mxu0 %v5484
      %6607 = vmatpush1.bf16.msra.mxu0 %v5483
      %6608 = vmatprep.mubr.bf16.mxu0 %v5872
      %6609 = vmatmul.mubr.bf16.gmra.mrb[0].mxu0 %v5871
      %v6610 = vpop.f32.mrb[0].mxu0
      %v6611 = vadd.f32 %v6418, %v6610
      %v6612 = vpop.f32.mrb[0].mxu0
      %v6613 = vadd.f32 %v6420, %v6612
      %v6614 = vpop.f32.mrb[0].mxu0
      %v6615 = vadd.f32 %v6422, %v6614
      %v6616 = vpop.f32.mrb[0].mxu0
      %v6617 = vadd.f32 %v6424, %v6616
      %6618 = vmatprep.mubr.bf16.mxu0 %v5876
      %6619 = vmatmul.mubr.bf16.gmra.mrb[0].mxu0 %v5875
      %v6620 = vpop.f32.mrb[0].mxu0
      %v6621 = vadd.f32 %v6428, %v6620
      %v6622 = vpop.f32.mrb[0].mxu0
      %v6623 = vadd.f32 %v6430, %v6622
      %v6624 = vpop.f32.mrb[0].mxu0
      %v6625 = vadd.f32 %v6432, %v6624
      %v6626 = vpop.f32.mrb[0].mxu0
      %v6627 = vadd.f32 %v6434, %v6626
      %6628 = vmatprep.mubr.bf16.mxu0 %v5880
      %6629 = vmatmul.mubr.bf16.gmra.mrb[0].mxu0 %v5879
      %v6630 = vpop.f32.mrb[0].mxu0
      %v6631 = vadd.f32 %v6438, %v6630
      %v6632 = vpop.f32.mrb[0].mxu0
      %v6633 = vadd.f32 %v6440, %v6632
      %v6634 = vpop.f32.mrb[0].mxu0
      %v6635 = vadd.f32 %v6442, %v6634
      %v6636 = vpop.f32.mrb[0].mxu0
      %v6637 = vadd.f32 %v6444, %v6636
      %6638 = vmatprep.mubr.bf16.mxu0 %v5884
      %6639 = vmatmul.mubr.bf16.gmra.mrb[0].mxu0 %v5883
      %v6640 = vpop.f32.mrb[0].mxu0
      %v6641 = vadd.f32 %v6448, %v6640
      %v6642 = vpop.f32.mrb[0].mxu0
      %v6643 = vadd.f32 %v6450, %v6642
      %v6644 = vpop.f32.mrb[0].mxu0
      %v6645 = vadd.f32 %v6452, %v6644
      %v6646 = vpop.f32.mrb[0].mxu0
      %v6647 = vadd.f32 %v6454, %v6646
      %6648 = vmatprep.mubr.bf16.mxu0 %v5888
      %6649 = vmatmul.mubr.bf16.gmra.mrb[0].mxu0 %v5887
      %v6650 = vpop.f32.mrb[0].mxu0
      %v6651 = vadd.f32 %v6458, %v6650
      %v6652 = vpop.f32.mrb[0].mxu0
      %v6653 = vadd.f32 %v6460, %v6652
      %v6654 = vpop.f32.mrb[0].mxu0
      %v6655 = vadd.f32 %v6462, %v6654
      %v6656 = vpop.f32.mrb[0].mxu0
      %v6657 = vadd.f32 %v6464, %v6656
      %6658 = vmatprep.mubr.bf16.mxu0 %v5892
      %6659 = vmatmul.mubr.bf16.gmra.mrb[0].mxu0 %v5891
      %v6660 = vpop.f32.mrb[0].mxu0
      %v6661 = vadd.f32 %v6468, %v6660
      %v6662 = vpop.f32.mrb[0].mxu0
      %v6663 = vadd.f32 %v6470, %v6662
      %v6664 = vpop.f32.mrb[0].mxu0
      %v6665 = vadd.f32 %v6472, %v6664
      %v6666 = vpop.f32.mrb[0].mxu0
      %v6667 = vadd.f32 %v6474, %v6666
      %6668 = vmatprep.mubr.bf16.mxu0 %v5896
      %6669 = vmatmul.mubr.bf16.gmra.mrb[0].mxu0 %v5895
      %v6670 = vpop.f32.mrb[0].mxu0
      %v6671 = vadd.f32 %v6478, %v6670
      %v6672 = vpop.f32.mrb[0].mxu0
      %v6673 = vadd.f32 %v6480, %v6672
      %v6674 = vpop.f32.mrb[0].mxu0
      %v6675 = vadd.f32 %v6482, %v6674
      %v6676 = vpop.f32.mrb[0].mxu0
      %v6677 = vadd.f32 %v6484, %v6676
      %6678 = vmatprep.mubr.bf16.mxu0 %v5900
      %6679 = vmatmul.mubr.bf16.gmra.mrb[0].mxu0 %v5899
      %v6680 = vpop.f32.mrb[0].mxu0
      %v6681 = vadd.f32 %v6488, %v6680
      %v6682 = vpop.f32.mrb[0].mxu0
      %v6683 = vadd.f32 %v6490, %v6682
      %v6684 = vpop.f32.mrb[0].mxu0
      %v6685 = vadd.f32 %v6492, %v6684
      %v6686 = vpop.f32.mrb[0].mxu0
      %v6687 = vadd.f32 %v6494, %v6686
      %6688 = vmatprep.mubr.bf16.mxu0 %v5904
      %6689 = vmatmul.mubr.bf16.gmra.mrb[0].mxu0 %v5903
      %v6690 = vpop.f32.mrb[0].mxu0
      %v6691 = vadd.f32 %v6498, %v6690
      %v6692 = vpop.f32.mrb[0].mxu0
      %v6693 = vadd.f32 %v6500, %v6692
      %v6694 = vpop.f32.mrb[0].mxu0
      %v6695 = vadd.f32 %v6502, %v6694
      %v6696 = vpop.f32.mrb[0].mxu0
      %v6697 = vadd.f32 %v6504, %v6696
      %6698 = vmatprep.mubr.bf16.mxu0 %v5908
      %6699 = vmatmul.mubr.bf16.gmra.mrb[0].mxu0 %v5907
      %v6700 = vpop.f32.mrb[0].mxu0
      %v6701 = vadd.f32 %v6508, %v6700
      %v6702 = vpop.f32.mrb[0].mxu0
      %v6703 = vadd.f32 %v6510, %v6702
      %v6704 = vpop.f32.mrb[0].mxu0
      %v6705 = vadd.f32 %v6512, %v6704
      %v6706 = vpop.f32.mrb[0].mxu0
      %v6707 = vadd.f32 %v6514, %v6706
      %6708 = vmatprep.mubr.bf16.mxu0 %v5912
      %6709 = vmatmul.mubr.bf16.gmra.mrb[0].mxu0 %v5911
      %v6710 = vpop.f32.mrb[0].mxu0
      %v6711 = vadd.f32 %v6518, %v6710
      %v6712 = vpop.f32.mrb[0].mxu0
      %v6713 = vadd.f32 %v6520, %v6712
      %v6714 = vpop.f32.mrb[0].mxu0
      %v6715 = vadd.f32 %v6522, %v6714
      %v6716 = vpop.f32.mrb[0].mxu0
      %v6717 = vadd.f32 %v6524, %v6716
      %6718 = vmatprep.mubr.bf16.mxu0 %v5916
      %6719 = vmatmul.mubr.bf16.gmra.mrb[0].mxu0 %v5915
      %v6720 = vpop.f32.mrb[0].mxu0
      %v6721 = vadd.f32 %v6528, %v6720
      %v6722 = vpop.f32.mrb[0].mxu0
      %v6723 = vadd.f32 %v6530, %v6722
      %v6724 = vpop.f32.mrb[0].mxu0
      %v6725 = vadd.f32 %v6532, %v6724
      %v6726 = vpop.f32.mrb[0].mxu0
      %v6727 = vadd.f32 %v6534, %v6726
      %6728 = vmatprep.mubr.bf16.mxu0 %v5920
      %6729 = vmatmul.mubr.bf16.gmra.mrb[0].mxu0 %v5919
      %v6730 = vpop.f32.mrb[0].mxu0
      %v6731 = vadd.f32 %v6538, %v6730
      %v6732 = vpop.f32.mrb[0].mxu0
      %v6733 = vadd.f32 %v6540, %v6732
      %v6734 = vpop.f32.mrb[0].mxu0
      %v6735 = vadd.f32 %v6542, %v6734
      %v6736 = vpop.f32.mrb[0].mxu0
      %v6737 = vadd.f32 %v6544, %v6736
      %6738 = vmatprep.mubr.bf16.mxu0 %v5924
      %6739 = vmatmul.mubr.bf16.gmra.mrb[0].mxu0 %v5923
      %v6740 = vpop.f32.mrb[0].mxu0
      %v6741 = vadd.f32 %v6548, %v6740
      %v6742 = vpop.f32.mrb[0].mxu0
      %v6743 = vadd.f32 %v6550, %v6742
      %v6744 = vpop.f32.mrb[0].mxu0
      %v6745 = vadd.f32 %v6552, %v6744
      %v6746 = vpop.f32.mrb[0].mxu0
      %v6747 = vadd.f32 %v6554, %v6746
      %6748 = vmatprep.mubr.bf16.mxu0 %v5928
      %6749 = vmatmul.mubr.bf16.gmra.mrb[0].mxu0 %v5927
      %v6750 = vpop.f32.mrb[0].mxu0
      %v6751 = vadd.f32 %v6558, %v6750
      %v6752 = vpop.f32.mrb[0].mxu0
      %v6753 = vadd.f32 %v6560, %v6752
      %v6754 = vpop.f32.mrb[0].mxu0
      %v6755 = vadd.f32 %v6562, %v6754
      %v6756 = vpop.f32.mrb[0].mxu0
      %v6757 = vadd.f32 %v6564, %v6756
      %6758 = vmatprep.mubr.bf16.mxu0 %v5932
      %6759 = vmatmul.mubr.bf16.gmra.mrb[0].mxu0 %v5931
      %v6760 = vpop.f32.mrb[0].mxu0
      %v6761 = vadd.f32 %v6568, %v6760
      %v6762 = vpop.f32.mrb[0].mxu0
      %v6763 = vadd.f32 %v6570, %v6762
      %v6764 = vpop.f32.mrb[0].mxu0
      %v6765 = vadd.f32 %v6572, %v6764
      %v6766 = vpop.f32.mrb[0].mxu0
      %v6767 = vadd.f32 %v6574, %v6766
      %6768 = vdwg.mxu0
      %v6769 = vmax.f32 %v6225, 0.0
      %v6770 = vmax.f32 %v6227, 0.0
      %v6771 = vmax.f32 %v6611, 0.0
      %v6772 = vmax.f32 %v6613, 0.0
      %v6773 = vmax.f32 %v6229, 0.0
      %v6774 = vmax.f32 %v6231, 0.0
      %v6775 = vmax.f32 %v6615, 0.0
      %v6776 = vmax.f32 %v6617, 0.0
      %v6777 = vmax.f32 %v6235, 0.0
      %v6778 = vmax.f32 %v6237, 0.0
      %v6779 = vmax.f32 %v6621, 0.0
      %v6780 = vmax.f32 %v6623, 0.0
      %v6781 = vmax.f32 %v6239, 0.0
      %v6782 = vmax.f32 %v6241, 0.0
      %v6783 = vmax.f32 %v6625, 0.0
      %v6784 = vmax.f32 %v6627, 0.0
      %v6785 = vmax.f32 %v6245, 0.0
      %v6786 = vmax.f32 %v6247, 0.0
      %v6787 = vmax.f32 %v6631, 0.0
      %v6788 = vmax.f32 %v6633, 0.0
      %v6789 = vmax.f32 %v6249, 0.0
      %v6790 = vmax.f32 %v6251, 0.0
      %v6791 = vmax.f32 %v6635, 0.0
      %v6792 = vmax.f32 %v6637, 0.0
      %v6793 = vmax.f32 %v6255, 0.0
      %v6794 = vmax.f32 %v6257, 0.0
      %v6795 = vmax.f32 %v6641, 0.0
      %v6796 = vmax.f32 %v6643, 0.0
      %v6797 = vmax.f32 %v6259, 0.0
      %v6798 = vmax.f32 %v6261, 0.0
      %v6799 = vmax.f32 %v6645, 0.0
      %v6800 = vmax.f32 %v6647, 0.0
      %v6801 = vmax.f32 %v6265, 0.0
      %v6802 = vmax.f32 %v6267, 0.0
      %v6803 = vmax.f32 %v6651, 0.0
      %v6804 = vmax.f32 %v6653, 0.0
      %v6805 = vmax.f32 %v6269, 0.0
      %v6806 = vmax.f32 %v6271, 0.0
      %v6807 = vmax.f32 %v6655, 0.0
      %v6808 = vmax.f32 %v6657, 0.0
      %v6809 = vmax.f32 %v6275, 0.0
      %v6810 = vmax.f32 %v6277, 0.0
      %v6811 = vmax.f32 %v6661, 0.0
      %v6812 = vmax.f32 %v6663, 0.0
      %v6813 = vmax.f32 %v6279, 0.0
      %v6814 = vmax.f32 %v6281, 0.0
      %v6815 = vmax.f32 %v6665, 0.0
      %v6816 = vmax.f32 %v6667, 0.0
      %v6817 = vmax.f32 %v6285, 0.0
      %v6818 = vmax.f32 %v6287, 0.0
      %v6819 = vmax.f32 %v6671, 0.0
      %v6820 = vmax.f32 %v6673, 0.0
      %v6821 = vmax.f32 %v6289, 0.0
      %v6822 = vmax.f32 %v6291, 0.0
      %v6823 = vmax.f32 %v6675, 0.0
      %v6824 = vmax.f32 %v6677, 0.0
      %v6825 = vmax.f32 %v6295, 0.0
      %v6826 = vmax.f32 %v6297, 0.0
      %v6827 = vmax.f32 %v6681, 0.0
      %v6828 = vmax.f32 %v6683, 0.0
      %v6829 = vmax.f32 %v6299, 0.0
      %v6830 = vmax.f32 %v6301, 0.0
      %v6831 = vmax.f32 %v6685, 0.0
      %v6832 = vmax.f32 %v6687, 0.0
      %v6833 = vmax.f32 %v6305, 0.0
      %v6834 = vmax.f32 %v6307, 0.0
      %v6835 = vmax.f32 %v6691, 0.0
      %v6836 = vmax.f32 %v6693, 0.0
      %v6837 = vmax.f32 %v6309, 0.0
      %v6838 = vmax.f32 %v6311, 0.0
      %v6839 = vmax.f32 %v6695, 0.0
      %v6840 = vmax.f32 %v6697, 0.0
      %v6841 = vmax.f32 %v6315, 0.0
      %v6842 = vmax.f32 %v6317, 0.0
      %v6843 = vmax.f32 %v6701, 0.0
      %v6844 = vmax.f32 %v6703, 0.0
      %v6845 = vmax.f32 %v6319, 0.0
      %v6846 = vmax.f32 %v6321, 0.0
      %v6847 = vmax.f32 %v6705, 0.0
      %v6848 = vmax.f32 %v6707, 0.0
      %v6849 = vmax.f32 %v6325, 0.0
      %v6850 = vmax.f32 %v6327, 0.0
      %v6851 = vmax.f32 %v6711, 0.0
      %v6852 = vmax.f32 %v6713, 0.0
      %v6853 = vmax.f32 %v6329, 0.0
      %v6854 = vmax.f32 %v6331, 0.0
      %v6855 = vmax.f32 %v6715, 0.0
      %v6856 = vmax.f32 %v6717, 0.0
      %v6857 = vmax.f32 %v6335, 0.0
      %v6858 = vmax.f32 %v6337, 0.0
      %v6859 = vmax.f32 %v6721, 0.0
      %v6860 = vmax.f32 %v6723, 0.0
      %v6861 = vmax.f32 %v6339, 0.0
      %v6862 = vmax.f32 %v6341, 0.0
      %v6863 = vmax.f32 %v6725, 0.0
      %v6864 = vmax.f32 %v6727, 0.0
      %v6865 = vmax.f32 %v6345, 0.0
      %v6866 = vmax.f32 %v6347, 0.0
      %v6867 = vmax.f32 %v6731, 0.0
      %v6868 = vmax.f32 %v6733, 0.0
      %v6869 = vmax.f32 %v6349, 0.0
      %v6870 = vmax.f32 %v6351, 0.0
      %v6871 = vmax.f32 %v6735, 0.0
      %v6872 = vmax.f32 %v6737, 0.0
      %v6873 = vmax.f32 %v6355, 0.0
      %v6874 = vmax.f32 %v6357, 0.0
      %v6875 = vmax.f32 %v6741, 0.0
      %v6876 = vmax.f32 %v6743, 0.0
      %v6877 = vmax.f32 %v6359, 0.0
      %v6878 = vmax.f32 %v6361, 0.0
      %v6879 = vmax.f32 %v6745, 0.0
      %v6880 = vmax.f32 %v6747, 0.0
      %v6881 = vmax.f32 %v6365, 0.0
      %v6882 = vmax.f32 %v6367, 0.0
      %v6883 = vmax.f32 %v6751, 0.0
      %v6884 = vmax.f32 %v6753, 0.0
      %v6885 = vmax.f32 %v6369, 0.0
      %v6886 = vmax.f32 %v6371, 0.0
      %v6887 = vmax.f32 %v6755, 0.0
      %v6888 = vmax.f32 %v6757, 0.0
      %v6889 = vmax.f32 %v6375, 0.0
      %v6890 = vmax.f32 %v6377, 0.0
      %v6891 = vmax.f32 %v6761, 0.0
      %v6892 = vmax.f32 %v6763, 0.0
      %v6893 = vmax.f32 %v6379, 0.0
      %v6894 = vmax.f32 %v6381, 0.0
      %v6895 = vmax.f32 %v6765, 0.0
      %v6896 = vmax.f32 %v6767, 0.0
      %v6897 = vld [vmem:[%s7] sm:$0x3]
      %v6898 = vpack.c.bf16 %v6773, %v6769
      %v6899 = vpack.c.bf16 %v6774, %v6770
      %v6900 = vpack.c.bf16 %v6775, %v6771
      %v6901 = vpack.c.bf16 %v6776, %v6772
      %v6902 = vpack.c.bf16 %v6781, %v6777
      %v6903 = vpack.c.bf16 %v6782, %v6778
      %v6904 = vpack.c.bf16 %v6783, %v6779
      %v6905 = vpack.c.bf16 %v6784, %v6780
      %v6906 = vpack.c.bf16 %v6789, %v6785
      %v6907 = vpack.c.bf16 %v6790, %v6786
      %v6908 = vpack.c.bf16 %v6791, %v6787
      %v6909 = vpack.c.bf16 %v6792, %v6788
      %v6910 = vpack.c.bf16 %v6797, %v6793
      %v6911 = vpack.c.bf16 %v6798, %v6794
      %v6912 = vpack.c.bf16 %v6799, %v6795
      %v6913 = vpack.c.bf16 %v6800, %v6796
      %v6914 = vpack.c.bf16 %v6805, %v6801
      %v6915 = vpack.c.bf16 %v6806, %v6802
      %v6916 = vpack.c.bf16 %v6807, %v6803
      %v6917 = vpack.c.bf16 %v6808, %v6804
      %v6918 = vpack.c.bf16 %v6813, %v6809
      %v6919 = vpack.c.bf16 %v6814, %v6810
      %v6920 = vpack.c.bf16 %v6815, %v6811
      %v6921 = vpack.c.bf16 %v6816, %v6812
      %v6922 = vpack.c.bf16 %v6821, %v6817
      %v6923 = vpack.c.bf16 %v6822, %v6818
      %v6924 = vpack.c.bf16 %v6823, %v6819
      %v6925 = vpack.c.bf16 %v6824, %v6820
      %v6926 = vpack.c.bf16 %v6829, %v6825
      %v6927 = vpack.c.bf16 %v6830, %v6826
      %v6928 = vpack.c.bf16 %v6831, %v6827
      %v6929 = vpack.c.bf16 %v6832, %v6828
      %v6930 = vpack.c.bf16 %v6837, %v6833
      %v6931 = vpack.c.bf16 %v6838, %v6834
      %v6932 = vpack.c.bf16 %v6839, %v6835
      %v6933 = vpack.c.bf16 %v6840, %v6836
      %v6934 = vpack.c.bf16 %v6845, %v6841
      %v6935 = vpack.c.bf16 %v6846, %v6842
      %v6936 = vpack.c.bf16 %v6847, %v6843
      %v6937 = vpack.c.bf16 %v6848, %v6844
      %v6938 = vpack.c.bf16 %v6853, %v6849
      %v6939 = vpack.c.bf16 %v6854, %v6850
      %v6940 = vpack.c.bf16 %v6855, %v6851
      %v6941 = vpack.c.bf16 %v6856, %v6852
      %v6942 = vpack.c.bf16 %v6861, %v6857
      %v6943 = vpack.c.bf16 %v6862, %v6858
      %v6944 = vpack.c.bf16 %v6863, %v6859
      %v6945 = vpack.c.bf16 %v6864, %v6860
      %v6946 = vpack.c.bf16 %v6869, %v6865
      %v6947 = vpack.c.bf16 %v6870, %v6866
      %v6948 = vpack.c.bf16 %v6871, %v6867
      %v6949 = vpack.c.bf16 %v6872, %v6868
      %v6950 = vpack.c.bf16 %v6877, %v6873
      %v6951 = vpack.c.bf16 %v6878, %v6874
      %v6952 = vpack.c.bf16 %v6879, %v6875
      %v6953 = vpack.c.bf16 %v6880, %v6876
      %v6954 = vpack.c.bf16 %v6885, %v6881
      %v6955 = vpack.c.bf16 %v6886, %v6882
      %v6956 = vpack.c.bf16 %v6887, %v6883
      %v6957 = vpack.c.bf16 %v6888, %v6884
      %v6958 = vpack.c.bf16 %v6893, %v6889
      %v6959 = vpack.c.bf16 %v6894, %v6890
      %v6960 = vpack.c.bf16 %v6895, %v6891
      %v6961 = vpack.c.bf16 %v6896, %v6892
      %v6962 = vld [vmem:[%s8] sm:$0x3]
      %6964 = vset.pattern.permute.xlu0 0
      %6965 = vperm.xlu0 %6964, %v6962
      %v6966 = vpop.permute.xlu0 %6965
      %v6970 = vunpack.c.l.s4 1966171168
      %v6971 = vunpack.c.0.s8 %v6970
      %v6972 = vlaneseq
      %v6973 = vshrl.u32 %v6972, 7
      %v6974 = vsub.s32 %v6971, %v6973
      %v6975 = vrot.slane %v6897, %v6974
      %v6976 = vcombine.high %v6975, %v6975
      %v6978 = vunpack.c.l.s4 1966171168
      %v6979 = vunpack.c.0.s8 %v6978
      %v6980 = vlaneseq
      %v6981 = vshrl.u32 %v6980, 7
      %v6982 = vsub.s32 %v6979, %v6981
      %v6983 = vrot.slane %v6975, %v6982
      %v6985 = vunpack.c.l.s4 1966171168
      %v6986 = vunpack.c.0.s8 %v6985
      %v6987 = vlaneseq
      %v6988 = vshrl.u32 %v6987, 7
      %v6989 = vsub.s32 %v6986, %v6988
      %v6990 = vrot.slane %v6976, %v6989
      %6993 = vmatprep.subr.bf16.mxu0 %v6899
      %6994 = vmatpush1.bf16.msra.mxu0 %v6898
      %6995 = vmatprep.subr.bf16.mxu0 %v6903
      %6996 = vmatpush1.bf16.msra.mxu0 %v6902
      %6997 = vmatprep.subr.bf16.mxu0 %v6907
      %6998 = vmatpush1.bf16.msra.mxu0 %v6906
      %6999 = vmatprep.subr.bf16.mxu0 %v6911
      %7000 = vmatpush1.bf16.msra.mxu0 %v6910
      %7001 = vmatprep.subr.bf16.mxu0 %v6915
      %7002 = vmatpush1.bf16.msra.mxu0 %v6914
      %7003 = vmatprep.subr.bf16.mxu0 %v6919
      %7004 = vmatpush1.bf16.msra.mxu0 %v6918
      %7005 = vmatprep.subr.bf16.mxu0 %v6923
      %7006 = vmatpush1.bf16.msra.mxu0 %v6922
      %7007 = vmatprep.subr.bf16.mxu0 %v6927
      %7008 = vmatpush1.bf16.msra.mxu0 %v6926
      %7009 = vmatprep.subr.bf16.mxu0 %v6931
      %7010 = vmatpush1.bf16.msra.mxu0 %v6930
      %7011 = vmatprep.subr.bf16.mxu0 %v6935
      %7012 = vmatpush1.bf16.msra.mxu0 %v6934
      %7013 = vmatprep.subr.bf16.mxu0 %v6939
      %7014 = vmatpush1.bf16.msra.mxu0 %v6938
      %7015 = vmatprep.subr.bf16.mxu0 %v6943
      %7016 = vmatpush1.bf16.msra.mxu0 %v6942
      %7017 = vmatprep.subr.bf16.mxu0 %v6947
      %7018 = vmatpush1.bf16.msra.mxu0 %v6946
      %7019 = vmatprep.subr.bf16.mxu0 %v6951
      %7020 = vmatpush1.bf16.msra.mxu0 %v6950
      %7021 = vmatprep.subr.bf16.mxu0 %v6955
      %7022 = vmatpush1.bf16.msra.mxu0 %v6954
      %7023 = vmatprep.subr.bf16.mxu0 %v6959
      %7024 = vmatpush1.bf16.msra.mxu0 %v6958
      %7025 = vmatprep.mubr.bf16.mxu0 %v6990
      %7026 = vmatmul.mubr.bf16.gmra.mrb[0].mxu0 %v6983
      %v7027 = vpop.f32.mrb[0].mxu0
      %v7028 = vadd.f32 %v6966, %v7027
      %v7029 = vpop.f32.mrb[0].mxu0
      %v7030 = vadd.f32 %v6966, %v7029
      %v7031 = vpop.f32.mrb[0].mxu0
      %v7032 = vpop.f32.mrb[0].mxu0
      %7033 = vdwg.mxu0
      %7034 = vmatprep.subr.bf16.mxu0 %v6901
      %7035 = vmatpush1.bf16.msra.mxu0 %v6900
      %7036 = vmatprep.subr.bf16.mxu0 %v6905
      %7037 = vmatpush1.bf16.msra.mxu0 %v6904
      %7038 = vmatprep.subr.bf16.mxu0 %v6909
      %7039 = vmatpush1.bf16.msra.mxu0 %v6908
      %7040 = vmatprep.subr.bf16.mxu0 %v6913
      %7041 = vmatpush1.bf16.msra.mxu0 %v6912
      %7042 = vmatprep.subr.bf16.mxu0 %v6917
      %7043 = vmatpush1.bf16.msra.mxu0 %v6916
      %7044 = vmatprep.subr.bf16.mxu0 %v6921
      %7045 = vmatpush1.bf16.msra.mxu0 %v6920
      %7046 = vmatprep.subr.bf16.mxu0 %v6925
      %7047 = vmatpush1.bf16.msra.mxu0 %v6924
      %7048 = vmatprep.subr.bf16.mxu0 %v6929
      %7049 = vmatpush1.bf16.msra.mxu0 %v6928
      %7050 = vmatprep.subr.bf16.mxu0 %v6933
      %7051 = vmatpush1.bf16.msra.mxu0 %v6932
      %7052 = vmatprep.subr.bf16.mxu0 %v6937
      %7053 = vmatpush1.bf16.msra.mxu0 %v6936
      %7054 = vmatprep.subr.bf16.mxu0 %v6941
      %7055 = vmatpush1.bf16.msra.mxu0 %v6940
      %7056 = vmatprep.subr.bf16.mxu0 %v6945
      %7057 = vmatpush1.bf16.msra.mxu0 %v6944
      %7058 = vmatprep.subr.bf16.mxu0 %v6949
      %7059 = vmatpush1.bf16.msra.mxu0 %v6948
      %7060 = vmatprep.subr.bf16.mxu0 %v6953
      %7061 = vmatpush1.bf16.msra.mxu0 %v6952
      %7062 = vmatprep.subr.bf16.mxu0 %v6957
      %7063 = vmatpush1.bf16.msra.mxu0 %v6956
      %7064 = vmatprep.subr.bf16.mxu0 %v6961
      %7065 = vmatpush1.bf16.msra.mxu0 %v6960
      %7066 = vmatprep.mubr.bf16.mxu0 %v6990
      %7067 = vmatmul.mubr.bf16.gmra.mrb[0].mxu0 %v6983
      %v7068 = vpop.f32.mrb[0].mxu0
      %v7069 = vadd.f32 %v6966, %v7068
      %v7070 = vpop.f32.mrb[0].mxu0
      %v7071 = vadd.f32 %v6966, %v7070
      %v7072 = vpop.f32.mrb[0].mxu0
      %v7073 = vpop.f32.mrb[0].mxu0
      %7074 = vdwg.mxu0
      %v7079 = vcombine.low %v7028, %v7030
      %v7080 = vcombine.low %v7069, %v7071
      %v7082 = vunpack.c.l.s4 1983009808
      %v7083 = vunpack.c.0.s8 %v7082
      %v7084 = vlaneseq
      %v7085 = vshrl.u32 %v7084, 7
      %v7086 = vsub.s32 %v7083, %v7085
      %v7087 = vrot.slane %v7079, %v7086
      %v7089 = vunpack.c.l.s4 1983009808
      %v7090 = vunpack.c.0.s8 %v7089
      %v7091 = vlaneseq
      %v7092 = vshrl.u32 %v7091, 7
      %v7093 = vsub.s32 %v7090, %v7092
      %v7094 = vrot.slane %v7080, %v7093
      %v7095 = vcombine.low %v7087, %v7094
      %7097 = vst [vmem:[%s411] sm:$0xff] %v7095
      %v7098 = vrot.slane %v7028, 7
      %v7099 = vrot.slane %v7030, 7
      %v7100 = vrot.slane %v7069, 7
      %v7101 = vrot.slane %v7071, 7
      %vm7106 = vcmp.gt.f32.partialorder %v7028, %v7098
      %vm7107 = vcmp.gt.f32.partialorder %v7030, %v7099
      %vm7108 = vcmp.gt.f32.partialorder %v7069, %v7100
      %vm7109 = vcmp.gt.f32.partialorder %v7071, %v7101
      %v7110 = vsel %vm7106, 1, 0
      %v7111 = vsel %vm7107, 1, 0
      %v7112 = vsel %vm7108, 1, 0
      %v7113 = vsel %vm7109, 1, 0
      %v7114 = vcvt.s32.f32 %v7110
      %v7115 = vcvt.s32.f32 %v7111
      %v7116 = vcvt.s32.f32 %v7112
      %v7117 = vcvt.s32.f32 %v7113
      %v7118 = vlaneseq
      %v7119 = vshrl.u32 %v7118, 7
      %v7120 = vsub.s32 1, %v7119
      %v7121 = vrot.slane %v7114, %v7120
      %v7122 = vlaneseq
      %v7123 = vshrl.u32 %v7122, 7
      %v7124 = vsub.s32 1, %v7123
      %v7125 = vrot.slane %v7115, %v7124
      %v7126 = vlaneseq
      %v7127 = vshrl.u32 %v7126, 7
      %v7128 = vsub.s32 1, %v7127
      %v7129 = vrot.slane %v7116, %v7128
      %v7130 = vlaneseq
      %v7131 = vshrl.u32 %v7130, 7
      %v7132 = vsub.s32 1, %v7131
      %v7133 = vrot.slane %v7117, %v7132
      %v7134 = vmul.f32 %v423, %v7121
      %v7135 = vmul.f32 %v424, %v7125
      %v7136 = vmul.f32 %v425, %v7129
      %v7137 = vmul.f32 %v426, %v7133
      %v7138 = vmul.f32 %v427, %v7121
      %v7139 = vmul.f32 %v428, %v7125
      %v7140 = vmul.f32 %v429, %v7129
      %v7141 = vmul.f32 %v430, %v7133
      %v7142 = vmul.f32 %v431, %v7121
      %v7143 = vmul.f32 %v432, %v7125
      %v7144 = vmul.f32 %v433, %v7129
      %v7145 = vmul.f32 %v434, %v7133
      %v7146 = vmul.f32 %v435, %v7121
      %v7147 = vmul.f32 %v436, %v7125
      %v7148 = vmul.f32 %v437, %v7129
      %v7149 = vmul.f32 %v438, %v7133
      %v7150 = vmul.f32 %v439, %v7121
      %v7151 = vmul.f32 %v440, %v7125
      %v7152 = vmul.f32 %v441, %v7129
      %v7153 = vmul.f32 %v442, %v7133
      %v7154 = vmul.f32 %v443, %v7121
      %v7155 = vmul.f32 %v444, %v7125
      %v7156 = vmul.f32 %v445, %v7129
      %v7157 = vmul.f32 %v446, %v7133
      %v7158 = vmul.f32 %v447, %v7121
      %v7159 = vmul.f32 %v448, %v7125
      %v7160 = vmul.f32 %v449, %v7129
      %v7161 = vmul.f32 %v450, %v7133
      %v7162 = vmul.f32 %v451, %v7121
      %v7163 = vmul.f32 %v452, %v7125
      %v7164 = vmul.f32 %v453, %v7129
      %v7165 = vmul.f32 %v454, %v7133
      %v7166 = vmul.f32 %v455, %v7121
      %v7167 = vmul.f32 %v456, %v7125
      %v7168 = vmul.f32 %v457, %v7129
      %v7169 = vmul.f32 %v458, %v7133
      %v7170 = vmul.f32 %v459, %v7121
      %v7171 = vmul.f32 %v460, %v7125
      %v7172 = vmul.f32 %v461, %v7129
      %v7173 = vmul.f32 %v462, %v7133
      %v7174 = vmul.f32 %v463, %v7121
      %v7175 = vmul.f32 %v464, %v7125
      %v7176 = vmul.f32 %v465, %v7129
      %v7177 = vmul.f32 %v466, %v7133
      %v7178 = vmul.f32 %v467, %v7121
      %v7179 = vmul.f32 %v468, %v7125
      %v7180 = vmul.f32 %v469, %v7129
      %v7181 = vmul.f32 %v470, %v7133
      %v7182 = vmul.f32 %v471, %v7121
      %v7183 = vmul.f32 %v472, %v7125
      %v7184 = vmul.f32 %v473, %v7129
      %v7185 = vmul.f32 %v474, %v7133
      %v7186 = vmul.f32 %v475, %v7121
      %v7187 = vmul.f32 %v476, %v7125
      %v7188 = vmul.f32 %v477, %v7129
      %v7189 = vmul.f32 %v478, %v7133
      %v7190 = vmul.f32 %v479, %v7121
      %v7191 = vmul.f32 %v480, %v7125
      %v7192 = vmul.f32 %v481, %v7129
      %v7193 = vmul.f32 %v482, %v7133
      %v7194 = vmul.f32 %v483, %v7121
      %v7195 = vmul.f32 %v484, %v7125
      %v7196 = vmul.f32 %v485, %v7129
      %v7197 = vmul.f32 %v486, %v7133
      %v7198 = vmul.f32 %v487, %v7121
      %v7199 = vmul.f32 %v488, %v7125
      %v7200 = vmul.f32 %v489, %v7129
      %v7201 = vmul.f32 %v490, %v7133
      %v7202 = vmul.f32 %v491, %v7121
      %v7203 = vmul.f32 %v492, %v7125
      %v7204 = vmul.f32 %v493, %v7129
      %v7205 = vmul.f32 %v494, %v7133
      %v7206 = vmul.f32 %v495, %v7121
      %v7207 = vmul.f32 %v496, %v7125
      %v7208 = vmul.f32 %v497, %v7129
      %v7209 = vmul.f32 %v498, %v7133
      %v7210 = vmul.f32 %v499, %v7121
      %v7211 = vmul.f32 %v500, %v7125
      %v7212 = vmul.f32 %v501, %v7129
      %v7213 = vmul.f32 %v502, %v7133
      %v7214 = vmul.f32 %v503, %v7121
      %v7215 = vmul.f32 %v504, %v7125
      %v7216 = vmul.f32 %v505, %v7129
      %v7217 = vmul.f32 %v506, %v7133
      %v7218 = vmul.f32 %v507, %v7121
      %v7219 = vmul.f32 %v508, %v7125
      %v7220 = vmul.f32 %v509, %v7129
      %v7221 = vmul.f32 %v510, %v7133
      %v7222 = vmul.f32 %v511, %v7121
      %v7223 = vmul.f32 %v512, %v7125
      %v7224 = vmul.f32 %v513, %v7129
      %v7225 = vmul.f32 %v514, %v7133
      %v7226 = vmul.f32 %v515, %v7121
      %v7227 = vmul.f32 %v516, %v7125
      %v7228 = vmul.f32 %v517, %v7129
      %v7229 = vmul.f32 %v518, %v7133
      %v7230 = vmul.f32 %v519, %v7121
      %v7231 = vmul.f32 %v520, %v7125
      %v7232 = vmul.f32 %v521, %v7129
      %v7233 = vmul.f32 %v522, %v7133
      %v7234 = vmul.f32 %v523, %v7121
      %v7235 = vmul.f32 %v524, %v7125
      %v7236 = vmul.f32 %v525, %v7129
      %v7237 = vmul.f32 %v526, %v7133
      %v7238 = vmul.f32 %v527, %v7121
      %v7239 = vmul.f32 %v528, %v7125
      %v7240 = vmul.f32 %v529, %v7129
      %v7241 = vmul.f32 %v530, %v7133
      %v7242 = vmul.f32 %v531, %v7121
      %v7243 = vmul.f32 %v532, %v7125
      %v7244 = vmul.f32 %v533, %v7129
      %v7245 = vmul.f32 %v534, %v7133
      %v7246 = vmul.f32 %v535, %v7121
      %v7247 = vmul.f32 %v536, %v7125
      %v7248 = vmul.f32 %v537, %v7129
      %v7249 = vmul.f32 %v538, %v7133
      %v7250 = vmul.f32 %v539, %v7121
      %v7251 = vmul.f32 %v540, %v7125
      %v7252 = vmul.f32 %v541, %v7129
      %v7253 = vmul.f32 %v542, %v7133
      %v7254 = vmul.f32 %v543, %v7121
      %v7255 = vmul.f32 %v544, %v7125
      %v7256 = vmul.f32 %v545, %v7129
      %v7257 = vmul.f32 %v546, %v7133
      %v7258 = vmul.f32 %v547, %v7121
      %v7259 = vmul.f32 %v548, %v7125
      %v7260 = vmul.f32 %v549, %v7129
      %v7261 = vmul.f32 %v550, %v7133
      %7262 = vst [vmem:[%s421] sm:$0xff] %v7134
      %7263 = vst [vmem:[%s421 + $0x8] sm:$0xff] %v7135
      %7264 = vst [vmem:[%s421 + $0x10] sm:$0xff] %v7136
      %7265 = vst [vmem:[%s421 + $0x18] sm:$0xff] %v7137
      %7266 = vst [vmem:[%s421 + $0x20] sm:$0xff] %v7138
      %7267 = vst [vmem:[%s421 + $0x28] sm:$0xff] %v7139
      %7268 = vst [vmem:[%s421 + $0x30] sm:$0xff] %v7140
      %7269 = vst [vmem:[%s421 + $0x38] sm:$0xff] %v7141
      %7270 = vst [vmem:[%s421 + $0x40] sm:$0xff] %v7142
      %7271 = vst [vmem:[%s421 + $0x48] sm:$0xff] %v7143
      %7272 = vst [vmem:[%s421 + $0x50] sm:$0xff] %v7144
      %7273 = vst [vmem:[%s421 + $0x58] sm:$0xff] %v7145
      %7274 = vst [vmem:[%s421 + $0x60] sm:$0xff] %v7146
      %7275 = vst [vmem:[%s421 + $0x68] sm:$0xff] %v7147
      %7276 = vst [vmem:[%s421 + $0x70] sm:$0xff] %v7148
      %7277 = vst [vmem:[%s421 + $0x78] sm:$0xff] %v7149
      %7278 = vst [vmem:[%s421 + $0x80] sm:$0xff] %v7150
      %7279 = vst [vmem:[%s421 + $0x88] sm:$0xff] %v7151
      %7280 = vst [vmem:[%s421 + $0x90] sm:$0xff] %v7152
      %7281 = vst [vmem:[%s421 + $0x98] sm:$0xff] %v7153
      %7282 = vst [vmem:[%s421 + $0xa0] sm:$0xff] %v7154
      %7283 = vst [vmem:[%s421 + $0xa8] sm:$0xff] %v7155
      %7284 = vst [vmem:[%s421 + $0xb0] sm:$0xff] %v7156
      %7285 = vst [vmem:[%s421 + $0xb8] sm:$0xff] %v7157
      %7286 = vst [vmem:[%s421 + $0xc0] sm:$0xff] %v7158
      %7287 = vst [vmem:[%s421 + $0xc8] sm:$0xff] %v7159
      %7288 = vst [vmem:[%s421 + $0xd0] sm:$0xff] %v7160
      %7289 = vst [vmem:[%s421 + $0xd8] sm:$0xff] %v7161
      %7290 = vst [vmem:[%s421 + $0xe0] sm:$0xff] %v7162
      %7291 = vst [vmem:[%s421 + $0xe8] sm:$0xff] %v7163
      %7292 = vst [vmem:[%s421 + $0xf0] sm:$0xff] %v7164
      %7293 = vst [vmem:[%s421 + $0xf8] sm:$0xff] %v7165
      %7294 = vst [vmem:[%s421 + $0x100] sm:$0xff] %v7166
      %7295 = vst [vmem:[%s421 + $0x108] sm:$0xff] %v7167
      %7296 = vst [vmem:[%s421 + $0x110] sm:$0xff] %v7168
      %7297 = vst [vmem:[%s421 + $0x118] sm:$0xff] %v7169
      %7298 = vst [vmem:[%s421 + $0x120] sm:$0xff] %v7170
      %7299 = vst [vmem:[%s421 + $0x128] sm:$0xff] %v7171
      %7300 = vst [vmem:[%s421 + $0x130] sm:$0xff] %v7172
      %7301 = vst [vmem:[%s421 + $0x138] sm:$0xff] %v7173
      %7302 = vst [vmem:[%s421 + $0x140] sm:$0xff] %v7174
      %7303 = vst [vmem:[%s421 + $0x148] sm:$0xff] %v7175
      %7304 = vst [vmem:[%s421 + $0x150] sm:$0xff] %v7176
      %7305 = vst [vmem:[%s421 + $0x158] sm:$0xff] %v7177
      %7306 = vst [vmem:[%s421 + $0x160] sm:$0xff] %v7178
      %7307 = vst [vmem:[%s421 + $0x168] sm:$0xff] %v7179
      %7308 = vst [vmem:[%s421 + $0x170] sm:$0xff] %v7180
      %7309 = vst [vmem:[%s421 + $0x178] sm:$0xff] %v7181
      %7310 = vst [vmem:[%s421 + $0x180] sm:$0xff] %v7182
      %7311 = vst [vmem:[%s421 + $0x188] sm:$0xff] %v7183
      %7312 = vst [vmem:[%s421 + $0x190] sm:$0xff] %v7184
      %7313 = vst [vmem:[%s421 + $0x198] sm:$0xff] %v7185
      %7314 = vst [vmem:[%s421 + $0x1a0] sm:$0xff] %v7186
      %7315 = vst [vmem:[%s421 + $0x1a8] sm:$0xff] %v7187
      %7316 = vst [vmem:[%s421 + $0x1b0] sm:$0xff] %v7188
      %7317 = vst [vmem:[%s421 + $0x1b8] sm:$0xff] %v7189
      %7318 = vst [vmem:[%s421 + $0x1c0] sm:$0xff] %v7190
      %7319 = vst [vmem:[%s421 + $0x1c8] sm:$0xff] %v7191
      %7320 = vst [vmem:[%s421 + $0x1d0] sm:$0xff] %v7192
      %7321 = vst [vmem:[%s421 + $0x1d8] sm:$0xff] %v7193
      %7322 = vst [vmem:[%s421 + $0x1e0] sm:$0xff] %v7194
      %7323 = vst [vmem:[%s421 + $0x1e8] sm:$0xff] %v7195
      %7324 = vst [vmem:[%s421 + $0x1f0] sm:$0xff] %v7196
      %7325 = vst [vmem:[%s421 + $0x1f8] sm:$0xff] %v7197
      %7326 = vst [vmem:[%s421 + $0x200] sm:$0xff] %v7198
      %7327 = vst [vmem:[%s421 + $0x208] sm:$0xff] %v7199
      %7328 = vst [vmem:[%s421 + $0x210] sm:$0xff] %v7200
      %7329 = vst [vmem:[%s421 + $0x218] sm:$0xff] %v7201
      %7330 = vst [vmem:[%s421 + $0x220] sm:$0xff] %v7202
      %7331 = vst [vmem:[%s421 + $0x228] sm:$0xff] %v7203
      %7332 = vst [vmem:[%s421 + $0x230] sm:$0xff] %v7204
      %7333 = vst [vmem:[%s421 + $0x238] sm:$0xff] %v7205
      %7334 = vst [vmem:[%s421 + $0x240] sm:$0xff] %v7206
      %7335 = vst [vmem:[%s421 + $0x248] sm:$0xff] %v7207
      %7336 = vst [vmem:[%s421 + $0x250] sm:$0xff] %v7208
      %7337 = vst [vmem:[%s421 + $0x258] sm:$0xff] %v7209
      %7338 = vst [vmem:[%s421 + $0x260] sm:$0xff] %v7210
      %7339 = vst [vmem:[%s421 + $0x268] sm:$0xff] %v7211
      %7340 = vst [vmem:[%s421 + $0x270] sm:$0xff] %v7212
      %7341 = vst [vmem:[%s421 + $0x278] sm:$0xff] %v7213
      %7342 = vst [vmem:[%s421 + $0x280] sm:$0xff] %v7214
      %7343 = vst [vmem:[%s421 + $0x288] sm:$0xff] %v7215
      %7344 = vst [vmem:[%s421 + $0x290] sm:$0xff] %v7216
      %7345 = vst [vmem:[%s421 + $0x298] sm:$0xff] %v7217
      %7346 = vst [vmem:[%s421 + $0x2a0] sm:$0xff] %v7218
      %7347 = vst [vmem:[%s421 + $0x2a8] sm:$0xff] %v7219
      %7348 = vst [vmem:[%s421 + $0x2b0] sm:$0xff] %v7220
      %7349 = vst [vmem:[%s421 + $0x2b8] sm:$0xff] %v7221
      %7350 = vst [vmem:[%s421 + $0x2c0] sm:$0xff] %v7222
      %7351 = vst [vmem:[%s421 + $0x2c8] sm:$0xff] %v7223
      %7352 = vst [vmem:[%s421 + $0x2d0] sm:$0xff] %v7224
      %7353 = vst [vmem:[%s421 + $0x2d8] sm:$0xff] %v7225
      %7354 = vst [vmem:[%s421 + $0x2e0] sm:$0xff] %v7226
      %7355 = vst [vmem:[%s421 + $0x2e8] sm:$0xff] %v7227
      %7356 = vst [vmem:[%s421 + $0x2f0] sm:$0xff] %v7228
      %7357 = vst [vmem:[%s421 + $0x2f8] sm:$0xff] %v7229
      %7358 = vst [vmem:[%s421 + $0x300] sm:$0xff] %v7230
      %7359 = vst [vmem:[%s421 + $0x308] sm:$0xff] %v7231
      %7360 = vst [vmem:[%s421 + $0x310] sm:$0xff] %v7232
      %7361 = vst [vmem:[%s421 + $0x318] sm:$0xff] %v7233
      %7362 = vst [vmem:[%s421 + $0x320] sm:$0xff] %v7234
      %7363 = vst [vmem:[%s421 + $0x328] sm:$0xff] %v7235
      %7364 = vst [vmem:[%s421 + $0x330] sm:$0xff] %v7236
      %7365 = vst [vmem:[%s421 + $0x338] sm:$0xff] %v7237
      %7366 = vst [vmem:[%s421 + $0x340] sm:$0xff] %v7238
      %7367 = vst [vmem:[%s421 + $0x348] sm:$0xff] %v7239
      %7368 = vst [vmem:[%s421 + $0x350] sm:$0xff] %v7240
      %7369 = vst [vmem:[%s421 + $0x358] sm:$0xff] %v7241
      %7370 = vst [vmem:[%s421 + $0x360] sm:$0xff] %v7242
      %7371 = vst [vmem:[%s421 + $0x368] sm:$0xff] %v7243
      %7372 = vst [vmem:[%s421 + $0x370] sm:$0xff] %v7244
      %7373 = vst [vmem:[%s421 + $0x378] sm:$0xff] %v7245
      %7374 = vst [vmem:[%s421 + $0x380] sm:$0xff] %v7246
      %7375 = vst [vmem:[%s421 + $0x388] sm:$0xff] %v7247
      %7376 = vst [vmem:[%s421 + $0x390] sm:$0xff] %v7248
      %7377 = vst [vmem:[%s421 + $0x398] sm:$0xff] %v7249
      %7378 = vst [vmem:[%s421 + $0x3a0] sm:$0xff] %v7250
      %7379 = vst [vmem:[%s421 + $0x3a8] sm:$0xff] %v7251
      %7380 = vst [vmem:[%s421 + $0x3b0] sm:$0xff] %v7252
      %7381 = vst [vmem:[%s421 + $0x3b8] sm:$0xff] %v7253
      %7382 = vst [vmem:[%s421 + $0x3c0] sm:$0xff] %v7254
      %7383 = vst [vmem:[%s421 + $0x3c8] sm:$0xff] %v7255
      %7384 = vst [vmem:[%s421 + $0x3d0] sm:$0xff] %v7256
      %7385 = vst [vmem:[%s421 + $0x3d8] sm:$0xff] %v7257
      %7386 = vst [vmem:[%s421 + $0x3e0] sm:$0xff] %v7258
      %7387 = vst [vmem:[%s421 + $0x3e8] sm:$0xff] %v7259
      %7388 = vst [vmem:[%s421 + $0x3f0] sm:$0xff] %v7260
      %7389 = vst [vmem:[%s421 + $0x3f8] sm:$0xff] %v7261
      %s7390 = smul.u32 4, %s27
      %p7391 = scmp.lt.s32.totalorder %s26, 3
      %s7392 = scalar_select %p7391, %s26, 3
      %p7393 = scmp.lt.s32.totalorder %s7390, 3
      %s7394 = scalar_select %p7393, %s7390, 3
      %s7395 = smul.addr %s7392, 4
      %s7396 = sadd.s32 %s7394, %s7395
      %s7397 = smul.addr %s7396, 2
      %s7398 = scalar_lea.vmem %s9, %s7397
      %s7399 = smul.u32 4, %s27
      %p7400 = scmp.lt.s32.totalorder %s26, 3
      %s7401 = scalar_select %p7400, %s26, 3
      %p7402 = scmp.lt.s32.totalorder %s7399, 3
      %s7403 = scalar_select %p7402, %s7399, 3
      %s7404 = smul.addr %s7401, 128
      %s7405 = sadd.s32 %s7403, %s7404
      %s7406 = smul.addr %s7405, 8
      %s7407 = scalar_lea.vmem %s10, %s7406
      // Predicated region
      $region57: #{_lambda_.1} parent=55 // pred_check
        %p7408 = pneg %p250
      $region58: #{_lambda_.1} parent=55 // pred_check_branch
        %7410 = sbr.rel (%p7408) target = $region60
      $region59: #{_lambda_.1} parent=55 // pred_region
        %s7411 = smul.u32 4, %s27
      $region60: #{_lambda_.1} parent=55 // pred_fallthru
        _
      // Predicated region
      $region61: #{_lambda_.1} parent=55 // pred_check
        %p7412 = pneg %p278
      $region62: #{_lambda_.1} parent=55 // pred_check_branch
        %7414 = sbr.rel (%p7412) target = $region64
      $region63: #{_lambda_.1} parent=55 // pred_region
        %s7415 = smul.u32 4, %s27
      $region64: #{_lambda_.1} parent=55 // pred_fallthru
        _
    $region56: #{_lambda_.1} parent=5 // pred_fallthru
      _
    %p7416 = scmp.le.s32.totalorder 2, %s17
    // Predicated region
    $region65: #{_lambda_.1} parent=5 // pred_check
      %p7417 = pneg %p7416
    $region66: #{_lambda_.1} parent=5 // pred_check_branch
      %7419 = sbr.rel (%p7417) target = $region68
    $region67: #{_lambda_.1} parent=5 // pred_region
      %s7420 = ssub.s32 %s17, 2
      // Predicated region
      $region69: #{_lambda_.1} parent=67 // pred_check
        %p7421 = pneg %p256
      $region70: #{_lambda_.1} parent=67 // pred_check_branch
        %7423 = sbr.rel (%p7421) target = $region72
      $region71: #{_lambda_.1} parent=67 // pred_region
        %s7424 = smul.u32 4, %s29
        %p7425 = scmp.lt.s32.totalorder %s28, 3
        %s7426 = scalar_select %p7425, %s28, 3
        %p7427 = scmp.lt.s32.totalorder %s7424, 3
        %s7428 = scalar_select %p7427, %s7424, 3
        %s7429 = smul.addr %s7426, 4
        %s7430 = sadd.s32 %s7428, %s7429
        %s7431 = smul.addr %s7430, 2
        %s7432 = scalar_lea.vmem %s9, %s7431
      $region72: #{_lambda_.1} parent=67 // pred_fallthru
        _
      // Predicated region
      $region73: #{_lambda_.1} parent=67 // pred_check
        %p7433 = pneg %p284
      $region74: #{_lambda_.1} parent=67 // pred_check_branch
        %7435 = sbr.rel (%p7433) target = $region76
      $region75: #{_lambda_.1} parent=67 // pred_region
        %s7436 = smul.u32 4, %s29
        %p7437 = scmp.lt.s32.totalorder %s28, 3
        %s7438 = scalar_select %p7437, %s28, 3
        %p7439 = scmp.lt.s32.totalorder %s7436, 3
        %s7440 = scalar_select %p7439, %s7436, 3
        %s7441 = smul.addr %s7438, 128
        %s7442 = sadd.s32 %s7440, %s7441
        %s7443 = smul.addr %s7442, 8
        %s7444 = scalar_lea.vmem %s10, %s7443
      $region76: #{_lambda_.1} parent=67 // pred_fallthru
        _
    $region68: #{_lambda_.1} parent=5 // pred_fallthru
      _
  $region6: #{_lambda_.1} parent=0 // loop_footer
    %s21 = sadd.s32 1, %s17
  $region7: #{_lambda_.1} parent=0 // loop_footer_branch
    %16 = sbr.rel target = $region3
  $region8: #{_lambda_.1} parent=0 // loop_exit
    _

</llo_original>
